<compile_context>
chip_gen: v7x
topology: tpu7x:2x2x1
jax: 0.10.0
libtpu: 0.0.40
codegen_flags: <defaults>
</compile_context>

<pallas_src>
import functools

import numpy as np
import jax
import jax.numpy as jnp
from jax.experimental import pallas as pl
from jax.experimental.pallas import tpu as pltpu

LANE = 128
GROUPS = 4          # the four 2x2 max-pool taps
BN = 8              # images processed per conv grid step (multiple of 8)

# (name, cin, cout, k, pad, h_in, l_in)   (feature maps are square: w_in == h_in)
_CONV_CFG = (
    ("conv1", 3, 8, 5, 0, 32, 96),    # 32x32x3  -> conv 28x28x8  -> pool 14x14x8
    ("conv2", 8, 16, 5, 1, 14, 128),  # 14x14x8  -> conv 12x12x16 -> pool 6x6x16
    ("conv3", 16, 32, 3, 1, 6, 128),  # 6x6x16   -> conv 6x6x32   -> pool 3x3x32
)


def _round_up(v, m):
    return (v + m - 1) // m * m


# ----------------------------- Pallas kernels -------------------------------


def _conv_pool_relu_kernel(x_ref, s_ref, r_ref, b_ref, o_ref, *, n_shift, rows):
    """Fused conv2d + bias + 2x2/2 maxpool + ReLU for a block of BN images.

    x_ref: (BN*h_in, l_in)        bf16  compact activation rows, cols = (x, ci)
    s_ref: (n_shift*rows, BN*h_in) bf16 0/1 row-selection (in-kernel H im2col,
                                        zero rows where the conv H-padding is)
    r_ref: (n_shift, l_in, 4*128) bf16  Toeplitz weights (W im2col + W padding +
                                        channel contraction + 4 pool taps)
    b_ref: (1, 128) f32                  bias row (zeros on padding columns)
    o_ref: (rows, 128) bf16              pooled/ReLU output, rows = (image, p)
    """
    # In-VMEM window extraction: stack the kh+1 shifted stride-2 row bands.
    a = jnp.dot(s_ref[...], x_ref[...], preferred_element_type=jnp.float32)

    acc = jnp.zeros((rows, GROUPS * LANE), jnp.float32)
    for t in range(n_shift):
        a_t = a[t * rows:(t + 1) * rows, :].astype(jnp.bfloat16)
        acc = acc + jnp.dot(a_t, r_ref[t], preferred_element_type=jnp.float32)

    # 2x2 max-pool = max over the four 128-wide column groups (all in VMEM).
    m = jnp.maximum(jnp.maximum(acc[:, 0 * LANE:1 * LANE], acc[:, 1 * LANE:2 * LANE]),
                    jnp.maximum(acc[:, 2 * LANE:3 * LANE], acc[:, 3 * LANE:4 * LANE]))
    o_ref[...] = jnp.maximum(m + b_ref[...], 0.0).astype(o_ref.dtype)


def _mlp_kernel(x_ref, w1_ref, b1_ref, w2_ref, b2_ref, w3_ref, b3_ref, o_ref):
    """Fused fc1(ReLU) -> dropout(identity) -> fc2(ReLU) -> dropout -> fc3."""
    h = jnp.dot(x_ref[...], w1_ref[...], preferred_element_type=jnp.float32)
    h = jnp.maximum(h + b1_ref[...], 0.0).astype(jnp.bfloat16)
    # TODO(synk): nn.Dropout(0.5) is eval-mode identity here (no training RNG mask).
    h = jnp.dot(h, w2_ref[...], preferred_element_type=jnp.float32)
    h = jnp.maximum(h + b2_ref[...], 0.0).astype(jnp.bfloat16)
    o = jnp.dot(h, w3_ref[...], preferred_element_type=jnp.float32) + b3_ref[...]
    o_ref[...] = o.astype(o_ref.dtype)


# ----------------------------- layer wrappers --------------------------------


def conv_pool_relu(x_rows, s, r, bias, *, n_shift, hp, h_in, l_in):
    """x_rows: (N_pad*h_in, l_in) bf16 -> (N_pad*hp, 128) bf16."""
    n_pad = x_rows.shape[0] // h_in
    rows = BN * hp
    kernel = functools.partial(_conv_pool_relu_kernel, n_shift=n_shift, rows=rows)
    return pl.pallas_call(
        kernel,
        out_shape=jax.ShapeDtypeStruct((n_pad * hp, LANE), jnp.bfloat16),
        grid=(n_pad // BN,),
        in_specs=[
            pl.BlockSpec((BN * h_in, l_in), lambda i: (i, 0)),
            pl.BlockSpec((n_shift * rows, BN * h_in), lambda i: (0, 0)),
            pl.BlockSpec((n_shift, l_in, GROUPS * LANE), lambda i: (0, 0, 0)),
            pl.BlockSpec((1, LANE), lambda i: (0, 0)),
        ],
        out_specs=pl.BlockSpec((rows, LANE), lambda i: (i, 0)),
        compiler_params=pltpu.CompilerParams(dimension_semantics=("parallel",)),
    )(x_rows, s, r, bias)


def fused_mlp(x, w1, b1, w2, b2, w3, b3):
    """x: (N, 384) bf16 (conv3 layout with embedded zero cols).  Returns (N, 128) f32."""
    n, k = x.shape
    h1, h2, op = w1.shape[1], w2.shape[1], w3.shape[1]
    tn = 512 if n >= 512 else n                      # bigger batch tiles (review)
    n_pad = _round_up(n, tn)
    if n_pad != n:
        x = jnp.pad(x, ((0, n_pad - n), (0, 0)))
    out = pl.pallas_call(
        _mlp_kernel,
        out_shape=jax.ShapeDtypeStruct((n_pad, op), jnp.float32),
        grid=(n_pad // tn,),
        in_specs=[
            pl.BlockSpec((tn, k), lambda i: (i, 0)),
            pl.BlockSpec((k, h1), lambda i: (0, 0)),
            pl.BlockSpec((1, h1), lambda i: (0, 0)),
            pl.BlockSpec((h1, h2), lambda i: (0, 0)),
            pl.BlockSpec((1, h2), lambda i: (0, 0)),
            pl.BlockSpec((h2, op), lambda i: (0, 0)),
            pl.BlockSpec((1, op), lambda i: (0, 0)),
        ],
        out_specs=pl.BlockSpec((tn, op), lambda i: (i, 0)),
        compiler_params=pltpu.CompilerParams(dimension_semantics=("parallel",)),
    )(x, w1, b1, w2, b2, w3, b3)
    return out[:n]


# --------------------------- one-time weight prep ----------------------------


def _prep_conv(w, b, *, pad, h_in, l_in, bn=BN):
    """Build the selection / Toeplitz / bias operands for one conv layer."""
    w = np.asarray(w, np.float32)                    # torch layout (Cout, Cin, kh, kw)
    b = np.asarray(b, np.float32)
    cout, cin, kh, kw = w.shape
    w_in = h_in
    hp = (h_in + 2 * pad - kh + 1) // 2
    wp = (w_in + 2 * pad - kw + 1) // 2
    n_shift = kh + 1

    # Row-selection matrix (block-diagonal over the BN images of a grid step).
    # Row (t, image, p) picks compact input row 2p + t - pad; rows falling into
    # the conv's zero H-padding stay all-zero.
    s = np.zeros((n_shift * bn * hp, bn * h_in), np.float32)
    for t in range(n_shift):
        for bi in range(bn):
            for p in range(hp):
                y = 2 * p + t - pad
                if 0 <= y < h_in:
                    s[(t * bn + bi) * hp + p, bi * h_in + y] = 1.0

    # Toeplitz weights: output columns are 4 groups (pool taps dy,dx), each 128
    # wide in the next layer's (q*Cout + co) layout, zero on padding columns.
    r = np.zeros((n_shift, l_in, GROUPS * LANE), np.float32)
    for t in range(n_shift):
        for g, (dy, dx) in enumerate(((0, 0), (0, 1), (1, 0), (1, 1))):
            i = t - dy
            if not 0 <= i < kh:
                continue
            for j in range(kw):
                for q in range(wp):
                    xx = 2 * q + dx + j - pad
                    if 0 <= xx < w_in:
                        col = g * LANE + q * cout
                        r[t, xx * cin:(xx + 1) * cin, col:col + cout] = w[:, :, i, j].T

    bias = np.zeros((1, LANE), np.float32)
    for q in range(wp):
        bias[0, q * cout:(q + 1) * cout] = b

    return (jnp.asarray(s, jnp.bfloat16), jnp.asarray(r, jnp.bfloat16),
            jnp.asarray(bias, jnp.float32))


def _prep_mlp(params):
    # fc1: fold the torch NCHW-flatten permutation (c*9 + h*3 + w) into the rows
    # and remap onto conv3's output column layout (row h, col q*32 + co, 128-wide).
    fc1 = np.asarray(params["fc1_w"], np.float32)            # (288, 120), (in, out)
    w1 = np.zeros((3 * LANE, LANE), np.float32)
    for h in range(3):
        for q in range(3):
            for c in range(32):
                w1[h * LANE + q * 32 + c, :120] = fc1[c * 9 + h * 3 + q, :]
    b1 = np.zeros((1, LANE), np.float32); b1[0, :120] = np.asarray(params["fc1_b"])
    w2 = np.zeros((LANE, LANE), np.float32); w2[:120, :84] = np.asarray(params["fc2_w"])
    b2 = np.zeros((1, LANE), np.float32); b2[0, :84] = np.asarray(params["fc2_b"])
    w3 = np.zeros((LANE, LANE), np.float32); w3[:84, :10] = np.asarray(params["fc3_w"])
    b3 = np.zeros((1, LANE), np.float32); b3[0, :10] = np.asarray(params["fc3_b"])
    return {
        "fc1_w": jnp.asarray(w1, jnp.bfloat16), "fc1_b": jnp.asarray(b1, jnp.float32),
        "fc2_w": jnp.asarray(w2, jnp.bfloat16), "fc2_b": jnp.asarray(b2, jnp.float32),
        "fc3_w": jnp.asarray(w3, jnp.bfloat16), "fc3_b": jnp.asarray(b3, jnp.float32),
    }


def prepare_params(params):
    """One-time weight prep.  Run eagerly, OUTSIDE the per-forward jit."""
    prep = {}
    for name, _cin, _cout, _k, pad, h_in, l_in in _CONV_CFG:
        s, r, bias = _prep_conv(params[name + "_w"], params[name + "_b"],
                                pad=pad, h_in=h_in, l_in=l_in)
        prep[name + "_s"], prep[name + "_r"], prep[name + "_b"] = s, r, bias
    prep.update(_prep_mlp(params))
    return prep


# ---------------------------------- model ------------------------------------


def init_params(key):
    ks = jax.random.split(key, 12)

    def u(k, shape, fan_in):
        bound = 1.0 / jnp.sqrt(fan_in)
        return jax.random.uniform(k, shape, jnp.float32, -bound, bound)

    return {
        "conv1_w": u(ks[0], (8, 3, 5, 5), 3 * 25),
        "conv1_b": u(ks[1], (8,), 3 * 25),
        "conv2_w": u(ks[2], (16, 8, 5, 5), 8 * 25),
        "conv2_b": u(ks[3], (16,), 8 * 25),
        "conv3_w": u(ks[4], (32, 16, 3, 3), 16 * 9),
        "conv3_b": u(ks[5], (32,), 16 * 9),
        # fc weights stored as (in, out); fc1's input order is torch's NCHW flatten
        # (the permutation is folded into the prepped weight rows).
        "fc1_w": u(ks[6], (32 * 3 * 3, 120), 288),
        "fc1_b": u(ks[7], (120,), 288),
        "fc2_w": u(ks[8], (120, 84), 120),
        "fc2_b": u(ks[9], (84,), 120),
        "fc3_w": u(ks[10], (84, 10), 84),
        "fc3_b": u(ks[11], (10,), 84),
    }


def cifar_cnn_forward(x, prep):
    """x: (N, 3, 32, 32) NCHW f32 (same input layout as the torch module)."""
    n = x.shape[0]
    n_pad = _round_up(n, BN)
    # NHWC rows: row = (n, y), col = (x, ci).  Tiny one-time XLA glue on the raw input.
    x = jnp.transpose(x, (0, 2, 3, 1)).reshape(n * 32, 32 * 3)
    x = jnp.pad(x, ((0, (n_pad - n) * 32), (0, 0))).astype(jnp.bfloat16)

    for name, _cin, _cout, k, pad, h_in, l_in in _CONV_CFG:
        hp = (h_in + 2 * pad - k + 1) // 2
        x = conv_pool_relu(x, prep[name + "_s"], prep[name + "_r"], prep[name + "_b"],
                           n_shift=k + 1, hp=hp, h_in=h_in, l_in=l_in)

    x = x.reshape(n_pad, -1)                        # (N_pad, 3*128), free reshape
    logits = fused_mlp(x, prep["fc1_w"], prep["fc1_b"], prep["fc2_w"], prep["fc2_b"],
                       prep["fc3_w"], prep["fc3_b"])
    return logits[:n, :10]


if __name__ == "__main__":
    key = jax.random.PRNGKey(0)
    k_params, k_x = jax.random.split(key)
    params = init_params(k_params)
    prep = prepare_params(params)                   # once, outside the forward jit
    x = jax.random.normal(k_x, (2, 3, 32, 32), jnp.float32)  # CIFAR-sized NCHW input
    out = jax.jit(cifar_cnn_forward)(x, prep)
    out = jax.block_until_ready(out)
    assert out.shape == (2, 10) and out.dtype == jnp.float32
    print("KERNEL_OK")
</pallas_src>

<mosaic_0001>
module attributes {stable_mosaic.version = 11 : i64} {
  func.func @_conv_pool_relu_kernel(%arg0: i32, %arg1: memref<112x128xbf16, #tpu.memory_space<vmem>>, %arg2: memref<288x112xbf16, #tpu.memory_space<vmem>>, %arg3: memref<6x128x512xbf16, #tpu.memory_space<vmem>>, %arg4: memref<1x128xf32, #tpu.memory_space<vmem>>, %arg5: memref<48x128xbf16, #tpu.memory_space<vmem>>) attributes {dimension_semantics = [#tpu.dimension_semantics<parallel>], iteration_bounds = array<i64: 1>, scalar_prefetch = 0 : i64, scratch_operands = 0 : i64, tpu.core_type = #tpu.core_type<tc>, window_params = [{transform_indices = @transform_0, window_bounds = array<i64: 112, 128>}, {pipeline_mode = #tpu.pipeline_mode<synchronous>, transform_indices = @transform_1, window_bounds = array<i64: 288, 112>}, {pipeline_mode = #tpu.pipeline_mode<synchronous>, transform_indices = @transform_2, window_bounds = array<i64: 6, 128, 512>}, {pipeline_mode = #tpu.pipeline_mode<synchronous>, transform_indices = @transform_3, window_bounds = array<i64: 1, 128>}, {transform_indices = @transform_4, window_bounds = array<i64: 48, 128>}]} {
    %c0 = arith.constant 0 : index
    %c0_0 = arith.constant 0 : index
    %0 = vector.load %arg2[%c0, %c0_0] : memref<288x112xbf16, #tpu.memory_space<vmem>>, vector<288x112xbf16>
    %c0_1 = arith.constant 0 : index
    %c0_2 = arith.constant 0 : index
    %1 = vector.load %arg1[%c0_1, %c0_2] : memref<112x128xbf16, #tpu.memory_space<vmem>>, vector<112x128xbf16>
    %cst = arith.constant dense<0.000000e+00> : vector<288x128xf32>
    %2 = tpu.matmul %0, %1, %cst {dimension_numbers = #tpu.dot_dimension_numbers<[1], [0], [0], [1], [0, 0, 1, 1], [], []>} : vector<288x112xbf16>, vector<112x128xbf16>, vector<288x128xf32> -> vector<288x128xf32>
    %cst_3 = arith.constant 0.000000e+00 : f32
    %3 = vector.broadcast %cst_3 : f32 to vector<48x512xf32>
    %4 = vector.extract_strided_slice %2 {offsets = [0, 0], sizes = [48, 128], strides = [1, 1]} : vector<288x128xf32> to vector<48x128xf32>
    %5 = arith.truncf %4 : vector<48x128xf32> to vector<48x128xbf16>
    %c0_4 = arith.constant 0 : index
    %c0_5 = arith.constant 0 : index
    %c0_6 = arith.constant 0 : index
    %6 = vector.load %arg3[%c0_4, %c0_5, %c0_6] : memref<6x128x512xbf16, #tpu.memory_space<vmem>>, vector<1x128x512xbf16>
    %7 = vector.shape_cast %6 : vector<1x128x512xbf16> to vector<128x512xbf16>
    %cst_7 = arith.constant dense<0.000000e+00> : vector<48x512xf32>
    %8 = tpu.matmul %5, %7, %cst_7 {dimension_numbers = #tpu.dot_dimension_numbers<[1], [0], [0], [1], [0, 0, 1, 1], [], []>} : vector<48x128xbf16>, vector<128x512xbf16>, vector<48x512xf32> -> vector<48x512xf32>
    %9 = arith.addf %3, %8 : vector<48x512xf32>
    %10 = vector.extract_strided_slice %2 {offsets = [48, 0], sizes = [48, 128], strides = [1, 1]} : vector<288x128xf32> to vector<48x128xf32>
    %11 = arith.truncf %10 : vector<48x128xf32> to vector<48x128xbf16>
    %c1 = arith.constant 1 : index
    %c0_8 = arith.constant 0 : index
    %c0_9 = arith.constant 0 : index
    %12 = vector.load %arg3[%c1, %c0_8, %c0_9] : memref<6x128x512xbf16, #tpu.memory_space<vmem>>, vector<1x128x512xbf16>
    %13 = vector.shape_cast %12 : vector<1x128x512xbf16> to vector<128x512xbf16>
    %cst_10 = arith.constant dense<0.000000e+00> : vector<48x512xf32>
    %14 = tpu.matmul %11, %13, %cst_10 {dimension_numbers = #tpu.dot_dimension_numbers<[1], [0], [0], [1], [0, 0, 1, 1], [], []>} : vector<48x128xbf16>, vector<128x512xbf16>, vector<48x512xf32> -> vector<48x512xf32>
    %15 = arith.addf %9, %14 : vector<48x512xf32>
    %16 = vector.extract_strided_slice %2 {offsets = [96, 0], sizes = [48, 128], strides = [1, 1]} : vector<288x128xf32> to vector<48x128xf32>
    %17 = arith.truncf %16 : vector<48x128xf32> to vector<48x128xbf16>
    %c2 = arith.constant 2 : index
    %c0_11 = arith.constant 0 : index
    %c0_12 = arith.constant 0 : index
    %18 = vector.load %arg3[%c2, %c0_11, %c0_12] : memref<6x128x512xbf16, #tpu.memory_space<vmem>>, vector<1x128x512xbf16>
    %19 = vector.shape_cast %18 : vector<1x128x512xbf16> to vector<128x512xbf16>
    %cst_13 = arith.constant dense<0.000000e+00> : vector<48x512xf32>
    %20 = tpu.matmul %17, %19, %cst_13 {dimension_numbers = #tpu.dot_dimension_numbers<[1], [0], [0], [1], [0, 0, 1, 1], [], []>} : vector<48x128xbf16>, vector<128x512xbf16>, vector<48x512xf32> -> vector<48x512xf32>
    %21 = arith.addf %15, %20 : vector<48x512xf32>
    %22 = vector.extract_strided_slice %2 {offsets = [144, 0], sizes = [48, 128], strides = [1, 1]} : vector<288x128xf32> to vector<48x128xf32>
    %23 = arith.truncf %22 : vector<48x128xf32> to vector<48x128xbf16>
    %c3 = arith.constant 3 : index
    %c0_14 = arith.constant 0 : index
    %c0_15 = arith.constant 0 : index
    %24 = vector.load %arg3[%c3, %c0_14, %c0_15] : memref<6x128x512xbf16, #tpu.memory_space<vmem>>, vector<1x128x512xbf16>
    %25 = vector.shape_cast %24 : vector<1x128x512xbf16> to vector<128x512xbf16>
    %cst_16 = arith.constant dense<0.000000e+00> : vector<48x512xf32>
    %26 = tpu.matmul %23, %25, %cst_16 {dimension_numbers = #tpu.dot_dimension_numbers<[1], [0], [0], [1], [0, 0, 1, 1], [], []>} : vector<48x128xbf16>, vector<128x512xbf16>, vector<48x512xf32> -> vector<48x512xf32>
    %27 = arith.addf %21, %26 : vector<48x512xf32>
    %28 = vector.extract_strided_slice %2 {offsets = [192, 0], sizes = [48, 128], strides = [1, 1]} : vector<288x128xf32> to vector<48x128xf32>
    %29 = arith.truncf %28 : vector<48x128xf32> to vector<48x128xbf16>
    %c4 = arith.constant 4 : index
    %c0_17 = arith.constant 0 : index
    %c0_18 = arith.constant 0 : index
    %30 = vector.load %arg3[%c4, %c0_17, %c0_18] : memref<6x128x512xbf16, #tpu.memory_space<vmem>>, vector<1x128x512xbf16>
    %31 = vector.shape_cast %30 : vector<1x128x512xbf16> to vector<128x512xbf16>
    %cst_19 = arith.constant dense<0.000000e+00> : vector<48x512xf32>
    %32 = tpu.matmul %29, %31, %cst_19 {dimension_numbers = #tpu.dot_dimension_numbers<[1], [0], [0], [1], [0, 0, 1, 1], [], []>} : vector<48x128xbf16>, vector<128x512xbf16>, vector<48x512xf32> -> vector<48x512xf32>
    %33 = arith.addf %27, %32 : vector<48x512xf32>
    %34 = vector.extract_strided_slice %2 {offsets = [240, 0], sizes = [48, 128], strides = [1, 1]} : vector<288x128xf32> to vector<48x128xf32>
    %35 = arith.truncf %34 : vector<48x128xf32> to vector<48x128xbf16>
    %c5 = arith.constant 5 : index
    %c0_20 = arith.constant 0 : index
    %c0_21 = arith.constant 0 : index
    %36 = vector.load %arg3[%c5, %c0_20, %c0_21] : memref<6x128x512xbf16, #tpu.memory_space<vmem>>, vector<1x128x512xbf16>
    %37 = vector.shape_cast %36 : vector<1x128x512xbf16> to vector<128x512xbf16>
    %cst_22 = arith.constant dense<0.000000e+00> : vector<48x512xf32>
    %38 = tpu.matmul %35, %37, %cst_22 {dimension_numbers = #tpu.dot_dimension_numbers<[1], [0], [0], [1], [0, 0, 1, 1], [], []>} : vector<48x128xbf16>, vector<128x512xbf16>, vector<48x512xf32> -> vector<48x512xf32>
    %39 = arith.addf %33, %38 : vector<48x512xf32>
    %40 = vector.extract_strided_slice %39 {offsets = [0, 0], sizes = [48, 128], strides = [1, 1]} : vector<48x512xf32> to vector<48x128xf32>
    %41 = vector.extract_strided_slice %39 {offsets = [0, 128], sizes = [48, 128], strides = [1, 1]} : vector<48x512xf32> to vector<48x128xf32>
    %42 = arith.maximumf %40, %41 : vector<48x128xf32>
    %43 = vector.extract_strided_slice %39 {offsets = [0, 256], sizes = [48, 128], strides = [1, 1]} : vector<48x512xf32> to vector<48x128xf32>
    %44 = vector.extract_strided_slice %39 {offsets = [0, 384], sizes = [48, 128], strides = [1, 1]} : vector<48x512xf32> to vector<48x128xf32>
    %45 = arith.maximumf %43, %44 : vector<48x128xf32>
    %46 = arith.maximumf %42, %45 : vector<48x128xf32>
    %c0_23 = arith.constant 0 : index
    %c0_24 = arith.constant 0 : index
    %47 = vector.load %arg4[%c0_23, %c0_24] : memref<1x128xf32, #tpu.memory_space<vmem>>, vector<1x128xf32>
    %48 = vector.broadcast %47 : vector<1x128xf32> to vector<48x128xf32>
    %49 = arith.addf %46, %48 : vector<48x128xf32>
    %cst_25 = arith.constant 0.000000e+00 : f32
    %50 = vector.broadcast %cst_25 : f32 to vector<48x128xf32>
    %51 = arith.maximumf %49, %50 : vector<48x128xf32>
    %52 = arith.truncf %51 : vector<48x128xf32> to vector<48x128xbf16>
    %c0_26 = arith.constant 0 : index
    %c0_27 = arith.constant 0 : index
    %53 = vector.load %arg5[%c0_26, %c0_27] : memref<48x128xbf16, #tpu.memory_space<vmem>>, vector<48x128xbf16>
    tpu.vector_store %arg5[%c0_26, %c0_27], %52 {strides = array<i32>} : memref<48x128xbf16, #tpu.memory_space<vmem>>, vector<48x128xbf16>,
    return
  }
  func.func @transform_0(%arg0: i32) -> (i32, i32) {
    %c0_i32 = arith.constant 0 : i32
    %c0_i32_0 = arith.constant 0 : i32
    return %arg0, %c0_i32 : i32, i32
  }
  func.func @transform_1(%arg0: i32) -> (i32, i32) {
    %c0_i32 = arith.constant 0 : i32
    %c0_i32_0 = arith.constant 0 : i32
    %c0_i32_1 = arith.constant 0 : i32
    return %c0_i32, %c0_i32_0 : i32, i32
  }
  func.func @transform_2(%arg0: i32) -> (i32, i32, i32) {
    %c0_i32 = arith.constant 0 : i32
    %c0_i32_0 = arith.constant 0 : i32
    %c0_i32_1 = arith.constant 0 : i32
    %c0_i32_2 = arith.constant 0 : i32
    return %c0_i32, %c0_i32_0, %c0_i32_1 : i32, i32, i32
  }
  func.func @transform_3(%arg0: i32) -> (i32, i32) {
    %c0_i32 = arith.constant 0 : i32
    %c0_i32_0 = arith.constant 0 : i32
    %c0_i32_1 = arith.constant 0 : i32
    return %c0_i32, %c0_i32_0 : i32, i32
  }
  func.func @transform_4(%arg0: i32) -> (i32, i32) {
    %c0_i32 = arith.constant 0 : i32
    %c0_i32_0 = arith.constant 0 : i32
    return %arg0, %c0_i32 : i32, i32
  }
}

module attributes {stable_mosaic.version = 11 : i64} {
  func.func @_conv_pool_relu_kernel(%arg0: i32, %arg1: memref<256x96xbf16, #tpu.memory_space<vmem>>, %arg2: memref<672x256xbf16, #tpu.memory_space<vmem>>, %arg3: memref<6x96x512xbf16, #tpu.memory_space<vmem>>, %arg4: memref<1x128xf32, #tpu.memory_space<vmem>>, %arg5: memref<112x128xbf16, #tpu.memory_space<vmem>>) attributes {dimension_semantics = [#tpu.dimension_semantics<parallel>], iteration_bounds = array<i64: 1>, scalar_prefetch = 0 : i64, scratch_operands = 0 : i64, tpu.core_type = #tpu.core_type<tc>, window_params = [{transform_indices = @transform_0, window_bounds = array<i64: 256, 96>}, {pipeline_mode = #tpu.pipeline_mode<synchronous>, transform_indices = @transform_1, window_bounds = array<i64: 672, 256>}, {pipeline_mode = #tpu.pipeline_mode<synchronous>, transform_indices = @transform_2, window_bounds = array<i64: 6, 96, 512>}, {pipeline_mode = #tpu.pipeline_mode<synchronous>, transform_indices = @transform_3, window_bounds = array<i64: 1, 128>}, {transform_indices = @transform_4, window_bounds = array<i64: 112, 128>}]} {
    %c0 = arith.constant 0 : index
    %c0_0 = arith.constant 0 : index
    %0 = vector.load %arg2[%c0, %c0_0] : memref<672x256xbf16, #tpu.memory_space<vmem>>, vector<672x256xbf16>
    %c0_1 = arith.constant 0 : index
    %c0_2 = arith.constant 0 : index
    %1 = vector.load %arg1[%c0_1, %c0_2] : memref<256x96xbf16, #tpu.memory_space<vmem>>, vector<256x96xbf16>
    %cst = arith.constant dense<0.000000e+00> : vector<672x96xf32>
    %2 = tpu.matmul %0, %1, %cst {dimension_numbers = #tpu.dot_dimension_numbers<[1], [0], [0], [1], [0, 0, 1, 1], [], []>} : vector<672x256xbf16>, vector<256x96xbf16>, vector<672x96xf32> -> vector<672x96xf32>
    %cst_3 = arith.constant 0.000000e+00 : f32
    %3 = vector.broadcast %cst_3 : f32 to vector<112x512xf32>
    %4 = vector.extract_strided_slice %2 {offsets = [0, 0], sizes = [112, 96], strides = [1, 1]} : vector<672x96xf32> to vector<112x96xf32>
    %5 = arith.truncf %4 : vector<112x96xf32> to vector<112x96xbf16>
    %c0_4 = arith.constant 0 : index
    %c0_5 = arith.constant 0 : index
    %c0_6 = arith.constant 0 : index
    %6 = vector.load %arg3[%c0_4, %c0_5, %c0_6] : memref<6x96x512xbf16, #tpu.memory_space<vmem>>, vector<1x96x512xbf16>
    %7 = vector.shape_cast %6 : vector<1x96x512xbf16> to vector<96x512xbf16>
    %cst_7 = arith.constant dense<0.000000e+00> : vector<112x512xf32>
    %8 = tpu.matmul %5, %7, %cst_7 {dimension_numbers = #tpu.dot_dimension_numbers<[1], [0], [0], [1], [0, 0, 1, 1], [], []>} : vector<112x96xbf16>, vector<96x512xbf16>, vector<112x512xf32> -> vector<112x512xf32>
    %9 = arith.addf %3, %8 : vector<112x512xf32>
    %10 = vector.extract_strided_slice %2 {offsets = [112, 0], sizes = [112, 96], strides = [1, 1]} : vector<672x96xf32> to vector<112x96xf32>
    %11 = arith.truncf %10 : vector<112x96xf32> to vector<112x96xbf16>
    %c1 = arith.constant 1 : index
    %c0_8 = arith.constant 0 : index
    %c0_9 = arith.constant 0 : index
    %12 = vector.load %arg3[%c1, %c0_8, %c0_9] : memref<6x96x512xbf16, #tpu.memory_space<vmem>>, vector<1x96x512xbf16>
    %13 = vector.shape_cast %12 : vector<1x96x512xbf16> to vector<96x512xbf16>
    %cst_10 = arith.constant dense<0.000000e+00> : vector<112x512xf32>
    %14 = tpu.matmul %11, %13, %cst_10 {dimension_numbers = #tpu.dot_dimension_numbers<[1], [0], [0], [1], [0, 0, 1, 1], [], []>} : vector<112x96xbf16>, vector<96x512xbf16>, vector<112x512xf32> -> vector<112x512xf32>
    %15 = arith.addf %9, %14 : vector<112x512xf32>
    %16 = vector.extract_strided_slice %2 {offsets = [224, 0], sizes = [112, 96], strides = [1, 1]} : vector<672x96xf32> to vector<112x96xf32>
    %17 = arith.truncf %16 : vector<112x96xf32> to vector<112x96xbf16>
    %c2 = arith.constant 2 : index
    %c0_11 = arith.constant 0 : index
    %c0_12 = arith.constant 0 : index
    %18 = vector.load %arg3[%c2, %c0_11, %c0_12] : memref<6x96x512xbf16, #tpu.memory_space<vmem>>, vector<1x96x512xbf16>
    %19 = vector.shape_cast %18 : vector<1x96x512xbf16> to vector<96x512xbf16>
    %cst_13 = arith.constant dense<0.000000e+00> : vector<112x512xf32>
    %20 = tpu.matmul %17, %19, %cst_13 {dimension_numbers = #tpu.dot_dimension_numbers<[1], [0], [0], [1], [0, 0, 1, 1], [], []>} : vector<112x96xbf16>, vector<96x512xbf16>, vector<112x512xf32> -> vector<112x512xf32>
    %21 = arith.addf %15, %20 : vector<112x512xf32>
    %22 = vector.extract_strided_slice %2 {offsets = [336, 0], sizes = [112, 96], strides = [1, 1]} : vector<672x96xf32> to vector<112x96xf32>
    %23 = arith.truncf %22 : vector<112x96xf32> to vector<112x96xbf16>
    %c3 = arith.constant 3 : index
    %c0_14 = arith.constant 0 : index
    %c0_15 = arith.constant 0 : index
    %24 = vector.load %arg3[%c3, %c0_14, %c0_15] : memref<6x96x512xbf16, #tpu.memory_space<vmem>>, vector<1x96x512xbf16>
    %25 = vector.shape_cast %24 : vector<1x96x512xbf16> to vector<96x512xbf16>
    %cst_16 = arith.constant dense<0.000000e+00> : vector<112x512xf32>
    %26 = tpu.matmul %23, %25, %cst_16 {dimension_numbers = #tpu.dot_dimension_numbers<[1], [0], [0], [1], [0, 0, 1, 1], [], []>} : vector<112x96xbf16>, vector<96x512xbf16>, vector<112x512xf32> -> vector<112x512xf32>
    %27 = arith.addf %21, %26 : vector<112x512xf32>
    %28 = vector.extract_strided_slice %2 {offsets = [448, 0], sizes = [112, 96], strides = [1, 1]} : vector<672x96xf32> to vector<112x96xf32>
    %29 = arith.truncf %28 : vector<112x96xf32> to vector<112x96xbf16>
    %c4 = arith.constant 4 : index
    %c0_17 = arith.constant 0 : index
    %c0_18 = arith.constant 0 : index
    %30 = vector.load %arg3[%c4, %c0_17, %c0_18] : memref<6x96x512xbf16, #tpu.memory_space<vmem>>, vector<1x96x512xbf16>
    %31 = vector.shape_cast %30 : vector<1x96x512xbf16> to vector<96x512xbf16>
    %cst_19 = arith.constant dense<0.000000e+00> : vector<112x512xf32>
    %32 = tpu.matmul %29, %31, %cst_19 {dimension_numbers = #tpu.dot_dimension_numbers<[1], [0], [0], [1], [0, 0, 1, 1], [], []>} : vector<112x96xbf16>, vector<96x512xbf16>, vector<112x512xf32> -> vector<112x512xf32>
    %33 = arith.addf %27, %32 : vector<112x512xf32>
    %34 = vector.extract_strided_slice %2 {offsets = [560, 0], sizes = [112, 96], strides = [1, 1]} : vector<672x96xf32> to vector<112x96xf32>
    %35 = arith.truncf %34 : vector<112x96xf32> to vector<112x96xbf16>
    %c5 = arith.constant 5 : index
    %c0_20 = arith.constant 0 : index
    %c0_21 = arith.constant 0 : index
    %36 = vector.load %arg3[%c5, %c0_20, %c0_21] : memref<6x96x512xbf16, #tpu.memory_space<vmem>>, vector<1x96x512xbf16>
    %37 = vector.shape_cast %36 : vector<1x96x512xbf16> to vector<96x512xbf16>
    %cst_22 = arith.constant dense<0.000000e+00> : vector<112x512xf32>
    %38 = tpu.matmul %35, %37, %cst_22 {dimension_numbers = #tpu.dot_dimension_numbers<[1], [0], [0], [1], [0, 0, 1, 1], [], []>} : vector<112x96xbf16>, vector<96x512xbf16>, vector<112x512xf32> -> vector<112x512xf32>
    %39 = arith.addf %33, %38 : vector<112x512xf32>
    %40 = vector.extract_strided_slice %39 {offsets = [0, 0], sizes = [112, 128], strides = [1, 1]} : vector<112x512xf32> to vector<112x128xf32>
    %41 = vector.extract_strided_slice %39 {offsets = [0, 128], sizes = [112, 128], strides = [1, 1]} : vector<112x512xf32> to vector<112x128xf32>
    %42 = arith.maximumf %40, %41 : vector<112x128xf32>
    %43 = vector.extract_strided_slice %39 {offsets = [0, 256], sizes = [112, 128], strides = [1, 1]} : vector<112x512xf32> to vector<112x128xf32>
    %44 = vector.extract_strided_slice %39 {offsets = [0, 384], sizes = [112, 128], strides = [1, 1]} : vector<112x512xf32> to vector<112x128xf32>
    %45 = arith.maximumf %43, %44 : vector<112x128xf32>
    %46 = arith.maximumf %42, %45 : vector<112x128xf32>
    %c0_23 = arith.constant 0 : index
    %c0_24 = arith.constant 0 : index
    %47 = vector.load %arg4[%c0_23, %c0_24] : memref<1x128xf32, #tpu.memory_space<vmem>>, vector<1x128xf32>
    %48 = vector.broadcast %47 : vector<1x128xf32> to vector<112x128xf32>
    %49 = arith.addf %46, %48 : vector<112x128xf32>
    %cst_25 = arith.constant 0.000000e+00 : f32
    %50 = vector.broadcast %cst_25 : f32 to vector<112x128xf32>
    %51 = arith.maximumf %49, %50 : vector<112x128xf32>
    %52 = arith.truncf %51 : vector<112x128xf32> to vector<112x128xbf16>
    %c0_26 = arith.constant 0 : index
    %c0_27 = arith.constant 0 : index
    %53 = vector.load %arg5[%c0_26, %c0_27] : memref<112x128xbf16, #tpu.memory_space<vmem>>, vector<112x128xbf16>
    tpu.vector_store %arg5[%c0_26, %c0_27], %52 {strides = array<i32>} : memref<112x128xbf16, #tpu.memory_space<vmem>>, vector<112x128xbf16>,
    return
  }
  func.func @transform_0(%arg0: i32) -> (i32, i32) {
    %c0_i32 = arith.constant 0 : i32
    %c0_i32_0 = arith.constant 0 : i32
    return %arg0, %c0_i32 : i32, i32
  }
  func.func @transform_1(%arg0: i32) -> (i32, i32) {
    %c0_i32 = arith.constant 0 : i32
    %c0_i32_0 = arith.constant 0 : i32
    %c0_i32_1 = arith.constant 0 : i32
    return %c0_i32, %c0_i32_0 : i32, i32
  }
  func.func @transform_2(%arg0: i32) -> (i32, i32, i32) {
    %c0_i32 = arith.constant 0 : i32
    %c0_i32_0 = arith.constant 0 : i32
    %c0_i32_1 = arith.constant 0 : i32
    %c0_i32_2 = arith.constant 0 : i32
    return %c0_i32, %c0_i32_0, %c0_i32_1 : i32, i32, i32
  }
  func.func @transform_3(%arg0: i32) -> (i32, i32) {
    %c0_i32 = arith.constant 0 : i32
    %c0_i32_0 = arith.constant 0 : i32
    %c0_i32_1 = arith.constant 0 : i32
    return %c0_i32, %c0_i32_0 : i32, i32
  }
  func.func @transform_4(%arg0: i32) -> (i32, i32) {
    %c0_i32 = arith.constant 0 : i32
    %c0_i32_0 = arith.constant 0 : i32
    return %arg0, %c0_i32 : i32, i32
  }
}

module attributes {stable_mosaic.version = 11 : i64} {
  func.func @_conv_pool_relu_kernel(%arg0: i32, %arg1: memref<48x128xbf16, #tpu.memory_space<vmem>>, %arg2: memref<96x48xbf16, #tpu.memory_space<vmem>>, %arg3: memref<4x128x512xbf16, #tpu.memory_space<vmem>>, %arg4: memref<1x128xf32, #tpu.memory_space<vmem>>, %arg5: memref<24x128xbf16, #tpu.memory_space<vmem>>) attributes {dimension_semantics = [#tpu.dimension_semantics<parallel>], iteration_bounds = array<i64: 1>, scalar_prefetch = 0 : i64, scratch_operands = 0 : i64, tpu.core_type = #tpu.core_type<tc>, window_params = [{transform_indices = @transform_0, window_bounds = array<i64: 48, 128>}, {pipeline_mode = #tpu.pipeline_mode<synchronous>, transform_indices = @transform_1, window_bounds = array<i64: 96, 48>}, {pipeline_mode = #tpu.pipeline_mode<synchronous>, transform_indices = @transform_2, window_bounds = array<i64: 4, 128, 512>}, {pipeline_mode = #tpu.pipeline_mode<synchronous>, transform_indices = @transform_3, window_bounds = array<i64: 1, 128>}, {transform_indices = @transform_4, window_bounds = array<i64: 24, 128>}]} {
    %c0 = arith.constant 0 : index
    %c0_0 = arith.constant 0 : index
    %0 = vector.load %arg2[%c0, %c0_0] : memref<96x48xbf16, #tpu.memory_space<vmem>>, vector<96x48xbf16>
    %c0_1 = arith.constant 0 : index
    %c0_2 = arith.constant 0 : index
    %1 = vector.load %arg1[%c0_1, %c0_2] : memref<48x128xbf16, #tpu.memory_space<vmem>>, vector<48x128xbf16>
    %cst = arith.constant dense<0.000000e+00> : vector<96x128xf32>
    %2 = tpu.matmul %0, %1, %cst {dimension_numbers = #tpu.dot_dimension_numbers<[1], [0], [0], [1], [0, 0, 1, 1], [], []>} : vector<96x48xbf16>, vector<48x128xbf16>, vector<96x128xf32> -> vector<96x128xf32>
    %cst_3 = arith.constant 0.000000e+00 : f32
    %3 = vector.broadcast %cst_3 : f32 to vector<24x512xf32>
    %4 = vector.extract_strided_slice %2 {offsets = [0, 0], sizes = [24, 128], strides = [1, 1]} : vector<96x128xf32> to vector<24x128xf32>
    %5 = arith.truncf %4 : vector<24x128xf32> to vector<24x128xbf16>
    %c0_4 = arith.constant 0 : index
    %c0_5 = arith.constant 0 : index
    %c0_6 = arith.constant 0 : index
    %6 = vector.load %arg3[%c0_4, %c0_5, %c0_6] : memref<4x128x512xbf16, #tpu.memory_space<vmem>>, vector<1x128x512xbf16>
    %7 = vector.shape_cast %6 : vector<1x128x512xbf16> to vector<128x512xbf16>
    %cst_7 = arith.constant dense<0.000000e+00> : vector<24x512xf32>
    %8 = tpu.matmul %5, %7, %cst_7 {dimension_numbers = #tpu.dot_dimension_numbers<[1], [0], [0], [1], [0, 0, 1, 1], [], []>} : vector<24x128xbf16>, vector<128x512xbf16>, vector<24x512xf32> -> vector<24x512xf32>
    %9 = arith.addf %3, %8 : vector<24x512xf32>
    %10 = vector.extract_strided_slice %2 {offsets = [24, 0], sizes = [24, 128], strides = [1, 1]} : vector<96x128xf32> to vector<24x128xf32>
    %11 = arith.truncf %10 : vector<24x128xf32> to vector<24x128xbf16>
    %c1 = arith.constant 1 : index
    %c0_8 = arith.constant 0 : index
    %c0_9 = arith.constant 0 : index
    %12 = vector.load %arg3[%c1, %c0_8, %c0_9] : memref<4x128x512xbf16, #tpu.memory_space<vmem>>, vector<1x128x512xbf16>
    %13 = vector.shape_cast %12 : vector<1x128x512xbf16> to vector<128x512xbf16>
    %cst_10 = arith.constant dense<0.000000e+00> : vector<24x512xf32>
    %14 = tpu.matmul %11, %13, %cst_10 {dimension_numbers = #tpu.dot_dimension_numbers<[1], [0], [0], [1], [0, 0, 1, 1], [], []>} : vector<24x128xbf16>, vector<128x512xbf16>, vector<24x512xf32> -> vector<24x512xf32>
    %15 = arith.addf %9, %14 : vector<24x512xf32>
    %16 = vector.extract_strided_slice %2 {offsets = [48, 0], sizes = [24, 128], strides = [1, 1]} : vector<96x128xf32> to vector<24x128xf32>
    %17 = arith.truncf %16 : vector<24x128xf32> to vector<24x128xbf16>
    %c2 = arith.constant 2 : index
    %c0_11 = arith.constant 0 : index
    %c0_12 = arith.constant 0 : index
    %18 = vector.load %arg3[%c2, %c0_11, %c0_12] : memref<4x128x512xbf16, #tpu.memory_space<vmem>>, vector<1x128x512xbf16>
    %19 = vector.shape_cast %18 : vector<1x128x512xbf16> to vector<128x512xbf16>
    %cst_13 = arith.constant dense<0.000000e+00> : vector<24x512xf32>
    %20 = tpu.matmul %17, %19, %cst_13 {dimension_numbers = #tpu.dot_dimension_numbers<[1], [0], [0], [1], [0, 0, 1, 1], [], []>} : vector<24x128xbf16>, vector<128x512xbf16>, vector<24x512xf32> -> vector<24x512xf32>
    %21 = arith.addf %15, %20 : vector<24x512xf32>
    %22 = vector.extract_strided_slice %2 {offsets = [72, 0], sizes = [24, 128], strides = [1, 1]} : vector<96x128xf32> to vector<24x128xf32>
    %23 = arith.truncf %22 : vector<24x128xf32> to vector<24x128xbf16>
    %c3 = arith.constant 3 : index
    %c0_14 = arith.constant 0 : index
    %c0_15 = arith.constant 0 : index
    %24 = vector.load %arg3[%c3, %c0_14, %c0_15] : memref<4x128x512xbf16, #tpu.memory_space<vmem>>, vector<1x128x512xbf16>
    %25 = vector.shape_cast %24 : vector<1x128x512xbf16> to vector<128x512xbf16>
    %cst_16 = arith.constant dense<0.000000e+00> : vector<24x512xf32>
    %26 = tpu.matmul %23, %25, %cst_16 {dimension_numbers = #tpu.dot_dimension_numbers<[1], [0], [0], [1], [0, 0, 1, 1], [], []>} : vector<24x128xbf16>, vector<128x512xbf16>, vector<24x512xf32> -> vector<24x512xf32>
    %27 = arith.addf %21, %26 : vector<24x512xf32>
    %28 = vector.extract_strided_slice %27 {offsets = [0, 0], sizes = [24, 128], strides = [1, 1]} : vector<24x512xf32> to vector<24x128xf32>
    %29 = vector.extract_strided_slice %27 {offsets = [0, 128], sizes = [24, 128], strides = [1, 1]} : vector<24x512xf32> to vector<24x128xf32>
    %30 = arith.maximumf %28, %29 : vector<24x128xf32>
    %31 = vector.extract_strided_slice %27 {offsets = [0, 256], sizes = [24, 128], strides = [1, 1]} : vector<24x512xf32> to vector<24x128xf32>
    %32 = vector.extract_strided_slice %27 {offsets = [0, 384], sizes = [24, 128], strides = [1, 1]} : vector<24x512xf32> to vector<24x128xf32>
    %33 = arith.maximumf %31, %32 : vector<24x128xf32>
    %34 = arith.maximumf %30, %33 : vector<24x128xf32>
    %c0_17 = arith.constant 0 : index
    %c0_18 = arith.constant 0 : index
    %35 = vector.load %arg4[%c0_17, %c0_18] : memref<1x128xf32, #tpu.memory_space<vmem>>, vector<1x128xf32>
    %36 = vector.broadcast %35 : vector<1x128xf32> to vector<24x128xf32>
    %37 = arith.addf %34, %36 : vector<24x128xf32>
    %cst_19 = arith.constant 0.000000e+00 : f32
    %38 = vector.broadcast %cst_19 : f32 to vector<24x128xf32>
    %39 = arith.maximumf %37, %38 : vector<24x128xf32>
    %40 = arith.truncf %39 : vector<24x128xf32> to vector<24x128xbf16>
    %c0_20 = arith.constant 0 : index
    %c0_21 = arith.constant 0 : index
    %41 = vector.load %arg5[%c0_20, %c0_21] : memref<24x128xbf16, #tpu.memory_space<vmem>>, vector<24x128xbf16>
    tpu.vector_store %arg5[%c0_20, %c0_21], %40 {strides = array<i32>} : memref<24x128xbf16, #tpu.memory_space<vmem>>, vector<24x128xbf16>,
    return
  }
  func.func @transform_0(%arg0: i32) -> (i32, i32) {
    %c0_i32 = arith.constant 0 : i32
    %c0_i32_0 = arith.constant 0 : i32
    return %arg0, %c0_i32 : i32, i32
  }
  func.func @transform_1(%arg0: i32) -> (i32, i32) {
    %c0_i32 = arith.constant 0 : i32
    %c0_i32_0 = arith.constant 0 : i32
    %c0_i32_1 = arith.constant 0 : i32
    return %c0_i32, %c0_i32_0 : i32, i32
  }
  func.func @transform_2(%arg0: i32) -> (i32, i32, i32) {
    %c0_i32 = arith.constant 0 : i32
    %c0_i32_0 = arith.constant 0 : i32
    %c0_i32_1 = arith.constant 0 : i32
    %c0_i32_2 = arith.constant 0 : i32
    return %c0_i32, %c0_i32_0, %c0_i32_1 : i32, i32, i32
  }
  func.func @transform_3(%arg0: i32) -> (i32, i32) {
    %c0_i32 = arith.constant 0 : i32
    %c0_i32_0 = arith.constant 0 : i32
    %c0_i32_1 = arith.constant 0 : i32
    return %c0_i32, %c0_i32_0 : i32, i32
  }
  func.func @transform_4(%arg0: i32) -> (i32, i32) {
    %c0_i32 = arith.constant 0 : i32
    %c0_i32_0 = arith.constant 0 : i32
    return %arg0, %c0_i32 : i32, i32
  }
}

module attributes {stable_mosaic.version = 11 : i64} {
  func.func @_mlp_kernel(%arg0: i32, %arg1: memref<8x384xbf16, #tpu.memory_space<vmem>>, %arg2: memref<384x128xbf16, #tpu.memory_space<vmem>>, %arg3: memref<1x128xf32, #tpu.memory_space<vmem>>, %arg4: memref<128x128xbf16, #tpu.memory_space<vmem>>, %arg5: memref<1x128xf32, #tpu.memory_space<vmem>>, %arg6: memref<128x128xbf16, #tpu.memory_space<vmem>>, %arg7: memref<1x128xf32, #tpu.memory_space<vmem>>, %arg8: memref<8x128xf32, #tpu.memory_space<vmem>>) attributes {dimension_semantics = [#tpu.dimension_semantics<parallel>], iteration_bounds = array<i64: 1>, scalar_prefetch = 0 : i64, scratch_operands = 0 : i64, tpu.core_type = #tpu.core_type<tc>, window_params = [{transform_indices = @transform_0, window_bounds = array<i64: 8, 384>}, {pipeline_mode = #tpu.pipeline_mode<synchronous>, transform_indices = @transform_1, window_bounds = array<i64: 384, 128>}, {pipeline_mode = #tpu.pipeline_mode<synchronous>, transform_indices = @transform_2, window_bounds = array<i64: 1, 128>}, {pipeline_mode = #tpu.pipeline_mode<synchronous>, transform_indices = @transform_3, window_bounds = array<i64: 128, 128>}, {pipeline_mode = #tpu.pipeline_mode<synchronous>, transform_indices = @transform_4, window_bounds = array<i64: 1, 128>}, {pipeline_mode = #tpu.pipeline_mode<synchronous>, transform_indices = @transform_5, window_bounds = array<i64: 128, 128>}, {pipeline_mode = #tpu.pipeline_mode<synchronous>, transform_indices = @transform_6, window_bounds = array<i64: 1, 128>}, {transform_indices = @transform_7, window_bounds = array<i64: 8, 128>}]} {
    %c0 = arith.constant 0 : index
    %c0_0 = arith.constant 0 : index
    %0 = vector.load %arg1[%c0, %c0_0] : memref<8x384xbf16, #tpu.memory_space<vmem>>, vector<8x384xbf16>
    %c0_1 = arith.constant 0 : index
    %c0_2 = arith.constant 0 : index
    %1 = vector.load %arg2[%c0_1, %c0_2] : memref<384x128xbf16, #tpu.memory_space<vmem>>, vector<384x128xbf16>
    %cst = arith.constant dense<0.000000e+00> : vector<8x128xf32>
    %2 = tpu.matmul %0, %1, %cst {dimension_numbers = #tpu.dot_dimension_numbers<[1], [0], [0], [1], [0, 0, 1, 1], [], []>} : vector<8x384xbf16>, vector<384x128xbf16>, vector<8x128xf32> -> vector<8x128xf32>
    %c0_3 = arith.constant 0 : index
    %c0_4 = arith.constant 0 : index
    %3 = vector.load %arg3[%c0_3, %c0_4] : memref<1x128xf32, #tpu.memory_space<vmem>>, vector<1x128xf32>
    %4 = vector.broadcast %3 : vector<1x128xf32> to vector<8x128xf32>
    %5 = arith.addf %2, %4 : vector<8x128xf32>
    %cst_5 = arith.constant 0.000000e+00 : f32
    %6 = vector.broadcast %cst_5 : f32 to vector<8x128xf32>
    %7 = arith.maximumf %5, %6 : vector<8x128xf32>
    %8 = arith.truncf %7 : vector<8x128xf32> to vector<8x128xbf16>
    %c0_6 = arith.constant 0 : index
    %c0_7 = arith.constant 0 : index
    %9 = vector.load %arg4[%c0_6, %c0_7] : memref<128x128xbf16, #tpu.memory_space<vmem>>, vector<128x128xbf16>
    %cst_8 = arith.constant dense<0.000000e+00> : vector<8x128xf32>
    %10 = tpu.matmul %8, %9, %cst_8 {dimension_numbers = #tpu.dot_dimension_numbers<[1], [0], [0], [1], [0, 0, 1, 1], [], []>} : vector<8x128xbf16>, vector<128x128xbf16>, vector<8x128xf32> -> vector<8x128xf32>
    %c0_9 = arith.constant 0 : index
    %c0_10 = arith.constant 0 : index
    %11 = vector.load %arg5[%c0_9, %c0_10] : memref<1x128xf32, #tpu.memory_space<vmem>>, vector<1x128xf32>
    %12 = vector.broadcast %11 : vector<1x128xf32> to vector<8x128xf32>
    %13 = arith.addf %10, %12 : vector<8x128xf32>
    %cst_11 = arith.constant 0.000000e+00 : f32
    %14 = vector.broadcast %cst_11 : f32 to vector<8x128xf32>
    %15 = arith.maximumf %13, %14 : vector<8x128xf32>
    %16 = arith.truncf %15 : vector<8x128xf32> to vector<8x128xbf16>
    %c0_12 = arith.constant 0 : index
    %c0_13 = arith.constant 0 : index
    %17 = vector.load %arg6[%c0_12, %c0_13] : memref<128x128xbf16, #tpu.memory_space<vmem>>, vector<128x128xbf16>
    %cst_14 = arith.constant dense<0.000000e+00> : vector<8x128xf32>
    %18 = tpu.matmul %16, %17, %cst_14 {dimension_numbers = #tpu.dot_dimension_numbers<[1], [0], [0], [1], [0, 0, 1, 1], [], []>} : vector<8x128xbf16>, vector<128x128xbf16>, vector<8x128xf32> -> vector<8x128xf32>
    %c0_15 = arith.constant 0 : index
    %c0_16 = arith.constant 0 : index
    %19 = vector.load %arg7[%c0_15, %c0_16] : memref<1x128xf32, #tpu.memory_space<vmem>>, vector<1x128xf32>
    %20 = vector.broadcast %19 : vector<1x128xf32> to vector<8x128xf32>
    %21 = arith.addf %18, %20 : vector<8x128xf32>
    %c0_17 = arith.constant 0 : index
    %c0_18 = arith.constant 0 : index
    %22 = vector.load %arg8[%c0_17, %c0_18] : memref<8x128xf32, #tpu.memory_space<vmem>>, vector<8x128xf32>
    tpu.vector_store %arg8[%c0_17, %c0_18], %21 {strides = array<i32>} : memref<8x128xf32, #tpu.memory_space<vmem>>, vector<8x128xf32>,
    return
  }
  func.func @transform_0(%arg0: i32) -> (i32, i32) {
    %c0_i32 = arith.constant 0 : i32
    %c0_i32_0 = arith.constant 0 : i32
    return %arg0, %c0_i32 : i32, i32
  }
  func.func @transform_1(%arg0: i32) -> (i32, i32) {
    %c0_i32 = arith.constant 0 : i32
    %c0_i32_0 = arith.constant 0 : i32
    %c0_i32_1 = arith.constant 0 : i32
    return %c0_i32, %c0_i32_0 : i32, i32
  }
  func.func @transform_2(%arg0: i32) -> (i32, i32) {
    %c0_i32 = arith.constant 0 : i32
    %c0_i32_0 = arith.constant 0 : i32
    %c0_i32_1 = arith.constant 0 : i32
    return %c0_i32, %c0_i32_0 : i32, i32
  }
  func.func @transform_3(%arg0: i32) -> (i32, i32) {
    %c0_i32 = arith.constant 0 : i32
    %c0_i32_0 = arith.constant 0 : i32
    %c0_i32_1 = arith.constant 0 : i32
    return %c0_i32, %c0_i32_0 : i32, i32
  }
  func.func @transform_4(%arg0: i32) -> (i32, i32) {
    %c0_i32 = arith.constant 0 : i32
    %c0_i32_0 = arith.constant 0 : i32
    %c0_i32_1 = arith.constant 0 : i32
    return %c0_i32, %c0_i32_0 : i32, i32
  }
  func.func @transform_5(%arg0: i32) -> (i32, i32) {
    %c0_i32 = arith.constant 0 : i32
    %c0_i32_0 = arith.constant 0 : i32
    %c0_i32_1 = arith.constant 0 : i32
    return %c0_i32, %c0_i32_0 : i32, i32
  }
  func.func @transform_6(%arg0: i32) -> (i32, i32) {
    %c0_i32 = arith.constant 0 : i32
    %c0_i32_0 = arith.constant 0 : i32
    %c0_i32_1 = arith.constant 0 : i32
    return %c0_i32, %c0_i32_0 : i32, i32
  }
  func.func @transform_7(%arg0: i32) -> (i32, i32) {
    %c0_i32 = arith.constant 0 : i32
    %c0_i32_0 = arith.constant 0 : i32
    return %arg0, %c0_i32 : i32, i32
  }
}

</mosaic_0001>

<llo_original>
// kernel: cifar_cnn_forward.7
$region0: #{cifar_cnn_forward.7}
  #allocation0 [shape = 'u32[]', space=smem, size = 0x4, offset = 0x4, fixed_abs, tag = 'smem constant byte address 0x4 - core index']
  #allocation1 [shape = 'u32[144,128]{1,0:T(1,128)}', space=vmem, size = 0x12000, scoped, tag = 'internal scratch']
  %s0 = inlined_call_operand.vmem [shape: bf16[8,384], index: 0, kind: input, shape index: {}]
  %s1 = inlined_call_operand.vmem [shape: bf16[384,128], index: 1, kind: input, shape index: {}]
  %s2 = inlined_call_operand.vmem [shape: f32[1,128], index: 2, kind: input, shape index: {}]
  %s3 = inlined_call_operand.vmem [shape: bf16[128,128], index: 3, kind: input, shape index: {}]
  %s4 = inlined_call_operand.vmem [shape: f32[1,128], index: 4, kind: input, shape index: {}]
  %s5 = inlined_call_operand.vmem [shape: bf16[128,128], index: 5, kind: input, shape index: {}]
  %s6 = inlined_call_operand.vmem [shape: f32[1,128], index: 6, kind: input, shape index: {}]
  %s7 = inlined_call_operand.vmem [shape: f32[8,128], index: 7, kind: output, shape index: {}]
  %s8 = sld [smem:[#allocation0]]
  $region38: #{cifar_cnn_forward.7} parent=0
    _
  %s10 = ssub.s32 1, %s8
  %s11 = scalar_select 0, %s10, %s8
  // Predicated region
  $region2: #{cifar_cnn_forward.7} parent=0 // pred_check
    _
  $region3: #{cifar_cnn_forward.7} parent=0 // pred_check_branch
    %13 = sbr.rel (0) target = $region5
  $region4: #{cifar_cnn_forward.7} parent=0 // pred_region
    _
  $region5: #{cifar_cnn_forward.7} parent=0 // pred_fallthru
    _
  // Predicated region
  $region6: #{cifar_cnn_forward.7} parent=0 // pred_check
    _
  $region7: #{cifar_cnn_forward.7} parent=0 // pred_check_branch
    %15 = sbr.rel (0) target = $region9
  $region8: #{cifar_cnn_forward.7} parent=0 // pred_region
    _
  $region9: #{cifar_cnn_forward.7} parent=0 // pred_fallthru
    _
  // Predicated region
  $region10: #{cifar_cnn_forward.7} parent=0 // pred_check
    _
  $region11: #{cifar_cnn_forward.7} parent=0 // pred_check_branch
    %17 = sbr.rel (0) target = $region13
  $region12: #{cifar_cnn_forward.7} parent=0 // pred_region
    _
  $region13: #{cifar_cnn_forward.7} parent=0 // pred_fallthru
    _
  // Predicated region
  $region14: #{cifar_cnn_forward.7} parent=0 // pred_check
    _
  $region15: #{cifar_cnn_forward.7} parent=0 // pred_check_branch
    %19 = sbr.rel (0) target = $region17
  $region16: #{cifar_cnn_forward.7} parent=0 // pred_region
    _
  $region17: #{cifar_cnn_forward.7} parent=0 // pred_fallthru
    _
  // Predicated region
  $region18: #{cifar_cnn_forward.7} parent=0 // pred_check
    _
  $region19: #{cifar_cnn_forward.7} parent=0 // pred_check_branch
    %21 = sbr.rel (0) target = $region21
  $region20: #{cifar_cnn_forward.7} parent=0 // pred_region
    _
  $region21: #{cifar_cnn_forward.7} parent=0 // pred_fallthru
    _
  // Predicated region
  $region22: #{cifar_cnn_forward.7} parent=0 // pred_check
    _
  $region23: #{cifar_cnn_forward.7} parent=0 // pred_check_branch
    %23 = sbr.rel (0) target = $region25
  $region24: #{cifar_cnn_forward.7} parent=0 // pred_region
    _
  $region25: #{cifar_cnn_forward.7} parent=0 // pred_fallthru
    _
  // Predicated region
  $region26: #{cifar_cnn_forward.7} parent=0 // pred_check
    _
  $region27: #{cifar_cnn_forward.7} parent=0 // pred_check_branch
    %25 = sbr.rel (0) target = $region29
  $region28: #{cifar_cnn_forward.7} parent=0 // pred_region
    _
  $region29: #{cifar_cnn_forward.7} parent=0 // pred_fallthru
    _
  %v27 = vld [vmem:[%s0] sm:$0xff]
  %v28 = vld [vmem:[%s0 + $0x8] sm:$0xf]
  %v29 = vld [vmem:[%s1] sm:$0xf]
  %v30 = vld [vmem:[%s1 + $0x4] sm:$0xf]
  %v31 = vld [vmem:[%s1 + $0x8] sm:$0xf]
  %v32 = vld [vmem:[%s1 + $0xc] sm:$0xf]
  %v33 = vld [vmem:[%s1 + $0x10] sm:$0xf]
  %v34 = vld [vmem:[%s1 + $0x14] sm:$0xf]
  %v35 = vld [vmem:[%s1 + $0x18] sm:$0xf]
  %v36 = vld [vmem:[%s1 + $0x1c] sm:$0xf]
  %v37 = vld [vmem:[%s1 + $0x20] sm:$0xf]
  %v38 = vld [vmem:[%s1 + $0x24] sm:$0xf]
  %v39 = vld [vmem:[%s1 + $0x28] sm:$0xf]
  %v40 = vld [vmem:[%s1 + $0x2c] sm:$0xf]
  %v41 = vld [vmem:[%s1 + $0x30] sm:$0xf]
  %v42 = vld [vmem:[%s1 + $0x34] sm:$0xf]
  %v43 = vld [vmem:[%s1 + $0x38] sm:$0xf]
  %v44 = vld [vmem:[%s1 + $0x3c] sm:$0xf]
  %v45 = vld [vmem:[%s1 + $0x40] sm:$0xf]
  %v46 = vld [vmem:[%s1 + $0x44] sm:$0xf]
  %v47 = vld [vmem:[%s1 + $0x48] sm:$0xf]
  %v48 = vld [vmem:[%s1 + $0x4c] sm:$0xf]
  %v49 = vld [vmem:[%s1 + $0x50] sm:$0xf]
  %v50 = vld [vmem:[%s1 + $0x54] sm:$0xf]
  %v51 = vld [vmem:[%s1 + $0x58] sm:$0xf]
  %v52 = vld [vmem:[%s1 + $0x5c] sm:$0xf]
  %v53 = vld [vmem:[%s1 + $0x60] sm:$0xf]
  %v54 = vld [vmem:[%s1 + $0x64] sm:$0xf]
  %v55 = vld [vmem:[%s1 + $0x68] sm:$0xf]
  %v56 = vld [vmem:[%s1 + $0x6c] sm:$0xf]
  %v57 = vld [vmem:[%s1 + $0x70] sm:$0xf]
  %v58 = vld [vmem:[%s1 + $0x74] sm:$0xf]
  %v59 = vld [vmem:[%s1 + $0x78] sm:$0xf]
  %v60 = vld [vmem:[%s1 + $0x7c] sm:$0xf]
  %v61 = vld [vmem:[%s1 + $0x80] sm:$0xf]
  %v62 = vld [vmem:[%s1 + $0x84] sm:$0xf]
  %v63 = vld [vmem:[%s1 + $0x88] sm:$0xf]
  %v64 = vld [vmem:[%s1 + $0x8c] sm:$0xf]
  %v65 = vld [vmem:[%s1 + $0x90] sm:$0xf]
  %v66 = vld [vmem:[%s1 + $0x94] sm:$0xf]
  %v67 = vld [vmem:[%s1 + $0x98] sm:$0xf]
  %v68 = vld [vmem:[%s1 + $0x9c] sm:$0xf]
  %v69 = vld [vmem:[%s1 + $0xa0] sm:$0xf]
  %v70 = vld [vmem:[%s1 + $0xa4] sm:$0xf]
  %v71 = vld [vmem:[%s1 + $0xa8] sm:$0xf]
  %v72 = vld [vmem:[%s1 + $0xac] sm:$0xf]
  %v73 = vld [vmem:[%s1 + $0xb0] sm:$0xf]
  %v74 = vld [vmem:[%s1 + $0xb4] sm:$0xf]
  %v75 = vld [vmem:[%s1 + $0xb8] sm:$0xf]
  %v76 = vld [vmem:[%s1 + $0xbc] sm:$0xf]
  %v77 = vld [vmem:[%s2] sm:$0x1]
  %v79 = vlaneseq
  %v80 = vshrl.u32 %v79, 7
  %v81 = vsub.s32 0, %v80
  %v82 = vrot.slane %v77, %v81
  %v86 = vunpack.c.l.b16 %v27
  %v87 = vunpack.c.h.b16 %v27
  %v88 = vunpack.c.l.b16 %v28
  %v89 = vpack.c.b16 %v86, %v86
  %v90 = vpack.c.b16 %v87, %v87
  %v91 = vpack.c.b16 %v88, %v88
  %v143 = vunpack.c.l.b16 %v29
  %v144 = vunpack.c.l.b16 %v30
  %v145 = vunpack.c.l.b16 %v31
  %v146 = vunpack.c.l.b16 %v32
  %v147 = vunpack.c.l.b16 %v33
  %v148 = vunpack.c.l.b16 %v34
  %v149 = vunpack.c.l.b16 %v35
  %v150 = vunpack.c.l.b16 %v36
  %v151 = vunpack.c.l.b16 %v37
  %v152 = vunpack.c.l.b16 %v38
  %v153 = vunpack.c.l.b16 %v39
  %v154 = vunpack.c.l.b16 %v40
  %v155 = vunpack.c.l.b16 %v41
  %v156 = vunpack.c.l.b16 %v42
  %v157 = vunpack.c.l.b16 %v43
  %v158 = vunpack.c.l.b16 %v44
  %v159 = vunpack.c.l.b16 %v45
  %v160 = vunpack.c.l.b16 %v46
  %v161 = vunpack.c.l.b16 %v47
  %v162 = vunpack.c.l.b16 %v48
  %v163 = vunpack.c.l.b16 %v49
  %v164 = vunpack.c.l.b16 %v50
  %v165 = vunpack.c.l.b16 %v51
  %v166 = vunpack.c.l.b16 %v52
  %v167 = vunpack.c.l.b16 %v53
  %v168 = vunpack.c.l.b16 %v54
  %v169 = vunpack.c.l.b16 %v55
  %v170 = vunpack.c.l.b16 %v56
  %v171 = vunpack.c.l.b16 %v57
  %v172 = vunpack.c.l.b16 %v58
  %v173 = vunpack.c.l.b16 %v59
  %v174 = vunpack.c.l.b16 %v60
  %v175 = vunpack.c.l.b16 %v61
  %v176 = vunpack.c.l.b16 %v62
  %v177 = vunpack.c.l.b16 %v63
  %v178 = vunpack.c.l.b16 %v64
  %v179 = vunpack.c.l.b16 %v65
  %v180 = vunpack.c.l.b16 %v66
  %v181 = vunpack.c.l.b16 %v67
  %v182 = vunpack.c.l.b16 %v68
  %v183 = vunpack.c.l.b16 %v69
  %v184 = vunpack.c.l.b16 %v70
  %v185 = vunpack.c.l.b16 %v71
  %v186 = vunpack.c.l.b16 %v72
  %v187 = vunpack.c.l.b16 %v73
  %v188 = vunpack.c.l.b16 %v74
  %v189 = vunpack.c.l.b16 %v75
  %v190 = vunpack.c.l.b16 %v76
  %v191 = vpack.c.b16 %v144, %v143
  %v192 = vpack.c.b16 %v146, %v145
  %v193 = vpack.c.b16 %v148, %v147
  %v194 = vpack.c.b16 %v150, %v149
  %v195 = vpack.c.b16 %v152, %v151
  %v196 = vpack.c.b16 %v154, %v153
  %v197 = vpack.c.b16 %v156, %v155
  %v198 = vpack.c.b16 %v158, %v157
  %v199 = vpack.c.b16 %v160, %v159
  %v200 = vpack.c.b16 %v162, %v161
  %v201 = vpack.c.b16 %v164, %v163
  %v202 = vpack.c.b16 %v166, %v165
  %v203 = vpack.c.b16 %v168, %v167
  %v204 = vpack.c.b16 %v170, %v169
  %v205 = vpack.c.b16 %v172, %v171
  %v206 = vpack.c.b16 %v174, %v173
  %v207 = vpack.c.b16 %v176, %v175
  %v208 = vpack.c.b16 %v178, %v177
  %v209 = vpack.c.b16 %v180, %v179
  %v210 = vpack.c.b16 %v182, %v181
  %v211 = vpack.c.b16 %v184, %v183
  %v212 = vpack.c.b16 %v186, %v185
  %v213 = vpack.c.b16 %v188, %v187
  %v214 = vpack.c.b16 %v190, %v189
  %239 = vmatprep.subr.bf16.mxu0 0
  %240 = vmatpush1.bf16.msra.mxu0 %v191
  %241 = vmatprep.subr.bf16.mxu0 0
  %242 = vmatpush1.bf16.msra.mxu0 %v192
  %243 = vmatprep.subr.bf16.mxu0 0
  %244 = vmatpush1.bf16.msra.mxu0 %v193
  %245 = vmatprep.subr.bf16.mxu0 0
  %246 = vmatpush1.bf16.msra.mxu0 %v194
  %247 = vmatprep.subr.bf16.mxu0 0
  %248 = vmatpush1.bf16.msra.mxu0 %v195
  %249 = vmatprep.subr.bf16.mxu0 0
  %250 = vmatpush1.bf16.msra.mxu0 %v196
  %251 = vmatprep.subr.bf16.mxu0 0
  %252 = vmatpush1.bf16.msra.mxu0 %v197
  %253 = vmatprep.subr.bf16.mxu0 0
  %254 = vmatpush1.bf16.msra.mxu0 %v198
  %255 = vmatprep.subr.bf16.mxu0 0
  %256 = vmatpush1.bf16.msra.mxu0 %v199
  %257 = vmatprep.subr.bf16.mxu0 0
  %258 = vmatpush1.bf16.msra.mxu0 %v200
  %259 = vmatprep.subr.bf16.mxu0 0
  %260 = vmatpush1.bf16.msra.mxu0 %v201
  %261 = vmatprep.subr.bf16.mxu0 0
  %262 = vmatpush1.bf16.msra.mxu0 %v202
  %263 = vmatprep.subr.bf16.mxu0 0
  %264 = vmatpush1.bf16.msra.mxu0 %v203
  %265 = vmatprep.subr.bf16.mxu0 0
  %266 = vmatpush1.bf16.msra.mxu0 %v204
  %267 = vmatprep.subr.bf16.mxu0 0
  %268 = vmatpush1.bf16.msra.mxu0 %v205
  %269 = vmatprep.subr.bf16.mxu0 0
  %270 = vmatpush1.bf16.msra.mxu0 %v206
  %271 = vmatprep.mubr.bf16.mxu0 %v90
  %272 = vmatmul.mubr.bf16.gmra.mrb[0].mxu0 %v89
  %v273 = vpop.f32.mrb[0].mxu0
  %v274 = vadd.f32 %v82, %v273
  %v275 = vpop.f32.mrb[0].mxu0
  %v276 = vpop.f32.mrb[0].mxu0
  %v277 = vpop.f32.mrb[0].mxu0
  %278 = vdwg.mxu0
  %279 = vmatprep.subr.bf16.mxu0 0
  %280 = vmatpush1.bf16.msra.mxu0 %v207
  %281 = vmatprep.subr.bf16.mxu0 0
  %282 = vmatpush1.bf16.msra.mxu0 %v208
  %283 = vmatprep.subr.bf16.mxu0 0
  %284 = vmatpush1.bf16.msra.mxu0 %v209
  %285 = vmatprep.subr.bf16.mxu0 0
  %286 = vmatpush1.bf16.msra.mxu0 %v210
  %287 = vmatprep.subr.bf16.mxu0 0
  %288 = vmatpush1.bf16.msra.mxu0 %v211
  %289 = vmatprep.subr.bf16.mxu0 0
  %290 = vmatpush1.bf16.msra.mxu0 %v212
  %291 = vmatprep.subr.bf16.mxu0 0
  %292 = vmatpush1.bf16.msra.mxu0 %v213
  %293 = vmatprep.subr.bf16.mxu0 0
  %294 = vmatpush1.bf16.msra.mxu0 %v214
  %295 = vmatprep.subr.bf16.mxu0 0
  %296 = vmatpush1.bf16.msra.mxu0 0
  %297 = vmatprep.subr.bf16.mxu0 0
  %298 = vmatpush1.bf16.msra.mxu0 0
  %299 = vmatprep.subr.bf16.mxu0 0
  %300 = vmatpush1.bf16.msra.mxu0 0
  %301 = vmatprep.subr.bf16.mxu0 0
  %302 = vmatpush1.bf16.msra.mxu0 0
  %303 = vmatprep.subr.bf16.mxu0 0
  %304 = vmatpush1.bf16.msra.mxu0 0
  %305 = vmatprep.subr.bf16.mxu0 0
  %306 = vmatpush1.bf16.msra.mxu0 0
  %307 = vmatprep.subr.bf16.mxu0 0
  %308 = vmatpush1.bf16.msra.mxu0 0
  %309 = vmatprep.subr.bf16.mxu0 0
  %310 = vmatpush1.bf16.msra.mxu0 0
  %311 = vmatprep.mubr.bf16.mxu0 0
  %312 = vmatmul.mubr.bf16.gmra.mrb[0].mxu0 %v91
  %v313 = vpop.f32.mrb[0].mxu0
  %v314 = vadd.f32 %v274, %v313
  %v315 = vpop.f32.mrb[0].mxu0
  %v316 = vpop.f32.mrb[0].mxu0
  %v317 = vpop.f32.mrb[0].mxu0
  %318 = vdwg.mxu0
  %v319 = vmax.f32 %v314, 0.0
  %v320 = vpack.c.bf16 %v319, %v319
  %v321 = vld [vmem:[%s3] sm:$0xf]
  %v322 = vld [vmem:[%s3 + $0x4] sm:$0xf]
  %v323 = vld [vmem:[%s3 + $0x8] sm:$0xf]
  %v324 = vld [vmem:[%s3 + $0xc] sm:$0xf]
  %v325 = vld [vmem:[%s3 + $0x10] sm:$0xf]
  %v326 = vld [vmem:[%s3 + $0x14] sm:$0xf]
  %v327 = vld [vmem:[%s3 + $0x18] sm:$0xf]
  %v328 = vld [vmem:[%s3 + $0x1c] sm:$0xf]
  %v329 = vld [vmem:[%s3 + $0x20] sm:$0xf]
  %v330 = vld [vmem:[%s3 + $0x24] sm:$0xf]
  %v331 = vld [vmem:[%s3 + $0x28] sm:$0xf]
  %v332 = vld [vmem:[%s3 + $0x2c] sm:$0xf]
  %v333 = vld [vmem:[%s3 + $0x30] sm:$0xf]
  %v334 = vld [vmem:[%s3 + $0x34] sm:$0xf]
  %v335 = vld [vmem:[%s3 + $0x38] sm:$0xf]
  %v336 = vld [vmem:[%s3 + $0x3c] sm:$0xf]
  %v337 = vld [vmem:[%s4] sm:$0x1]
  %v339 = vlaneseq
  %v340 = vshrl.u32 %v339, 7
  %v341 = vsub.s32 0, %v340
  %v342 = vrot.slane %v337, %v341
  %v360 = vunpack.c.l.b16 %v321
  %v361 = vunpack.c.l.b16 %v322
  %v362 = vunpack.c.l.b16 %v323
  %v363 = vunpack.c.l.b16 %v324
  %v364 = vunpack.c.l.b16 %v325
  %v365 = vunpack.c.l.b16 %v326
  %v366 = vunpack.c.l.b16 %v327
  %v367 = vunpack.c.l.b16 %v328
  %v368 = vunpack.c.l.b16 %v329
  %v369 = vunpack.c.l.b16 %v330
  %v370 = vunpack.c.l.b16 %v331
  %v371 = vunpack.c.l.b16 %v332
  %v372 = vunpack.c.l.b16 %v333
  %v373 = vunpack.c.l.b16 %v334
  %v374 = vunpack.c.l.b16 %v335
  %v375 = vunpack.c.l.b16 %v336
  %v376 = vpack.c.b16 %v361, %v360
  %v377 = vpack.c.b16 %v363, %v362
  %v378 = vpack.c.b16 %v365, %v364
  %v379 = vpack.c.b16 %v367, %v366
  %v380 = vpack.c.b16 %v369, %v368
  %v381 = vpack.c.b16 %v371, %v370
  %v382 = vpack.c.b16 %v373, %v372
  %v383 = vpack.c.b16 %v375, %v374
  %392 = vmatprep.subr.bf16.mxu0 0
  %393 = vmatpush1.bf16.msra.mxu0 %v376
  %394 = vmatprep.subr.bf16.mxu0 0
  %395 = vmatpush1.bf16.msra.mxu0 %v377
  %396 = vmatprep.subr.bf16.mxu0 0
  %397 = vmatpush1.bf16.msra.mxu0 %v378
  %398 = vmatprep.subr.bf16.mxu0 0
  %399 = vmatpush1.bf16.msra.mxu0 %v379
  %400 = vmatprep.subr.bf16.mxu0 0
  %401 = vmatpush1.bf16.msra.mxu0 %v380
  %402 = vmatprep.subr.bf16.mxu0 0
  %403 = vmatpush1.bf16.msra.mxu0 %v381
  %404 = vmatprep.subr.bf16.mxu0 0
  %405 = vmatpush1.bf16.msra.mxu0 %v382
  %406 = vmatprep.subr.bf16.mxu0 0
  %407 = vmatpush1.bf16.msra.mxu0 %v383
  %408 = vmatprep.subr.bf16.mxu0 0
  %409 = vmatpush1.bf16.msra.mxu0 0
  %410 = vmatprep.subr.bf16.mxu0 0
  %411 = vmatpush1.bf16.msra.mxu0 0
  %412 = vmatprep.subr.bf16.mxu0 0
  %413 = vmatpush1.bf16.msra.mxu0 0
  %414 = vmatprep.subr.bf16.mxu0 0
  %415 = vmatpush1.bf16.msra.mxu0 0
  %416 = vmatprep.subr.bf16.mxu0 0
  %417 = vmatpush1.bf16.msra.mxu0 0
  %418 = vmatprep.subr.bf16.mxu0 0
  %419 = vmatpush1.bf16.msra.mxu0 0
  %420 = vmatprep.subr.bf16.mxu0 0
  %421 = vmatpush1.bf16.msra.mxu0 0
  %422 = vmatprep.subr.bf16.mxu0 0
  %423 = vmatpush1.bf16.msra.mxu0 0
  %424 = vmatprep.mubr.bf16.mxu0 0
  %425 = vmatmul.mubr.bf16.gmra.mrb[0].mxu0 %v320
  %v426 = vpop.f32.mrb[0].mxu0
  %v427 = vadd.f32 %v342, %v426
  %v428 = vpop.f32.mrb[0].mxu0
  %v429 = vpop.f32.mrb[0].mxu0
  %v430 = vpop.f32.mrb[0].mxu0
  %431 = vdwg.mxu0
  %v432 = vmax.f32 %v427, 0.0
  %v433 = vpack.c.bf16 %v432, %v432
  %v434 = vld [vmem:[%s5] sm:$0xf]
  %v435 = vld [vmem:[%s5 + $0x4] sm:$0xf]
  %v436 = vld [vmem:[%s5 + $0x8] sm:$0xf]
  %v437 = vld [vmem:[%s5 + $0xc] sm:$0xf]
  %v438 = vld [vmem:[%s5 + $0x10] sm:$0xf]
  %v439 = vld [vmem:[%s5 + $0x14] sm:$0xf]
  %v440 = vld [vmem:[%s5 + $0x18] sm:$0xf]
  %v441 = vld [vmem:[%s5 + $0x1c] sm:$0xf]
  %v442 = vld [vmem:[%s5 + $0x20] sm:$0xf]
  %v443 = vld [vmem:[%s5 + $0x24] sm:$0xf]
  %v444 = vld [vmem:[%s5 + $0x28] sm:$0xf]
  %v445 = vld [vmem:[%s5 + $0x2c] sm:$0xf]
  %v446 = vld [vmem:[%s5 + $0x30] sm:$0xf]
  %v447 = vld [vmem:[%s5 + $0x34] sm:$0xf]
  %v448 = vld [vmem:[%s5 + $0x38] sm:$0xf]
  %v449 = vld [vmem:[%s5 + $0x3c] sm:$0xf]
  %v450 = vld [vmem:[%s6] sm:$0x1]
  %v452 = vlaneseq
  %v453 = vshrl.u32 %v452, 7
  %v454 = vsub.s32 0, %v453
  %v455 = vrot.slane %v450, %v454
  %v473 = vunpack.c.l.b16 %v434
  %v474 = vunpack.c.l.b16 %v435
  %v475 = vunpack.c.l.b16 %v436
  %v476 = vunpack.c.l.b16 %v437
  %v477 = vunpack.c.l.b16 %v438
  %v478 = vunpack.c.l.b16 %v439
  %v479 = vunpack.c.l.b16 %v440
  %v480 = vunpack.c.l.b16 %v441
  %v481 = vunpack.c.l.b16 %v442
  %v482 = vunpack.c.l.b16 %v443
  %v483 = vunpack.c.l.b16 %v444
  %v484 = vunpack.c.l.b16 %v445
  %v485 = vunpack.c.l.b16 %v446
  %v486 = vunpack.c.l.b16 %v447
  %v487 = vunpack.c.l.b16 %v448
  %v488 = vunpack.c.l.b16 %v449
  %v489 = vpack.c.b16 %v474, %v473
  %v490 = vpack.c.b16 %v476, %v475
  %v491 = vpack.c.b16 %v478, %v477
  %v492 = vpack.c.b16 %v480, %v479
  %v493 = vpack.c.b16 %v482, %v481
  %v494 = vpack.c.b16 %v484, %v483
  %v495 = vpack.c.b16 %v486, %v485
  %v496 = vpack.c.b16 %v488, %v487
  %505 = vmatprep.subr.bf16.mxu0 0
  %506 = vmatpush1.bf16.msra.mxu0 %v489
  %507 = vmatprep.subr.bf16.mxu0 0
  %508 = vmatpush1.bf16.msra.mxu0 %v490
  %509 = vmatprep.subr.bf16.mxu0 0
  %510 = vmatpush1.bf16.msra.mxu0 %v491
  %511 = vmatprep.subr.bf16.mxu0 0
  %512 = vmatpush1.bf16.msra.mxu0 %v492
  %513 = vmatprep.subr.bf16.mxu0 0
  %514 = vmatpush1.bf16.msra.mxu0 %v493
  %515 = vmatprep.subr.bf16.mxu0 0
  %516 = vmatpush1.bf16.msra.mxu0 %v494
  %517 = vmatprep.subr.bf16.mxu0 0
  %518 = vmatpush1.bf16.msra.mxu0 %v495
  %519 = vmatprep.subr.bf16.mxu0 0
  %520 = vmatpush1.bf16.msra.mxu0 %v496
  %521 = vmatprep.subr.bf16.mxu0 0
  %522 = vmatpush1.bf16.msra.mxu0 0
  %523 = vmatprep.subr.bf16.mxu0 0
  %524 = vmatpush1.bf16.msra.mxu0 0
  %525 = vmatprep.subr.bf16.mxu0 0
  %526 = vmatpush1.bf16.msra.mxu0 0
  %527 = vmatprep.subr.bf16.mxu0 0
  %528 = vmatpush1.bf16.msra.mxu0 0
  %529 = vmatprep.subr.bf16.mxu0 0
  %530 = vmatpush1.bf16.msra.mxu0 0
  %531 = vmatprep.subr.bf16.mxu0 0
  %532 = vmatpush1.bf16.msra.mxu0 0
  %533 = vmatprep.subr.bf16.mxu0 0
  %534 = vmatpush1.bf16.msra.mxu0 0
  %535 = vmatprep.subr.bf16.mxu0 0
  %536 = vmatpush1.bf16.msra.mxu0 0
  %537 = vmatprep.mubr.bf16.mxu0 0
  %538 = vmatmul.mubr.bf16.gmra.mrb[0].mxu0 %v433
  %v539 = vpop.f32.mrb[0].mxu0
  %v540 = vadd.f32 %v455, %v539
  %v541 = vpop.f32.mrb[0].mxu0
  %v542 = vpop.f32.mrb[0].mxu0
  %v543 = vpop.f32.mrb[0].mxu0
  %544 = vdwg.mxu0
  %545 = vst [vmem:[%s7] sm:$0xff] %v540
  // Predicated region
  $region30: #{cifar_cnn_forward.7} parent=0 // pred_check
    _
  $region31: #{cifar_cnn_forward.7} parent=0 // pred_check_branch
    %547 = sbr.rel (0) target = $region33
  $region32: #{cifar_cnn_forward.7} parent=0 // pred_region
    _
  $region33: #{cifar_cnn_forward.7} parent=0 // pred_fallthru
    _
  // Predicated region
  $region34: #{cifar_cnn_forward.7} parent=0 // pred_check
    _
  $region35: #{cifar_cnn_forward.7} parent=0 // pred_check_branch
    %549 = sbr.rel (0) target = $region37
  $region36: #{cifar_cnn_forward.7} parent=0 // pred_region
    _
  $region37: #{cifar_cnn_forward.7} parent=0 // pred_fallthru
    _

// kernel: cifar_cnn_forward.6
$region0: #{cifar_cnn_forward.6}
  #allocation0 [shape = 'u32[]', space=smem, size = 0x4, offset = 0x4, fixed_abs, tag = 'smem constant byte address 0x4 - core index']
  #allocation1 [shape = 'u32[144,128]{1,0:T(1,128)}', space=vmem, size = 0x12000, scoped, tag = 'internal scratch']
  %s0 = inlined_call_operand.vmem [shape: bf16[48,128], index: 0, kind: input, shape index: {}]
  %s1 = inlined_call_operand.vmem [shape: bf16[96,48], index: 1, kind: input, shape index: {}]
  %s2 = inlined_call_operand.vmem [shape: bf16[4,128,512], index: 2, kind: input, shape index: {}]
  %s3 = inlined_call_operand.vmem [shape: f32[1,128], index: 3, kind: input, shape index: {}]
  %s4 = inlined_call_operand.vmem [shape: bf16[24,128], index: 4, kind: output, shape index: {}]
  %s5 = sld [smem:[#allocation0]]
  $region26: #{cifar_cnn_forward.6} parent=0
    _
  %s7 = ssub.s32 1, %s5
  %s8 = scalar_select 0, %s7, %s5
  // Predicated region
  $region2: #{cifar_cnn_forward.6} parent=0 // pred_check
    _
  $region3: #{cifar_cnn_forward.6} parent=0 // pred_check_branch
    %10 = sbr.rel (0) target = $region5
  $region4: #{cifar_cnn_forward.6} parent=0 // pred_region
    _
  $region5: #{cifar_cnn_forward.6} parent=0 // pred_fallthru
    _
  // Predicated region
  $region6: #{cifar_cnn_forward.6} parent=0 // pred_check
    _
  $region7: #{cifar_cnn_forward.6} parent=0 // pred_check_branch
    %12 = sbr.rel (0) target = $region9
  $region8: #{cifar_cnn_forward.6} parent=0 // pred_region
    _
  $region9: #{cifar_cnn_forward.6} parent=0 // pred_fallthru
    _
  // Predicated region
  $region10: #{cifar_cnn_forward.6} parent=0 // pred_check
    _
  $region11: #{cifar_cnn_forward.6} parent=0 // pred_check_branch
    %14 = sbr.rel (0) target = $region13
  $region12: #{cifar_cnn_forward.6} parent=0 // pred_region
    _
  $region13: #{cifar_cnn_forward.6} parent=0 // pred_fallthru
    _
  // Predicated region
  $region14: #{cifar_cnn_forward.6} parent=0 // pred_check
    _
  $region15: #{cifar_cnn_forward.6} parent=0 // pred_check_branch
    %16 = sbr.rel (0) target = $region17
  $region16: #{cifar_cnn_forward.6} parent=0 // pred_region
    _
  $region17: #{cifar_cnn_forward.6} parent=0 // pred_fallthru
    _
  %v18 = vld [vmem:[%s1] sm:$0xf]
  %v19 = vld [vmem:[%s1 + $0x4] sm:$0xf]
  %v20 = vld [vmem:[%s1 + $0x8] sm:$0xf]
  %v21 = vld [vmem:[%s1 + $0xc] sm:$0xf]
  %v22 = vld [vmem:[%s1 + $0x10] sm:$0xf]
  %v23 = vld [vmem:[%s1 + $0x14] sm:$0xf]
  %v24 = vld [vmem:[%s1 + $0x18] sm:$0xf]
  %v25 = vld [vmem:[%s1 + $0x1c] sm:$0xf]
  %v26 = vld [vmem:[%s1 + $0x20] sm:$0xf]
  %v27 = vld [vmem:[%s1 + $0x24] sm:$0xf]
  %v28 = vld [vmem:[%s1 + $0x28] sm:$0xf]
  %v29 = vld [vmem:[%s1 + $0x2c] sm:$0xf]
  %v30 = vld [vmem:[%s0] sm:$0xf]
  %v31 = vld [vmem:[%s0 + $0x4] sm:$0xf]
  %v32 = vld [vmem:[%s0 + $0x8] sm:$0xf]
  %v33 = vld [vmem:[%s0 + $0xc] sm:$0xf]
  %v34 = vld [vmem:[%s0 + $0x10] sm:$0xf]
  %v35 = vld [vmem:[%s0 + $0x14] sm:$0xf]
  %v48 = vunpack.c.l.b16 %v18
  %v49 = vunpack.c.l.b16 %v19
  %v50 = vunpack.c.l.b16 %v20
  %v51 = vunpack.c.l.b16 %v21
  %v52 = vunpack.c.l.b16 %v22
  %v53 = vunpack.c.l.b16 %v23
  %v54 = vunpack.c.l.b16 %v24
  %v55 = vunpack.c.l.b16 %v25
  %v56 = vunpack.c.l.b16 %v26
  %v57 = vunpack.c.l.b16 %v27
  %v58 = vunpack.c.l.b16 %v28
  %v59 = vunpack.c.l.b16 %v29
  %v60 = vpack.c.b16 %v49, %v48
  %v61 = vpack.c.b16 %v51, %v50
  %v62 = vpack.c.b16 %v53, %v52
  %v63 = vpack.c.b16 %v55, %v54
  %v64 = vpack.c.b16 %v57, %v56
  %v65 = vpack.c.b16 %v59, %v58
  %v72 = vunpack.c.l.b16 %v30
  %v73 = vunpack.c.l.b16 %v31
  %v74 = vunpack.c.l.b16 %v32
  %v75 = vunpack.c.l.b16 %v33
  %v76 = vunpack.c.l.b16 %v34
  %v77 = vunpack.c.l.b16 %v35
  %v78 = vpack.c.b16 %v73, %v72
  %v79 = vpack.c.b16 %v75, %v74
  %v80 = vpack.c.b16 %v77, %v76
  %vm84 = vcmask 392192
  %v86 = vsel %vm84, %v60, 0
  %v89 = vsel %vm84, %v61, 0
  %v92 = vsel %vm84, %v62, 0
  %v95 = vsel %vm84, %v63, 0
  %v98 = vsel %vm84, %v64, 0
  %v101 = vsel %vm84, %v65, 0
  %103 = vmatprep.subr.bf16.mxu0 0
  %104 = vmatpush1.bf16.msra.mxu0 %v78
  %105 = vmatprep.subr.bf16.mxu0 0
  %106 = vmatpush1.bf16.msra.mxu0 %v79
  %107 = vmatprep.subr.bf16.mxu0 0
  %108 = vmatpush1.bf16.msra.mxu0 %v80
  %109 = vmatprep.subr.bf16.mxu0 0
  %110 = vmatpush1.bf16.msra.mxu0 0
  %111 = vmatprep.subr.bf16.mxu0 0
  %112 = vmatpush1.bf16.msra.mxu0 0
  %113 = vmatprep.subr.bf16.mxu0 0
  %114 = vmatpush1.bf16.msra.mxu0 0
  %115 = vmatprep.subr.bf16.mxu0 0
  %116 = vmatpush1.bf16.msra.mxu0 0
  %117 = vmatprep.subr.bf16.mxu0 0
  %118 = vmatpush1.bf16.msra.mxu0 0
  %119 = vmatprep.subr.bf16.mxu0 0
  %120 = vmatpush1.bf16.msra.mxu0 0
  %121 = vmatprep.subr.bf16.mxu0 0
  %122 = vmatpush1.bf16.msra.mxu0 0
  %123 = vmatprep.subr.bf16.mxu0 0
  %124 = vmatpush1.bf16.msra.mxu0 0
  %125 = vmatprep.subr.bf16.mxu0 0
  %126 = vmatpush1.bf16.msra.mxu0 0
  %127 = vmatprep.subr.bf16.mxu0 0
  %128 = vmatpush1.bf16.msra.mxu0 0
  %129 = vmatprep.subr.bf16.mxu0 0
  %130 = vmatpush1.bf16.msra.mxu0 0
  %131 = vmatprep.subr.bf16.mxu0 0
  %132 = vmatpush1.bf16.msra.mxu0 0
  %133 = vmatprep.subr.bf16.mxu0 0
  %134 = vmatpush1.bf16.msra.mxu0 0
  %135 = vmatprep.mubr.bf16.mxu0 0
  %136 = vmatmul.mubr.bf16.gmra.mrb[0].mxu0 %v86
  %v137 = vpop.f32.mrb[0].mxu0
  %v138 = vadd.f32 0.0, %v137
  %v139 = vpop.f32.mrb[0].mxu0
  %v140 = vpop.f32.mrb[0].mxu0
  %v141 = vadd.f32 0.0, %v140
  %v142 = vpop.f32.mrb[0].mxu0
  %143 = vmatprep.mubr.bf16.mxu0 0
  %144 = vmatmul.mubr.bf16.gmra.mrb[0].mxu0 %v89
  %v145 = vpop.f32.mrb[0].mxu0
  %v146 = vadd.f32 0.0, %v145
  %v147 = vpop.f32.mrb[0].mxu0
  %v148 = vpop.f32.mrb[0].mxu0
  %v149 = vadd.f32 0.0, %v148
  %v150 = vpop.f32.mrb[0].mxu0
  %151 = vmatprep.mubr.bf16.mxu0 0
  %152 = vmatmul.mubr.bf16.gmra.mrb[0].mxu0 %v92
  %v153 = vpop.f32.mrb[0].mxu0
  %v154 = vadd.f32 0.0, %v153
  %v155 = vpop.f32.mrb[0].mxu0
  %v156 = vpop.f32.mrb[0].mxu0
  %v157 = vadd.f32 0.0, %v156
  %v158 = vpop.f32.mrb[0].mxu0
  %159 = vmatprep.mubr.bf16.mxu0 0
  %160 = vmatmul.mubr.bf16.gmra.mrb[0].mxu0 %v95
  %v161 = vpop.f32.mrb[0].mxu0
  %v162 = vadd.f32 0.0, %v161
  %v163 = vpop.f32.mrb[0].mxu0
  %v164 = vpop.f32.mrb[0].mxu0
  %v165 = vadd.f32 0.0, %v164
  %v166 = vpop.f32.mrb[0].mxu0
  %167 = vmatprep.mubr.bf16.mxu0 0
  %168 = vmatmul.mubr.bf16.gmra.mrb[0].mxu0 %v98
  %v169 = vpop.f32.mrb[0].mxu0
  %v170 = vadd.f32 0.0, %v169
  %v171 = vpop.f32.mrb[0].mxu0
  %v172 = vpop.f32.mrb[0].mxu0
  %v173 = vadd.f32 0.0, %v172
  %v174 = vpop.f32.mrb[0].mxu0
  %175 = vmatprep.mubr.bf16.mxu0 0
  %176 = vmatmul.mubr.bf16.gmra.mrb[0].mxu0 %v101
  %v177 = vpop.f32.mrb[0].mxu0
  %v178 = vadd.f32 0.0, %v177
  %v179 = vpop.f32.mrb[0].mxu0
  %v180 = vpop.f32.mrb[0].mxu0
  %v181 = vadd.f32 0.0, %v180
  %v182 = vpop.f32.mrb[0].mxu0
  %183 = vdwg.mxu0
  %v184 = vpack.c.bf16 %v141, %v138
  %v185 = vpack.c.bf16 %v146, %v146
  %v186 = vld [vmem:[%s2] sm:$0xff]
  %v187 = vld [vmem:[%s2 + $0x8] sm:$0xff]
  %v188 = vld [vmem:[%s2 + $0x10] sm:$0xff]
  %v189 = vld [vmem:[%s2 + $0x18] sm:$0xff]
  %v190 = vld [vmem:[%s2 + $0x20] sm:$0xff]
  %v191 = vld [vmem:[%s2 + $0x28] sm:$0xff]
  %v192 = vld [vmem:[%s2 + $0x30] sm:$0xff]
  %v193 = vld [vmem:[%s2 + $0x38] sm:$0xff]
  %v194 = vld [vmem:[%s2 + $0x40] sm:$0xff]
  %v195 = vld [vmem:[%s2 + $0x48] sm:$0xff]
  %v196 = vld [vmem:[%s2 + $0x50] sm:$0xff]
  %v197 = vld [vmem:[%s2 + $0x58] sm:$0xff]
  %v198 = vld [vmem:[%s2 + $0x60] sm:$0xff]
  %v199 = vld [vmem:[%s2 + $0x68] sm:$0xff]
  %v200 = vld [vmem:[%s2 + $0x70] sm:$0xff]
  %v201 = vld [vmem:[%s2 + $0x78] sm:$0xff]
  %v202 = vld [vmem:[%s2 + $0x80] sm:$0xff]
  %v203 = vld [vmem:[%s2 + $0x88] sm:$0xff]
  %v204 = vld [vmem:[%s2 + $0x90] sm:$0xff]
  %v205 = vld [vmem:[%s2 + $0x98] sm:$0xff]
  %v206 = vld [vmem:[%s2 + $0xa0] sm:$0xff]
  %v207 = vld [vmem:[%s2 + $0xa8] sm:$0xff]
  %v208 = vld [vmem:[%s2 + $0xb0] sm:$0xff]
  %v209 = vld [vmem:[%s2 + $0xb8] sm:$0xff]
  %v210 = vld [vmem:[%s2 + $0xc0] sm:$0xff]
  %v211 = vld [vmem:[%s2 + $0xc8] sm:$0xff]
  %v212 = vld [vmem:[%s2 + $0xd0] sm:$0xff]
  %v213 = vld [vmem:[%s2 + $0xd8] sm:$0xff]
  %v214 = vld [vmem:[%s2 + $0xe0] sm:$0xff]
  %v215 = vld [vmem:[%s2 + $0xe8] sm:$0xff]
  %v216 = vld [vmem:[%s2 + $0xf0] sm:$0xff]
  %v217 = vld [vmem:[%s2 + $0xf8] sm:$0xff]
  %v218 = vpack.c.bf16 %v154, %v149
  %v219 = vpack.c.bf16 %v157, %v157
  %s220 = scalar_lea.vmem %s2, 256
  %v221 = vld [vmem:[%s220] sm:$0xff]
  %v222 = vld [vmem:[%s220 + $0x8] sm:$0xff]
  %v223 = vld [vmem:[%s220 + $0x10] sm:$0xff]
  %v224 = vld [vmem:[%s220 + $0x18] sm:$0xff]
  %v225 = vld [vmem:[%s220 + $0x20] sm:$0xff]
  %v226 = vld [vmem:[%s220 + $0x28] sm:$0xff]
  %v227 = vld [vmem:[%s220 + $0x30] sm:$0xff]
  %v228 = vld [vmem:[%s220 + $0x38] sm:$0xff]
  %v229 = vld [vmem:[%s220 + $0x40] sm:$0xff]
  %v230 = vld [vmem:[%s220 + $0x48] sm:$0xff]
  %v231 = vld [vmem:[%s220 + $0x50] sm:$0xff]
  %v232 = vld [vmem:[%s220 + $0x58] sm:$0xff]
  %v233 = vld [vmem:[%s220 + $0x60] sm:$0xff]
  %v234 = vld [vmem:[%s220 + $0x68] sm:$0xff]
  %v235 = vld [vmem:[%s220 + $0x70] sm:$0xff]
  %v236 = vld [vmem:[%s220 + $0x78] sm:$0xff]
  %v237 = vld [vmem:[%s220 + $0x80] sm:$0xff]
  %v238 = vld [vmem:[%s220 + $0x88] sm:$0xff]
  %v239 = vld [vmem:[%s220 + $0x90] sm:$0xff]
  %v240 = vld [vmem:[%s220 + $0x98] sm:$0xff]
  %v241 = vld [vmem:[%s220 + $0xa0] sm:$0xff]
  %v242 = vld [vmem:[%s220 + $0xa8] sm:$0xff]
  %v243 = vld [vmem:[%s220 + $0xb0] sm:$0xff]
  %v244 = vld [vmem:[%s220 + $0xb8] sm:$0xff]
  %v245 = vld [vmem:[%s220 + $0xc0] sm:$0xff]
  %v246 = vld [vmem:[%s220 + $0xc8] sm:$0xff]
  %v247 = vld [vmem:[%s220 + $0xd0] sm:$0xff]
  %v248 = vld [vmem:[%s220 + $0xd8] sm:$0xff]
  %v249 = vld [vmem:[%s220 + $0xe0] sm:$0xff]
  %v250 = vld [vmem:[%s220 + $0xe8] sm:$0xff]
  %v251 = vld [vmem:[%s220 + $0xf0] sm:$0xff]
  %v252 = vld [vmem:[%s220 + $0xf8] sm:$0xff]
  %v285 = vunpack.c.l.b16 %v221
  %v286 = vunpack.c.h.b16 %v221
  %v287 = vunpack.c.l.b16 %v222
  %v288 = vunpack.c.h.b16 %v222
  %v289 = vunpack.c.l.b16 %v223
  %v290 = vunpack.c.h.b16 %v223
  %v291 = vunpack.c.l.b16 %v224
  %v292 = vunpack.c.h.b16 %v224
  %v293 = vunpack.c.l.b16 %v225
  %v294 = vunpack.c.h.b16 %v225
  %v295 = vunpack.c.l.b16 %v226
  %v296 = vunpack.c.h.b16 %v226
  %v297 = vunpack.c.l.b16 %v227
  %v298 = vunpack.c.h.b16 %v227
  %v299 = vunpack.c.l.b16 %v228
  %v300 = vunpack.c.h.b16 %v228
  %v301 = vunpack.c.l.b16 %v229
  %v302 = vunpack.c.h.b16 %v229
  %v303 = vunpack.c.l.b16 %v230
  %v304 = vunpack.c.h.b16 %v230
  %v305 = vunpack.c.l.b16 %v231
  %v306 = vunpack.c.h.b16 %v231
  %v307 = vunpack.c.l.b16 %v232
  %v308 = vunpack.c.h.b16 %v232
  %v309 = vunpack.c.l.b16 %v233
  %v310 = vunpack.c.h.b16 %v233
  %v311 = vunpack.c.l.b16 %v234
  %v312 = vunpack.c.h.b16 %v234
  %v313 = vunpack.c.l.b16 %v235
  %v314 = vunpack.c.h.b16 %v235
  %v315 = vunpack.c.l.b16 %v236
  %v316 = vunpack.c.h.b16 %v236
  %v317 = vunpack.c.l.b16 %v237
  %v318 = vunpack.c.h.b16 %v237
  %v319 = vunpack.c.l.b16 %v238
  %v320 = vunpack.c.h.b16 %v238
  %v321 = vunpack.c.l.b16 %v239
  %v322 = vunpack.c.h.b16 %v239
  %v323 = vunpack.c.l.b16 %v240
  %v324 = vunpack.c.h.b16 %v240
  %v325 = vunpack.c.l.b16 %v241
  %v326 = vunpack.c.h.b16 %v241
  %v327 = vunpack.c.l.b16 %v242
  %v328 = vunpack.c.h.b16 %v242
  %v329 = vunpack.c.l.b16 %v243
  %v330 = vunpack.c.h.b16 %v243
  %v331 = vunpack.c.l.b16 %v244
  %v332 = vunpack.c.h.b16 %v244
  %v333 = vunpack.c.l.b16 %v245
  %v334 = vunpack.c.h.b16 %v245
  %v335 = vunpack.c.l.b16 %v246
  %v336 = vunpack.c.h.b16 %v246
  %v337 = vunpack.c.l.b16 %v247
  %v338 = vunpack.c.h.b16 %v247
  %v339 = vunpack.c.l.b16 %v248
  %v340 = vunpack.c.h.b16 %v248
  %v341 = vunpack.c.l.b16 %v249
  %v342 = vunpack.c.h.b16 %v249
  %v343 = vunpack.c.l.b16 %v250
  %v344 = vunpack.c.h.b16 %v250
  %v345 = vunpack.c.l.b16 %v251
  %v346 = vunpack.c.h.b16 %v251
  %v347 = vunpack.c.l.b16 %v252
  %v348 = vunpack.c.h.b16 %v252
  %v349 = vpack.c.b16 %v289, %v285
  %v350 = vpack.c.b16 %v290, %v286
  %v351 = vpack.c.b16 %v291, %v287
  %v352 = vpack.c.b16 %v292, %v288
  %v353 = vpack.c.b16 %v297, %v293
  %v354 = vpack.c.b16 %v298, %v294
  %v355 = vpack.c.b16 %v299, %v295
  %v356 = vpack.c.b16 %v300, %v296
  %v357 = vpack.c.b16 %v305, %v301
  %v358 = vpack.c.b16 %v306, %v302
  %v359 = vpack.c.b16 %v307, %v303
  %v360 = vpack.c.b16 %v308, %v304
  %v361 = vpack.c.b16 %v313, %v309
  %v362 = vpack.c.b16 %v314, %v310
  %v363 = vpack.c.b16 %v315, %v311
  %v364 = vpack.c.b16 %v316, %v312
  %v365 = vpack.c.b16 %v321, %v317
  %v366 = vpack.c.b16 %v322, %v318
  %v367 = vpack.c.b16 %v323, %v319
  %v368 = vpack.c.b16 %v324, %v320
  %v369 = vpack.c.b16 %v329, %v325
  %v370 = vpack.c.b16 %v330, %v326
  %v371 = vpack.c.b16 %v331, %v327
  %v372 = vpack.c.b16 %v332, %v328
  %v373 = vpack.c.b16 %v337, %v333
  %v374 = vpack.c.b16 %v338, %v334
  %v375 = vpack.c.b16 %v339, %v335
  %v376 = vpack.c.b16 %v340, %v336
  %v377 = vpack.c.b16 %v345, %v341
  %v378 = vpack.c.b16 %v346, %v342
  %v379 = vpack.c.b16 %v347, %v343
  %v380 = vpack.c.b16 %v348, %v344
  %413 = vmatprep.subr.bf16.mxu0 %v350
  %414 = vmatpush1.bf16.msra.mxu0 %v349
  %415 = vmatprep.subr.bf16.mxu0 %v354
  %416 = vmatpush1.bf16.msra.mxu0 %v353
  %417 = vmatprep.subr.bf16.mxu0 %v358
  %418 = vmatpush1.bf16.msra.mxu0 %v357
  %419 = vmatprep.subr.bf16.mxu0 %v362
  %420 = vmatpush1.bf16.msra.mxu0 %v361
  %421 = vmatprep.subr.bf16.mxu0 %v366
  %422 = vmatpush1.bf16.msra.mxu0 %v365
  %423 = vmatprep.subr.bf16.mxu0 %v370
  %424 = vmatpush1.bf16.msra.mxu0 %v369
  %425 = vmatprep.subr.bf16.mxu0 %v374
  %426 = vmatpush1.bf16.msra.mxu0 %v373
  %427 = vmatprep.subr.bf16.mxu0 %v378
  %428 = vmatpush1.bf16.msra.mxu0 %v377
  %429 = vmatprep.subr.bf16.mxu0 0
  %430 = vmatpush1.bf16.msra.mxu0 0
  %431 = vmatprep.subr.bf16.mxu0 0
  %432 = vmatpush1.bf16.msra.mxu0 0
  %433 = vmatprep.subr.bf16.mxu0 0
  %434 = vmatpush1.bf16.msra.mxu0 0
  %435 = vmatprep.subr.bf16.mxu0 0
  %436 = vmatpush1.bf16.msra.mxu0 0
  %437 = vmatprep.subr.bf16.mxu0 0
  %438 = vmatpush1.bf16.msra.mxu0 0
  %439 = vmatprep.subr.bf16.mxu0 0
  %440 = vmatpush1.bf16.msra.mxu0 0
  %441 = vmatprep.subr.bf16.mxu0 0
  %442 = vmatpush1.bf16.msra.mxu0 0
  %443 = vmatprep.subr.bf16.mxu0 0
  %444 = vmatpush1.bf16.msra.mxu0 0
  %445 = vmatprep.mubr.bf16.mxu0 0
  %446 = vmatmul.mubr.bf16.gmra.mrb[0].mxu0 %v218
  %v447 = vpop.f32.mrb[0].mxu0
  %v448 = vadd.f32 0.0, %v447
  %v449 = vpop.f32.mrb[0].mxu0
  %v450 = vadd.f32 0.0, %v449
  %v451 = vpop.f32.mrb[0].mxu0
  %v452 = vadd.f32 0.0, %v451
  %v453 = vpop.f32.mrb[0].mxu0
  %v454 = vadd.f32 0.0, %v453
  %455 = vmatprep.mubr.bf16.mxu0 0
  %456 = vmatmul.mubr.bf16.gmra.mrb[0].mxu0 %v219
  %v457 = vpop.f32.mrb[0].mxu0
  %v458 = vadd.f32 0.0, %v457
  %v459 = vpop.f32.mrb[0].mxu0
  %v460 = vadd.f32 0.0, %v459
  %v461 = vpop.f32.mrb[0].mxu0
  %v462 = vpop.f32.mrb[0].mxu0
  %463 = vdwg.mxu0
  %464 = vmatprep.subr.bf16.mxu0 %v352
  %465 = vmatpush1.bf16.msra.mxu0 %v351
  %466 = vmatprep.subr.bf16.mxu0 %v356
  %467 = vmatpush1.bf16.msra.mxu0 %v355
  %468 = vmatprep.subr.bf16.mxu0 %v360
  %469 = vmatpush1.bf16.msra.mxu0 %v359
  %470 = vmatprep.subr.bf16.mxu0 %v364
  %471 = vmatpush1.bf16.msra.mxu0 %v363
  %472 = vmatprep.subr.bf16.mxu0 %v368
  %473 = vmatpush1.bf16.msra.mxu0 %v367
  %474 = vmatprep.subr.bf16.mxu0 %v372
  %475 = vmatpush1.bf16.msra.mxu0 %v371
  %476 = vmatprep.subr.bf16.mxu0 %v376
  %477 = vmatpush1.bf16.msra.mxu0 %v375
  %478 = vmatprep.subr.bf16.mxu0 %v380
  %479 = vmatpush1.bf16.msra.mxu0 %v379
  %480 = vmatprep.subr.bf16.mxu0 0
  %481 = vmatpush1.bf16.msra.mxu0 0
  %482 = vmatprep.subr.bf16.mxu0 0
  %483 = vmatpush1.bf16.msra.mxu0 0
  %484 = vmatprep.subr.bf16.mxu0 0
  %485 = vmatpush1.bf16.msra.mxu0 0
  %486 = vmatprep.subr.bf16.mxu0 0
  %487 = vmatpush1.bf16.msra.mxu0 0
  %488 = vmatprep.subr.bf16.mxu0 0
  %489 = vmatpush1.bf16.msra.mxu0 0
  %490 = vmatprep.subr.bf16.mxu0 0
  %491 = vmatpush1.bf16.msra.mxu0 0
  %492 = vmatprep.subr.bf16.mxu0 0
  %493 = vmatpush1.bf16.msra.mxu0 0
  %494 = vmatprep.subr.bf16.mxu0 0
  %495 = vmatpush1.bf16.msra.mxu0 0
  %496 = vmatprep.mubr.bf16.mxu0 0
  %497 = vmatmul.mubr.bf16.gmra.mrb[0].mxu0 %v218
  %v498 = vpop.f32.mrb[0].mxu0
  %v499 = vadd.f32 0.0, %v498
  %v500 = vpop.f32.mrb[0].mxu0
  %v501 = vadd.f32 0.0, %v500
  %v502 = vpop.f32.mrb[0].mxu0
  %v503 = vadd.f32 0.0, %v502
  %v504 = vpop.f32.mrb[0].mxu0
  %v505 = vadd.f32 0.0, %v504
  %506 = vmatprep.mubr.bf16.mxu0 0
  %507 = vmatmul.mubr.bf16.gmra.mrb[0].mxu0 %v219
  %v508 = vpop.f32.mrb[0].mxu0
  %v509 = vadd.f32 0.0, %v508
  %v510 = vpop.f32.mrb[0].mxu0
  %v511 = vadd.f32 0.0, %v510
  %v512 = vpop.f32.mrb[0].mxu0
  %v513 = vpop.f32.mrb[0].mxu0
  %514 = vdwg.mxu0
  %v547 = vunpack.c.l.b16 %v186
  %v548 = vunpack.c.h.b16 %v186
  %v549 = vunpack.c.l.b16 %v187
  %v550 = vunpack.c.h.b16 %v187
  %v551 = vunpack.c.l.b16 %v188
  %v552 = vunpack.c.h.b16 %v188
  %v553 = vunpack.c.l.b16 %v189
  %v554 = vunpack.c.h.b16 %v189
  %v555 = vunpack.c.l.b16 %v190
  %v556 = vunpack.c.h.b16 %v190
  %v557 = vunpack.c.l.b16 %v191
  %v558 = vunpack.c.h.b16 %v191
  %v559 = vunpack.c.l.b16 %v192
  %v560 = vunpack.c.h.b16 %v192
  %v561 = vunpack.c.l.b16 %v193
  %v562 = vunpack.c.h.b16 %v193
  %v563 = vunpack.c.l.b16 %v194
  %v564 = vunpack.c.h.b16 %v194
  %v565 = vunpack.c.l.b16 %v195
  %v566 = vunpack.c.h.b16 %v195
  %v567 = vunpack.c.l.b16 %v196
  %v568 = vunpack.c.h.b16 %v196
  %v569 = vunpack.c.l.b16 %v197
  %v570 = vunpack.c.h.b16 %v197
  %v571 = vunpack.c.l.b16 %v198
  %v572 = vunpack.c.h.b16 %v198
  %v573 = vunpack.c.l.b16 %v199
  %v574 = vunpack.c.h.b16 %v199
  %v575 = vunpack.c.l.b16 %v200
  %v576 = vunpack.c.h.b16 %v200
  %v577 = vunpack.c.l.b16 %v201
  %v578 = vunpack.c.h.b16 %v201
  %v579 = vunpack.c.l.b16 %v202
  %v580 = vunpack.c.h.b16 %v202
  %v581 = vunpack.c.l.b16 %v203
  %v582 = vunpack.c.h.b16 %v203
  %v583 = vunpack.c.l.b16 %v204
  %v584 = vunpack.c.h.b16 %v204
  %v585 = vunpack.c.l.b16 %v205
  %v586 = vunpack.c.h.b16 %v205
  %v587 = vunpack.c.l.b16 %v206
  %v588 = vunpack.c.h.b16 %v206
  %v589 = vunpack.c.l.b16 %v207
  %v590 = vunpack.c.h.b16 %v207
  %v591 = vunpack.c.l.b16 %v208
  %v592 = vunpack.c.h.b16 %v208
  %v593 = vunpack.c.l.b16 %v209
  %v594 = vunpack.c.h.b16 %v209
  %v595 = vunpack.c.l.b16 %v210
  %v596 = vunpack.c.h.b16 %v210
  %v597 = vunpack.c.l.b16 %v211
  %v598 = vunpack.c.h.b16 %v211
  %v599 = vunpack.c.l.b16 %v212
  %v600 = vunpack.c.h.b16 %v212
  %v601 = vunpack.c.l.b16 %v213
  %v602 = vunpack.c.h.b16 %v213
  %v603 = vunpack.c.l.b16 %v214
  %v604 = vunpack.c.h.b16 %v214
  %v605 = vunpack.c.l.b16 %v215
  %v606 = vunpack.c.h.b16 %v215
  %v607 = vunpack.c.l.b16 %v216
  %v608 = vunpack.c.h.b16 %v216
  %v609 = vunpack.c.l.b16 %v217
  %v610 = vunpack.c.h.b16 %v217
  %v611 = vpack.c.b16 %v551, %v547
  %v612 = vpack.c.b16 %v552, %v548
  %v613 = vpack.c.b16 %v553, %v549
  %v614 = vpack.c.b16 %v554, %v550
  %v615 = vpack.c.b16 %v559, %v555
  %v616 = vpack.c.b16 %v560, %v556
  %v617 = vpack.c.b16 %v561, %v557
  %v618 = vpack.c.b16 %v562, %v558
  %v619 = vpack.c.b16 %v567, %v563
  %v620 = vpack.c.b16 %v568, %v564
  %v621 = vpack.c.b16 %v569, %v565
  %v622 = vpack.c.b16 %v570, %v566
  %v623 = vpack.c.b16 %v575, %v571
  %v624 = vpack.c.b16 %v576, %v572
  %v625 = vpack.c.b16 %v577, %v573
  %v626 = vpack.c.b16 %v578, %v574
  %v627 = vpack.c.b16 %v583, %v579
  %v628 = vpack.c.b16 %v584, %v580
  %v629 = vpack.c.b16 %v585, %v581
  %v630 = vpack.c.b16 %v586, %v582
  %v631 = vpack.c.b16 %v591, %v587
  %v632 = vpack.c.b16 %v592, %v588
  %v633 = vpack.c.b16 %v593, %v589
  %v634 = vpack.c.b16 %v594, %v590
  %v635 = vpack.c.b16 %v599, %v595
  %v636 = vpack.c.b16 %v600, %v596
  %v637 = vpack.c.b16 %v601, %v597
  %v638 = vpack.c.b16 %v602, %v598
  %v639 = vpack.c.b16 %v607, %v603
  %v640 = vpack.c.b16 %v608, %v604
  %v641 = vpack.c.b16 %v609, %v605
  %v642 = vpack.c.b16 %v610, %v606
  %675 = vmatprep.subr.bf16.mxu0 %v612
  %676 = vmatpush1.bf16.msra.mxu0 %v611
  %677 = vmatprep.subr.bf16.mxu0 %v616
  %678 = vmatpush1.bf16.msra.mxu0 %v615
  %679 = vmatprep.subr.bf16.mxu0 %v620
  %680 = vmatpush1.bf16.msra.mxu0 %v619
  %681 = vmatprep.subr.bf16.mxu0 %v624
  %682 = vmatpush1.bf16.msra.mxu0 %v623
  %683 = vmatprep.subr.bf16.mxu0 %v628
  %684 = vmatpush1.bf16.msra.mxu0 %v627
  %685 = vmatprep.subr.bf16.mxu0 %v632
  %686 = vmatpush1.bf16.msra.mxu0 %v631
  %687 = vmatprep.subr.bf16.mxu0 %v636
  %688 = vmatpush1.bf16.msra.mxu0 %v635
  %689 = vmatprep.subr.bf16.mxu0 %v640
  %690 = vmatpush1.bf16.msra.mxu0 %v639
  %691 = vmatprep.subr.bf16.mxu0 0
  %692 = vmatpush1.bf16.msra.mxu0 0
  %693 = vmatprep.subr.bf16.mxu0 0
  %694 = vmatpush1.bf16.msra.mxu0 0
  %695 = vmatprep.subr.bf16.mxu0 0
  %696 = vmatpush1.bf16.msra.mxu0 0
  %697 = vmatprep.subr.bf16.mxu0 0
  %698 = vmatpush1.bf16.msra.mxu0 0
  %699 = vmatprep.subr.bf16.mxu0 0
  %700 = vmatpush1.bf16.msra.mxu0 0
  %701 = vmatprep.subr.bf16.mxu0 0
  %702 = vmatpush1.bf16.msra.mxu0 0
  %703 = vmatprep.subr.bf16.mxu0 0
  %704 = vmatpush1.bf16.msra.mxu0 0
  %705 = vmatprep.subr.bf16.mxu0 0
  %706 = vmatpush1.bf16.msra.mxu0 0
  %707 = vmatprep.mubr.bf16.mxu0 0
  %708 = vmatmul.mubr.bf16.gmra.mrb[0].mxu0 %v184
  %v709 = vpop.f32.mrb[0].mxu0
  %v710 = vadd.f32 %v448, %v709
  %v711 = vpop.f32.mrb[0].mxu0
  %v712 = vadd.f32 %v450, %v711
  %v713 = vpop.f32.mrb[0].mxu0
  %v714 = vadd.f32 %v452, %v713
  %v715 = vpop.f32.mrb[0].mxu0
  %v716 = vadd.f32 %v454, %v715
  %717 = vmatprep.mubr.bf16.mxu0 0
  %718 = vmatmul.mubr.bf16.gmra.mrb[0].mxu0 %v185
  %v719 = vpop.f32.mrb[0].mxu0
  %v720 = vadd.f32 %v458, %v719
  %v721 = vpop.f32.mrb[0].mxu0
  %v722 = vadd.f32 %v460, %v721
  %v723 = vpop.f32.mrb[0].mxu0
  %v724 = vpop.f32.mrb[0].mxu0
  %725 = vdwg.mxu0
  %726 = vmatprep.subr.bf16.mxu0 %v614
  %727 = vmatpush1.bf16.msra.mxu0 %v613
  %728 = vmatprep.subr.bf16.mxu0 %v618
  %729 = vmatpush1.bf16.msra.mxu0 %v617
  %730 = vmatprep.subr.bf16.mxu0 %v622
  %731 = vmatpush1.bf16.msra.mxu0 %v621
  %732 = vmatprep.subr.bf16.mxu0 %v626
  %733 = vmatpush1.bf16.msra.mxu0 %v625
  %734 = vmatprep.subr.bf16.mxu0 %v630
  %735 = vmatpush1.bf16.msra.mxu0 %v629
  %736 = vmatprep.subr.bf16.mxu0 %v634
  %737 = vmatpush1.bf16.msra.mxu0 %v633
  %738 = vmatprep.subr.bf16.mxu0 %v638
  %739 = vmatpush1.bf16.msra.mxu0 %v637
  %740 = vmatprep.subr.bf16.mxu0 %v642
  %741 = vmatpush1.bf16.msra.mxu0 %v641
  %742 = vmatprep.subr.bf16.mxu0 0
  %743 = vmatpush1.bf16.msra.mxu0 0
  %744 = vmatprep.subr.bf16.mxu0 0
  %745 = vmatpush1.bf16.msra.mxu0 0
  %746 = vmatprep.subr.bf16.mxu0 0
  %747 = vmatpush1.bf16.msra.mxu0 0
  %748 = vmatprep.subr.bf16.mxu0 0
  %749 = vmatpush1.bf16.msra.mxu0 0
  %750 = vmatprep.subr.bf16.mxu0 0
  %751 = vmatpush1.bf16.msra.mxu0 0
  %752 = vmatprep.subr.bf16.mxu0 0
  %753 = vmatpush1.bf16.msra.mxu0 0
  %754 = vmatprep.subr.bf16.mxu0 0
  %755 = vmatpush1.bf16.msra.mxu0 0
  %756 = vmatprep.subr.bf16.mxu0 0
  %757 = vmatpush1.bf16.msra.mxu0 0
  %758 = vmatprep.mubr.bf16.mxu0 0
  %759 = vmatmul.mubr.bf16.gmra.mrb[0].mxu0 %v184
  %v760 = vpop.f32.mrb[0].mxu0
  %v761 = vadd.f32 %v499, %v760
  %v762 = vpop.f32.mrb[0].mxu0
  %v763 = vadd.f32 %v501, %v762
  %v764 = vpop.f32.mrb[0].mxu0
  %v765 = vadd.f32 %v503, %v764
  %v766 = vpop.f32.mrb[0].mxu0
  %v767 = vadd.f32 %v505, %v766
  %768 = vmatprep.mubr.bf16.mxu0 0
  %769 = vmatmul.mubr.bf16.gmra.mrb[0].mxu0 %v185
  %v770 = vpop.f32.mrb[0].mxu0
  %v771 = vadd.f32 %v509, %v770
  %v772 = vpop.f32.mrb[0].mxu0
  %v773 = vadd.f32 %v511, %v772
  %v774 = vpop.f32.mrb[0].mxu0
  %v775 = vpop.f32.mrb[0].mxu0
  %776 = vdwg.mxu0
  %v777 = vpack.c.bf16 %v165, %v162
  %v778 = vpack.c.bf16 %v170, %v170
  %s779 = scalar_lea.vmem %s2, 512
  %v780 = vld [vmem:[%s779] sm:$0xff]
  %v781 = vld [vmem:[%s779 + $0x8] sm:$0xff]
  %v782 = vld [vmem:[%s779 + $0x10] sm:$0xff]
  %v783 = vld [vmem:[%s779 + $0x18] sm:$0xff]
  %v784 = vld [vmem:[%s779 + $0x20] sm:$0xff]
  %v785 = vld [vmem:[%s779 + $0x28] sm:$0xff]
  %v786 = vld [vmem:[%s779 + $0x30] sm:$0xff]
  %v787 = vld [vmem:[%s779 + $0x38] sm:$0xff]
  %v788 = vld [vmem:[%s779 + $0x40] sm:$0xff]
  %v789 = vld [vmem:[%s779 + $0x48] sm:$0xff]
  %v790 = vld [vmem:[%s779 + $0x50] sm:$0xff]
  %v791 = vld [vmem:[%s779 + $0x58] sm:$0xff]
  %v792 = vld [vmem:[%s779 + $0x60] sm:$0xff]
  %v793 = vld [vmem:[%s779 + $0x68] sm:$0xff]
  %v794 = vld [vmem:[%s779 + $0x70] sm:$0xff]
  %v795 = vld [vmem:[%s779 + $0x78] sm:$0xff]
  %v796 = vld [vmem:[%s779 + $0x80] sm:$0xff]
  %v797 = vld [vmem:[%s779 + $0x88] sm:$0xff]
  %v798 = vld [vmem:[%s779 + $0x90] sm:$0xff]
  %v799 = vld [vmem:[%s779 + $0x98] sm:$0xff]
  %v800 = vld [vmem:[%s779 + $0xa0] sm:$0xff]
  %v801 = vld [vmem:[%s779 + $0xa8] sm:$0xff]
  %v802 = vld [vmem:[%s779 + $0xb0] sm:$0xff]
  %v803 = vld [vmem:[%s779 + $0xb8] sm:$0xff]
  %v804 = vld [vmem:[%s779 + $0xc0] sm:$0xff]
  %v805 = vld [vmem:[%s779 + $0xc8] sm:$0xff]
  %v806 = vld [vmem:[%s779 + $0xd0] sm:$0xff]
  %v807 = vld [vmem:[%s779 + $0xd8] sm:$0xff]
  %v808 = vld [vmem:[%s779 + $0xe0] sm:$0xff]
  %v809 = vld [vmem:[%s779 + $0xe8] sm:$0xff]
  %v810 = vld [vmem:[%s779 + $0xf0] sm:$0xff]
  %v811 = vld [vmem:[%s779 + $0xf8] sm:$0xff]
  %v844 = vunpack.c.l.b16 %v780
  %v845 = vunpack.c.h.b16 %v780
  %v846 = vunpack.c.l.b16 %v781
  %v847 = vunpack.c.h.b16 %v781
  %v848 = vunpack.c.l.b16 %v782
  %v849 = vunpack.c.h.b16 %v782
  %v850 = vunpack.c.l.b16 %v783
  %v851 = vunpack.c.h.b16 %v783
  %v852 = vunpack.c.l.b16 %v784
  %v853 = vunpack.c.h.b16 %v784
  %v854 = vunpack.c.l.b16 %v785
  %v855 = vunpack.c.h.b16 %v785
  %v856 = vunpack.c.l.b16 %v786
  %v857 = vunpack.c.h.b16 %v786
  %v858 = vunpack.c.l.b16 %v787
  %v859 = vunpack.c.h.b16 %v787
  %v860 = vunpack.c.l.b16 %v788
  %v861 = vunpack.c.h.b16 %v788
  %v862 = vunpack.c.l.b16 %v789
  %v863 = vunpack.c.h.b16 %v789
  %v864 = vunpack.c.l.b16 %v790
  %v865 = vunpack.c.h.b16 %v790
  %v866 = vunpack.c.l.b16 %v791
  %v867 = vunpack.c.h.b16 %v791
  %v868 = vunpack.c.l.b16 %v792
  %v869 = vunpack.c.h.b16 %v792
  %v870 = vunpack.c.l.b16 %v793
  %v871 = vunpack.c.h.b16 %v793
  %v872 = vunpack.c.l.b16 %v794
  %v873 = vunpack.c.h.b16 %v794
  %v874 = vunpack.c.l.b16 %v795
  %v875 = vunpack.c.h.b16 %v795
  %v876 = vunpack.c.l.b16 %v796
  %v877 = vunpack.c.h.b16 %v796
  %v878 = vunpack.c.l.b16 %v797
  %v879 = vunpack.c.h.b16 %v797
  %v880 = vunpack.c.l.b16 %v798
  %v881 = vunpack.c.h.b16 %v798
  %v882 = vunpack.c.l.b16 %v799
  %v883 = vunpack.c.h.b16 %v799
  %v884 = vunpack.c.l.b16 %v800
  %v885 = vunpack.c.h.b16 %v800
  %v886 = vunpack.c.l.b16 %v801
  %v887 = vunpack.c.h.b16 %v801
  %v888 = vunpack.c.l.b16 %v802
  %v889 = vunpack.c.h.b16 %v802
  %v890 = vunpack.c.l.b16 %v803
  %v891 = vunpack.c.h.b16 %v803
  %v892 = vunpack.c.l.b16 %v804
  %v893 = vunpack.c.h.b16 %v804
  %v894 = vunpack.c.l.b16 %v805
  %v895 = vunpack.c.h.b16 %v805
  %v896 = vunpack.c.l.b16 %v806
  %v897 = vunpack.c.h.b16 %v806
  %v898 = vunpack.c.l.b16 %v807
  %v899 = vunpack.c.h.b16 %v807
  %v900 = vunpack.c.l.b16 %v808
  %v901 = vunpack.c.h.b16 %v808
  %v902 = vunpack.c.l.b16 %v809
  %v903 = vunpack.c.h.b16 %v809
  %v904 = vunpack.c.l.b16 %v810
  %v905 = vunpack.c.h.b16 %v810
  %v906 = vunpack.c.l.b16 %v811
  %v907 = vunpack.c.h.b16 %v811
  %v908 = vpack.c.b16 %v848, %v844
  %v909 = vpack.c.b16 %v849, %v845
  %v910 = vpack.c.b16 %v850, %v846
  %v911 = vpack.c.b16 %v851, %v847
  %v912 = vpack.c.b16 %v856, %v852
  %v913 = vpack.c.b16 %v857, %v853
  %v914 = vpack.c.b16 %v858, %v854
  %v915 = vpack.c.b16 %v859, %v855
  %v916 = vpack.c.b16 %v864, %v860
  %v917 = vpack.c.b16 %v865, %v861
  %v918 = vpack.c.b16 %v866, %v862
  %v919 = vpack.c.b16 %v867, %v863
  %v920 = vpack.c.b16 %v872, %v868
  %v921 = vpack.c.b16 %v873, %v869
  %v922 = vpack.c.b16 %v874, %v870
  %v923 = vpack.c.b16 %v875, %v871
  %v924 = vpack.c.b16 %v880, %v876
  %v925 = vpack.c.b16 %v881, %v877
  %v926 = vpack.c.b16 %v882, %v878
  %v927 = vpack.c.b16 %v883, %v879
  %v928 = vpack.c.b16 %v888, %v884
  %v929 = vpack.c.b16 %v889, %v885
  %v930 = vpack.c.b16 %v890, %v886
  %v931 = vpack.c.b16 %v891, %v887
  %v932 = vpack.c.b16 %v896, %v892
  %v933 = vpack.c.b16 %v897, %v893
  %v934 = vpack.c.b16 %v898, %v894
  %v935 = vpack.c.b16 %v899, %v895
  %v936 = vpack.c.b16 %v904, %v900
  %v937 = vpack.c.b16 %v905, %v901
  %v938 = vpack.c.b16 %v906, %v902
  %v939 = vpack.c.b16 %v907, %v903
  %972 = vmatprep.subr.bf16.mxu0 %v909
  %973 = vmatpush1.bf16.msra.mxu0 %v908
  %974 = vmatprep.subr.bf16.mxu0 %v913
  %975 = vmatpush1.bf16.msra.mxu0 %v912
  %976 = vmatprep.subr.bf16.mxu0 %v917
  %977 = vmatpush1.bf16.msra.mxu0 %v916
  %978 = vmatprep.subr.bf16.mxu0 %v921
  %979 = vmatpush1.bf16.msra.mxu0 %v920
  %980 = vmatprep.subr.bf16.mxu0 %v925
  %981 = vmatpush1.bf16.msra.mxu0 %v924
  %982 = vmatprep.subr.bf16.mxu0 %v929
  %983 = vmatpush1.bf16.msra.mxu0 %v928
  %984 = vmatprep.subr.bf16.mxu0 %v933
  %985 = vmatpush1.bf16.msra.mxu0 %v932
  %986 = vmatprep.subr.bf16.mxu0 %v937
  %987 = vmatpush1.bf16.msra.mxu0 %v936
  %988 = vmatprep.subr.bf16.mxu0 0
  %989 = vmatpush1.bf16.msra.mxu0 0
  %990 = vmatprep.subr.bf16.mxu0 0
  %991 = vmatpush1.bf16.msra.mxu0 0
  %992 = vmatprep.subr.bf16.mxu0 0
  %993 = vmatpush1.bf16.msra.mxu0 0
  %994 = vmatprep.subr.bf16.mxu0 0
  %995 = vmatpush1.bf16.msra.mxu0 0
  %996 = vmatprep.subr.bf16.mxu0 0
  %997 = vmatpush1.bf16.msra.mxu0 0
  %998 = vmatprep.subr.bf16.mxu0 0
  %999 = vmatpush1.bf16.msra.mxu0 0
  %1000 = vmatprep.subr.bf16.mxu0 0
  %1001 = vmatpush1.bf16.msra.mxu0 0
  %1002 = vmatprep.subr.bf16.mxu0 0
  %1003 = vmatpush1.bf16.msra.mxu0 0
  %1004 = vmatprep.mubr.bf16.mxu0 0
  %1005 = vmatmul.mubr.bf16.gmra.mrb[0].mxu0 %v777
  %v1006 = vpop.f32.mrb[0].mxu0
  %v1007 = vadd.f32 0.0, %v1006
  %v1008 = vpop.f32.mrb[0].mxu0
  %v1009 = vadd.f32 0.0, %v1008
  %v1010 = vpop.f32.mrb[0].mxu0
  %v1011 = vadd.f32 0.0, %v1010
  %v1012 = vpop.f32.mrb[0].mxu0
  %v1013 = vadd.f32 0.0, %v1012
  %1014 = vmatprep.mubr.bf16.mxu0 0
  %1015 = vmatmul.mubr.bf16.gmra.mrb[0].mxu0 %v778
  %v1016 = vpop.f32.mrb[0].mxu0
  %v1017 = vadd.f32 0.0, %v1016
  %v1018 = vpop.f32.mrb[0].mxu0
  %v1019 = vadd.f32 0.0, %v1018
  %v1020 = vpop.f32.mrb[0].mxu0
  %v1021 = vpop.f32.mrb[0].mxu0
  %1022 = vdwg.mxu0
  %1023 = vmatprep.subr.bf16.mxu0 %v911
  %1024 = vmatpush1.bf16.msra.mxu0 %v910
  %1025 = vmatprep.subr.bf16.mxu0 %v915
  %1026 = vmatpush1.bf16.msra.mxu0 %v914
  %1027 = vmatprep.subr.bf16.mxu0 %v919
  %1028 = vmatpush1.bf16.msra.mxu0 %v918
  %1029 = vmatprep.subr.bf16.mxu0 %v923
  %1030 = vmatpush1.bf16.msra.mxu0 %v922
  %1031 = vmatprep.subr.bf16.mxu0 %v927
  %1032 = vmatpush1.bf16.msra.mxu0 %v926
  %1033 = vmatprep.subr.bf16.mxu0 %v931
  %1034 = vmatpush1.bf16.msra.mxu0 %v930
  %1035 = vmatprep.subr.bf16.mxu0 %v935
  %1036 = vmatpush1.bf16.msra.mxu0 %v934
  %1037 = vmatprep.subr.bf16.mxu0 %v939
  %1038 = vmatpush1.bf16.msra.mxu0 %v938
  %1039 = vmatprep.subr.bf16.mxu0 0
  %1040 = vmatpush1.bf16.msra.mxu0 0
  %1041 = vmatprep.subr.bf16.mxu0 0
  %1042 = vmatpush1.bf16.msra.mxu0 0
  %1043 = vmatprep.subr.bf16.mxu0 0
  %1044 = vmatpush1.bf16.msra.mxu0 0
  %1045 = vmatprep.subr.bf16.mxu0 0
  %1046 = vmatpush1.bf16.msra.mxu0 0
  %1047 = vmatprep.subr.bf16.mxu0 0
  %1048 = vmatpush1.bf16.msra.mxu0 0
  %1049 = vmatprep.subr.bf16.mxu0 0
  %1050 = vmatpush1.bf16.msra.mxu0 0
  %1051 = vmatprep.subr.bf16.mxu0 0
  %1052 = vmatpush1.bf16.msra.mxu0 0
  %1053 = vmatprep.subr.bf16.mxu0 0
  %1054 = vmatpush1.bf16.msra.mxu0 0
  %1055 = vmatprep.mubr.bf16.mxu0 0
  %1056 = vmatmul.mubr.bf16.gmra.mrb[0].mxu0 %v777
  %v1057 = vpop.f32.mrb[0].mxu0
  %v1058 = vadd.f32 0.0, %v1057
  %v1059 = vpop.f32.mrb[0].mxu0
  %v1060 = vadd.f32 0.0, %v1059
  %v1061 = vpop.f32.mrb[0].mxu0
  %v1062 = vadd.f32 0.0, %v1061
  %v1063 = vpop.f32.mrb[0].mxu0
  %v1064 = vadd.f32 0.0, %v1063
  %1065 = vmatprep.mubr.bf16.mxu0 0
  %1066 = vmatmul.mubr.bf16.gmra.mrb[0].mxu0 %v778
  %v1067 = vpop.f32.mrb[0].mxu0
  %v1068 = vadd.f32 0.0, %v1067
  %v1069 = vpop.f32.mrb[0].mxu0
  %v1070 = vadd.f32 0.0, %v1069
  %v1071 = vpop.f32.mrb[0].mxu0
  %v1072 = vpop.f32.mrb[0].mxu0
  %1073 = vdwg.mxu0
  %v1074 = vadd.f32 %v710, %v1007
  %v1075 = vadd.f32 %v712, %v1009
  %v1076 = vadd.f32 %v761, %v1058
  %v1077 = vadd.f32 %v763, %v1060
  %v1078 = vadd.f32 %v714, %v1011
  %v1079 = vadd.f32 %v716, %v1013
  %v1080 = vadd.f32 %v765, %v1062
  %v1081 = vadd.f32 %v767, %v1064
  %v1082 = vadd.f32 %v720, %v1017
  %v1083 = vadd.f32 %v722, %v1019
  %v1084 = vadd.f32 %v771, %v1068
  %v1085 = vadd.f32 %v773, %v1070
  %v1086 = vpack.c.bf16 %v178, %v173
  %v1087 = vpack.c.bf16 %v181, %v181
  %s1088 = scalar_lea.vmem %s2, 768
  %v1089 = vld [vmem:[%s1088] sm:$0xff]
  %v1090 = vld [vmem:[%s1088 + $0x8] sm:$0xff]
  %v1091 = vld [vmem:[%s1088 + $0x10] sm:$0xff]
  %v1092 = vld [vmem:[%s1088 + $0x18] sm:$0xff]
  %v1093 = vld [vmem:[%s1088 + $0x20] sm:$0xff]
  %v1094 = vld [vmem:[%s1088 + $0x28] sm:$0xff]
  %v1095 = vld [vmem:[%s1088 + $0x30] sm:$0xff]
  %v1096 = vld [vmem:[%s1088 + $0x38] sm:$0xff]
  %v1097 = vld [vmem:[%s1088 + $0x40] sm:$0xff]
  %v1098 = vld [vmem:[%s1088 + $0x48] sm:$0xff]
  %v1099 = vld [vmem:[%s1088 + $0x50] sm:$0xff]
  %v1100 = vld [vmem:[%s1088 + $0x58] sm:$0xff]
  %v1101 = vld [vmem:[%s1088 + $0x60] sm:$0xff]
  %v1102 = vld [vmem:[%s1088 + $0x68] sm:$0xff]
  %v1103 = vld [vmem:[%s1088 + $0x70] sm:$0xff]
  %v1104 = vld [vmem:[%s1088 + $0x78] sm:$0xff]
  %v1105 = vld [vmem:[%s1088 + $0x80] sm:$0xff]
  %v1106 = vld [vmem:[%s1088 + $0x88] sm:$0xff]
  %v1107 = vld [vmem:[%s1088 + $0x90] sm:$0xff]
  %v1108 = vld [vmem:[%s1088 + $0x98] sm:$0xff]
  %v1109 = vld [vmem:[%s1088 + $0xa0] sm:$0xff]
  %v1110 = vld [vmem:[%s1088 + $0xa8] sm:$0xff]
  %v1111 = vld [vmem:[%s1088 + $0xb0] sm:$0xff]
  %v1112 = vld [vmem:[%s1088 + $0xb8] sm:$0xff]
  %v1113 = vld [vmem:[%s1088 + $0xc0] sm:$0xff]
  %v1114 = vld [vmem:[%s1088 + $0xc8] sm:$0xff]
  %v1115 = vld [vmem:[%s1088 + $0xd0] sm:$0xff]
  %v1116 = vld [vmem:[%s1088 + $0xd8] sm:$0xff]
  %v1117 = vld [vmem:[%s1088 + $0xe0] sm:$0xff]
  %v1118 = vld [vmem:[%s1088 + $0xe8] sm:$0xff]
  %v1119 = vld [vmem:[%s1088 + $0xf0] sm:$0xff]
  %v1120 = vld [vmem:[%s1088 + $0xf8] sm:$0xff]
  %v1153 = vunpack.c.l.b16 %v1089
  %v1154 = vunpack.c.h.b16 %v1089
  %v1155 = vunpack.c.l.b16 %v1090
  %v1156 = vunpack.c.h.b16 %v1090
  %v1157 = vunpack.c.l.b16 %v1091
  %v1158 = vunpack.c.h.b16 %v1091
  %v1159 = vunpack.c.l.b16 %v1092
  %v1160 = vunpack.c.h.b16 %v1092
  %v1161 = vunpack.c.l.b16 %v1093
  %v1162 = vunpack.c.h.b16 %v1093
  %v1163 = vunpack.c.l.b16 %v1094
  %v1164 = vunpack.c.h.b16 %v1094
  %v1165 = vunpack.c.l.b16 %v1095
  %v1166 = vunpack.c.h.b16 %v1095
  %v1167 = vunpack.c.l.b16 %v1096
  %v1168 = vunpack.c.h.b16 %v1096
  %v1169 = vunpack.c.l.b16 %v1097
  %v1170 = vunpack.c.h.b16 %v1097
  %v1171 = vunpack.c.l.b16 %v1098
  %v1172 = vunpack.c.h.b16 %v1098
  %v1173 = vunpack.c.l.b16 %v1099
  %v1174 = vunpack.c.h.b16 %v1099
  %v1175 = vunpack.c.l.b16 %v1100
  %v1176 = vunpack.c.h.b16 %v1100
  %v1177 = vunpack.c.l.b16 %v1101
  %v1178 = vunpack.c.h.b16 %v1101
  %v1179 = vunpack.c.l.b16 %v1102
  %v1180 = vunpack.c.h.b16 %v1102
  %v1181 = vunpack.c.l.b16 %v1103
  %v1182 = vunpack.c.h.b16 %v1103
  %v1183 = vunpack.c.l.b16 %v1104
  %v1184 = vunpack.c.h.b16 %v1104
  %v1185 = vunpack.c.l.b16 %v1105
  %v1186 = vunpack.c.h.b16 %v1105
  %v1187 = vunpack.c.l.b16 %v1106
  %v1188 = vunpack.c.h.b16 %v1106
  %v1189 = vunpack.c.l.b16 %v1107
  %v1190 = vunpack.c.h.b16 %v1107
  %v1191 = vunpack.c.l.b16 %v1108
  %v1192 = vunpack.c.h.b16 %v1108
  %v1193 = vunpack.c.l.b16 %v1109
  %v1194 = vunpack.c.h.b16 %v1109
  %v1195 = vunpack.c.l.b16 %v1110
  %v1196 = vunpack.c.h.b16 %v1110
  %v1197 = vunpack.c.l.b16 %v1111
  %v1198 = vunpack.c.h.b16 %v1111
  %v1199 = vunpack.c.l.b16 %v1112
  %v1200 = vunpack.c.h.b16 %v1112
  %v1201 = vunpack.c.l.b16 %v1113
  %v1202 = vunpack.c.h.b16 %v1113
  %v1203 = vunpack.c.l.b16 %v1114
  %v1204 = vunpack.c.h.b16 %v1114
  %v1205 = vunpack.c.l.b16 %v1115
  %v1206 = vunpack.c.h.b16 %v1115
  %v1207 = vunpack.c.l.b16 %v1116
  %v1208 = vunpack.c.h.b16 %v1116
  %v1209 = vunpack.c.l.b16 %v1117
  %v1210 = vunpack.c.h.b16 %v1117
  %v1211 = vunpack.c.l.b16 %v1118
  %v1212 = vunpack.c.h.b16 %v1118
  %v1213 = vunpack.c.l.b16 %v1119
  %v1214 = vunpack.c.h.b16 %v1119
  %v1215 = vunpack.c.l.b16 %v1120
  %v1216 = vunpack.c.h.b16 %v1120
  %v1217 = vpack.c.b16 %v1157, %v1153
  %v1218 = vpack.c.b16 %v1158, %v1154
  %v1219 = vpack.c.b16 %v1159, %v1155
  %v1220 = vpack.c.b16 %v1160, %v1156
  %v1221 = vpack.c.b16 %v1165, %v1161
  %v1222 = vpack.c.b16 %v1166, %v1162
  %v1223 = vpack.c.b16 %v1167, %v1163
  %v1224 = vpack.c.b16 %v1168, %v1164
  %v1225 = vpack.c.b16 %v1173, %v1169
  %v1226 = vpack.c.b16 %v1174, %v1170
  %v1227 = vpack.c.b16 %v1175, %v1171
  %v1228 = vpack.c.b16 %v1176, %v1172
  %v1229 = vpack.c.b16 %v1181, %v1177
  %v1230 = vpack.c.b16 %v1182, %v1178
  %v1231 = vpack.c.b16 %v1183, %v1179
  %v1232 = vpack.c.b16 %v1184, %v1180
  %v1233 = vpack.c.b16 %v1189, %v1185
  %v1234 = vpack.c.b16 %v1190, %v1186
  %v1235 = vpack.c.b16 %v1191, %v1187
  %v1236 = vpack.c.b16 %v1192, %v1188
  %v1237 = vpack.c.b16 %v1197, %v1193
  %v1238 = vpack.c.b16 %v1198, %v1194
  %v1239 = vpack.c.b16 %v1199, %v1195
  %v1240 = vpack.c.b16 %v1200, %v1196
  %v1241 = vpack.c.b16 %v1205, %v1201
  %v1242 = vpack.c.b16 %v1206, %v1202
  %v1243 = vpack.c.b16 %v1207, %v1203
  %v1244 = vpack.c.b16 %v1208, %v1204
  %v1245 = vpack.c.b16 %v1213, %v1209
  %v1246 = vpack.c.b16 %v1214, %v1210
  %v1247 = vpack.c.b16 %v1215, %v1211
  %v1248 = vpack.c.b16 %v1216, %v1212
  %1281 = vmatprep.subr.bf16.mxu0 %v1218
  %1282 = vmatpush1.bf16.msra.mxu0 %v1217
  %1283 = vmatprep.subr.bf16.mxu0 %v1222
  %1284 = vmatpush1.bf16.msra.mxu0 %v1221
  %1285 = vmatprep.subr.bf16.mxu0 %v1226
  %1286 = vmatpush1.bf16.msra.mxu0 %v1225
  %1287 = vmatprep.subr.bf16.mxu0 %v1230
  %1288 = vmatpush1.bf16.msra.mxu0 %v1229
  %1289 = vmatprep.subr.bf16.mxu0 %v1234
  %1290 = vmatpush1.bf16.msra.mxu0 %v1233
  %1291 = vmatprep.subr.bf16.mxu0 %v1238
  %1292 = vmatpush1.bf16.msra.mxu0 %v1237
  %1293 = vmatprep.subr.bf16.mxu0 %v1242
  %1294 = vmatpush1.bf16.msra.mxu0 %v1241
  %1295 = vmatprep.subr.bf16.mxu0 %v1246
  %1296 = vmatpush1.bf16.msra.mxu0 %v1245
  %1297 = vmatprep.subr.bf16.mxu0 0
  %1298 = vmatpush1.bf16.msra.mxu0 0
  %1299 = vmatprep.subr.bf16.mxu0 0
  %1300 = vmatpush1.bf16.msra.mxu0 0
  %1301 = vmatprep.subr.bf16.mxu0 0
  %1302 = vmatpush1.bf16.msra.mxu0 0
  %1303 = vmatprep.subr.bf16.mxu0 0
  %1304 = vmatpush1.bf16.msra.mxu0 0
  %1305 = vmatprep.subr.bf16.mxu0 0
  %1306 = vmatpush1.bf16.msra.mxu0 0
  %1307 = vmatprep.subr.bf16.mxu0 0
  %1308 = vmatpush1.bf16.msra.mxu0 0
  %1309 = vmatprep.subr.bf16.mxu0 0
  %1310 = vmatpush1.bf16.msra.mxu0 0
  %1311 = vmatprep.subr.bf16.mxu0 0
  %1312 = vmatpush1.bf16.msra.mxu0 0
  %1313 = vmatprep.mubr.bf16.mxu0 0
  %1314 = vmatmul.mubr.bf16.gmra.mrb[0].mxu0 %v1086
  %v1315 = vpop.f32.mrb[0].mxu0
  %v1316 = vadd.f32 0.0, %v1315
  %v1317 = vpop.f32.mrb[0].mxu0
  %v1318 = vadd.f32 0.0, %v1317
  %v1319 = vpop.f32.mrb[0].mxu0
  %v1320 = vadd.f32 0.0, %v1319
  %v1321 = vpop.f32.mrb[0].mxu0
  %v1322 = vadd.f32 0.0, %v1321
  %1323 = vmatprep.mubr.bf16.mxu0 0
  %1324 = vmatmul.mubr.bf16.gmra.mrb[0].mxu0 %v1087
  %v1325 = vpop.f32.mrb[0].mxu0
  %v1326 = vadd.f32 0.0, %v1325
  %v1327 = vpop.f32.mrb[0].mxu0
  %v1328 = vadd.f32 0.0, %v1327
  %v1329 = vpop.f32.mrb[0].mxu0
  %v1330 = vpop.f32.mrb[0].mxu0
  %1331 = vdwg.mxu0
  %1332 = vmatprep.subr.bf16.mxu0 %v1220
  %1333 = vmatpush1.bf16.msra.mxu0 %v1219
  %1334 = vmatprep.subr.bf16.mxu0 %v1224
  %1335 = vmatpush1.bf16.msra.mxu0 %v1223
  %1336 = vmatprep.subr.bf16.mxu0 %v1228
  %1337 = vmatpush1.bf16.msra.mxu0 %v1227
  %1338 = vmatprep.subr.bf16.mxu0 %v1232
  %1339 = vmatpush1.bf16.msra.mxu0 %v1231
  %1340 = vmatprep.subr.bf16.mxu0 %v1236
  %1341 = vmatpush1.bf16.msra.mxu0 %v1235
  %1342 = vmatprep.subr.bf16.mxu0 %v1240
  %1343 = vmatpush1.bf16.msra.mxu0 %v1239
  %1344 = vmatprep.subr.bf16.mxu0 %v1244
  %1345 = vmatpush1.bf16.msra.mxu0 %v1243
  %1346 = vmatprep.subr.bf16.mxu0 %v1248
  %1347 = vmatpush1.bf16.msra.mxu0 %v1247
  %1348 = vmatprep.subr.bf16.mxu0 0
  %1349 = vmatpush1.bf16.msra.mxu0 0
  %1350 = vmatprep.subr.bf16.mxu0 0
  %1351 = vmatpush1.bf16.msra.mxu0 0
  %1352 = vmatprep.subr.bf16.mxu0 0
  %1353 = vmatpush1.bf16.msra.mxu0 0
  %1354 = vmatprep.subr.bf16.mxu0 0
  %1355 = vmatpush1.bf16.msra.mxu0 0
  %1356 = vmatprep.subr.bf16.mxu0 0
  %1357 = vmatpush1.bf16.msra.mxu0 0
  %1358 = vmatprep.subr.bf16.mxu0 0
  %1359 = vmatpush1.bf16.msra.mxu0 0
  %1360 = vmatprep.subr.bf16.mxu0 0
  %1361 = vmatpush1.bf16.msra.mxu0 0
  %1362 = vmatprep.subr.bf16.mxu0 0
  %1363 = vmatpush1.bf16.msra.mxu0 0
  %1364 = vmatprep.mubr.bf16.mxu0 0
  %1365 = vmatmul.mubr.bf16.gmra.mrb[0].mxu0 %v1086
  %v1366 = vpop.f32.mrb[0].mxu0
  %v1367 = vadd.f32 0.0, %v1366
  %v1368 = vpop.f32.mrb[0].mxu0
  %v1369 = vadd.f32 0.0, %v1368
  %v1370 = vpop.f32.mrb[0].mxu0
  %v1371 = vadd.f32 0.0, %v1370
  %v1372 = vpop.f32.mrb[0].mxu0
  %v1373 = vadd.f32 0.0, %v1372
  %1374 = vmatprep.mubr.bf16.mxu0 0
  %1375 = vmatmul.mubr.bf16.gmra.mrb[0].mxu0 %v1087
  %v1376 = vpop.f32.mrb[0].mxu0
  %v1377 = vadd.f32 0.0, %v1376
  %v1378 = vpop.f32.mrb[0].mxu0
  %v1379 = vadd.f32 0.0, %v1378
  %v1380 = vpop.f32.mrb[0].mxu0
  %v1381 = vpop.f32.mrb[0].mxu0
  %1382 = vdwg.mxu0
  %v1383 = vadd.f32 %v1074, %v1316
  %v1384 = vadd.f32 %v1075, %v1318
  %v1385 = vadd.f32 %v1076, %v1367
  %v1386 = vadd.f32 %v1077, %v1369
  %v1387 = vadd.f32 %v1078, %v1320
  %v1388 = vadd.f32 %v1079, %v1322
  %v1389 = vadd.f32 %v1080, %v1371
  %v1390 = vadd.f32 %v1081, %v1373
  %v1391 = vadd.f32 %v1082, %v1326
  %v1392 = vadd.f32 %v1083, %v1328
  %v1393 = vadd.f32 %v1084, %v1377
  %v1394 = vadd.f32 %v1085, %v1379
  %v1395 = vmax.f32 %v1383, %v1384
  %v1396 = vmax.f32 %v1387, %v1388
  %v1397 = vmax.f32 %v1391, %v1392
  %v1398 = vmax.f32 %v1385, %v1386
  %v1399 = vmax.f32 %v1389, %v1390
  %v1400 = vmax.f32 %v1393, %v1394
  %v1401 = vmax.f32 %v1395, %v1398
  %v1402 = vmax.f32 %v1396, %v1399
  %v1403 = vmax.f32 %v1397, %v1400
  %v1404 = vld [vmem:[%s3] sm:$0x1]
  %v1406 = vlaneseq
  %v1407 = vshrl.u32 %v1406, 7
  %v1408 = vsub.s32 0, %v1407
  %v1409 = vrot.slane %v1404, %v1408
  %v1411 = vadd.f32 %v1401, %v1409
  %v1412 = vadd.f32 %v1402, %v1409
  %v1413 = vadd.f32 %v1403, %v1409
  %v1414 = vmax.f32 %v1411, 0.0
  %v1415 = vmax.f32 %v1412, 0.0
  %v1416 = vmax.f32 %v1413, 0.0
  %v1417 = vpack.c.bf16 %v1415, %v1414
  %v1418 = vpack.c.bf16 %v1416, %v1416
  %v1421 = vunpack.c.l.b16 %v1417
  %v1422 = vunpack.c.h.b16 %v1417
  %v1423 = vunpack.c.l.b16 %v1418
  %v1424 = vpack.c.b16 %v1421, %v1421
  %v1425 = vpack.c.b16 %v1422, %v1422
  %v1426 = vpack.c.b16 %v1423, %v1423
  %1430 = vst [vmem:[%s4] sm:$0xf] %v1424
  %1431 = vst [vmem:[%s4 + $0x4] sm:$0xf] %v1425
  %1432 = vst [vmem:[%s4 + $0x8] sm:$0xf] %v1426
  // Predicated region
  $region18: #{cifar_cnn_forward.6} parent=0 // pred_check
    _
  $region19: #{cifar_cnn_forward.6} parent=0 // pred_check_branch
    %1434 = sbr.rel (0) target = $region21
  $region20: #{cifar_cnn_forward.6} parent=0 // pred_region
    _
  $region21: #{cifar_cnn_forward.6} parent=0 // pred_fallthru
    _
  // Predicated region
  $region22: #{cifar_cnn_forward.6} parent=0 // pred_check
    _
  $region23: #{cifar_cnn_forward.6} parent=0 // pred_check_branch
    %1436 = sbr.rel (0) target = $region25
  $region24: #{cifar_cnn_forward.6} parent=0 // pred_region
    _
  $region25: #{cifar_cnn_forward.6} parent=0 // pred_fallthru
    _

// kernel: cifar_cnn_forward.5
$region0: #{cifar_cnn_forward.5}
  #allocation0 [shape = 'u32[]', space=smem, size = 0x4, offset = 0x4, fixed_abs, tag = 'smem constant byte address 0x4 - core index']
  #allocation1 [shape = 'u32[144,128]{1,0:T(1,128)}', space=vmem, size = 0x12000, scoped, tag = 'internal scratch']
  %s0 = inlined_call_operand.vmem [shape: bf16[112,128], index: 0, kind: input, shape index: {}]
  %s1 = inlined_call_operand.vmem [shape: bf16[288,112], index: 1, kind: input, shape index: {}]
  %s2 = inlined_call_operand.vmem [shape: bf16[6,128,512], index: 2, kind: input, shape index: {}]
  %s3 = inlined_call_operand.vmem [shape: f32[1,128], index: 3, kind: input, shape index: {}]
  %s4 = inlined_call_operand.vmem [shape: bf16[48,128], index: 4, kind: output, shape index: {}]
  %s5 = sld [smem:[#allocation0]]
  $region26: #{cifar_cnn_forward.5} parent=0
    _
  %s7 = ssub.s32 1, %s5
  %s8 = scalar_select 0, %s7, %s5
  // Predicated region
  $region2: #{cifar_cnn_forward.5} parent=0 // pred_check
    _
  $region3: #{cifar_cnn_forward.5} parent=0 // pred_check_branch
    %10 = sbr.rel (0) target = $region5
  $region4: #{cifar_cnn_forward.5} parent=0 // pred_region
    _
  $region5: #{cifar_cnn_forward.5} parent=0 // pred_fallthru
    _
  // Predicated region
  $region6: #{cifar_cnn_forward.5} parent=0 // pred_check
    _
  $region7: #{cifar_cnn_forward.5} parent=0 // pred_check_branch
    %12 = sbr.rel (0) target = $region9
  $region8: #{cifar_cnn_forward.5} parent=0 // pred_region
    _
  $region9: #{cifar_cnn_forward.5} parent=0 // pred_fallthru
    _
  // Predicated region
  $region10: #{cifar_cnn_forward.5} parent=0 // pred_check
    _
  $region11: #{cifar_cnn_forward.5} parent=0 // pred_check_branch
    %14 = sbr.rel (0) target = $region13
  $region12: #{cifar_cnn_forward.5} parent=0 // pred_region
    _
  $region13: #{cifar_cnn_forward.5} parent=0 // pred_fallthru
    _
  // Predicated region
  $region14: #{cifar_cnn_forward.5} parent=0 // pred_check
    _
  $region15: #{cifar_cnn_forward.5} parent=0 // pred_check_branch
    %16 = sbr.rel (0) target = $region17
  $region16: #{cifar_cnn_forward.5} parent=0 // pred_region
    _
  $region17: #{cifar_cnn_forward.5} parent=0 // pred_fallthru
    _
  %v18 = vld [vmem:[%s1] sm:$0xf]
  %v19 = vld [vmem:[%s1 + $0x4] sm:$0xf]
  %v20 = vld [vmem:[%s1 + $0x8] sm:$0xf]
  %v21 = vld [vmem:[%s1 + $0xc] sm:$0xf]
  %v22 = vld [vmem:[%s1 + $0x10] sm:$0xf]
  %v23 = vld [vmem:[%s1 + $0x14] sm:$0xf]
  %v24 = vld [vmem:[%s1 + $0x18] sm:$0xf]
  %v25 = vld [vmem:[%s1 + $0x1c] sm:$0xf]
  %v26 = vld [vmem:[%s1 + $0x20] sm:$0xf]
  %v27 = vld [vmem:[%s1 + $0x24] sm:$0xf]
  %v28 = vld [vmem:[%s1 + $0x28] sm:$0xf]
  %v29 = vld [vmem:[%s1 + $0x2c] sm:$0xf]
  %v30 = vld [vmem:[%s1 + $0x30] sm:$0xf]
  %v31 = vld [vmem:[%s1 + $0x34] sm:$0xf]
  %v32 = vld [vmem:[%s1 + $0x38] sm:$0xf]
  %v33 = vld [vmem:[%s1 + $0x3c] sm:$0xf]
  %v34 = vld [vmem:[%s1 + $0x40] sm:$0xf]
  %v35 = vld [vmem:[%s1 + $0x44] sm:$0xf]
  %v36 = vld [vmem:[%s1 + $0x48] sm:$0xf]
  %v37 = vld [vmem:[%s1 + $0x4c] sm:$0xf]
  %v38 = vld [vmem:[%s1 + $0x50] sm:$0xf]
  %v39 = vld [vmem:[%s1 + $0x54] sm:$0xf]
  %v40 = vld [vmem:[%s1 + $0x58] sm:$0xf]
  %v41 = vld [vmem:[%s1 + $0x5c] sm:$0xf]
  %v42 = vld [vmem:[%s1 + $0x60] sm:$0xf]
  %v43 = vld [vmem:[%s1 + $0x64] sm:$0xf]
  %v44 = vld [vmem:[%s1 + $0x68] sm:$0xf]
  %v45 = vld [vmem:[%s1 + $0x6c] sm:$0xf]
  %v46 = vld [vmem:[%s1 + $0x70] sm:$0xf]
  %v47 = vld [vmem:[%s1 + $0x74] sm:$0xf]
  %v48 = vld [vmem:[%s1 + $0x78] sm:$0xf]
  %v49 = vld [vmem:[%s1 + $0x7c] sm:$0xf]
  %v50 = vld [vmem:[%s1 + $0x80] sm:$0xf]
  %v51 = vld [vmem:[%s1 + $0x84] sm:$0xf]
  %v52 = vld [vmem:[%s1 + $0x88] sm:$0xf]
  %v53 = vld [vmem:[%s1 + $0x8c] sm:$0xf]
  %v54 = vld [vmem:[%s0] sm:$0xf]
  %v55 = vld [vmem:[%s0 + $0x4] sm:$0xf]
  %v56 = vld [vmem:[%s0 + $0x8] sm:$0xf]
  %v57 = vld [vmem:[%s0 + $0xc] sm:$0xf]
  %v58 = vld [vmem:[%s0 + $0x10] sm:$0xf]
  %v59 = vld [vmem:[%s0 + $0x14] sm:$0xf]
  %v60 = vld [vmem:[%s0 + $0x18] sm:$0xf]
  %v61 = vld [vmem:[%s0 + $0x1c] sm:$0xf]
  %v62 = vld [vmem:[%s0 + $0x20] sm:$0xf]
  %v63 = vld [vmem:[%s0 + $0x24] sm:$0xf]
  %v64 = vld [vmem:[%s0 + $0x28] sm:$0xf]
  %v65 = vld [vmem:[%s0 + $0x2c] sm:$0xf]
  %v66 = vld [vmem:[%s0 + $0x30] sm:$0xf]
  %v67 = vld [vmem:[%s0 + $0x34] sm:$0xf]
  %v104 = vunpack.c.l.b16 %v18
  %v105 = vunpack.c.l.b16 %v19
  %v106 = vunpack.c.l.b16 %v20
  %v107 = vunpack.c.l.b16 %v21
  %v108 = vunpack.c.l.b16 %v22
  %v109 = vunpack.c.l.b16 %v23
  %v110 = vunpack.c.l.b16 %v24
  %v111 = vunpack.c.l.b16 %v25
  %v112 = vunpack.c.l.b16 %v26
  %v113 = vunpack.c.l.b16 %v27
  %v114 = vunpack.c.l.b16 %v28
  %v115 = vunpack.c.l.b16 %v29
  %v116 = vunpack.c.l.b16 %v30
  %v117 = vunpack.c.l.b16 %v31
  %v118 = vunpack.c.l.b16 %v32
  %v119 = vunpack.c.l.b16 %v33
  %v120 = vunpack.c.l.b16 %v34
  %v121 = vunpack.c.l.b16 %v35
  %v122 = vunpack.c.l.b16 %v36
  %v123 = vunpack.c.l.b16 %v37
  %v124 = vunpack.c.l.b16 %v38
  %v125 = vunpack.c.l.b16 %v39
  %v126 = vunpack.c.l.b16 %v40
  %v127 = vunpack.c.l.b16 %v41
  %v128 = vunpack.c.l.b16 %v42
  %v129 = vunpack.c.l.b16 %v43
  %v130 = vunpack.c.l.b16 %v44
  %v131 = vunpack.c.l.b16 %v45
  %v132 = vunpack.c.l.b16 %v46
  %v133 = vunpack.c.l.b16 %v47
  %v134 = vunpack.c.l.b16 %v48
  %v135 = vunpack.c.l.b16 %v49
  %v136 = vunpack.c.l.b16 %v50
  %v137 = vunpack.c.l.b16 %v51
  %v138 = vunpack.c.l.b16 %v52
  %v139 = vunpack.c.l.b16 %v53
  %v140 = vpack.c.b16 %v105, %v104
  %v141 = vpack.c.b16 %v107, %v106
  %v142 = vpack.c.b16 %v109, %v108
  %v143 = vpack.c.b16 %v111, %v110
  %v144 = vpack.c.b16 %v113, %v112
  %v145 = vpack.c.b16 %v115, %v114
  %v146 = vpack.c.b16 %v117, %v116
  %v147 = vpack.c.b16 %v119, %v118
  %v148 = vpack.c.b16 %v121, %v120
  %v149 = vpack.c.b16 %v123, %v122
  %v150 = vpack.c.b16 %v125, %v124
  %v151 = vpack.c.b16 %v127, %v126
  %v152 = vpack.c.b16 %v129, %v128
  %v153 = vpack.c.b16 %v131, %v130
  %v154 = vpack.c.b16 %v133, %v132
  %v155 = vpack.c.b16 %v135, %v134
  %v156 = vpack.c.b16 %v137, %v136
  %v157 = vpack.c.b16 %v139, %v138
  %v172 = vunpack.c.l.b16 %v54
  %v173 = vunpack.c.l.b16 %v55
  %v174 = vunpack.c.l.b16 %v56
  %v175 = vunpack.c.l.b16 %v57
  %v176 = vunpack.c.l.b16 %v58
  %v177 = vunpack.c.l.b16 %v59
  %v178 = vunpack.c.l.b16 %v60
  %v179 = vunpack.c.l.b16 %v61
  %v180 = vunpack.c.l.b16 %v62
  %v181 = vunpack.c.l.b16 %v63
  %v182 = vunpack.c.l.b16 %v64
  %v183 = vunpack.c.l.b16 %v65
  %v184 = vunpack.c.l.b16 %v66
  %v185 = vunpack.c.l.b16 %v67
  %v186 = vpack.c.b16 %v173, %v172
  %v187 = vpack.c.b16 %v175, %v174
  %v188 = vpack.c.b16 %v177, %v176
  %v189 = vpack.c.b16 %v179, %v178
  %v190 = vpack.c.b16 %v181, %v180
  %v191 = vpack.c.b16 %v183, %v182
  %v192 = vpack.c.b16 %v185, %v184
  %vm200 = vcmask 916480
  %v202 = vsel %vm200, %v140, 0
  %v205 = vsel %vm200, %v141, 0
  %v208 = vsel %vm200, %v142, 0
  %v211 = vsel %vm200, %v143, 0
  %v214 = vsel %vm200, %v144, 0
  %v217 = vsel %vm200, %v145, 0
  %v220 = vsel %vm200, %v146, 0
  %v223 = vsel %vm200, %v147, 0
  %v226 = vsel %vm200, %v148, 0
  %v229 = vsel %vm200, %v149, 0
  %v232 = vsel %vm200, %v150, 0
  %v235 = vsel %vm200, %v151, 0
  %v238 = vsel %vm200, %v152, 0
  %v241 = vsel %vm200, %v153, 0
  %v244 = vsel %vm200, %v154, 0
  %v247 = vsel %vm200, %v155, 0
  %v250 = vsel %vm200, %v156, 0
  %v253 = vsel %vm200, %v157, 0
  %255 = vmatprep.subr.bf16.mxu0 0
  %256 = vmatpush1.bf16.msra.mxu0 %v186
  %257 = vmatprep.subr.bf16.mxu0 0
  %258 = vmatpush1.bf16.msra.mxu0 %v187
  %259 = vmatprep.subr.bf16.mxu0 0
  %260 = vmatpush1.bf16.msra.mxu0 %v188
  %261 = vmatprep.subr.bf16.mxu0 0
  %262 = vmatpush1.bf16.msra.mxu0 %v189
  %263 = vmatprep.subr.bf16.mxu0 0
  %264 = vmatpush1.bf16.msra.mxu0 %v190
  %265 = vmatprep.subr.bf16.mxu0 0
  %266 = vmatpush1.bf16.msra.mxu0 %v191
  %267 = vmatprep.subr.bf16.mxu0 0
  %268 = vmatpush1.bf16.msra.mxu0 %v192
  %269 = vmatprep.subr.bf16.mxu0 0
  %270 = vmatpush1.bf16.msra.mxu0 0
  %271 = vmatprep.subr.bf16.mxu0 0
  %272 = vmatpush1.bf16.msra.mxu0 0
  %273 = vmatprep.subr.bf16.mxu0 0
  %274 = vmatpush1.bf16.msra.mxu0 0
  %275 = vmatprep.subr.bf16.mxu0 0
  %276 = vmatpush1.bf16.msra.mxu0 0
  %277 = vmatprep.subr.bf16.mxu0 0
  %278 = vmatpush1.bf16.msra.mxu0 0
  %279 = vmatprep.subr.bf16.mxu0 0
  %280 = vmatpush1.bf16.msra.mxu0 0
  %281 = vmatprep.subr.bf16.mxu0 0
  %282 = vmatpush1.bf16.msra.mxu0 0
  %283 = vmatprep.subr.bf16.mxu0 0
  %284 = vmatpush1.bf16.msra.mxu0 0
  %285 = vmatprep.subr.bf16.mxu0 0
  %286 = vmatpush1.bf16.msra.mxu0 0
  %287 = vmatprep.mubr.bf16.mxu0 0
  %288 = vmatmul.mubr.bf16.gmra.mrb[0].mxu0 %v202
  %v289 = vpop.f32.mrb[0].mxu0
  %v290 = vadd.f32 0.0, %v289
  %v291 = vpop.f32.mrb[0].mxu0
  %v292 = vpop.f32.mrb[0].mxu0
  %v293 = vadd.f32 0.0, %v292
  %v294 = vpop.f32.mrb[0].mxu0
  %295 = vmatprep.mubr.bf16.mxu0 0
  %296 = vmatmul.mubr.bf16.gmra.mrb[0].mxu0 %v205
  %v297 = vpop.f32.mrb[0].mxu0
  %v298 = vadd.f32 0.0, %v297
  %v299 = vpop.f32.mrb[0].mxu0
  %v300 = vpop.f32.mrb[0].mxu0
  %v301 = vadd.f32 0.0, %v300
  %v302 = vpop.f32.mrb[0].mxu0
  %303 = vmatprep.mubr.bf16.mxu0 0
  %304 = vmatmul.mubr.bf16.gmra.mrb[0].mxu0 %v208
  %v305 = vpop.f32.mrb[0].mxu0
  %v306 = vadd.f32 0.0, %v305
  %v307 = vpop.f32.mrb[0].mxu0
  %v308 = vpop.f32.mrb[0].mxu0
  %v309 = vadd.f32 0.0, %v308
  %v310 = vpop.f32.mrb[0].mxu0
  %311 = vmatprep.mubr.bf16.mxu0 0
  %312 = vmatmul.mubr.bf16.gmra.mrb[0].mxu0 %v211
  %v313 = vpop.f32.mrb[0].mxu0
  %v314 = vadd.f32 0.0, %v313
  %v315 = vpop.f32.mrb[0].mxu0
  %v316 = vpop.f32.mrb[0].mxu0
  %v317 = vadd.f32 0.0, %v316
  %v318 = vpop.f32.mrb[0].mxu0
  %319 = vmatprep.mubr.bf16.mxu0 0
  %320 = vmatmul.mubr.bf16.gmra.mrb[0].mxu0 %v214
  %v321 = vpop.f32.mrb[0].mxu0
  %v322 = vadd.f32 0.0, %v321
  %v323 = vpop.f32.mrb[0].mxu0
  %v324 = vpop.f32.mrb[0].mxu0
  %v325 = vadd.f32 0.0, %v324
  %v326 = vpop.f32.mrb[0].mxu0
  %327 = vmatprep.mubr.bf16.mxu0 0
  %328 = vmatmul.mubr.bf16.gmra.mrb[0].mxu0 %v217
  %v329 = vpop.f32.mrb[0].mxu0
  %v330 = vadd.f32 0.0, %v329
  %v331 = vpop.f32.mrb[0].mxu0
  %v332 = vpop.f32.mrb[0].mxu0
  %v333 = vadd.f32 0.0, %v332
  %v334 = vpop.f32.mrb[0].mxu0
  %335 = vmatprep.mubr.bf16.mxu0 0
  %336 = vmatmul.mubr.bf16.gmra.mrb[0].mxu0 %v220
  %v337 = vpop.f32.mrb[0].mxu0
  %v338 = vadd.f32 0.0, %v337
  %v339 = vpop.f32.mrb[0].mxu0
  %v340 = vpop.f32.mrb[0].mxu0
  %v341 = vadd.f32 0.0, %v340
  %v342 = vpop.f32.mrb[0].mxu0
  %343 = vmatprep.mubr.bf16.mxu0 0
  %344 = vmatmul.mubr.bf16.gmra.mrb[0].mxu0 %v223
  %v345 = vpop.f32.mrb[0].mxu0
  %v346 = vadd.f32 0.0, %v345
  %v347 = vpop.f32.mrb[0].mxu0
  %v348 = vpop.f32.mrb[0].mxu0
  %v349 = vadd.f32 0.0, %v348
  %v350 = vpop.f32.mrb[0].mxu0
  %351 = vmatprep.mubr.bf16.mxu0 0
  %352 = vmatmul.mubr.bf16.gmra.mrb[0].mxu0 %v226
  %v353 = vpop.f32.mrb[0].mxu0
  %v354 = vadd.f32 0.0, %v353
  %v355 = vpop.f32.mrb[0].mxu0
  %v356 = vpop.f32.mrb[0].mxu0
  %v357 = vadd.f32 0.0, %v356
  %v358 = vpop.f32.mrb[0].mxu0
  %359 = vmatprep.mubr.bf16.mxu0 0
  %360 = vmatmul.mubr.bf16.gmra.mrb[0].mxu0 %v229
  %v361 = vpop.f32.mrb[0].mxu0
  %v362 = vadd.f32 0.0, %v361
  %v363 = vpop.f32.mrb[0].mxu0
  %v364 = vpop.f32.mrb[0].mxu0
  %v365 = vadd.f32 0.0, %v364
  %v366 = vpop.f32.mrb[0].mxu0
  %367 = vmatprep.mubr.bf16.mxu0 0
  %368 = vmatmul.mubr.bf16.gmra.mrb[0].mxu0 %v232
  %v369 = vpop.f32.mrb[0].mxu0
  %v370 = vadd.f32 0.0, %v369
  %v371 = vpop.f32.mrb[0].mxu0
  %v372 = vpop.f32.mrb[0].mxu0
  %v373 = vadd.f32 0.0, %v372
  %v374 = vpop.f32.mrb[0].mxu0
  %375 = vmatprep.mubr.bf16.mxu0 0
  %376 = vmatmul.mubr.bf16.gmra.mrb[0].mxu0 %v235
  %v377 = vpop.f32.mrb[0].mxu0
  %v378 = vadd.f32 0.0, %v377
  %v379 = vpop.f32.mrb[0].mxu0
  %v380 = vpop.f32.mrb[0].mxu0
  %v381 = vadd.f32 0.0, %v380
  %v382 = vpop.f32.mrb[0].mxu0
  %383 = vmatprep.mubr.bf16.mxu0 0
  %384 = vmatmul.mubr.bf16.gmra.mrb[0].mxu0 %v238
  %v385 = vpop.f32.mrb[0].mxu0
  %v386 = vadd.f32 0.0, %v385
  %v387 = vpop.f32.mrb[0].mxu0
  %v388 = vpop.f32.mrb[0].mxu0
  %v389 = vadd.f32 0.0, %v388
  %v390 = vpop.f32.mrb[0].mxu0
  %391 = vmatprep.mubr.bf16.mxu0 0
  %392 = vmatmul.mubr.bf16.gmra.mrb[0].mxu0 %v241
  %v393 = vpop.f32.mrb[0].mxu0
  %v394 = vadd.f32 0.0, %v393
  %v395 = vpop.f32.mrb[0].mxu0
  %v396 = vpop.f32.mrb[0].mxu0
  %v397 = vadd.f32 0.0, %v396
  %v398 = vpop.f32.mrb[0].mxu0
  %399 = vmatprep.mubr.bf16.mxu0 0
  %400 = vmatmul.mubr.bf16.gmra.mrb[0].mxu0 %v244
  %v401 = vpop.f32.mrb[0].mxu0
  %v402 = vadd.f32 0.0, %v401
  %v403 = vpop.f32.mrb[0].mxu0
  %v404 = vpop.f32.mrb[0].mxu0
  %v405 = vadd.f32 0.0, %v404
  %v406 = vpop.f32.mrb[0].mxu0
  %407 = vmatprep.mubr.bf16.mxu0 0
  %408 = vmatmul.mubr.bf16.gmra.mrb[0].mxu0 %v247
  %v409 = vpop.f32.mrb[0].mxu0
  %v410 = vadd.f32 0.0, %v409
  %v411 = vpop.f32.mrb[0].mxu0
  %v412 = vpop.f32.mrb[0].mxu0
  %v413 = vadd.f32 0.0, %v412
  %v414 = vpop.f32.mrb[0].mxu0
  %415 = vmatprep.mubr.bf16.mxu0 0
  %416 = vmatmul.mubr.bf16.gmra.mrb[0].mxu0 %v250
  %v417 = vpop.f32.mrb[0].mxu0
  %v418 = vadd.f32 0.0, %v417
  %v419 = vpop.f32.mrb[0].mxu0
  %v420 = vpop.f32.mrb[0].mxu0
  %v421 = vadd.f32 0.0, %v420
  %v422 = vpop.f32.mrb[0].mxu0
  %423 = vmatprep.mubr.bf16.mxu0 0
  %424 = vmatmul.mubr.bf16.gmra.mrb[0].mxu0 %v253
  %v425 = vpop.f32.mrb[0].mxu0
  %v426 = vadd.f32 0.0, %v425
  %v427 = vpop.f32.mrb[0].mxu0
  %v428 = vpop.f32.mrb[0].mxu0
  %v429 = vadd.f32 0.0, %v428
  %v430 = vpop.f32.mrb[0].mxu0
  %431 = vdwg.mxu0
  %v432 = vpack.c.bf16 %v293, %v290
  %v433 = vpack.c.bf16 %v301, %v298
  %v434 = vpack.c.bf16 %v309, %v306
  %v435 = vld [vmem:[%s2] sm:$0xff]
  %v436 = vld [vmem:[%s2 + $0x8] sm:$0xff]
  %v437 = vld [vmem:[%s2 + $0x10] sm:$0xff]
  %v438 = vld [vmem:[%s2 + $0x18] sm:$0xff]
  %v439 = vld [vmem:[%s2 + $0x20] sm:$0xff]
  %v440 = vld [vmem:[%s2 + $0x28] sm:$0xff]
  %v441 = vld [vmem:[%s2 + $0x30] sm:$0xff]
  %v442 = vld [vmem:[%s2 + $0x38] sm:$0xff]
  %v443 = vld [vmem:[%s2 + $0x40] sm:$0xff]
  %v444 = vld [vmem:[%s2 + $0x48] sm:$0xff]
  %v445 = vld [vmem:[%s2 + $0x50] sm:$0xff]
  %v446 = vld [vmem:[%s2 + $0x58] sm:$0xff]
  %v447 = vld [vmem:[%s2 + $0x60] sm:$0xff]
  %v448 = vld [vmem:[%s2 + $0x68] sm:$0xff]
  %v449 = vld [vmem:[%s2 + $0x70] sm:$0xff]
  %v450 = vld [vmem:[%s2 + $0x78] sm:$0xff]
  %v451 = vld [vmem:[%s2 + $0x80] sm:$0xff]
  %v452 = vld [vmem:[%s2 + $0x88] sm:$0xff]
  %v453 = vld [vmem:[%s2 + $0x90] sm:$0xff]
  %v454 = vld [vmem:[%s2 + $0x98] sm:$0xff]
  %v455 = vld [vmem:[%s2 + $0xa0] sm:$0xff]
  %v456 = vld [vmem:[%s2 + $0xa8] sm:$0xff]
  %v457 = vld [vmem:[%s2 + $0xb0] sm:$0xff]
  %v458 = vld [vmem:[%s2 + $0xb8] sm:$0xff]
  %v459 = vld [vmem:[%s2 + $0xc0] sm:$0xff]
  %v460 = vld [vmem:[%s2 + $0xc8] sm:$0xff]
  %v461 = vld [vmem:[%s2 + $0xd0] sm:$0xff]
  %v462 = vld [vmem:[%s2 + $0xd8] sm:$0xff]
  %v463 = vld [vmem:[%s2 + $0xe0] sm:$0xff]
  %v464 = vld [vmem:[%s2 + $0xe8] sm:$0xff]
  %v465 = vld [vmem:[%s2 + $0xf0] sm:$0xff]
  %v466 = vld [vmem:[%s2 + $0xf8] sm:$0xff]
  %v467 = vpack.c.bf16 %v317, %v314
  %v468 = vpack.c.bf16 %v325, %v322
  %v469 = vpack.c.bf16 %v333, %v330
  %s470 = scalar_lea.vmem %s2, 256
  %v471 = vld [vmem:[%s470] sm:$0xff]
  %v472 = vld [vmem:[%s470 + $0x8] sm:$0xff]
  %v473 = vld [vmem:[%s470 + $0x10] sm:$0xff]
  %v474 = vld [vmem:[%s470 + $0x18] sm:$0xff]
  %v475 = vld [vmem:[%s470 + $0x20] sm:$0xff]
  %v476 = vld [vmem:[%s470 + $0x28] sm:$0xff]
  %v477 = vld [vmem:[%s470 + $0x30] sm:$0xff]
  %v478 = vld [vmem:[%s470 + $0x38] sm:$0xff]
  %v479 = vld [vmem:[%s470 + $0x40] sm:$0xff]
  %v480 = vld [vmem:[%s470 + $0x48] sm:$0xff]
  %v481 = vld [vmem:[%s470 + $0x50] sm:$0xff]
  %v482 = vld [vmem:[%s470 + $0x58] sm:$0xff]
  %v483 = vld [vmem:[%s470 + $0x60] sm:$0xff]
  %v484 = vld [vmem:[%s470 + $0x68] sm:$0xff]
  %v485 = vld [vmem:[%s470 + $0x70] sm:$0xff]
  %v486 = vld [vmem:[%s470 + $0x78] sm:$0xff]
  %v487 = vld [vmem:[%s470 + $0x80] sm:$0xff]
  %v488 = vld [vmem:[%s470 + $0x88] sm:$0xff]
  %v489 = vld [vmem:[%s470 + $0x90] sm:$0xff]
  %v490 = vld [vmem:[%s470 + $0x98] sm:$0xff]
  %v491 = vld [vmem:[%s470 + $0xa0] sm:$0xff]
  %v492 = vld [vmem:[%s470 + $0xa8] sm:$0xff]
  %v493 = vld [vmem:[%s470 + $0xb0] sm:$0xff]
  %v494 = vld [vmem:[%s470 + $0xb8] sm:$0xff]
  %v495 = vld [vmem:[%s470 + $0xc0] sm:$0xff]
  %v496 = vld [vmem:[%s470 + $0xc8] sm:$0xff]
  %v497 = vld [vmem:[%s470 + $0xd0] sm:$0xff]
  %v498 = vld [vmem:[%s470 + $0xd8] sm:$0xff]
  %v499 = vld [vmem:[%s470 + $0xe0] sm:$0xff]
  %v500 = vld [vmem:[%s470 + $0xe8] sm:$0xff]
  %v501 = vld [vmem:[%s470 + $0xf0] sm:$0xff]
  %v502 = vld [vmem:[%s470 + $0xf8] sm:$0xff]
  %v535 = vunpack.c.l.b16 %v471
  %v536 = vunpack.c.h.b16 %v471
  %v537 = vunpack.c.l.b16 %v472
  %v538 = vunpack.c.h.b16 %v472
  %v539 = vunpack.c.l.b16 %v473
  %v540 = vunpack.c.h.b16 %v473
  %v541 = vunpack.c.l.b16 %v474
  %v542 = vunpack.c.h.b16 %v474
  %v543 = vunpack.c.l.b16 %v475
  %v544 = vunpack.c.h.b16 %v475
  %v545 = vunpack.c.l.b16 %v476
  %v546 = vunpack.c.h.b16 %v476
  %v547 = vunpack.c.l.b16 %v477
  %v548 = vunpack.c.h.b16 %v477
  %v549 = vunpack.c.l.b16 %v478
  %v550 = vunpack.c.h.b16 %v478
  %v551 = vunpack.c.l.b16 %v479
  %v552 = vunpack.c.h.b16 %v479
  %v553 = vunpack.c.l.b16 %v480
  %v554 = vunpack.c.h.b16 %v480
  %v555 = vunpack.c.l.b16 %v481
  %v556 = vunpack.c.h.b16 %v481
  %v557 = vunpack.c.l.b16 %v482
  %v558 = vunpack.c.h.b16 %v482
  %v559 = vunpack.c.l.b16 %v483
  %v560 = vunpack.c.h.b16 %v483
  %v561 = vunpack.c.l.b16 %v484
  %v562 = vunpack.c.h.b16 %v484
  %v563 = vunpack.c.l.b16 %v485
  %v564 = vunpack.c.h.b16 %v485
  %v565 = vunpack.c.l.b16 %v486
  %v566 = vunpack.c.h.b16 %v486
  %v567 = vunpack.c.l.b16 %v487
  %v568 = vunpack.c.h.b16 %v487
  %v569 = vunpack.c.l.b16 %v488
  %v570 = vunpack.c.h.b16 %v488
  %v571 = vunpack.c.l.b16 %v489
  %v572 = vunpack.c.h.b16 %v489
  %v573 = vunpack.c.l.b16 %v490
  %v574 = vunpack.c.h.b16 %v490
  %v575 = vunpack.c.l.b16 %v491
  %v576 = vunpack.c.h.b16 %v491
  %v577 = vunpack.c.l.b16 %v492
  %v578 = vunpack.c.h.b16 %v492
  %v579 = vunpack.c.l.b16 %v493
  %v580 = vunpack.c.h.b16 %v493
  %v581 = vunpack.c.l.b16 %v494
  %v582 = vunpack.c.h.b16 %v494
  %v583 = vunpack.c.l.b16 %v495
  %v584 = vunpack.c.h.b16 %v495
  %v585 = vunpack.c.l.b16 %v496
  %v586 = vunpack.c.h.b16 %v496
  %v587 = vunpack.c.l.b16 %v497
  %v588 = vunpack.c.h.b16 %v497
  %v589 = vunpack.c.l.b16 %v498
  %v590 = vunpack.c.h.b16 %v498
  %v591 = vunpack.c.l.b16 %v499
  %v592 = vunpack.c.h.b16 %v499
  %v593 = vunpack.c.l.b16 %v500
  %v594 = vunpack.c.h.b16 %v500
  %v595 = vunpack.c.l.b16 %v501
  %v596 = vunpack.c.h.b16 %v501
  %v597 = vunpack.c.l.b16 %v502
  %v598 = vunpack.c.h.b16 %v502
  %v599 = vpack.c.b16 %v539, %v535
  %v600 = vpack.c.b16 %v540, %v536
  %v601 = vpack.c.b16 %v541, %v537
  %v602 = vpack.c.b16 %v542, %v538
  %v603 = vpack.c.b16 %v547, %v543
  %v604 = vpack.c.b16 %v548, %v544
  %v605 = vpack.c.b16 %v549, %v545
  %v606 = vpack.c.b16 %v550, %v546
  %v607 = vpack.c.b16 %v555, %v551
  %v608 = vpack.c.b16 %v556, %v552
  %v609 = vpack.c.b16 %v557, %v553
  %v610 = vpack.c.b16 %v558, %v554
  %v611 = vpack.c.b16 %v563, %v559
  %v612 = vpack.c.b16 %v564, %v560
  %v613 = vpack.c.b16 %v565, %v561
  %v614 = vpack.c.b16 %v566, %v562
  %v615 = vpack.c.b16 %v571, %v567
  %v616 = vpack.c.b16 %v572, %v568
  %v617 = vpack.c.b16 %v573, %v569
  %v618 = vpack.c.b16 %v574, %v570
  %v619 = vpack.c.b16 %v579, %v575
  %v620 = vpack.c.b16 %v580, %v576
  %v621 = vpack.c.b16 %v581, %v577
  %v622 = vpack.c.b16 %v582, %v578
  %v623 = vpack.c.b16 %v587, %v583
  %v624 = vpack.c.b16 %v588, %v584
  %v625 = vpack.c.b16 %v589, %v585
  %v626 = vpack.c.b16 %v590, %v586
  %v627 = vpack.c.b16 %v595, %v591
  %v628 = vpack.c.b16 %v596, %v592
  %v629 = vpack.c.b16 %v597, %v593
  %v630 = vpack.c.b16 %v598, %v594
  %663 = vmatprep.subr.bf16.mxu0 %v600
  %664 = vmatpush1.bf16.msra.mxu0 %v599
  %665 = vmatprep.subr.bf16.mxu0 %v604
  %666 = vmatpush1.bf16.msra.mxu0 %v603
  %667 = vmatprep.subr.bf16.mxu0 %v608
  %668 = vmatpush1.bf16.msra.mxu0 %v607
  %669 = vmatprep.subr.bf16.mxu0 %v612
  %670 = vmatpush1.bf16.msra.mxu0 %v611
  %671 = vmatprep.subr.bf16.mxu0 %v616
  %672 = vmatpush1.bf16.msra.mxu0 %v615
  %673 = vmatprep.subr.bf16.mxu0 %v620
  %674 = vmatpush1.bf16.msra.mxu0 %v619
  %675 = vmatprep.subr.bf16.mxu0 %v624
  %676 = vmatpush1.bf16.msra.mxu0 %v623
  %677 = vmatprep.subr.bf16.mxu0 %v628
  %678 = vmatpush1.bf16.msra.mxu0 %v627
  %679 = vmatprep.subr.bf16.mxu0 0
  %680 = vmatpush1.bf16.msra.mxu0 0
  %681 = vmatprep.subr.bf16.mxu0 0
  %682 = vmatpush1.bf16.msra.mxu0 0
  %683 = vmatprep.subr.bf16.mxu0 0
  %684 = vmatpush1.bf16.msra.mxu0 0
  %685 = vmatprep.subr.bf16.mxu0 0
  %686 = vmatpush1.bf16.msra.mxu0 0
  %687 = vmatprep.subr.bf16.mxu0 0
  %688 = vmatpush1.bf16.msra.mxu0 0
  %689 = vmatprep.subr.bf16.mxu0 0
  %690 = vmatpush1.bf16.msra.mxu0 0
  %691 = vmatprep.subr.bf16.mxu0 0
  %692 = vmatpush1.bf16.msra.mxu0 0
  %693 = vmatprep.subr.bf16.mxu0 0
  %694 = vmatpush1.bf16.msra.mxu0 0
  %695 = vmatprep.mubr.bf16.mxu0 0
  %696 = vmatmul.mubr.bf16.gmra.mrb[0].mxu0 %v467
  %v697 = vpop.f32.mrb[0].mxu0
  %v698 = vadd.f32 0.0, %v697
  %v699 = vpop.f32.mrb[0].mxu0
  %v700 = vadd.f32 0.0, %v699
  %v701 = vpop.f32.mrb[0].mxu0
  %v702 = vadd.f32 0.0, %v701
  %v703 = vpop.f32.mrb[0].mxu0
  %v704 = vadd.f32 0.0, %v703
  %705 = vmatprep.mubr.bf16.mxu0 0
  %706 = vmatmul.mubr.bf16.gmra.mrb[0].mxu0 %v468
  %v707 = vpop.f32.mrb[0].mxu0
  %v708 = vadd.f32 0.0, %v707
  %v709 = vpop.f32.mrb[0].mxu0
  %v710 = vadd.f32 0.0, %v709
  %v711 = vpop.f32.mrb[0].mxu0
  %v712 = vadd.f32 0.0, %v711
  %v713 = vpop.f32.mrb[0].mxu0
  %v714 = vadd.f32 0.0, %v713
  %715 = vmatprep.mubr.bf16.mxu0 0
  %716 = vmatmul.mubr.bf16.gmra.mrb[0].mxu0 %v469
  %v717 = vpop.f32.mrb[0].mxu0
  %v718 = vadd.f32 0.0, %v717
  %v719 = vpop.f32.mrb[0].mxu0
  %v720 = vadd.f32 0.0, %v719
  %v721 = vpop.f32.mrb[0].mxu0
  %v722 = vadd.f32 0.0, %v721
  %v723 = vpop.f32.mrb[0].mxu0
  %v724 = vadd.f32 0.0, %v723
  %725 = vdwg.mxu0
  %726 = vmatprep.subr.bf16.mxu0 %v602
  %727 = vmatpush1.bf16.msra.mxu0 %v601
  %728 = vmatprep.subr.bf16.mxu0 %v606
  %729 = vmatpush1.bf16.msra.mxu0 %v605
  %730 = vmatprep.subr.bf16.mxu0 %v610
  %731 = vmatpush1.bf16.msra.mxu0 %v609
  %732 = vmatprep.subr.bf16.mxu0 %v614
  %733 = vmatpush1.bf16.msra.mxu0 %v613
  %734 = vmatprep.subr.bf16.mxu0 %v618
  %735 = vmatpush1.bf16.msra.mxu0 %v617
  %736 = vmatprep.subr.bf16.mxu0 %v622
  %737 = vmatpush1.bf16.msra.mxu0 %v621
  %738 = vmatprep.subr.bf16.mxu0 %v626
  %739 = vmatpush1.bf16.msra.mxu0 %v625
  %740 = vmatprep.subr.bf16.mxu0 %v630
  %741 = vmatpush1.bf16.msra.mxu0 %v629
  %742 = vmatprep.subr.bf16.mxu0 0
  %743 = vmatpush1.bf16.msra.mxu0 0
  %744 = vmatprep.subr.bf16.mxu0 0
  %745 = vmatpush1.bf16.msra.mxu0 0
  %746 = vmatprep.subr.bf16.mxu0 0
  %747 = vmatpush1.bf16.msra.mxu0 0
  %748 = vmatprep.subr.bf16.mxu0 0
  %749 = vmatpush1.bf16.msra.mxu0 0
  %750 = vmatprep.subr.bf16.mxu0 0
  %751 = vmatpush1.bf16.msra.mxu0 0
  %752 = vmatprep.subr.bf16.mxu0 0
  %753 = vmatpush1.bf16.msra.mxu0 0
  %754 = vmatprep.subr.bf16.mxu0 0
  %755 = vmatpush1.bf16.msra.mxu0 0
  %756 = vmatprep.subr.bf16.mxu0 0
  %757 = vmatpush1.bf16.msra.mxu0 0
  %758 = vmatprep.mubr.bf16.mxu0 0
  %759 = vmatmul.mubr.bf16.gmra.mrb[0].mxu0 %v467
  %v760 = vpop.f32.mrb[0].mxu0
  %v761 = vadd.f32 0.0, %v760
  %v762 = vpop.f32.mrb[0].mxu0
  %v763 = vadd.f32 0.0, %v762
  %v764 = vpop.f32.mrb[0].mxu0
  %v765 = vadd.f32 0.0, %v764
  %v766 = vpop.f32.mrb[0].mxu0
  %v767 = vadd.f32 0.0, %v766
  %768 = vmatprep.mubr.bf16.mxu0 0
  %769 = vmatmul.mubr.bf16.gmra.mrb[0].mxu0 %v468
  %v770 = vpop.f32.mrb[0].mxu0
  %v771 = vadd.f32 0.0, %v770
  %v772 = vpop.f32.mrb[0].mxu0
  %v773 = vadd.f32 0.0, %v772
  %v774 = vpop.f32.mrb[0].mxu0
  %v775 = vadd.f32 0.0, %v774
  %v776 = vpop.f32.mrb[0].mxu0
  %v777 = vadd.f32 0.0, %v776
  %778 = vmatprep.mubr.bf16.mxu0 0
  %779 = vmatmul.mubr.bf16.gmra.mrb[0].mxu0 %v469
  %v780 = vpop.f32.mrb[0].mxu0
  %v781 = vadd.f32 0.0, %v780
  %v782 = vpop.f32.mrb[0].mxu0
  %v783 = vadd.f32 0.0, %v782
  %v784 = vpop.f32.mrb[0].mxu0
  %v785 = vadd.f32 0.0, %v784
  %v786 = vpop.f32.mrb[0].mxu0
  %v787 = vadd.f32 0.0, %v786
  %788 = vdwg.mxu0
  %v821 = vunpack.c.l.b16 %v435
  %v822 = vunpack.c.h.b16 %v435
  %v823 = vunpack.c.l.b16 %v436
  %v824 = vunpack.c.h.b16 %v436
  %v825 = vunpack.c.l.b16 %v437
  %v826 = vunpack.c.h.b16 %v437
  %v827 = vunpack.c.l.b16 %v438
  %v828 = vunpack.c.h.b16 %v438
  %v829 = vunpack.c.l.b16 %v439
  %v830 = vunpack.c.h.b16 %v439
  %v831 = vunpack.c.l.b16 %v440
  %v832 = vunpack.c.h.b16 %v440
  %v833 = vunpack.c.l.b16 %v441
  %v834 = vunpack.c.h.b16 %v441
  %v835 = vunpack.c.l.b16 %v442
  %v836 = vunpack.c.h.b16 %v442
  %v837 = vunpack.c.l.b16 %v443
  %v838 = vunpack.c.h.b16 %v443
  %v839 = vunpack.c.l.b16 %v444
  %v840 = vunpack.c.h.b16 %v444
  %v841 = vunpack.c.l.b16 %v445
  %v842 = vunpack.c.h.b16 %v445
  %v843 = vunpack.c.l.b16 %v446
  %v844 = vunpack.c.h.b16 %v446
  %v845 = vunpack.c.l.b16 %v447
  %v846 = vunpack.c.h.b16 %v447
  %v847 = vunpack.c.l.b16 %v448
  %v848 = vunpack.c.h.b16 %v448
  %v849 = vunpack.c.l.b16 %v449
  %v850 = vunpack.c.h.b16 %v449
  %v851 = vunpack.c.l.b16 %v450
  %v852 = vunpack.c.h.b16 %v450
  %v853 = vunpack.c.l.b16 %v451
  %v854 = vunpack.c.h.b16 %v451
  %v855 = vunpack.c.l.b16 %v452
  %v856 = vunpack.c.h.b16 %v452
  %v857 = vunpack.c.l.b16 %v453
  %v858 = vunpack.c.h.b16 %v453
  %v859 = vunpack.c.l.b16 %v454
  %v860 = vunpack.c.h.b16 %v454
  %v861 = vunpack.c.l.b16 %v455
  %v862 = vunpack.c.h.b16 %v455
  %v863 = vunpack.c.l.b16 %v456
  %v864 = vunpack.c.h.b16 %v456
  %v865 = vunpack.c.l.b16 %v457
  %v866 = vunpack.c.h.b16 %v457
  %v867 = vunpack.c.l.b16 %v458
  %v868 = vunpack.c.h.b16 %v458
  %v869 = vunpack.c.l.b16 %v459
  %v870 = vunpack.c.h.b16 %v459
  %v871 = vunpack.c.l.b16 %v460
  %v872 = vunpack.c.h.b16 %v460
  %v873 = vunpack.c.l.b16 %v461
  %v874 = vunpack.c.h.b16 %v461
  %v875 = vunpack.c.l.b16 %v462
  %v876 = vunpack.c.h.b16 %v462
  %v877 = vunpack.c.l.b16 %v463
  %v878 = vunpack.c.h.b16 %v463
  %v879 = vunpack.c.l.b16 %v464
  %v880 = vunpack.c.h.b16 %v464
  %v881 = vunpack.c.l.b16 %v465
  %v882 = vunpack.c.h.b16 %v465
  %v883 = vunpack.c.l.b16 %v466
  %v884 = vunpack.c.h.b16 %v466
  %v885 = vpack.c.b16 %v825, %v821
  %v886 = vpack.c.b16 %v826, %v822
  %v887 = vpack.c.b16 %v827, %v823
  %v888 = vpack.c.b16 %v828, %v824
  %v889 = vpack.c.b16 %v833, %v829
  %v890 = vpack.c.b16 %v834, %v830
  %v891 = vpack.c.b16 %v835, %v831
  %v892 = vpack.c.b16 %v836, %v832
  %v893 = vpack.c.b16 %v841, %v837
  %v894 = vpack.c.b16 %v842, %v838
  %v895 = vpack.c.b16 %v843, %v839
  %v896 = vpack.c.b16 %v844, %v840
  %v897 = vpack.c.b16 %v849, %v845
  %v898 = vpack.c.b16 %v850, %v846
  %v899 = vpack.c.b16 %v851, %v847
  %v900 = vpack.c.b16 %v852, %v848
  %v901 = vpack.c.b16 %v857, %v853
  %v902 = vpack.c.b16 %v858, %v854
  %v903 = vpack.c.b16 %v859, %v855
  %v904 = vpack.c.b16 %v860, %v856
  %v905 = vpack.c.b16 %v865, %v861
  %v906 = vpack.c.b16 %v866, %v862
  %v907 = vpack.c.b16 %v867, %v863
  %v908 = vpack.c.b16 %v868, %v864
  %v909 = vpack.c.b16 %v873, %v869
  %v910 = vpack.c.b16 %v874, %v870
  %v911 = vpack.c.b16 %v875, %v871
  %v912 = vpack.c.b16 %v876, %v872
  %v913 = vpack.c.b16 %v881, %v877
  %v914 = vpack.c.b16 %v882, %v878
  %v915 = vpack.c.b16 %v883, %v879
  %v916 = vpack.c.b16 %v884, %v880
  %949 = vmatprep.subr.bf16.mxu0 %v886
  %950 = vmatpush1.bf16.msra.mxu0 %v885
  %951 = vmatprep.subr.bf16.mxu0 %v890
  %952 = vmatpush1.bf16.msra.mxu0 %v889
  %953 = vmatprep.subr.bf16.mxu0 %v894
  %954 = vmatpush1.bf16.msra.mxu0 %v893
  %955 = vmatprep.subr.bf16.mxu0 %v898
  %956 = vmatpush1.bf16.msra.mxu0 %v897
  %957 = vmatprep.subr.bf16.mxu0 %v902
  %958 = vmatpush1.bf16.msra.mxu0 %v901
  %959 = vmatprep.subr.bf16.mxu0 %v906
  %960 = vmatpush1.bf16.msra.mxu0 %v905
  %961 = vmatprep.subr.bf16.mxu0 %v910
  %962 = vmatpush1.bf16.msra.mxu0 %v909
  %963 = vmatprep.subr.bf16.mxu0 %v914
  %964 = vmatpush1.bf16.msra.mxu0 %v913
  %965 = vmatprep.subr.bf16.mxu0 0
  %966 = vmatpush1.bf16.msra.mxu0 0
  %967 = vmatprep.subr.bf16.mxu0 0
  %968 = vmatpush1.bf16.msra.mxu0 0
  %969 = vmatprep.subr.bf16.mxu0 0
  %970 = vmatpush1.bf16.msra.mxu0 0
  %971 = vmatprep.subr.bf16.mxu0 0
  %972 = vmatpush1.bf16.msra.mxu0 0
  %973 = vmatprep.subr.bf16.mxu0 0
  %974 = vmatpush1.bf16.msra.mxu0 0
  %975 = vmatprep.subr.bf16.mxu0 0
  %976 = vmatpush1.bf16.msra.mxu0 0
  %977 = vmatprep.subr.bf16.mxu0 0
  %978 = vmatpush1.bf16.msra.mxu0 0
  %979 = vmatprep.subr.bf16.mxu0 0
  %980 = vmatpush1.bf16.msra.mxu0 0
  %981 = vmatprep.mubr.bf16.mxu0 0
  %982 = vmatmul.mubr.bf16.gmra.mrb[0].mxu0 %v432
  %v983 = vpop.f32.mrb[0].mxu0
  %v984 = vadd.f32 %v698, %v983
  %v985 = vpop.f32.mrb[0].mxu0
  %v986 = vadd.f32 %v700, %v985
  %v987 = vpop.f32.mrb[0].mxu0
  %v988 = vadd.f32 %v702, %v987
  %v989 = vpop.f32.mrb[0].mxu0
  %v990 = vadd.f32 %v704, %v989
  %991 = vmatprep.mubr.bf16.mxu0 0
  %992 = vmatmul.mubr.bf16.gmra.mrb[0].mxu0 %v433
  %v993 = vpop.f32.mrb[0].mxu0
  %v994 = vadd.f32 %v708, %v993
  %v995 = vpop.f32.mrb[0].mxu0
  %v996 = vadd.f32 %v710, %v995
  %v997 = vpop.f32.mrb[0].mxu0
  %v998 = vadd.f32 %v712, %v997
  %v999 = vpop.f32.mrb[0].mxu0
  %v1000 = vadd.f32 %v714, %v999
  %1001 = vmatprep.mubr.bf16.mxu0 0
  %1002 = vmatmul.mubr.bf16.gmra.mrb[0].mxu0 %v434
  %v1003 = vpop.f32.mrb[0].mxu0
  %v1004 = vadd.f32 %v718, %v1003
  %v1005 = vpop.f32.mrb[0].mxu0
  %v1006 = vadd.f32 %v720, %v1005
  %v1007 = vpop.f32.mrb[0].mxu0
  %v1008 = vadd.f32 %v722, %v1007
  %v1009 = vpop.f32.mrb[0].mxu0
  %v1010 = vadd.f32 %v724, %v1009
  %1011 = vdwg.mxu0
  %1012 = vmatprep.subr.bf16.mxu0 %v888
  %1013 = vmatpush1.bf16.msra.mxu0 %v887
  %1014 = vmatprep.subr.bf16.mxu0 %v892
  %1015 = vmatpush1.bf16.msra.mxu0 %v891
  %1016 = vmatprep.subr.bf16.mxu0 %v896
  %1017 = vmatpush1.bf16.msra.mxu0 %v895
  %1018 = vmatprep.subr.bf16.mxu0 %v900
  %1019 = vmatpush1.bf16.msra.mxu0 %v899
  %1020 = vmatprep.subr.bf16.mxu0 %v904
  %1021 = vmatpush1.bf16.msra.mxu0 %v903
  %1022 = vmatprep.subr.bf16.mxu0 %v908
  %1023 = vmatpush1.bf16.msra.mxu0 %v907
  %1024 = vmatprep.subr.bf16.mxu0 %v912
  %1025 = vmatpush1.bf16.msra.mxu0 %v911
  %1026 = vmatprep.subr.bf16.mxu0 %v916
  %1027 = vmatpush1.bf16.msra.mxu0 %v915
  %1028 = vmatprep.subr.bf16.mxu0 0
  %1029 = vmatpush1.bf16.msra.mxu0 0
  %1030 = vmatprep.subr.bf16.mxu0 0
  %1031 = vmatpush1.bf16.msra.mxu0 0
  %1032 = vmatprep.subr.bf16.mxu0 0
  %1033 = vmatpush1.bf16.msra.mxu0 0
  %1034 = vmatprep.subr.bf16.mxu0 0
  %1035 = vmatpush1.bf16.msra.mxu0 0
  %1036 = vmatprep.subr.bf16.mxu0 0
  %1037 = vmatpush1.bf16.msra.mxu0 0
  %1038 = vmatprep.subr.bf16.mxu0 0
  %1039 = vmatpush1.bf16.msra.mxu0 0
  %1040 = vmatprep.subr.bf16.mxu0 0
  %1041 = vmatpush1.bf16.msra.mxu0 0
  %1042 = vmatprep.subr.bf16.mxu0 0
  %1043 = vmatpush1.bf16.msra.mxu0 0
  %1044 = vmatprep.mubr.bf16.mxu0 0
  %1045 = vmatmul.mubr.bf16.gmra.mrb[0].mxu0 %v432
  %v1046 = vpop.f32.mrb[0].mxu0
  %v1047 = vadd.f32 %v761, %v1046
  %v1048 = vpop.f32.mrb[0].mxu0
  %v1049 = vadd.f32 %v763, %v1048
  %v1050 = vpop.f32.mrb[0].mxu0
  %v1051 = vadd.f32 %v765, %v1050
  %v1052 = vpop.f32.mrb[0].mxu0
  %v1053 = vadd.f32 %v767, %v1052
  %1054 = vmatprep.mubr.bf16.mxu0 0
  %1055 = vmatmul.mubr.bf16.gmra.mrb[0].mxu0 %v433
  %v1056 = vpop.f32.mrb[0].mxu0
  %v1057 = vadd.f32 %v771, %v1056
  %v1058 = vpop.f32.mrb[0].mxu0
  %v1059 = vadd.f32 %v773, %v1058
  %v1060 = vpop.f32.mrb[0].mxu0
  %v1061 = vadd.f32 %v775, %v1060
  %v1062 = vpop.f32.mrb[0].mxu0
  %v1063 = vadd.f32 %v777, %v1062
  %1064 = vmatprep.mubr.bf16.mxu0 0
  %1065 = vmatmul.mubr.bf16.gmra.mrb[0].mxu0 %v434
  %v1066 = vpop.f32.mrb[0].mxu0
  %v1067 = vadd.f32 %v781, %v1066
  %v1068 = vpop.f32.mrb[0].mxu0
  %v1069 = vadd.f32 %v783, %v1068
  %v1070 = vpop.f32.mrb[0].mxu0
  %v1071 = vadd.f32 %v785, %v1070
  %v1072 = vpop.f32.mrb[0].mxu0
  %v1073 = vadd.f32 %v787, %v1072
  %1074 = vdwg.mxu0
  %v1075 = vpack.c.bf16 %v341, %v338
  %v1076 = vpack.c.bf16 %v349, %v346
  %v1077 = vpack.c.bf16 %v357, %v354
  %s1078 = scalar_lea.vmem %s2, 512
  %v1079 = vld [vmem:[%s1078] sm:$0xff]
  %v1080 = vld [vmem:[%s1078 + $0x8] sm:$0xff]
  %v1081 = vld [vmem:[%s1078 + $0x10] sm:$0xff]
  %v1082 = vld [vmem:[%s1078 + $0x18] sm:$0xff]
  %v1083 = vld [vmem:[%s1078 + $0x20] sm:$0xff]
  %v1084 = vld [vmem:[%s1078 + $0x28] sm:$0xff]
  %v1085 = vld [vmem:[%s1078 + $0x30] sm:$0xff]
  %v1086 = vld [vmem:[%s1078 + $0x38] sm:$0xff]
  %v1087 = vld [vmem:[%s1078 + $0x40] sm:$0xff]
  %v1088 = vld [vmem:[%s1078 + $0x48] sm:$0xff]
  %v1089 = vld [vmem:[%s1078 + $0x50] sm:$0xff]
  %v1090 = vld [vmem:[%s1078 + $0x58] sm:$0xff]
  %v1091 = vld [vmem:[%s1078 + $0x60] sm:$0xff]
  %v1092 = vld [vmem:[%s1078 + $0x68] sm:$0xff]
  %v1093 = vld [vmem:[%s1078 + $0x70] sm:$0xff]
  %v1094 = vld [vmem:[%s1078 + $0x78] sm:$0xff]
  %v1095 = vld [vmem:[%s1078 + $0x80] sm:$0xff]
  %v1096 = vld [vmem:[%s1078 + $0x88] sm:$0xff]
  %v1097 = vld [vmem:[%s1078 + $0x90] sm:$0xff]
  %v1098 = vld [vmem:[%s1078 + $0x98] sm:$0xff]
  %v1099 = vld [vmem:[%s1078 + $0xa0] sm:$0xff]
  %v1100 = vld [vmem:[%s1078 + $0xa8] sm:$0xff]
  %v1101 = vld [vmem:[%s1078 + $0xb0] sm:$0xff]
  %v1102 = vld [vmem:[%s1078 + $0xb8] sm:$0xff]
  %v1103 = vld [vmem:[%s1078 + $0xc0] sm:$0xff]
  %v1104 = vld [vmem:[%s1078 + $0xc8] sm:$0xff]
  %v1105 = vld [vmem:[%s1078 + $0xd0] sm:$0xff]
  %v1106 = vld [vmem:[%s1078 + $0xd8] sm:$0xff]
  %v1107 = vld [vmem:[%s1078 + $0xe0] sm:$0xff]
  %v1108 = vld [vmem:[%s1078 + $0xe8] sm:$0xff]
  %v1109 = vld [vmem:[%s1078 + $0xf0] sm:$0xff]
  %v1110 = vld [vmem:[%s1078 + $0xf8] sm:$0xff]
  %v1143 = vunpack.c.l.b16 %v1079
  %v1144 = vunpack.c.h.b16 %v1079
  %v1145 = vunpack.c.l.b16 %v1080
  %v1146 = vunpack.c.h.b16 %v1080
  %v1147 = vunpack.c.l.b16 %v1081
  %v1148 = vunpack.c.h.b16 %v1081
  %v1149 = vunpack.c.l.b16 %v1082
  %v1150 = vunpack.c.h.b16 %v1082
  %v1151 = vunpack.c.l.b16 %v1083
  %v1152 = vunpack.c.h.b16 %v1083
  %v1153 = vunpack.c.l.b16 %v1084
  %v1154 = vunpack.c.h.b16 %v1084
  %v1155 = vunpack.c.l.b16 %v1085
  %v1156 = vunpack.c.h.b16 %v1085
  %v1157 = vunpack.c.l.b16 %v1086
  %v1158 = vunpack.c.h.b16 %v1086
  %v1159 = vunpack.c.l.b16 %v1087
  %v1160 = vunpack.c.h.b16 %v1087
  %v1161 = vunpack.c.l.b16 %v1088
  %v1162 = vunpack.c.h.b16 %v1088
  %v1163 = vunpack.c.l.b16 %v1089
  %v1164 = vunpack.c.h.b16 %v1089
  %v1165 = vunpack.c.l.b16 %v1090
  %v1166 = vunpack.c.h.b16 %v1090
  %v1167 = vunpack.c.l.b16 %v1091
  %v1168 = vunpack.c.h.b16 %v1091
  %v1169 = vunpack.c.l.b16 %v1092
  %v1170 = vunpack.c.h.b16 %v1092
  %v1171 = vunpack.c.l.b16 %v1093
  %v1172 = vunpack.c.h.b16 %v1093
  %v1173 = vunpack.c.l.b16 %v1094
  %v1174 = vunpack.c.h.b16 %v1094
  %v1175 = vunpack.c.l.b16 %v1095
  %v1176 = vunpack.c.h.b16 %v1095
  %v1177 = vunpack.c.l.b16 %v1096
  %v1178 = vunpack.c.h.b16 %v1096
  %v1179 = vunpack.c.l.b16 %v1097
  %v1180 = vunpack.c.h.b16 %v1097
  %v1181 = vunpack.c.l.b16 %v1098
  %v1182 = vunpack.c.h.b16 %v1098
  %v1183 = vunpack.c.l.b16 %v1099
  %v1184 = vunpack.c.h.b16 %v1099
  %v1185 = vunpack.c.l.b16 %v1100
  %v1186 = vunpack.c.h.b16 %v1100
  %v1187 = vunpack.c.l.b16 %v1101
  %v1188 = vunpack.c.h.b16 %v1101
  %v1189 = vunpack.c.l.b16 %v1102
  %v1190 = vunpack.c.h.b16 %v1102
  %v1191 = vunpack.c.l.b16 %v1103
  %v1192 = vunpack.c.h.b16 %v1103
  %v1193 = vunpack.c.l.b16 %v1104
  %v1194 = vunpack.c.h.b16 %v1104
  %v1195 = vunpack.c.l.b16 %v1105
  %v1196 = vunpack.c.h.b16 %v1105
  %v1197 = vunpack.c.l.b16 %v1106
  %v1198 = vunpack.c.h.b16 %v1106
  %v1199 = vunpack.c.l.b16 %v1107
  %v1200 = vunpack.c.h.b16 %v1107
  %v1201 = vunpack.c.l.b16 %v1108
  %v1202 = vunpack.c.h.b16 %v1108
  %v1203 = vunpack.c.l.b16 %v1109
  %v1204 = vunpack.c.h.b16 %v1109
  %v1205 = vunpack.c.l.b16 %v1110
  %v1206 = vunpack.c.h.b16 %v1110
  %v1207 = vpack.c.b16 %v1147, %v1143
  %v1208 = vpack.c.b16 %v1148, %v1144
  %v1209 = vpack.c.b16 %v1149, %v1145
  %v1210 = vpack.c.b16 %v1150, %v1146
  %v1211 = vpack.c.b16 %v1155, %v1151
  %v1212 = vpack.c.b16 %v1156, %v1152
  %v1213 = vpack.c.b16 %v1157, %v1153
  %v1214 = vpack.c.b16 %v1158, %v1154
  %v1215 = vpack.c.b16 %v1163, %v1159
  %v1216 = vpack.c.b16 %v1164, %v1160
  %v1217 = vpack.c.b16 %v1165, %v1161
  %v1218 = vpack.c.b16 %v1166, %v1162
  %v1219 = vpack.c.b16 %v1171, %v1167
  %v1220 = vpack.c.b16 %v1172, %v1168
  %v1221 = vpack.c.b16 %v1173, %v1169
  %v1222 = vpack.c.b16 %v1174, %v1170
  %v1223 = vpack.c.b16 %v1179, %v1175
  %v1224 = vpack.c.b16 %v1180, %v1176
  %v1225 = vpack.c.b16 %v1181, %v1177
  %v1226 = vpack.c.b16 %v1182, %v1178
  %v1227 = vpack.c.b16 %v1187, %v1183
  %v1228 = vpack.c.b16 %v1188, %v1184
  %v1229 = vpack.c.b16 %v1189, %v1185
  %v1230 = vpack.c.b16 %v1190, %v1186
  %v1231 = vpack.c.b16 %v1195, %v1191
  %v1232 = vpack.c.b16 %v1196, %v1192
  %v1233 = vpack.c.b16 %v1197, %v1193
  %v1234 = vpack.c.b16 %v1198, %v1194
  %v1235 = vpack.c.b16 %v1203, %v1199
  %v1236 = vpack.c.b16 %v1204, %v1200
  %v1237 = vpack.c.b16 %v1205, %v1201
  %v1238 = vpack.c.b16 %v1206, %v1202
  %1271 = vmatprep.subr.bf16.mxu0 %v1208
  %1272 = vmatpush1.bf16.msra.mxu0 %v1207
  %1273 = vmatprep.subr.bf16.mxu0 %v1212
  %1274 = vmatpush1.bf16.msra.mxu0 %v1211
  %1275 = vmatprep.subr.bf16.mxu0 %v1216
  %1276 = vmatpush1.bf16.msra.mxu0 %v1215
  %1277 = vmatprep.subr.bf16.mxu0 %v1220
  %1278 = vmatpush1.bf16.msra.mxu0 %v1219
  %1279 = vmatprep.subr.bf16.mxu0 %v1224
  %1280 = vmatpush1.bf16.msra.mxu0 %v1223
  %1281 = vmatprep.subr.bf16.mxu0 %v1228
  %1282 = vmatpush1.bf16.msra.mxu0 %v1227
  %1283 = vmatprep.subr.bf16.mxu0 %v1232
  %1284 = vmatpush1.bf16.msra.mxu0 %v1231
  %1285 = vmatprep.subr.bf16.mxu0 %v1236
  %1286 = vmatpush1.bf16.msra.mxu0 %v1235
  %1287 = vmatprep.subr.bf16.mxu0 0
  %1288 = vmatpush1.bf16.msra.mxu0 0
  %1289 = vmatprep.subr.bf16.mxu0 0
  %1290 = vmatpush1.bf16.msra.mxu0 0
  %1291 = vmatprep.subr.bf16.mxu0 0
  %1292 = vmatpush1.bf16.msra.mxu0 0
  %1293 = vmatprep.subr.bf16.mxu0 0
  %1294 = vmatpush1.bf16.msra.mxu0 0
  %1295 = vmatprep.subr.bf16.mxu0 0
  %1296 = vmatpush1.bf16.msra.mxu0 0
  %1297 = vmatprep.subr.bf16.mxu0 0
  %1298 = vmatpush1.bf16.msra.mxu0 0
  %1299 = vmatprep.subr.bf16.mxu0 0
  %1300 = vmatpush1.bf16.msra.mxu0 0
  %1301 = vmatprep.subr.bf16.mxu0 0
  %1302 = vmatpush1.bf16.msra.mxu0 0
  %1303 = vmatprep.mubr.bf16.mxu0 0
  %1304 = vmatmul.mubr.bf16.gmra.mrb[0].mxu0 %v1075
  %v1305 = vpop.f32.mrb[0].mxu0
  %v1306 = vadd.f32 0.0, %v1305
  %v1307 = vpop.f32.mrb[0].mxu0
  %v1308 = vadd.f32 0.0, %v1307
  %v1309 = vpop.f32.mrb[0].mxu0
  %v1310 = vadd.f32 0.0, %v1309
  %v1311 = vpop.f32.mrb[0].mxu0
  %v1312 = vadd.f32 0.0, %v1311
  %1313 = vmatprep.mubr.bf16.mxu0 0
  %1314 = vmatmul.mubr.bf16.gmra.mrb[0].mxu0 %v1076
  %v1315 = vpop.f32.mrb[0].mxu0
  %v1316 = vadd.f32 0.0, %v1315
  %v1317 = vpop.f32.mrb[0].mxu0
  %v1318 = vadd.f32 0.0, %v1317
  %v1319 = vpop.f32.mrb[0].mxu0
  %v1320 = vadd.f32 0.0, %v1319
  %v1321 = vpop.f32.mrb[0].mxu0
  %v1322 = vadd.f32 0.0, %v1321
  %1323 = vmatprep.mubr.bf16.mxu0 0
  %1324 = vmatmul.mubr.bf16.gmra.mrb[0].mxu0 %v1077
  %v1325 = vpop.f32.mrb[0].mxu0
  %v1326 = vadd.f32 0.0, %v1325
  %v1327 = vpop.f32.mrb[0].mxu0
  %v1328 = vadd.f32 0.0, %v1327
  %v1329 = vpop.f32.mrb[0].mxu0
  %v1330 = vadd.f32 0.0, %v1329
  %v1331 = vpop.f32.mrb[0].mxu0
  %v1332 = vadd.f32 0.0, %v1331
  %1333 = vdwg.mxu0
  %1334 = vmatprep.subr.bf16.mxu0 %v1210
  %1335 = vmatpush1.bf16.msra.mxu0 %v1209
  %1336 = vmatprep.subr.bf16.mxu0 %v1214
  %1337 = vmatpush1.bf16.msra.mxu0 %v1213
  %1338 = vmatprep.subr.bf16.mxu0 %v1218
  %1339 = vmatpush1.bf16.msra.mxu0 %v1217
  %1340 = vmatprep.subr.bf16.mxu0 %v1222
  %1341 = vmatpush1.bf16.msra.mxu0 %v1221
  %1342 = vmatprep.subr.bf16.mxu0 %v1226
  %1343 = vmatpush1.bf16.msra.mxu0 %v1225
  %1344 = vmatprep.subr.bf16.mxu0 %v1230
  %1345 = vmatpush1.bf16.msra.mxu0 %v1229
  %1346 = vmatprep.subr.bf16.mxu0 %v1234
  %1347 = vmatpush1.bf16.msra.mxu0 %v1233
  %1348 = vmatprep.subr.bf16.mxu0 %v1238
  %1349 = vmatpush1.bf16.msra.mxu0 %v1237
  %1350 = vmatprep.subr.bf16.mxu0 0
  %1351 = vmatpush1.bf16.msra.mxu0 0
  %1352 = vmatprep.subr.bf16.mxu0 0
  %1353 = vmatpush1.bf16.msra.mxu0 0
  %1354 = vmatprep.subr.bf16.mxu0 0
  %1355 = vmatpush1.bf16.msra.mxu0 0
  %1356 = vmatprep.subr.bf16.mxu0 0
  %1357 = vmatpush1.bf16.msra.mxu0 0
  %1358 = vmatprep.subr.bf16.mxu0 0
  %1359 = vmatpush1.bf16.msra.mxu0 0
  %1360 = vmatprep.subr.bf16.mxu0 0
  %1361 = vmatpush1.bf16.msra.mxu0 0
  %1362 = vmatprep.subr.bf16.mxu0 0
  %1363 = vmatpush1.bf16.msra.mxu0 0
  %1364 = vmatprep.subr.bf16.mxu0 0
  %1365 = vmatpush1.bf16.msra.mxu0 0
  %1366 = vmatprep.mubr.bf16.mxu0 0
  %1367 = vmatmul.mubr.bf16.gmra.mrb[0].mxu0 %v1075
  %v1368 = vpop.f32.mrb[0].mxu0
  %v1369 = vadd.f32 0.0, %v1368
  %v1370 = vpop.f32.mrb[0].mxu0
  %v1371 = vadd.f32 0.0, %v1370
  %v1372 = vpop.f32.mrb[0].mxu0
  %v1373 = vadd.f32 0.0, %v1372
  %v1374 = vpop.f32.mrb[0].mxu0
  %v1375 = vadd.f32 0.0, %v1374
  %1376 = vmatprep.mubr.bf16.mxu0 0
  %1377 = vmatmul.mubr.bf16.gmra.mrb[0].mxu0 %v1076
  %v1378 = vpop.f32.mrb[0].mxu0
  %v1379 = vadd.f32 0.0, %v1378
  %v1380 = vpop.f32.mrb[0].mxu0
  %v1381 = vadd.f32 0.0, %v1380
  %v1382 = vpop.f32.mrb[0].mxu0
  %v1383 = vadd.f32 0.0, %v1382
  %v1384 = vpop.f32.mrb[0].mxu0
  %v1385 = vadd.f32 0.0, %v1384
  %1386 = vmatprep.mubr.bf16.mxu0 0
  %1387 = vmatmul.mubr.bf16.gmra.mrb[0].mxu0 %v1077
  %v1388 = vpop.f32.mrb[0].mxu0
  %v1389 = vadd.f32 0.0, %v1388
  %v1390 = vpop.f32.mrb[0].mxu0
  %v1391 = vadd.f32 0.0, %v1390
  %v1392 = vpop.f32.mrb[0].mxu0
  %v1393 = vadd.f32 0.0, %v1392
  %v1394 = vpop.f32.mrb[0].mxu0
  %v1395 = vadd.f32 0.0, %v1394
  %1396 = vdwg.mxu0
  %v1397 = vadd.f32 %v984, %v1306
  %v1398 = vadd.f32 %v986, %v1308
  %v1399 = vadd.f32 %v1047, %v1369
  %v1400 = vadd.f32 %v1049, %v1371
  %v1401 = vadd.f32 %v988, %v1310
  %v1402 = vadd.f32 %v990, %v1312
  %v1403 = vadd.f32 %v1051, %v1373
  %v1404 = vadd.f32 %v1053, %v1375
  %v1405 = vadd.f32 %v994, %v1316
  %v1406 = vadd.f32 %v996, %v1318
  %v1407 = vadd.f32 %v1057, %v1379
  %v1408 = vadd.f32 %v1059, %v1381
  %v1409 = vadd.f32 %v998, %v1320
  %v1410 = vadd.f32 %v1000, %v1322
  %v1411 = vadd.f32 %v1061, %v1383
  %v1412 = vadd.f32 %v1063, %v1385
  %v1413 = vadd.f32 %v1004, %v1326
  %v1414 = vadd.f32 %v1006, %v1328
  %v1415 = vadd.f32 %v1067, %v1389
  %v1416 = vadd.f32 %v1069, %v1391
  %v1417 = vadd.f32 %v1008, %v1330
  %v1418 = vadd.f32 %v1010, %v1332
  %v1419 = vadd.f32 %v1071, %v1393
  %v1420 = vadd.f32 %v1073, %v1395
  %v1421 = vpack.c.bf16 %v365, %v362
  %v1422 = vpack.c.bf16 %v373, %v370
  %v1423 = vpack.c.bf16 %v381, %v378
  %s1424 = scalar_lea.vmem %s2, 768
  %v1425 = vld [vmem:[%s1424] sm:$0xff]
  %v1426 = vld [vmem:[%s1424 + $0x8] sm:$0xff]
  %v1427 = vld [vmem:[%s1424 + $0x10] sm:$0xff]
  %v1428 = vld [vmem:[%s1424 + $0x18] sm:$0xff]
  %v1429 = vld [vmem:[%s1424 + $0x20] sm:$0xff]
  %v1430 = vld [vmem:[%s1424 + $0x28] sm:$0xff]
  %v1431 = vld [vmem:[%s1424 + $0x30] sm:$0xff]
  %v1432 = vld [vmem:[%s1424 + $0x38] sm:$0xff]
  %v1433 = vld [vmem:[%s1424 + $0x40] sm:$0xff]
  %v1434 = vld [vmem:[%s1424 + $0x48] sm:$0xff]
  %v1435 = vld [vmem:[%s1424 + $0x50] sm:$0xff]
  %v1436 = vld [vmem:[%s1424 + $0x58] sm:$0xff]
  %v1437 = vld [vmem:[%s1424 + $0x60] sm:$0xff]
  %v1438 = vld [vmem:[%s1424 + $0x68] sm:$0xff]
  %v1439 = vld [vmem:[%s1424 + $0x70] sm:$0xff]
  %v1440 = vld [vmem:[%s1424 + $0x78] sm:$0xff]
  %v1441 = vld [vmem:[%s1424 + $0x80] sm:$0xff]
  %v1442 = vld [vmem:[%s1424 + $0x88] sm:$0xff]
  %v1443 = vld [vmem:[%s1424 + $0x90] sm:$0xff]
  %v1444 = vld [vmem:[%s1424 + $0x98] sm:$0xff]
  %v1445 = vld [vmem:[%s1424 + $0xa0] sm:$0xff]
  %v1446 = vld [vmem:[%s1424 + $0xa8] sm:$0xff]
  %v1447 = vld [vmem:[%s1424 + $0xb0] sm:$0xff]
  %v1448 = vld [vmem:[%s1424 + $0xb8] sm:$0xff]
  %v1449 = vld [vmem:[%s1424 + $0xc0] sm:$0xff]
  %v1450 = vld [vmem:[%s1424 + $0xc8] sm:$0xff]
  %v1451 = vld [vmem:[%s1424 + $0xd0] sm:$0xff]
  %v1452 = vld [vmem:[%s1424 + $0xd8] sm:$0xff]
  %v1453 = vld [vmem:[%s1424 + $0xe0] sm:$0xff]
  %v1454 = vld [vmem:[%s1424 + $0xe8] sm:$0xff]
  %v1455 = vld [vmem:[%s1424 + $0xf0] sm:$0xff]
  %v1456 = vld [vmem:[%s1424 + $0xf8] sm:$0xff]
  %v1489 = vunpack.c.l.b16 %v1425
  %v1490 = vunpack.c.h.b16 %v1425
  %v1491 = vunpack.c.l.b16 %v1426
  %v1492 = vunpack.c.h.b16 %v1426
  %v1493 = vunpack.c.l.b16 %v1427
  %v1494 = vunpack.c.h.b16 %v1427
  %v1495 = vunpack.c.l.b16 %v1428
  %v1496 = vunpack.c.h.b16 %v1428
  %v1497 = vunpack.c.l.b16 %v1429
  %v1498 = vunpack.c.h.b16 %v1429
  %v1499 = vunpack.c.l.b16 %v1430
  %v1500 = vunpack.c.h.b16 %v1430
  %v1501 = vunpack.c.l.b16 %v1431
  %v1502 = vunpack.c.h.b16 %v1431
  %v1503 = vunpack.c.l.b16 %v1432
  %v1504 = vunpack.c.h.b16 %v1432
  %v1505 = vunpack.c.l.b16 %v1433
  %v1506 = vunpack.c.h.b16 %v1433
  %v1507 = vunpack.c.l.b16 %v1434
  %v1508 = vunpack.c.h.b16 %v1434
  %v1509 = vunpack.c.l.b16 %v1435
  %v1510 = vunpack.c.h.b16 %v1435
  %v1511 = vunpack.c.l.b16 %v1436
  %v1512 = vunpack.c.h.b16 %v1436
  %v1513 = vunpack.c.l.b16 %v1437
  %v1514 = vunpack.c.h.b16 %v1437
  %v1515 = vunpack.c.l.b16 %v1438
  %v1516 = vunpack.c.h.b16 %v1438
  %v1517 = vunpack.c.l.b16 %v1439
  %v1518 = vunpack.c.h.b16 %v1439
  %v1519 = vunpack.c.l.b16 %v1440
  %v1520 = vunpack.c.h.b16 %v1440
  %v1521 = vunpack.c.l.b16 %v1441
  %v1522 = vunpack.c.h.b16 %v1441
  %v1523 = vunpack.c.l.b16 %v1442
  %v1524 = vunpack.c.h.b16 %v1442
  %v1525 = vunpack.c.l.b16 %v1443
  %v1526 = vunpack.c.h.b16 %v1443
  %v1527 = vunpack.c.l.b16 %v1444
  %v1528 = vunpack.c.h.b16 %v1444
  %v1529 = vunpack.c.l.b16 %v1445
  %v1530 = vunpack.c.h.b16 %v1445
  %v1531 = vunpack.c.l.b16 %v1446
  %v1532 = vunpack.c.h.b16 %v1446
  %v1533 = vunpack.c.l.b16 %v1447
  %v1534 = vunpack.c.h.b16 %v1447
  %v1535 = vunpack.c.l.b16 %v1448
  %v1536 = vunpack.c.h.b16 %v1448
  %v1537 = vunpack.c.l.b16 %v1449
  %v1538 = vunpack.c.h.b16 %v1449
  %v1539 = vunpack.c.l.b16 %v1450
  %v1540 = vunpack.c.h.b16 %v1450
  %v1541 = vunpack.c.l.b16 %v1451
  %v1542 = vunpack.c.h.b16 %v1451
  %v1543 = vunpack.c.l.b16 %v1452
  %v1544 = vunpack.c.h.b16 %v1452
  %v1545 = vunpack.c.l.b16 %v1453
  %v1546 = vunpack.c.h.b16 %v1453
  %v1547 = vunpack.c.l.b16 %v1454
  %v1548 = vunpack.c.h.b16 %v1454
  %v1549 = vunpack.c.l.b16 %v1455
  %v1550 = vunpack.c.h.b16 %v1455
  %v1551 = vunpack.c.l.b16 %v1456
  %v1552 = vunpack.c.h.b16 %v1456
  %v1553 = vpack.c.b16 %v1493, %v1489
  %v1554 = vpack.c.b16 %v1494, %v1490
  %v1555 = vpack.c.b16 %v1495, %v1491
  %v1556 = vpack.c.b16 %v1496, %v1492
  %v1557 = vpack.c.b16 %v1501, %v1497
  %v1558 = vpack.c.b16 %v1502, %v1498
  %v1559 = vpack.c.b16 %v1503, %v1499
  %v1560 = vpack.c.b16 %v1504, %v1500
  %v1561 = vpack.c.b16 %v1509, %v1505
  %v1562 = vpack.c.b16 %v1510, %v1506
  %v1563 = vpack.c.b16 %v1511, %v1507
  %v1564 = vpack.c.b16 %v1512, %v1508
  %v1565 = vpack.c.b16 %v1517, %v1513
  %v1566 = vpack.c.b16 %v1518, %v1514
  %v1567 = vpack.c.b16 %v1519, %v1515
  %v1568 = vpack.c.b16 %v1520, %v1516
  %v1569 = vpack.c.b16 %v1525, %v1521
  %v1570 = vpack.c.b16 %v1526, %v1522
  %v1571 = vpack.c.b16 %v1527, %v1523
  %v1572 = vpack.c.b16 %v1528, %v1524
  %v1573 = vpack.c.b16 %v1533, %v1529
  %v1574 = vpack.c.b16 %v1534, %v1530
  %v1575 = vpack.c.b16 %v1535, %v1531
  %v1576 = vpack.c.b16 %v1536, %v1532
  %v1577 = vpack.c.b16 %v1541, %v1537
  %v1578 = vpack.c.b16 %v1542, %v1538
  %v1579 = vpack.c.b16 %v1543, %v1539
  %v1580 = vpack.c.b16 %v1544, %v1540
  %v1581 = vpack.c.b16 %v1549, %v1545
  %v1582 = vpack.c.b16 %v1550, %v1546
  %v1583 = vpack.c.b16 %v1551, %v1547
  %v1584 = vpack.c.b16 %v1552, %v1548
  %1617 = vmatprep.subr.bf16.mxu0 %v1554
  %1618 = vmatpush1.bf16.msra.mxu0 %v1553
  %1619 = vmatprep.subr.bf16.mxu0 %v1558
  %1620 = vmatpush1.bf16.msra.mxu0 %v1557
  %1621 = vmatprep.subr.bf16.mxu0 %v1562
  %1622 = vmatpush1.bf16.msra.mxu0 %v1561
  %1623 = vmatprep.subr.bf16.mxu0 %v1566
  %1624 = vmatpush1.bf16.msra.mxu0 %v1565
  %1625 = vmatprep.subr.bf16.mxu0 %v1570
  %1626 = vmatpush1.bf16.msra.mxu0 %v1569
  %1627 = vmatprep.subr.bf16.mxu0 %v1574
  %1628 = vmatpush1.bf16.msra.mxu0 %v1573
  %1629 = vmatprep.subr.bf16.mxu0 %v1578
  %1630 = vmatpush1.bf16.msra.mxu0 %v1577
  %1631 = vmatprep.subr.bf16.mxu0 %v1582
  %1632 = vmatpush1.bf16.msra.mxu0 %v1581
  %1633 = vmatprep.subr.bf16.mxu0 0
  %1634 = vmatpush1.bf16.msra.mxu0 0
  %1635 = vmatprep.subr.bf16.mxu0 0
  %1636 = vmatpush1.bf16.msra.mxu0 0
  %1637 = vmatprep.subr.bf16.mxu0 0
  %1638 = vmatpush1.bf16.msra.mxu0 0
  %1639 = vmatprep.subr.bf16.mxu0 0
  %1640 = vmatpush1.bf16.msra.mxu0 0
  %1641 = vmatprep.subr.bf16.mxu0 0
  %1642 = vmatpush1.bf16.msra.mxu0 0
  %1643 = vmatprep.subr.bf16.mxu0 0
  %1644 = vmatpush1.bf16.msra.mxu0 0
  %1645 = vmatprep.subr.bf16.mxu0 0
  %1646 = vmatpush1.bf16.msra.mxu0 0
  %1647 = vmatprep.subr.bf16.mxu0 0
  %1648 = vmatpush1.bf16.msra.mxu0 0
  %1649 = vmatprep.mubr.bf16.mxu0 0
  %1650 = vmatmul.mubr.bf16.gmra.mrb[0].mxu0 %v1421
  %v1651 = vpop.f32.mrb[0].mxu0
  %v1652 = vadd.f32 0.0, %v1651
  %v1653 = vpop.f32.mrb[0].mxu0
  %v1654 = vadd.f32 0.0, %v1653
  %v1655 = vpop.f32.mrb[0].mxu0
  %v1656 = vadd.f32 0.0, %v1655
  %v1657 = vpop.f32.mrb[0].mxu0
  %v1658 = vadd.f32 0.0, %v1657
  %1659 = vmatprep.mubr.bf16.mxu0 0
  %1660 = vmatmul.mubr.bf16.gmra.mrb[0].mxu0 %v1422
  %v1661 = vpop.f32.mrb[0].mxu0
  %v1662 = vadd.f32 0.0, %v1661
  %v1663 = vpop.f32.mrb[0].mxu0
  %v1664 = vadd.f32 0.0, %v1663
  %v1665 = vpop.f32.mrb[0].mxu0
  %v1666 = vadd.f32 0.0, %v1665
  %v1667 = vpop.f32.mrb[0].mxu0
  %v1668 = vadd.f32 0.0, %v1667
  %1669 = vmatprep.mubr.bf16.mxu0 0
  %1670 = vmatmul.mubr.bf16.gmra.mrb[0].mxu0 %v1423
  %v1671 = vpop.f32.mrb[0].mxu0
  %v1672 = vadd.f32 0.0, %v1671
  %v1673 = vpop.f32.mrb[0].mxu0
  %v1674 = vadd.f32 0.0, %v1673
  %v1675 = vpop.f32.mrb[0].mxu0
  %v1676 = vadd.f32 0.0, %v1675
  %v1677 = vpop.f32.mrb[0].mxu0
  %v1678 = vadd.f32 0.0, %v1677
  %1679 = vdwg.mxu0
  %1680 = vmatprep.subr.bf16.mxu0 %v1556
  %1681 = vmatpush1.bf16.msra.mxu0 %v1555
  %1682 = vmatprep.subr.bf16.mxu0 %v1560
  %1683 = vmatpush1.bf16.msra.mxu0 %v1559
  %1684 = vmatprep.subr.bf16.mxu0 %v1564
  %1685 = vmatpush1.bf16.msra.mxu0 %v1563
  %1686 = vmatprep.subr.bf16.mxu0 %v1568
  %1687 = vmatpush1.bf16.msra.mxu0 %v1567
  %1688 = vmatprep.subr.bf16.mxu0 %v1572
  %1689 = vmatpush1.bf16.msra.mxu0 %v1571
  %1690 = vmatprep.subr.bf16.mxu0 %v1576
  %1691 = vmatpush1.bf16.msra.mxu0 %v1575
  %1692 = vmatprep.subr.bf16.mxu0 %v1580
  %1693 = vmatpush1.bf16.msra.mxu0 %v1579
  %1694 = vmatprep.subr.bf16.mxu0 %v1584
  %1695 = vmatpush1.bf16.msra.mxu0 %v1583
  %1696 = vmatprep.subr.bf16.mxu0 0
  %1697 = vmatpush1.bf16.msra.mxu0 0
  %1698 = vmatprep.subr.bf16.mxu0 0
  %1699 = vmatpush1.bf16.msra.mxu0 0
  %1700 = vmatprep.subr.bf16.mxu0 0
  %1701 = vmatpush1.bf16.msra.mxu0 0
  %1702 = vmatprep.subr.bf16.mxu0 0
  %1703 = vmatpush1.bf16.msra.mxu0 0
  %1704 = vmatprep.subr.bf16.mxu0 0
  %1705 = vmatpush1.bf16.msra.mxu0 0
  %1706 = vmatprep.subr.bf16.mxu0 0
  %1707 = vmatpush1.bf16.msra.mxu0 0
  %1708 = vmatprep.subr.bf16.mxu0 0
  %1709 = vmatpush1.bf16.msra.mxu0 0
  %1710 = vmatprep.subr.bf16.mxu0 0
  %1711 = vmatpush1.bf16.msra.mxu0 0
  %1712 = vmatprep.mubr.bf16.mxu0 0
  %1713 = vmatmul.mubr.bf16.gmra.mrb[0].mxu0 %v1421
  %v1714 = vpop.f32.mrb[0].mxu0
  %v1715 = vadd.f32 0.0, %v1714
  %v1716 = vpop.f32.mrb[0].mxu0
  %v1717 = vadd.f32 0.0, %v1716
  %v1718 = vpop.f32.mrb[0].mxu0
  %v1719 = vadd.f32 0.0, %v1718
  %v1720 = vpop.f32.mrb[0].mxu0
  %v1721 = vadd.f32 0.0, %v1720
  %1722 = vmatprep.mubr.bf16.mxu0 0
  %1723 = vmatmul.mubr.bf16.gmra.mrb[0].mxu0 %v1422
  %v1724 = vpop.f32.mrb[0].mxu0
  %v1725 = vadd.f32 0.0, %v1724
  %v1726 = vpop.f32.mrb[0].mxu0
  %v1727 = vadd.f32 0.0, %v1726
  %v1728 = vpop.f32.mrb[0].mxu0
  %v1729 = vadd.f32 0.0, %v1728
  %v1730 = vpop.f32.mrb[0].mxu0
  %v1731 = vadd.f32 0.0, %v1730
  %1732 = vmatprep.mubr.bf16.mxu0 0
  %1733 = vmatmul.mubr.bf16.gmra.mrb[0].mxu0 %v1423
  %v1734 = vpop.f32.mrb[0].mxu0
  %v1735 = vadd.f32 0.0, %v1734
  %v1736 = vpop.f32.mrb[0].mxu0
  %v1737 = vadd.f32 0.0, %v1736
  %v1738 = vpop.f32.mrb[0].mxu0
  %v1739 = vadd.f32 0.0, %v1738
  %v1740 = vpop.f32.mrb[0].mxu0
  %v1741 = vadd.f32 0.0, %v1740
  %1742 = vdwg.mxu0
  %v1743 = vadd.f32 %v1397, %v1652
  %v1744 = vadd.f32 %v1398, %v1654
  %v1745 = vadd.f32 %v1399, %v1715
  %v1746 = vadd.f32 %v1400, %v1717
  %v1747 = vadd.f32 %v1401, %v1656
  %v1748 = vadd.f32 %v1402, %v1658
  %v1749 = vadd.f32 %v1403, %v1719
  %v1750 = vadd.f32 %v1404, %v1721
  %v1751 = vadd.f32 %v1405, %v1662
  %v1752 = vadd.f32 %v1406, %v1664
  %v1753 = vadd.f32 %v1407, %v1725
  %v1754 = vadd.f32 %v1408, %v1727
  %v1755 = vadd.f32 %v1409, %v1666
  %v1756 = vadd.f32 %v1410, %v1668
  %v1757 = vadd.f32 %v1411, %v1729
  %v1758 = vadd.f32 %v1412, %v1731
  %v1759 = vadd.f32 %v1413, %v1672
  %v1760 = vadd.f32 %v1414, %v1674
  %v1761 = vadd.f32 %v1415, %v1735
  %v1762 = vadd.f32 %v1416, %v1737
  %v1763 = vadd.f32 %v1417, %v1676
  %v1764 = vadd.f32 %v1418, %v1678
  %v1765 = vadd.f32 %v1419, %v1739
  %v1766 = vadd.f32 %v1420, %v1741
  %v1767 = vpack.c.bf16 %v389, %v386
  %v1768 = vpack.c.bf16 %v397, %v394
  %v1769 = vpack.c.bf16 %v405, %v402
  %s1770 = scalar_lea.vmem %s2, 1024
  %v1771 = vld [vmem:[%s1770] sm:$0xff]
  %v1772 = vld [vmem:[%s1770 + $0x8] sm:$0xff]
  %v1773 = vld [vmem:[%s1770 + $0x10] sm:$0xff]
  %v1774 = vld [vmem:[%s1770 + $0x18] sm:$0xff]
  %v1775 = vld [vmem:[%s1770 + $0x20] sm:$0xff]
  %v1776 = vld [vmem:[%s1770 + $0x28] sm:$0xff]
  %v1777 = vld [vmem:[%s1770 + $0x30] sm:$0xff]
  %v1778 = vld [vmem:[%s1770 + $0x38] sm:$0xff]
  %v1779 = vld [vmem:[%s1770 + $0x40] sm:$0xff]
  %v1780 = vld [vmem:[%s1770 + $0x48] sm:$0xff]
  %v1781 = vld [vmem:[%s1770 + $0x50] sm:$0xff]
  %v1782 = vld [vmem:[%s1770 + $0x58] sm:$0xff]
  %v1783 = vld [vmem:[%s1770 + $0x60] sm:$0xff]
  %v1784 = vld [vmem:[%s1770 + $0x68] sm:$0xff]
  %v1785 = vld [vmem:[%s1770 + $0x70] sm:$0xff]
  %v1786 = vld [vmem:[%s1770 + $0x78] sm:$0xff]
  %v1787 = vld [vmem:[%s1770 + $0x80] sm:$0xff]
  %v1788 = vld [vmem:[%s1770 + $0x88] sm:$0xff]
  %v1789 = vld [vmem:[%s1770 + $0x90] sm:$0xff]
  %v1790 = vld [vmem:[%s1770 + $0x98] sm:$0xff]
  %v1791 = vld [vmem:[%s1770 + $0xa0] sm:$0xff]
  %v1792 = vld [vmem:[%s1770 + $0xa8] sm:$0xff]
  %v1793 = vld [vmem:[%s1770 + $0xb0] sm:$0xff]
  %v1794 = vld [vmem:[%s1770 + $0xb8] sm:$0xff]
  %v1795 = vld [vmem:[%s1770 + $0xc0] sm:$0xff]
  %v1796 = vld [vmem:[%s1770 + $0xc8] sm:$0xff]
  %v1797 = vld [vmem:[%s1770 + $0xd0] sm:$0xff]
  %v1798 = vld [vmem:[%s1770 + $0xd8] sm:$0xff]
  %v1799 = vld [vmem:[%s1770 + $0xe0] sm:$0xff]
  %v1800 = vld [vmem:[%s1770 + $0xe8] sm:$0xff]
  %v1801 = vld [vmem:[%s1770 + $0xf0] sm:$0xff]
  %v1802 = vld [vmem:[%s1770 + $0xf8] sm:$0xff]
  %v1835 = vunpack.c.l.b16 %v1771
  %v1836 = vunpack.c.h.b16 %v1771
  %v1837 = vunpack.c.l.b16 %v1772
  %v1838 = vunpack.c.h.b16 %v1772
  %v1839 = vunpack.c.l.b16 %v1773
  %v1840 = vunpack.c.h.b16 %v1773
  %v1841 = vunpack.c.l.b16 %v1774
  %v1842 = vunpack.c.h.b16 %v1774
  %v1843 = vunpack.c.l.b16 %v1775
  %v1844 = vunpack.c.h.b16 %v1775
  %v1845 = vunpack.c.l.b16 %v1776
  %v1846 = vunpack.c.h.b16 %v1776
  %v1847 = vunpack.c.l.b16 %v1777
  %v1848 = vunpack.c.h.b16 %v1777
  %v1849 = vunpack.c.l.b16 %v1778
  %v1850 = vunpack.c.h.b16 %v1778
  %v1851 = vunpack.c.l.b16 %v1779
  %v1852 = vunpack.c.h.b16 %v1779
  %v1853 = vunpack.c.l.b16 %v1780
  %v1854 = vunpack.c.h.b16 %v1780
  %v1855 = vunpack.c.l.b16 %v1781
  %v1856 = vunpack.c.h.b16 %v1781
  %v1857 = vunpack.c.l.b16 %v1782
  %v1858 = vunpack.c.h.b16 %v1782
  %v1859 = vunpack.c.l.b16 %v1783
  %v1860 = vunpack.c.h.b16 %v1783
  %v1861 = vunpack.c.l.b16 %v1784
  %v1862 = vunpack.c.h.b16 %v1784
  %v1863 = vunpack.c.l.b16 %v1785
  %v1864 = vunpack.c.h.b16 %v1785
  %v1865 = vunpack.c.l.b16 %v1786
  %v1866 = vunpack.c.h.b16 %v1786
  %v1867 = vunpack.c.l.b16 %v1787
  %v1868 = vunpack.c.h.b16 %v1787
  %v1869 = vunpack.c.l.b16 %v1788
  %v1870 = vunpack.c.h.b16 %v1788
  %v1871 = vunpack.c.l.b16 %v1789
  %v1872 = vunpack.c.h.b16 %v1789
  %v1873 = vunpack.c.l.b16 %v1790
  %v1874 = vunpack.c.h.b16 %v1790
  %v1875 = vunpack.c.l.b16 %v1791
  %v1876 = vunpack.c.h.b16 %v1791
  %v1877 = vunpack.c.l.b16 %v1792
  %v1878 = vunpack.c.h.b16 %v1792
  %v1879 = vunpack.c.l.b16 %v1793
  %v1880 = vunpack.c.h.b16 %v1793
  %v1881 = vunpack.c.l.b16 %v1794
  %v1882 = vunpack.c.h.b16 %v1794
  %v1883 = vunpack.c.l.b16 %v1795
  %v1884 = vunpack.c.h.b16 %v1795
  %v1885 = vunpack.c.l.b16 %v1796
  %v1886 = vunpack.c.h.b16 %v1796
  %v1887 = vunpack.c.l.b16 %v1797
  %v1888 = vunpack.c.h.b16 %v1797
  %v1889 = vunpack.c.l.b16 %v1798
  %v1890 = vunpack.c.h.b16 %v1798
  %v1891 = vunpack.c.l.b16 %v1799
  %v1892 = vunpack.c.h.b16 %v1799
  %v1893 = vunpack.c.l.b16 %v1800
  %v1894 = vunpack.c.h.b16 %v1800
  %v1895 = vunpack.c.l.b16 %v1801
  %v1896 = vunpack.c.h.b16 %v1801
  %v1897 = vunpack.c.l.b16 %v1802
  %v1898 = vunpack.c.h.b16 %v1802
  %v1899 = vpack.c.b16 %v1839, %v1835
  %v1900 = vpack.c.b16 %v1840, %v1836
  %v1901 = vpack.c.b16 %v1841, %v1837
  %v1902 = vpack.c.b16 %v1842, %v1838
  %v1903 = vpack.c.b16 %v1847, %v1843
  %v1904 = vpack.c.b16 %v1848, %v1844
  %v1905 = vpack.c.b16 %v1849, %v1845
  %v1906 = vpack.c.b16 %v1850, %v1846
  %v1907 = vpack.c.b16 %v1855, %v1851
  %v1908 = vpack.c.b16 %v1856, %v1852
  %v1909 = vpack.c.b16 %v1857, %v1853
  %v1910 = vpack.c.b16 %v1858, %v1854
  %v1911 = vpack.c.b16 %v1863, %v1859
  %v1912 = vpack.c.b16 %v1864, %v1860
  %v1913 = vpack.c.b16 %v1865, %v1861
  %v1914 = vpack.c.b16 %v1866, %v1862
  %v1915 = vpack.c.b16 %v1871, %v1867
  %v1916 = vpack.c.b16 %v1872, %v1868
  %v1917 = vpack.c.b16 %v1873, %v1869
  %v1918 = vpack.c.b16 %v1874, %v1870
  %v1919 = vpack.c.b16 %v1879, %v1875
  %v1920 = vpack.c.b16 %v1880, %v1876
  %v1921 = vpack.c.b16 %v1881, %v1877
  %v1922 = vpack.c.b16 %v1882, %v1878
  %v1923 = vpack.c.b16 %v1887, %v1883
  %v1924 = vpack.c.b16 %v1888, %v1884
  %v1925 = vpack.c.b16 %v1889, %v1885
  %v1926 = vpack.c.b16 %v1890, %v1886
  %v1927 = vpack.c.b16 %v1895, %v1891
  %v1928 = vpack.c.b16 %v1896, %v1892
  %v1929 = vpack.c.b16 %v1897, %v1893
  %v1930 = vpack.c.b16 %v1898, %v1894
  %1963 = vmatprep.subr.bf16.mxu0 %v1900
  %1964 = vmatpush1.bf16.msra.mxu0 %v1899
  %1965 = vmatprep.subr.bf16.mxu0 %v1904
  %1966 = vmatpush1.bf16.msra.mxu0 %v1903
  %1967 = vmatprep.subr.bf16.mxu0 %v1908
  %1968 = vmatpush1.bf16.msra.mxu0 %v1907
  %1969 = vmatprep.subr.bf16.mxu0 %v1912
  %1970 = vmatpush1.bf16.msra.mxu0 %v1911
  %1971 = vmatprep.subr.bf16.mxu0 %v1916
  %1972 = vmatpush1.bf16.msra.mxu0 %v1915
  %1973 = vmatprep.subr.bf16.mxu0 %v1920
  %1974 = vmatpush1.bf16.msra.mxu0 %v1919
  %1975 = vmatprep.subr.bf16.mxu0 %v1924
  %1976 = vmatpush1.bf16.msra.mxu0 %v1923
  %1977 = vmatprep.subr.bf16.mxu0 %v1928
  %1978 = vmatpush1.bf16.msra.mxu0 %v1927
  %1979 = vmatprep.subr.bf16.mxu0 0
  %1980 = vmatpush1.bf16.msra.mxu0 0
  %1981 = vmatprep.subr.bf16.mxu0 0
  %1982 = vmatpush1.bf16.msra.mxu0 0
  %1983 = vmatprep.subr.bf16.mxu0 0
  %1984 = vmatpush1.bf16.msra.mxu0 0
  %1985 = vmatprep.subr.bf16.mxu0 0
  %1986 = vmatpush1.bf16.msra.mxu0 0
  %1987 = vmatprep.subr.bf16.mxu0 0
  %1988 = vmatpush1.bf16.msra.mxu0 0
  %1989 = vmatprep.subr.bf16.mxu0 0
  %1990 = vmatpush1.bf16.msra.mxu0 0
  %1991 = vmatprep.subr.bf16.mxu0 0
  %1992 = vmatpush1.bf16.msra.mxu0 0
  %1993 = vmatprep.subr.bf16.mxu0 0
  %1994 = vmatpush1.bf16.msra.mxu0 0
  %1995 = vmatprep.mubr.bf16.mxu0 0
  %1996 = vmatmul.mubr.bf16.gmra.mrb[0].mxu0 %v1767
  %v1997 = vpop.f32.mrb[0].mxu0
  %v1998 = vadd.f32 0.0, %v1997
  %v1999 = vpop.f32.mrb[0].mxu0
  %v2000 = vadd.f32 0.0, %v1999
  %v2001 = vpop.f32.mrb[0].mxu0
  %v2002 = vadd.f32 0.0, %v2001
  %v2003 = vpop.f32.mrb[0].mxu0
  %v2004 = vadd.f32 0.0, %v2003
  %2005 = vmatprep.mubr.bf16.mxu0 0
  %2006 = vmatmul.mubr.bf16.gmra.mrb[0].mxu0 %v1768
  %v2007 = vpop.f32.mrb[0].mxu0
  %v2008 = vadd.f32 0.0, %v2007
  %v2009 = vpop.f32.mrb[0].mxu0
  %v2010 = vadd.f32 0.0, %v2009
  %v2011 = vpop.f32.mrb[0].mxu0
  %v2012 = vadd.f32 0.0, %v2011
  %v2013 = vpop.f32.mrb[0].mxu0
  %v2014 = vadd.f32 0.0, %v2013
  %2015 = vmatprep.mubr.bf16.mxu0 0
  %2016 = vmatmul.mubr.bf16.gmra.mrb[0].mxu0 %v1769
  %v2017 = vpop.f32.mrb[0].mxu0
  %v2018 = vadd.f32 0.0, %v2017
  %v2019 = vpop.f32.mrb[0].mxu0
  %v2020 = vadd.f32 0.0, %v2019
  %v2021 = vpop.f32.mrb[0].mxu0
  %v2022 = vadd.f32 0.0, %v2021
  %v2023 = vpop.f32.mrb[0].mxu0
  %v2024 = vadd.f32 0.0, %v2023
  %2025 = vdwg.mxu0
  %2026 = vmatprep.subr.bf16.mxu0 %v1902
  %2027 = vmatpush1.bf16.msra.mxu0 %v1901
  %2028 = vmatprep.subr.bf16.mxu0 %v1906
  %2029 = vmatpush1.bf16.msra.mxu0 %v1905
  %2030 = vmatprep.subr.bf16.mxu0 %v1910
  %2031 = vmatpush1.bf16.msra.mxu0 %v1909
  %2032 = vmatprep.subr.bf16.mxu0 %v1914
  %2033 = vmatpush1.bf16.msra.mxu0 %v1913
  %2034 = vmatprep.subr.bf16.mxu0 %v1918
  %2035 = vmatpush1.bf16.msra.mxu0 %v1917
  %2036 = vmatprep.subr.bf16.mxu0 %v1922
  %2037 = vmatpush1.bf16.msra.mxu0 %v1921
  %2038 = vmatprep.subr.bf16.mxu0 %v1926
  %2039 = vmatpush1.bf16.msra.mxu0 %v1925
  %2040 = vmatprep.subr.bf16.mxu0 %v1930
  %2041 = vmatpush1.bf16.msra.mxu0 %v1929
  %2042 = vmatprep.subr.bf16.mxu0 0
  %2043 = vmatpush1.bf16.msra.mxu0 0
  %2044 = vmatprep.subr.bf16.mxu0 0
  %2045 = vmatpush1.bf16.msra.mxu0 0
  %2046 = vmatprep.subr.bf16.mxu0 0
  %2047 = vmatpush1.bf16.msra.mxu0 0
  %2048 = vmatprep.subr.bf16.mxu0 0
  %2049 = vmatpush1.bf16.msra.mxu0 0
  %2050 = vmatprep.subr.bf16.mxu0 0
  %2051 = vmatpush1.bf16.msra.mxu0 0
  %2052 = vmatprep.subr.bf16.mxu0 0
  %2053 = vmatpush1.bf16.msra.mxu0 0
  %2054 = vmatprep.subr.bf16.mxu0 0
  %2055 = vmatpush1.bf16.msra.mxu0 0
  %2056 = vmatprep.subr.bf16.mxu0 0
  %2057 = vmatpush1.bf16.msra.mxu0 0
  %2058 = vmatprep.mubr.bf16.mxu0 0
  %2059 = vmatmul.mubr.bf16.gmra.mrb[0].mxu0 %v1767
  %v2060 = vpop.f32.mrb[0].mxu0
  %v2061 = vadd.f32 0.0, %v2060
  %v2062 = vpop.f32.mrb[0].mxu0
  %v2063 = vadd.f32 0.0, %v2062
  %v2064 = vpop.f32.mrb[0].mxu0
  %v2065 = vadd.f32 0.0, %v2064
  %v2066 = vpop.f32.mrb[0].mxu0
  %v2067 = vadd.f32 0.0, %v2066
  %2068 = vmatprep.mubr.bf16.mxu0 0
  %2069 = vmatmul.mubr.bf16.gmra.mrb[0].mxu0 %v1768
  %v2070 = vpop.f32.mrb[0].mxu0
  %v2071 = vadd.f32 0.0, %v2070
  %v2072 = vpop.f32.mrb[0].mxu0
  %v2073 = vadd.f32 0.0, %v2072
  %v2074 = vpop.f32.mrb[0].mxu0
  %v2075 = vadd.f32 0.0, %v2074
  %v2076 = vpop.f32.mrb[0].mxu0
  %v2077 = vadd.f32 0.0, %v2076
  %2078 = vmatprep.mubr.bf16.mxu0 0
  %2079 = vmatmul.mubr.bf16.gmra.mrb[0].mxu0 %v1769
  %v2080 = vpop.f32.mrb[0].mxu0
  %v2081 = vadd.f32 0.0, %v2080
  %v2082 = vpop.f32.mrb[0].mxu0
  %v2083 = vadd.f32 0.0, %v2082
  %v2084 = vpop.f32.mrb[0].mxu0
  %v2085 = vadd.f32 0.0, %v2084
  %v2086 = vpop.f32.mrb[0].mxu0
  %v2087 = vadd.f32 0.0, %v2086
  %2088 = vdwg.mxu0
  %v2089 = vadd.f32 %v1743, %v1998
  %v2090 = vadd.f32 %v1744, %v2000
  %v2091 = vadd.f32 %v1745, %v2061
  %v2092 = vadd.f32 %v1746, %v2063
  %v2093 = vadd.f32 %v1747, %v2002
  %v2094 = vadd.f32 %v1748, %v2004
  %v2095 = vadd.f32 %v1749, %v2065
  %v2096 = vadd.f32 %v1750, %v2067
  %v2097 = vadd.f32 %v1751, %v2008
  %v2098 = vadd.f32 %v1752, %v2010
  %v2099 = vadd.f32 %v1753, %v2071
  %v2100 = vadd.f32 %v1754, %v2073
  %v2101 = vadd.f32 %v1755, %v2012
  %v2102 = vadd.f32 %v1756, %v2014
  %v2103 = vadd.f32 %v1757, %v2075
  %v2104 = vadd.f32 %v1758, %v2077
  %v2105 = vadd.f32 %v1759, %v2018
  %v2106 = vadd.f32 %v1760, %v2020
  %v2107 = vadd.f32 %v1761, %v2081
  %v2108 = vadd.f32 %v1762, %v2083
  %v2109 = vadd.f32 %v1763, %v2022
  %v2110 = vadd.f32 %v1764, %v2024
  %v2111 = vadd.f32 %v1765, %v2085
  %v2112 = vadd.f32 %v1766, %v2087
  %v2113 = vpack.c.bf16 %v413, %v410
  %v2114 = vpack.c.bf16 %v421, %v418
  %v2115 = vpack.c.bf16 %v429, %v426
  %s2116 = scalar_lea.vmem %s2, 1280
  %v2117 = vld [vmem:[%s2116] sm:$0xff]
  %v2118 = vld [vmem:[%s2116 + $0x8] sm:$0xff]
  %v2119 = vld [vmem:[%s2116 + $0x10] sm:$0xff]
  %v2120 = vld [vmem:[%s2116 + $0x18] sm:$0xff]
  %v2121 = vld [vmem:[%s2116 + $0x20] sm:$0xff]
  %v2122 = vld [vmem:[%s2116 + $0x28] sm:$0xff]
  %v2123 = vld [vmem:[%s2116 + $0x30] sm:$0xff]
  %v2124 = vld [vmem:[%s2116 + $0x38] sm:$0xff]
  %v2125 = vld [vmem:[%s2116 + $0x40] sm:$0xff]
  %v2126 = vld [vmem:[%s2116 + $0x48] sm:$0xff]
  %v2127 = vld [vmem:[%s2116 + $0x50] sm:$0xff]
  %v2128 = vld [vmem:[%s2116 + $0x58] sm:$0xff]
  %v2129 = vld [vmem:[%s2116 + $0x60] sm:$0xff]
  %v2130 = vld [vmem:[%s2116 + $0x68] sm:$0xff]
  %v2131 = vld [vmem:[%s2116 + $0x70] sm:$0xff]
  %v2132 = vld [vmem:[%s2116 + $0x78] sm:$0xff]
  %v2133 = vld [vmem:[%s2116 + $0x80] sm:$0xff]
  %v2134 = vld [vmem:[%s2116 + $0x88] sm:$0xff]
  %v2135 = vld [vmem:[%s2116 + $0x90] sm:$0xff]
  %v2136 = vld [vmem:[%s2116 + $0x98] sm:$0xff]
  %v2137 = vld [vmem:[%s2116 + $0xa0] sm:$0xff]
  %v2138 = vld [vmem:[%s2116 + $0xa8] sm:$0xff]
  %v2139 = vld [vmem:[%s2116 + $0xb0] sm:$0xff]
  %v2140 = vld [vmem:[%s2116 + $0xb8] sm:$0xff]
  %v2141 = vld [vmem:[%s2116 + $0xc0] sm:$0xff]
  %v2142 = vld [vmem:[%s2116 + $0xc8] sm:$0xff]
  %v2143 = vld [vmem:[%s2116 + $0xd0] sm:$0xff]
  %v2144 = vld [vmem:[%s2116 + $0xd8] sm:$0xff]
  %v2145 = vld [vmem:[%s2116 + $0xe0] sm:$0xff]
  %v2146 = vld [vmem:[%s2116 + $0xe8] sm:$0xff]
  %v2147 = vld [vmem:[%s2116 + $0xf0] sm:$0xff]
  %v2148 = vld [vmem:[%s2116 + $0xf8] sm:$0xff]
  %v2181 = vunpack.c.l.b16 %v2117
  %v2182 = vunpack.c.h.b16 %v2117
  %v2183 = vunpack.c.l.b16 %v2118
  %v2184 = vunpack.c.h.b16 %v2118
  %v2185 = vunpack.c.l.b16 %v2119
  %v2186 = vunpack.c.h.b16 %v2119
  %v2187 = vunpack.c.l.b16 %v2120
  %v2188 = vunpack.c.h.b16 %v2120
  %v2189 = vunpack.c.l.b16 %v2121
  %v2190 = vunpack.c.h.b16 %v2121
  %v2191 = vunpack.c.l.b16 %v2122
  %v2192 = vunpack.c.h.b16 %v2122
  %v2193 = vunpack.c.l.b16 %v2123
  %v2194 = vunpack.c.h.b16 %v2123
  %v2195 = vunpack.c.l.b16 %v2124
  %v2196 = vunpack.c.h.b16 %v2124
  %v2197 = vunpack.c.l.b16 %v2125
  %v2198 = vunpack.c.h.b16 %v2125
  %v2199 = vunpack.c.l.b16 %v2126
  %v2200 = vunpack.c.h.b16 %v2126
  %v2201 = vunpack.c.l.b16 %v2127
  %v2202 = vunpack.c.h.b16 %v2127
  %v2203 = vunpack.c.l.b16 %v2128
  %v2204 = vunpack.c.h.b16 %v2128
  %v2205 = vunpack.c.l.b16 %v2129
  %v2206 = vunpack.c.h.b16 %v2129
  %v2207 = vunpack.c.l.b16 %v2130
  %v2208 = vunpack.c.h.b16 %v2130
  %v2209 = vunpack.c.l.b16 %v2131
  %v2210 = vunpack.c.h.b16 %v2131
  %v2211 = vunpack.c.l.b16 %v2132
  %v2212 = vunpack.c.h.b16 %v2132
  %v2213 = vunpack.c.l.b16 %v2133
  %v2214 = vunpack.c.h.b16 %v2133
  %v2215 = vunpack.c.l.b16 %v2134
  %v2216 = vunpack.c.h.b16 %v2134
  %v2217 = vunpack.c.l.b16 %v2135
  %v2218 = vunpack.c.h.b16 %v2135
  %v2219 = vunpack.c.l.b16 %v2136
  %v2220 = vunpack.c.h.b16 %v2136
  %v2221 = vunpack.c.l.b16 %v2137
  %v2222 = vunpack.c.h.b16 %v2137
  %v2223 = vunpack.c.l.b16 %v2138
  %v2224 = vunpack.c.h.b16 %v2138
  %v2225 = vunpack.c.l.b16 %v2139
  %v2226 = vunpack.c.h.b16 %v2139
  %v2227 = vunpack.c.l.b16 %v2140
  %v2228 = vunpack.c.h.b16 %v2140
  %v2229 = vunpack.c.l.b16 %v2141
  %v2230 = vunpack.c.h.b16 %v2141
  %v2231 = vunpack.c.l.b16 %v2142
  %v2232 = vunpack.c.h.b16 %v2142
  %v2233 = vunpack.c.l.b16 %v2143
  %v2234 = vunpack.c.h.b16 %v2143
  %v2235 = vunpack.c.l.b16 %v2144
  %v2236 = vunpack.c.h.b16 %v2144
  %v2237 = vunpack.c.l.b16 %v2145
  %v2238 = vunpack.c.h.b16 %v2145
  %v2239 = vunpack.c.l.b16 %v2146
  %v2240 = vunpack.c.h.b16 %v2146
  %v2241 = vunpack.c.l.b16 %v2147
  %v2242 = vunpack.c.h.b16 %v2147
  %v2243 = vunpack.c.l.b16 %v2148
  %v2244 = vunpack.c.h.b16 %v2148
  %v2245 = vpack.c.b16 %v2185, %v2181
  %v2246 = vpack.c.b16 %v2186, %v2182
  %v2247 = vpack.c.b16 %v2187, %v2183
  %v2248 = vpack.c.b16 %v2188, %v2184
  %v2249 = vpack.c.b16 %v2193, %v2189
  %v2250 = vpack.c.b16 %v2194, %v2190
  %v2251 = vpack.c.b16 %v2195, %v2191
  %v2252 = vpack.c.b16 %v2196, %v2192
  %v2253 = vpack.c.b16 %v2201, %v2197
  %v2254 = vpack.c.b16 %v2202, %v2198
  %v2255 = vpack.c.b16 %v2203, %v2199
  %v2256 = vpack.c.b16 %v2204, %v2200
  %v2257 = vpack.c.b16 %v2209, %v2205
  %v2258 = vpack.c.b16 %v2210, %v2206
  %v2259 = vpack.c.b16 %v2211, %v2207
  %v2260 = vpack.c.b16 %v2212, %v2208
  %v2261 = vpack.c.b16 %v2217, %v2213
  %v2262 = vpack.c.b16 %v2218, %v2214
  %v2263 = vpack.c.b16 %v2219, %v2215
  %v2264 = vpack.c.b16 %v2220, %v2216
  %v2265 = vpack.c.b16 %v2225, %v2221
  %v2266 = vpack.c.b16 %v2226, %v2222
  %v2267 = vpack.c.b16 %v2227, %v2223
  %v2268 = vpack.c.b16 %v2228, %v2224
  %v2269 = vpack.c.b16 %v2233, %v2229
  %v2270 = vpack.c.b16 %v2234, %v2230
  %v2271 = vpack.c.b16 %v2235, %v2231
  %v2272 = vpack.c.b16 %v2236, %v2232
  %v2273 = vpack.c.b16 %v2241, %v2237
  %v2274 = vpack.c.b16 %v2242, %v2238
  %v2275 = vpack.c.b16 %v2243, %v2239
  %v2276 = vpack.c.b16 %v2244, %v2240
  %2309 = vmatprep.subr.bf16.mxu0 %v2246
  %2310 = vmatpush1.bf16.msra.mxu0 %v2245
  %2311 = vmatprep.subr.bf16.mxu0 %v2250
  %2312 = vmatpush1.bf16.msra.mxu0 %v2249
  %2313 = vmatprep.subr.bf16.mxu0 %v2254
  %2314 = vmatpush1.bf16.msra.mxu0 %v2253
  %2315 = vmatprep.subr.bf16.mxu0 %v2258
  %2316 = vmatpush1.bf16.msra.mxu0 %v2257
  %2317 = vmatprep.subr.bf16.mxu0 %v2262
  %2318 = vmatpush1.bf16.msra.mxu0 %v2261
  %2319 = vmatprep.subr.bf16.mxu0 %v2266
  %2320 = vmatpush1.bf16.msra.mxu0 %v2265
  %2321 = vmatprep.subr.bf16.mxu0 %v2270
  %2322 = vmatpush1.bf16.msra.mxu0 %v2269
  %2323 = vmatprep.subr.bf16.mxu0 %v2274
  %2324 = vmatpush1.bf16.msra.mxu0 %v2273
  %2325 = vmatprep.subr.bf16.mxu0 0
  %2326 = vmatpush1.bf16.msra.mxu0 0
  %2327 = vmatprep.subr.bf16.mxu0 0
  %2328 = vmatpush1.bf16.msra.mxu0 0
  %2329 = vmatprep.subr.bf16.mxu0 0
  %2330 = vmatpush1.bf16.msra.mxu0 0
  %2331 = vmatprep.subr.bf16.mxu0 0
  %2332 = vmatpush1.bf16.msra.mxu0 0
  %2333 = vmatprep.subr.bf16.mxu0 0
  %2334 = vmatpush1.bf16.msra.mxu0 0
  %2335 = vmatprep.subr.bf16.mxu0 0
  %2336 = vmatpush1.bf16.msra.mxu0 0
  %2337 = vmatprep.subr.bf16.mxu0 0
  %2338 = vmatpush1.bf16.msra.mxu0 0
  %2339 = vmatprep.subr.bf16.mxu0 0
  %2340 = vmatpush1.bf16.msra.mxu0 0
  %2341 = vmatprep.mubr.bf16.mxu0 0
  %2342 = vmatmul.mubr.bf16.gmra.mrb[0].mxu0 %v2113
  %v2343 = vpop.f32.mrb[0].mxu0
  %v2344 = vadd.f32 0.0, %v2343
  %v2345 = vpop.f32.mrb[0].mxu0
  %v2346 = vadd.f32 0.0, %v2345
  %v2347 = vpop.f32.mrb[0].mxu0
  %v2348 = vadd.f32 0.0, %v2347
  %v2349 = vpop.f32.mrb[0].mxu0
  %v2350 = vadd.f32 0.0, %v2349
  %2351 = vmatprep.mubr.bf16.mxu0 0
  %2352 = vmatmul.mubr.bf16.gmra.mrb[0].mxu0 %v2114
  %v2353 = vpop.f32.mrb[0].mxu0
  %v2354 = vadd.f32 0.0, %v2353
  %v2355 = vpop.f32.mrb[0].mxu0
  %v2356 = vadd.f32 0.0, %v2355
  %v2357 = vpop.f32.mrb[0].mxu0
  %v2358 = vadd.f32 0.0, %v2357
  %v2359 = vpop.f32.mrb[0].mxu0
  %v2360 = vadd.f32 0.0, %v2359
  %2361 = vmatprep.mubr.bf16.mxu0 0
  %2362 = vmatmul.mubr.bf16.gmra.mrb[0].mxu0 %v2115
  %v2363 = vpop.f32.mrb[0].mxu0
  %v2364 = vadd.f32 0.0, %v2363
  %v2365 = vpop.f32.mrb[0].mxu0
  %v2366 = vadd.f32 0.0, %v2365
  %v2367 = vpop.f32.mrb[0].mxu0
  %v2368 = vadd.f32 0.0, %v2367
  %v2369 = vpop.f32.mrb[0].mxu0
  %v2370 = vadd.f32 0.0, %v2369
  %2371 = vdwg.mxu0
  %2372 = vmatprep.subr.bf16.mxu0 %v2248
  %2373 = vmatpush1.bf16.msra.mxu0 %v2247
  %2374 = vmatprep.subr.bf16.mxu0 %v2252
  %2375 = vmatpush1.bf16.msra.mxu0 %v2251
  %2376 = vmatprep.subr.bf16.mxu0 %v2256
  %2377 = vmatpush1.bf16.msra.mxu0 %v2255
  %2378 = vmatprep.subr.bf16.mxu0 %v2260
  %2379 = vmatpush1.bf16.msra.mxu0 %v2259
  %2380 = vmatprep.subr.bf16.mxu0 %v2264
  %2381 = vmatpush1.bf16.msra.mxu0 %v2263
  %2382 = vmatprep.subr.bf16.mxu0 %v2268
  %2383 = vmatpush1.bf16.msra.mxu0 %v2267
  %2384 = vmatprep.subr.bf16.mxu0 %v2272
  %2385 = vmatpush1.bf16.msra.mxu0 %v2271
  %2386 = vmatprep.subr.bf16.mxu0 %v2276
  %2387 = vmatpush1.bf16.msra.mxu0 %v2275
  %2388 = vmatprep.subr.bf16.mxu0 0
  %2389 = vmatpush1.bf16.msra.mxu0 0
  %2390 = vmatprep.subr.bf16.mxu0 0
  %2391 = vmatpush1.bf16.msra.mxu0 0
  %2392 = vmatprep.subr.bf16.mxu0 0
  %2393 = vmatpush1.bf16.msra.mxu0 0
  %2394 = vmatprep.subr.bf16.mxu0 0
  %2395 = vmatpush1.bf16.msra.mxu0 0
  %2396 = vmatprep.subr.bf16.mxu0 0
  %2397 = vmatpush1.bf16.msra.mxu0 0
  %2398 = vmatprep.subr.bf16.mxu0 0
  %2399 = vmatpush1.bf16.msra.mxu0 0
  %2400 = vmatprep.subr.bf16.mxu0 0
  %2401 = vmatpush1.bf16.msra.mxu0 0
  %2402 = vmatprep.subr.bf16.mxu0 0
  %2403 = vmatpush1.bf16.msra.mxu0 0
  %2404 = vmatprep.mubr.bf16.mxu0 0
  %2405 = vmatmul.mubr.bf16.gmra.mrb[0].mxu0 %v2113
  %v2406 = vpop.f32.mrb[0].mxu0
  %v2407 = vadd.f32 0.0, %v2406
  %v2408 = vpop.f32.mrb[0].mxu0
  %v2409 = vadd.f32 0.0, %v2408
  %v2410 = vpop.f32.mrb[0].mxu0
  %v2411 = vadd.f32 0.0, %v2410
  %v2412 = vpop.f32.mrb[0].mxu0
  %v2413 = vadd.f32 0.0, %v2412
  %2414 = vmatprep.mubr.bf16.mxu0 0
  %2415 = vmatmul.mubr.bf16.gmra.mrb[0].mxu0 %v2114
  %v2416 = vpop.f32.mrb[0].mxu0
  %v2417 = vadd.f32 0.0, %v2416
  %v2418 = vpop.f32.mrb[0].mxu0
  %v2419 = vadd.f32 0.0, %v2418
  %v2420 = vpop.f32.mrb[0].mxu0
  %v2421 = vadd.f32 0.0, %v2420
  %v2422 = vpop.f32.mrb[0].mxu0
  %v2423 = vadd.f32 0.0, %v2422
  %2424 = vmatprep.mubr.bf16.mxu0 0
  %2425 = vmatmul.mubr.bf16.gmra.mrb[0].mxu0 %v2115
  %v2426 = vpop.f32.mrb[0].mxu0
  %v2427 = vadd.f32 0.0, %v2426
  %v2428 = vpop.f32.mrb[0].mxu0
  %v2429 = vadd.f32 0.0, %v2428
  %v2430 = vpop.f32.mrb[0].mxu0
  %v2431 = vadd.f32 0.0, %v2430
  %v2432 = vpop.f32.mrb[0].mxu0
  %v2433 = vadd.f32 0.0, %v2432
  %2434 = vdwg.mxu0
  %v2435 = vadd.f32 %v2089, %v2344
  %v2436 = vadd.f32 %v2090, %v2346
  %v2437 = vadd.f32 %v2091, %v2407
  %v2438 = vadd.f32 %v2092, %v2409
  %v2439 = vadd.f32 %v2093, %v2348
  %v2440 = vadd.f32 %v2094, %v2350
  %v2441 = vadd.f32 %v2095, %v2411
  %v2442 = vadd.f32 %v2096, %v2413
  %v2443 = vadd.f32 %v2097, %v2354
  %v2444 = vadd.f32 %v2098, %v2356
  %v2445 = vadd.f32 %v2099, %v2417
  %v2446 = vadd.f32 %v2100, %v2419
  %v2447 = vadd.f32 %v2101, %v2358
  %v2448 = vadd.f32 %v2102, %v2360
  %v2449 = vadd.f32 %v2103, %v2421
  %v2450 = vadd.f32 %v2104, %v2423
  %v2451 = vadd.f32 %v2105, %v2364
  %v2452 = vadd.f32 %v2106, %v2366
  %v2453 = vadd.f32 %v2107, %v2427
  %v2454 = vadd.f32 %v2108, %v2429
  %v2455 = vadd.f32 %v2109, %v2368
  %v2456 = vadd.f32 %v2110, %v2370
  %v2457 = vadd.f32 %v2111, %v2431
  %v2458 = vadd.f32 %v2112, %v2433
  %v2459 = vmax.f32 %v2435, %v2436
  %v2460 = vmax.f32 %v2439, %v2440
  %v2461 = vmax.f32 %v2443, %v2444
  %v2462 = vmax.f32 %v2447, %v2448
  %v2463 = vmax.f32 %v2451, %v2452
  %v2464 = vmax.f32 %v2455, %v2456
  %v2465 = vmax.f32 %v2437, %v2438
  %v2466 = vmax.f32 %v2441, %v2442
  %v2467 = vmax.f32 %v2445, %v2446
  %v2468 = vmax.f32 %v2449, %v2450
  %v2469 = vmax.f32 %v2453, %v2454
  %v2470 = vmax.f32 %v2457, %v2458
  %v2471 = vmax.f32 %v2459, %v2465
  %v2472 = vmax.f32 %v2460, %v2466
  %v2473 = vmax.f32 %v2461, %v2467
  %v2474 = vmax.f32 %v2462, %v2468
  %v2475 = vmax.f32 %v2463, %v2469
  %v2476 = vmax.f32 %v2464, %v2470
  %v2477 = vld [vmem:[%s3] sm:$0x1]
  %v2479 = vlaneseq
  %v2480 = vshrl.u32 %v2479, 7
  %v2481 = vsub.s32 0, %v2480
  %v2482 = vrot.slane %v2477, %v2481
  %v2484 = vadd.f32 %v2471, %v2482
  %v2485 = vadd.f32 %v2472, %v2482
  %v2486 = vadd.f32 %v2473, %v2482
  %v2487 = vadd.f32 %v2474, %v2482
  %v2488 = vadd.f32 %v2475, %v2482
  %v2489 = vadd.f32 %v2476, %v2482
  %v2490 = vmax.f32 %v2484, 0.0
  %v2491 = vmax.f32 %v2485, 0.0
  %v2492 = vmax.f32 %v2486, 0.0
  %v2493 = vmax.f32 %v2487, 0.0
  %v2494 = vmax.f32 %v2488, 0.0
  %v2495 = vmax.f32 %v2489, 0.0
  %v2496 = vpack.c.bf16 %v2491, %v2490
  %v2497 = vpack.c.bf16 %v2493, %v2492
  %v2498 = vpack.c.bf16 %v2495, %v2494
  %v2502 = vunpack.c.l.b16 %v2496
  %v2503 = vunpack.c.h.b16 %v2496
  %v2504 = vunpack.c.l.b16 %v2497
  %v2505 = vunpack.c.h.b16 %v2497
  %v2506 = vunpack.c.l.b16 %v2498
  %v2507 = vunpack.c.h.b16 %v2498
  %v2508 = vpack.c.b16 %v2502, %v2502
  %v2509 = vpack.c.b16 %v2503, %v2503
  %v2510 = vpack.c.b16 %v2504, %v2504
  %v2511 = vpack.c.b16 %v2505, %v2505
  %v2512 = vpack.c.b16 %v2506, %v2506
  %v2513 = vpack.c.b16 %v2507, %v2507
  %2520 = vst [vmem:[%s4] sm:$0xf] %v2508
  %2521 = vst [vmem:[%s4 + $0x4] sm:$0xf] %v2509
  %2522 = vst [vmem:[%s4 + $0x8] sm:$0xf] %v2510
  %2523 = vst [vmem:[%s4 + $0xc] sm:$0xf] %v2511
  %2524 = vst [vmem:[%s4 + $0x10] sm:$0xf] %v2512
  %2525 = vst [vmem:[%s4 + $0x14] sm:$0xf] %v2513
  // Predicated region
  $region18: #{cifar_cnn_forward.5} parent=0 // pred_check
    _
  $region19: #{cifar_cnn_forward.5} parent=0 // pred_check_branch
    %2527 = sbr.rel (0) target = $region21
  $region20: #{cifar_cnn_forward.5} parent=0 // pred_region
    _
  $region21: #{cifar_cnn_forward.5} parent=0 // pred_fallthru
    _
  // Predicated region
  $region22: #{cifar_cnn_forward.5} parent=0 // pred_check
    _
  $region23: #{cifar_cnn_forward.5} parent=0 // pred_check_branch
    %2529 = sbr.rel (0) target = $region25
  $region24: #{cifar_cnn_forward.5} parent=0 // pred_region
    _
  $region25: #{cifar_cnn_forward.5} parent=0 // pred_fallthru
    _

// kernel: cifar_cnn_forward.4
$region0: #{cifar_cnn_forward.4}
  #allocation0 [shape = 'u32[]', space=smem, size = 0x4, offset = 0x4, fixed_abs, tag = 'smem constant byte address 0x4 - core index']
  #allocation1 [shape = 'u32[144,128]{1,0:T(1,128)}', space=vmem, size = 0x12000, scoped, tag = 'internal scratch']
  %s0 = inlined_call_operand.vmem [shape: bf16[256,96], index: 0, kind: input, shape index: {}]
  %s1 = inlined_call_operand.vmem [shape: bf16[672,256], index: 1, kind: input, shape index: {}]
  %s2 = inlined_call_operand.hbm [shape: bf16[6,96,512], index: 2, kind: input, shape index: {}]
  %s3 = inlined_call_operand.vmem [shape: f32[1,128], index: 3, kind: input, shape index: {}]
  %s4 = inlined_call_operand.vmem [shape: bf16[112,128], index: 4, kind: output, shape index: {}]
  %s5 = sld [smem:[#allocation0]]
  $region30: #{cifar_cnn_forward.4} parent=0
    _
  %s7 = ssub.s32 1, %s5
  %s8 = scalar_select 0, %s7, %s5
  $region1: #{cifar_cnn_forward.4} parent=0
    #allocation2 [shape = 'u8[589824]{0}', space=vmem, size = 0x90000, scoped, tag = 'input window, operand 2, single buffered']
    #allocation3 [shape = 's32[1]{0}', space=sflag, size = 0x4, scoped, tag = 'scoped memory for cifar_cnn_forward.4']
    %9 = vsyncpa [#allocation3], 0
    // Predicated region
    $region2: #{cifar_cnn_forward.4} parent=1 // pred_check
      _
    $region3: #{cifar_cnn_forward.4} parent=1 // pred_check_branch
      %11 = sbr.rel (0) target = $region5
    $region4: #{cifar_cnn_forward.4} parent=1 // pred_region
      _
    $region5: #{cifar_cnn_forward.4} parent=1 // pred_fallthru
      _
    // Predicated region
    $region6: #{cifar_cnn_forward.4} parent=1 // pred_check
      _
    $region7: #{cifar_cnn_forward.4} parent=1 // pred_check_branch
      %13 = sbr.rel (0) target = $region9
    $region8: #{cifar_cnn_forward.4} parent=1 // pred_region
      _
    $region9: #{cifar_cnn_forward.4} parent=1 // pred_fallthru
      _
    // Predicated region
    $region10: #{cifar_cnn_forward.4} parent=1 // pred_check
      _
    $region11: #{cifar_cnn_forward.4} parent=1 // pred_check_branch
      %15 = sbr.rel (0) target = $region13
    $region12: #{cifar_cnn_forward.4} parent=1 // pred_region
      %s17 = ssub.s32 18432, 18432
      %18 = vsyncadd [#allocation3], %s17
      %s19 = sshll.u32 [#allocation2], 4
      %s20 = int_to_ptr.vmem [resolvable:$true] %s19
      %25 = dma.hbm_to_vmem [thread:$0]  %s2, 18432, %s20, [#allocation3], 256, 256, 16
    $region13: #{cifar_cnn_forward.4} parent=1 // pred_fallthru
      _
    // Predicated region
    $region14: #{cifar_cnn_forward.4} parent=1 // pred_check
      _
    $region15: #{cifar_cnn_forward.4} parent=1 // pred_check_branch
      %27 = sbr.rel (0) target = $region17
    $region16: #{cifar_cnn_forward.4} parent=1 // pred_region
      _
    $region17: #{cifar_cnn_forward.4} parent=1 // pred_fallthru
      _
    // Predicated region
    $region18: #{cifar_cnn_forward.4} parent=1 // pred_check
      _
    $region19: #{cifar_cnn_forward.4} parent=1 // pred_check_branch
      %29 = sbr.rel (0) target = $region21
    $region20: #{cifar_cnn_forward.4} parent=1 // pred_region
      %30 = dma.done [#allocation3], 18432
    $region21: #{cifar_cnn_forward.4} parent=1 // pred_fallthru
      _
    %v32 = vld [vmem:[%s1] sm:$0xff]
    %v33 = vld [vmem:[%s1 + $0x8] sm:$0xff]
    %v34 = vld [vmem:[%s1 + $0x10] sm:$0xff]
    %v35 = vld [vmem:[%s1 + $0x18] sm:$0xff]
    %v36 = vld [vmem:[%s1 + $0x20] sm:$0xff]
    %v37 = vld [vmem:[%s1 + $0x28] sm:$0xff]
    %v38 = vld [vmem:[%s1 + $0x30] sm:$0xff]
    %v39 = vld [vmem:[%s1 + $0x38] sm:$0xff]
    %v40 = vld [vmem:[%s1 + $0x40] sm:$0xff]
    %v41 = vld [vmem:[%s1 + $0x48] sm:$0xff]
    %v42 = vld [vmem:[%s1 + $0x50] sm:$0xff]
    %v43 = vld [vmem:[%s1 + $0x58] sm:$0xff]
    %v44 = vld [vmem:[%s1 + $0x60] sm:$0xff]
    %v45 = vld [vmem:[%s1 + $0x68] sm:$0xff]
    %v46 = vld [vmem:[%s1 + $0x70] sm:$0xff]
    %v47 = vld [vmem:[%s1 + $0x78] sm:$0xff]
    %v48 = vld [vmem:[%s1 + $0x80] sm:$0xff]
    %v49 = vld [vmem:[%s1 + $0x88] sm:$0xff]
    %v50 = vld [vmem:[%s1 + $0x90] sm:$0xff]
    %v51 = vld [vmem:[%s1 + $0x98] sm:$0xff]
    %v52 = vld [vmem:[%s1 + $0xa0] sm:$0xff]
    %v53 = vld [vmem:[%s1 + $0xa8] sm:$0xff]
    %v54 = vld [vmem:[%s1 + $0xb0] sm:$0xff]
    %v55 = vld [vmem:[%s1 + $0xb8] sm:$0xff]
    %v56 = vld [vmem:[%s1 + $0xc0] sm:$0xff]
    %v57 = vld [vmem:[%s1 + $0xc8] sm:$0xff]
    %v58 = vld [vmem:[%s1 + $0xd0] sm:$0xff]
    %v59 = vld [vmem:[%s1 + $0xd8] sm:$0xff]
    %v60 = vld [vmem:[%s1 + $0xe0] sm:$0xff]
    %v61 = vld [vmem:[%s1 + $0xe8] sm:$0xff]
    %v62 = vld [vmem:[%s1 + $0xf0] sm:$0xff]
    %v63 = vld [vmem:[%s1 + $0xf8] sm:$0xff]
    %v64 = vld [vmem:[%s1 + $0x100] sm:$0xff]
    %v65 = vld [vmem:[%s1 + $0x108] sm:$0xff]
    %v66 = vld [vmem:[%s1 + $0x110] sm:$0xff]
    %v67 = vld [vmem:[%s1 + $0x118] sm:$0xff]
    %v68 = vld [vmem:[%s1 + $0x120] sm:$0xff]
    %v69 = vld [vmem:[%s1 + $0x128] sm:$0xff]
    %v70 = vld [vmem:[%s1 + $0x130] sm:$0xff]
    %v71 = vld [vmem:[%s1 + $0x138] sm:$0xff]
    %v72 = vld [vmem:[%s1 + $0x140] sm:$0xff]
    %v73 = vld [vmem:[%s1 + $0x148] sm:$0xff]
    %v74 = vld [vmem:[%s1 + $0x150] sm:$0xff]
    %v75 = vld [vmem:[%s1 + $0x158] sm:$0xff]
    %v76 = vld [vmem:[%s1 + $0x160] sm:$0xff]
    %v77 = vld [vmem:[%s1 + $0x168] sm:$0xff]
    %v78 = vld [vmem:[%s1 + $0x170] sm:$0xff]
    %v79 = vld [vmem:[%s1 + $0x178] sm:$0xff]
    %v80 = vld [vmem:[%s1 + $0x180] sm:$0xff]
    %v81 = vld [vmem:[%s1 + $0x188] sm:$0xff]
    %v82 = vld [vmem:[%s1 + $0x190] sm:$0xff]
    %v83 = vld [vmem:[%s1 + $0x198] sm:$0xff]
    %v84 = vld [vmem:[%s1 + $0x1a0] sm:$0xff]
    %v85 = vld [vmem:[%s1 + $0x1a8] sm:$0xff]
    %v86 = vld [vmem:[%s1 + $0x1b0] sm:$0xff]
    %v87 = vld [vmem:[%s1 + $0x1b8] sm:$0xff]
    %v88 = vld [vmem:[%s1 + $0x1c0] sm:$0xff]
    %v89 = vld [vmem:[%s1 + $0x1c8] sm:$0xff]
    %v90 = vld [vmem:[%s1 + $0x1d0] sm:$0xff]
    %v91 = vld [vmem:[%s1 + $0x1d8] sm:$0xff]
    %v92 = vld [vmem:[%s1 + $0x1e0] sm:$0xff]
    %v93 = vld [vmem:[%s1 + $0x1e8] sm:$0xff]
    %v94 = vld [vmem:[%s1 + $0x1f0] sm:$0xff]
    %v95 = vld [vmem:[%s1 + $0x1f8] sm:$0xff]
    %v96 = vld [vmem:[%s1 + $0x200] sm:$0xff]
    %v97 = vld [vmem:[%s1 + $0x208] sm:$0xff]
    %v98 = vld [vmem:[%s1 + $0x210] sm:$0xff]
    %v99 = vld [vmem:[%s1 + $0x218] sm:$0xff]
    %v100 = vld [vmem:[%s1 + $0x220] sm:$0xff]
    %v101 = vld [vmem:[%s1 + $0x228] sm:$0xff]
    %v102 = vld [vmem:[%s1 + $0x230] sm:$0xff]
    %v103 = vld [vmem:[%s1 + $0x238] sm:$0xff]
    %v104 = vld [vmem:[%s1 + $0x240] sm:$0xff]
    %v105 = vld [vmem:[%s1 + $0x248] sm:$0xff]
    %v106 = vld [vmem:[%s1 + $0x250] sm:$0xff]
    %v107 = vld [vmem:[%s1 + $0x258] sm:$0xff]
    %v108 = vld [vmem:[%s1 + $0x260] sm:$0xff]
    %v109 = vld [vmem:[%s1 + $0x268] sm:$0xff]
    %v110 = vld [vmem:[%s1 + $0x270] sm:$0xff]
    %v111 = vld [vmem:[%s1 + $0x278] sm:$0xff]
    %v112 = vld [vmem:[%s1 + $0x280] sm:$0xff]
    %v113 = vld [vmem:[%s1 + $0x288] sm:$0xff]
    %v114 = vld [vmem:[%s1 + $0x290] sm:$0xff]
    %v115 = vld [vmem:[%s1 + $0x298] sm:$0xff]
    %v116 = vld [vmem:[%s0] sm:$0xf]
    %v117 = vld [vmem:[%s0 + $0x4] sm:$0xf]
    %v118 = vld [vmem:[%s0 + $0x8] sm:$0xf]
    %v119 = vld [vmem:[%s0 + $0xc] sm:$0xf]
    %v120 = vld [vmem:[%s0 + $0x10] sm:$0xf]
    %v121 = vld [vmem:[%s0 + $0x14] sm:$0xf]
    %v122 = vld [vmem:[%s0 + $0x18] sm:$0xf]
    %v123 = vld [vmem:[%s0 + $0x1c] sm:$0xf]
    %v124 = vld [vmem:[%s0 + $0x20] sm:$0xf]
    %v125 = vld [vmem:[%s0 + $0x24] sm:$0xf]
    %v126 = vld [vmem:[%s0 + $0x28] sm:$0xf]
    %v127 = vld [vmem:[%s0 + $0x2c] sm:$0xf]
    %v128 = vld [vmem:[%s0 + $0x30] sm:$0xf]
    %v129 = vld [vmem:[%s0 + $0x34] sm:$0xf]
    %v130 = vld [vmem:[%s0 + $0x38] sm:$0xf]
    %v131 = vld [vmem:[%s0 + $0x3c] sm:$0xf]
    %v132 = vld [vmem:[%s0 + $0x40] sm:$0xf]
    %v133 = vld [vmem:[%s0 + $0x44] sm:$0xf]
    %v134 = vld [vmem:[%s0 + $0x48] sm:$0xf]
    %v135 = vld [vmem:[%s0 + $0x4c] sm:$0xf]
    %v136 = vld [vmem:[%s0 + $0x50] sm:$0xf]
    %v137 = vld [vmem:[%s0 + $0x54] sm:$0xf]
    %v138 = vld [vmem:[%s0 + $0x58] sm:$0xf]
    %v139 = vld [vmem:[%s0 + $0x5c] sm:$0xf]
    %v140 = vld [vmem:[%s0 + $0x60] sm:$0xf]
    %v141 = vld [vmem:[%s0 + $0x64] sm:$0xf]
    %v142 = vld [vmem:[%s0 + $0x68] sm:$0xf]
    %v143 = vld [vmem:[%s0 + $0x6c] sm:$0xf]
    %v144 = vld [vmem:[%s0 + $0x70] sm:$0xf]
    %v145 = vld [vmem:[%s0 + $0x74] sm:$0xf]
    %v146 = vld [vmem:[%s0 + $0x78] sm:$0xf]
    %v147 = vld [vmem:[%s0 + $0x7c] sm:$0xf]
    %v232 = vunpack.c.l.b16 %v32
    %v233 = vunpack.c.h.b16 %v32
    %v234 = vunpack.c.l.b16 %v33
    %v235 = vunpack.c.h.b16 %v33
    %v236 = vunpack.c.l.b16 %v34
    %v237 = vunpack.c.h.b16 %v34
    %v238 = vunpack.c.l.b16 %v35
    %v239 = vunpack.c.h.b16 %v35
    %v240 = vunpack.c.l.b16 %v36
    %v241 = vunpack.c.h.b16 %v36
    %v242 = vunpack.c.l.b16 %v37
    %v243 = vunpack.c.h.b16 %v37
    %v244 = vunpack.c.l.b16 %v38
    %v245 = vunpack.c.h.b16 %v38
    %v246 = vunpack.c.l.b16 %v39
    %v247 = vunpack.c.h.b16 %v39
    %v248 = vunpack.c.l.b16 %v40
    %v249 = vunpack.c.h.b16 %v40
    %v250 = vunpack.c.l.b16 %v41
    %v251 = vunpack.c.h.b16 %v41
    %v252 = vunpack.c.l.b16 %v42
    %v253 = vunpack.c.h.b16 %v42
    %v254 = vunpack.c.l.b16 %v43
    %v255 = vunpack.c.h.b16 %v43
    %v256 = vunpack.c.l.b16 %v44
    %v257 = vunpack.c.h.b16 %v44
    %v258 = vunpack.c.l.b16 %v45
    %v259 = vunpack.c.h.b16 %v45
    %v260 = vunpack.c.l.b16 %v46
    %v261 = vunpack.c.h.b16 %v46
    %v262 = vunpack.c.l.b16 %v47
    %v263 = vunpack.c.h.b16 %v47
    %v264 = vunpack.c.l.b16 %v48
    %v265 = vunpack.c.h.b16 %v48
    %v266 = vunpack.c.l.b16 %v49
    %v267 = vunpack.c.h.b16 %v49
    %v268 = vunpack.c.l.b16 %v50
    %v269 = vunpack.c.h.b16 %v50
    %v270 = vunpack.c.l.b16 %v51
    %v271 = vunpack.c.h.b16 %v51
    %v272 = vunpack.c.l.b16 %v52
    %v273 = vunpack.c.h.b16 %v52
    %v274 = vunpack.c.l.b16 %v53
    %v275 = vunpack.c.h.b16 %v53
    %v276 = vunpack.c.l.b16 %v54
    %v277 = vunpack.c.h.b16 %v54
    %v278 = vunpack.c.l.b16 %v55
    %v279 = vunpack.c.h.b16 %v55
    %v280 = vunpack.c.l.b16 %v56
    %v281 = vunpack.c.h.b16 %v56
    %v282 = vunpack.c.l.b16 %v57
    %v283 = vunpack.c.h.b16 %v57
    %v284 = vunpack.c.l.b16 %v58
    %v285 = vunpack.c.h.b16 %v58
    %v286 = vunpack.c.l.b16 %v59
    %v287 = vunpack.c.h.b16 %v59
    %v288 = vunpack.c.l.b16 %v60
    %v289 = vunpack.c.h.b16 %v60
    %v290 = vunpack.c.l.b16 %v61
    %v291 = vunpack.c.h.b16 %v61
    %v292 = vunpack.c.l.b16 %v62
    %v293 = vunpack.c.h.b16 %v62
    %v294 = vunpack.c.l.b16 %v63
    %v295 = vunpack.c.h.b16 %v63
    %v296 = vunpack.c.l.b16 %v64
    %v297 = vunpack.c.h.b16 %v64
    %v298 = vunpack.c.l.b16 %v65
    %v299 = vunpack.c.h.b16 %v65
    %v300 = vunpack.c.l.b16 %v66
    %v301 = vunpack.c.h.b16 %v66
    %v302 = vunpack.c.l.b16 %v67
    %v303 = vunpack.c.h.b16 %v67
    %v304 = vunpack.c.l.b16 %v68
    %v305 = vunpack.c.h.b16 %v68
    %v306 = vunpack.c.l.b16 %v69
    %v307 = vunpack.c.h.b16 %v69
    %v308 = vunpack.c.l.b16 %v70
    %v309 = vunpack.c.h.b16 %v70
    %v310 = vunpack.c.l.b16 %v71
    %v311 = vunpack.c.h.b16 %v71
    %v312 = vunpack.c.l.b16 %v72
    %v313 = vunpack.c.h.b16 %v72
    %v314 = vunpack.c.l.b16 %v73
    %v315 = vunpack.c.h.b16 %v73
    %v316 = vunpack.c.l.b16 %v74
    %v317 = vunpack.c.h.b16 %v74
    %v318 = vunpack.c.l.b16 %v75
    %v319 = vunpack.c.h.b16 %v75
    %v320 = vunpack.c.l.b16 %v76
    %v321 = vunpack.c.h.b16 %v76
    %v322 = vunpack.c.l.b16 %v77
    %v323 = vunpack.c.h.b16 %v77
    %v324 = vunpack.c.l.b16 %v78
    %v325 = vunpack.c.h.b16 %v78
    %v326 = vunpack.c.l.b16 %v79
    %v327 = vunpack.c.h.b16 %v79
    %v328 = vunpack.c.l.b16 %v80
    %v329 = vunpack.c.h.b16 %v80
    %v330 = vunpack.c.l.b16 %v81
    %v331 = vunpack.c.h.b16 %v81
    %v332 = vunpack.c.l.b16 %v82
    %v333 = vunpack.c.h.b16 %v82
    %v334 = vunpack.c.l.b16 %v83
    %v335 = vunpack.c.h.b16 %v83
    %v336 = vunpack.c.l.b16 %v84
    %v337 = vunpack.c.h.b16 %v84
    %v338 = vunpack.c.l.b16 %v85
    %v339 = vunpack.c.h.b16 %v85
    %v340 = vunpack.c.l.b16 %v86
    %v341 = vunpack.c.h.b16 %v86
    %v342 = vunpack.c.l.b16 %v87
    %v343 = vunpack.c.h.b16 %v87
    %v344 = vunpack.c.l.b16 %v88
    %v345 = vunpack.c.h.b16 %v88
    %v346 = vunpack.c.l.b16 %v89
    %v347 = vunpack.c.h.b16 %v89
    %v348 = vunpack.c.l.b16 %v90
    %v349 = vunpack.c.h.b16 %v90
    %v350 = vunpack.c.l.b16 %v91
    %v351 = vunpack.c.h.b16 %v91
    %v352 = vunpack.c.l.b16 %v92
    %v353 = vunpack.c.h.b16 %v92
    %v354 = vunpack.c.l.b16 %v93
    %v355 = vunpack.c.h.b16 %v93
    %v356 = vunpack.c.l.b16 %v94
    %v357 = vunpack.c.h.b16 %v94
    %v358 = vunpack.c.l.b16 %v95
    %v359 = vunpack.c.h.b16 %v95
    %v360 = vunpack.c.l.b16 %v96
    %v361 = vunpack.c.h.b16 %v96
    %v362 = vunpack.c.l.b16 %v97
    %v363 = vunpack.c.h.b16 %v97
    %v364 = vunpack.c.l.b16 %v98
    %v365 = vunpack.c.h.b16 %v98
    %v366 = vunpack.c.l.b16 %v99
    %v367 = vunpack.c.h.b16 %v99
    %v368 = vunpack.c.l.b16 %v100
    %v369 = vunpack.c.h.b16 %v100
    %v370 = vunpack.c.l.b16 %v101
    %v371 = vunpack.c.h.b16 %v101
    %v372 = vunpack.c.l.b16 %v102
    %v373 = vunpack.c.h.b16 %v102
    %v374 = vunpack.c.l.b16 %v103
    %v375 = vunpack.c.h.b16 %v103
    %v376 = vunpack.c.l.b16 %v104
    %v377 = vunpack.c.h.b16 %v104
    %v378 = vunpack.c.l.b16 %v105
    %v379 = vunpack.c.h.b16 %v105
    %v380 = vunpack.c.l.b16 %v106
    %v381 = vunpack.c.h.b16 %v106
    %v382 = vunpack.c.l.b16 %v107
    %v383 = vunpack.c.h.b16 %v107
    %v384 = vunpack.c.l.b16 %v108
    %v385 = vunpack.c.h.b16 %v108
    %v386 = vunpack.c.l.b16 %v109
    %v387 = vunpack.c.h.b16 %v109
    %v388 = vunpack.c.l.b16 %v110
    %v389 = vunpack.c.h.b16 %v110
    %v390 = vunpack.c.l.b16 %v111
    %v391 = vunpack.c.h.b16 %v111
    %v392 = vunpack.c.l.b16 %v112
    %v393 = vunpack.c.h.b16 %v112
    %v394 = vunpack.c.l.b16 %v113
    %v395 = vunpack.c.h.b16 %v113
    %v396 = vunpack.c.l.b16 %v114
    %v397 = vunpack.c.h.b16 %v114
    %v398 = vunpack.c.l.b16 %v115
    %v399 = vunpack.c.h.b16 %v115
    %v400 = vpack.c.b16 %v234, %v232
    %v401 = vpack.c.b16 %v235, %v233
    %v402 = vpack.c.b16 %v238, %v236
    %v403 = vpack.c.b16 %v239, %v237
    %v404 = vpack.c.b16 %v242, %v240
    %v405 = vpack.c.b16 %v243, %v241
    %v406 = vpack.c.b16 %v246, %v244
    %v407 = vpack.c.b16 %v247, %v245
    %v408 = vpack.c.b16 %v250, %v248
    %v409 = vpack.c.b16 %v251, %v249
    %v410 = vpack.c.b16 %v254, %v252
    %v411 = vpack.c.b16 %v255, %v253
    %v412 = vpack.c.b16 %v258, %v256
    %v413 = vpack.c.b16 %v259, %v257
    %v414 = vpack.c.b16 %v262, %v260
    %v415 = vpack.c.b16 %v263, %v261
    %v416 = vpack.c.b16 %v266, %v264
    %v417 = vpack.c.b16 %v267, %v265
    %v418 = vpack.c.b16 %v270, %v268
    %v419 = vpack.c.b16 %v271, %v269
    %v420 = vpack.c.b16 %v274, %v272
    %v421 = vpack.c.b16 %v275, %v273
    %v422 = vpack.c.b16 %v278, %v276
    %v423 = vpack.c.b16 %v279, %v277
    %v424 = vpack.c.b16 %v282, %v280
    %v425 = vpack.c.b16 %v283, %v281
    %v426 = vpack.c.b16 %v286, %v284
    %v427 = vpack.c.b16 %v287, %v285
    %v428 = vpack.c.b16 %v290, %v288
    %v429 = vpack.c.b16 %v291, %v289
    %v430 = vpack.c.b16 %v294, %v292
    %v431 = vpack.c.b16 %v295, %v293
    %v432 = vpack.c.b16 %v298, %v296
    %v433 = vpack.c.b16 %v299, %v297
    %v434 = vpack.c.b16 %v302, %v300
    %v435 = vpack.c.b16 %v303, %v301
    %v436 = vpack.c.b16 %v306, %v304
    %v437 = vpack.c.b16 %v307, %v305
    %v438 = vpack.c.b16 %v310, %v308
    %v439 = vpack.c.b16 %v311, %v309
    %v440 = vpack.c.b16 %v314, %v312
    %v441 = vpack.c.b16 %v315, %v313
    %v442 = vpack.c.b16 %v318, %v316
    %v443 = vpack.c.b16 %v319, %v317
    %v444 = vpack.c.b16 %v322, %v320
    %v445 = vpack.c.b16 %v323, %v321
    %v446 = vpack.c.b16 %v326, %v324
    %v447 = vpack.c.b16 %v327, %v325
    %v448 = vpack.c.b16 %v330, %v328
    %v449 = vpack.c.b16 %v331, %v329
    %v450 = vpack.c.b16 %v334, %v332
    %v451 = vpack.c.b16 %v335, %v333
    %v452 = vpack.c.b16 %v338, %v336
    %v453 = vpack.c.b16 %v339, %v337
    %v454 = vpack.c.b16 %v342, %v340
    %v455 = vpack.c.b16 %v343, %v341
    %v456 = vpack.c.b16 %v346, %v344
    %v457 = vpack.c.b16 %v347, %v345
    %v458 = vpack.c.b16 %v350, %v348
    %v459 = vpack.c.b16 %v351, %v349
    %v460 = vpack.c.b16 %v354, %v352
    %v461 = vpack.c.b16 %v355, %v353
    %v462 = vpack.c.b16 %v358, %v356
    %v463 = vpack.c.b16 %v359, %v357
    %v464 = vpack.c.b16 %v362, %v360
    %v465 = vpack.c.b16 %v363, %v361
    %v466 = vpack.c.b16 %v366, %v364
    %v467 = vpack.c.b16 %v367, %v365
    %v468 = vpack.c.b16 %v370, %v368
    %v469 = vpack.c.b16 %v371, %v369
    %v470 = vpack.c.b16 %v374, %v372
    %v471 = vpack.c.b16 %v375, %v373
    %v472 = vpack.c.b16 %v378, %v376
    %v473 = vpack.c.b16 %v379, %v377
    %v474 = vpack.c.b16 %v382, %v380
    %v475 = vpack.c.b16 %v383, %v381
    %v476 = vpack.c.b16 %v386, %v384
    %v477 = vpack.c.b16 %v387, %v385
    %v478 = vpack.c.b16 %v390, %v388
    %v479 = vpack.c.b16 %v391, %v389
    %v480 = vpack.c.b16 %v394, %v392
    %v481 = vpack.c.b16 %v395, %v393
    %v482 = vpack.c.b16 %v398, %v396
    %v483 = vpack.c.b16 %v399, %v397
    %v600 = vunpack.c.l.b16 %v116
    %v601 = vunpack.c.l.b16 %v117
    %v602 = vunpack.c.l.b16 %v118
    %v603 = vunpack.c.l.b16 %v119
    %v604 = vunpack.c.l.b16 %v120
    %v605 = vunpack.c.l.b16 %v121
    %v606 = vunpack.c.l.b16 %v122
    %v607 = vunpack.c.l.b16 %v123
    %v608 = vunpack.c.l.b16 %v124
    %v609 = vunpack.c.l.b16 %v125
    %v610 = vunpack.c.l.b16 %v126
    %v611 = vunpack.c.l.b16 %v127
    %v612 = vunpack.c.l.b16 %v128
    %v613 = vunpack.c.l.b16 %v129
    %v614 = vunpack.c.l.b16 %v130
    %v615 = vunpack.c.l.b16 %v131
    %v616 = vunpack.c.l.b16 %v132
    %v617 = vunpack.c.l.b16 %v133
    %v618 = vunpack.c.l.b16 %v134
    %v619 = vunpack.c.l.b16 %v135
    %v620 = vunpack.c.l.b16 %v136
    %v621 = vunpack.c.l.b16 %v137
    %v622 = vunpack.c.l.b16 %v138
    %v623 = vunpack.c.l.b16 %v139
    %v624 = vunpack.c.l.b16 %v140
    %v625 = vunpack.c.l.b16 %v141
    %v626 = vunpack.c.l.b16 %v142
    %v627 = vunpack.c.l.b16 %v143
    %v628 = vunpack.c.l.b16 %v144
    %v629 = vunpack.c.l.b16 %v145
    %v630 = vunpack.c.l.b16 %v146
    %v631 = vunpack.c.l.b16 %v147
    %v632 = vpack.c.b16 %v601, %v600
    %v633 = vpack.c.b16 %v603, %v602
    %v634 = vpack.c.b16 %v605, %v604
    %v635 = vpack.c.b16 %v607, %v606
    %v636 = vpack.c.b16 %v609, %v608
    %v637 = vpack.c.b16 %v611, %v610
    %v638 = vpack.c.b16 %v613, %v612
    %v639 = vpack.c.b16 %v615, %v614
    %v640 = vpack.c.b16 %v617, %v616
    %v641 = vpack.c.b16 %v619, %v618
    %v642 = vpack.c.b16 %v621, %v620
    %v643 = vpack.c.b16 %v623, %v622
    %v644 = vpack.c.b16 %v625, %v624
    %v645 = vpack.c.b16 %v627, %v626
    %v646 = vpack.c.b16 %v629, %v628
    %v647 = vpack.c.b16 %v631, %v630
    %664 = vmatprep.subr.bf16.mxu0 0
    %665 = vmatpush1.bf16.msra.mxu0 %v632
    %666 = vmatprep.subr.bf16.mxu0 0
    %667 = vmatpush1.bf16.msra.mxu0 %v633
    %668 = vmatprep.subr.bf16.mxu0 0
    %669 = vmatpush1.bf16.msra.mxu0 %v634
    %670 = vmatprep.subr.bf16.mxu0 0
    %671 = vmatpush1.bf16.msra.mxu0 %v635
    %672 = vmatprep.subr.bf16.mxu0 0
    %673 = vmatpush1.bf16.msra.mxu0 %v636
    %674 = vmatprep.subr.bf16.mxu0 0
    %675 = vmatpush1.bf16.msra.mxu0 %v637
    %676 = vmatprep.subr.bf16.mxu0 0
    %677 = vmatpush1.bf16.msra.mxu0 %v638
    %678 = vmatprep.subr.bf16.mxu0 0
    %679 = vmatpush1.bf16.msra.mxu0 %v639
    %680 = vmatprep.subr.bf16.mxu0 0
    %681 = vmatpush1.bf16.msra.mxu0 %v640
    %682 = vmatprep.subr.bf16.mxu0 0
    %683 = vmatpush1.bf16.msra.mxu0 %v641
    %684 = vmatprep.subr.bf16.mxu0 0
    %685 = vmatpush1.bf16.msra.mxu0 %v642
    %686 = vmatprep.subr.bf16.mxu0 0
    %687 = vmatpush1.bf16.msra.mxu0 %v643
    %688 = vmatprep.subr.bf16.mxu0 0
    %689 = vmatpush1.bf16.msra.mxu0 %v644
    %690 = vmatprep.subr.bf16.mxu0 0
    %691 = vmatpush1.bf16.msra.mxu0 %v645
    %692 = vmatprep.subr.bf16.mxu0 0
    %693 = vmatpush1.bf16.msra.mxu0 %v646
    %694 = vmatprep.subr.bf16.mxu0 0
    %695 = vmatpush1.bf16.msra.mxu0 %v647
    %696 = vmatprep.mubr.bf16.mxu0 %v401
    %697 = vmatmul.mubr.bf16.gmra.mrb[0].mxu0 %v400
    %v698 = vpop.f32.mrb[0].mxu0
    %v699 = vadd.f32 0.0, %v698
    %v700 = vpop.f32.mrb[0].mxu0
    %v701 = vpop.f32.mrb[0].mxu0
    %v702 = vadd.f32 0.0, %v701
    %v703 = vpop.f32.mrb[0].mxu0
    %704 = vmatprep.mubr.bf16.mxu0 %v403
    %705 = vmatmul.mubr.bf16.gmra.mrb[0].mxu0 %v402
    %v706 = vpop.f32.mrb[0].mxu0
    %v707 = vadd.f32 0.0, %v706
    %v708 = vpop.f32.mrb[0].mxu0
    %v709 = vpop.f32.mrb[0].mxu0
    %v710 = vadd.f32 0.0, %v709
    %v711 = vpop.f32.mrb[0].mxu0
    %712 = vmatprep.mubr.bf16.mxu0 %v405
    %713 = vmatmul.mubr.bf16.gmra.mrb[0].mxu0 %v404
    %v714 = vpop.f32.mrb[0].mxu0
    %v715 = vadd.f32 0.0, %v714
    %v716 = vpop.f32.mrb[0].mxu0
    %v717 = vpop.f32.mrb[0].mxu0
    %v718 = vadd.f32 0.0, %v717
    %v719 = vpop.f32.mrb[0].mxu0
    %720 = vmatprep.mubr.bf16.mxu0 %v407
    %721 = vmatmul.mubr.bf16.gmra.mrb[0].mxu0 %v406
    %v722 = vpop.f32.mrb[0].mxu0
    %v723 = vadd.f32 0.0, %v722
    %v724 = vpop.f32.mrb[0].mxu0
    %v725 = vpop.f32.mrb[0].mxu0
    %v726 = vadd.f32 0.0, %v725
    %v727 = vpop.f32.mrb[0].mxu0
    %728 = vmatprep.mubr.bf16.mxu0 %v409
    %729 = vmatmul.mubr.bf16.gmra.mrb[0].mxu0 %v408
    %v730 = vpop.f32.mrb[0].mxu0
    %v731 = vadd.f32 0.0, %v730
    %v732 = vpop.f32.mrb[0].mxu0
    %v733 = vpop.f32.mrb[0].mxu0
    %v734 = vadd.f32 0.0, %v733
    %v735 = vpop.f32.mrb[0].mxu0
    %736 = vmatprep.mubr.bf16.mxu0 %v411
    %737 = vmatmul.mubr.bf16.gmra.mrb[0].mxu0 %v410
    %v738 = vpop.f32.mrb[0].mxu0
    %v739 = vadd.f32 0.0, %v738
    %v740 = vpop.f32.mrb[0].mxu0
    %v741 = vpop.f32.mrb[0].mxu0
    %v742 = vadd.f32 0.0, %v741
    %v743 = vpop.f32.mrb[0].mxu0
    %744 = vmatprep.mubr.bf16.mxu0 %v413
    %745 = vmatmul.mubr.bf16.gmra.mrb[0].mxu0 %v412
    %v746 = vpop.f32.mrb[0].mxu0
    %v747 = vadd.f32 0.0, %v746
    %v748 = vpop.f32.mrb[0].mxu0
    %v749 = vpop.f32.mrb[0].mxu0
    %v750 = vadd.f32 0.0, %v749
    %v751 = vpop.f32.mrb[0].mxu0
    %752 = vmatprep.mubr.bf16.mxu0 %v415
    %753 = vmatmul.mubr.bf16.gmra.mrb[0].mxu0 %v414
    %v754 = vpop.f32.mrb[0].mxu0
    %v755 = vadd.f32 0.0, %v754
    %v756 = vpop.f32.mrb[0].mxu0
    %v757 = vpop.f32.mrb[0].mxu0
    %v758 = vadd.f32 0.0, %v757
    %v759 = vpop.f32.mrb[0].mxu0
    %760 = vmatprep.mubr.bf16.mxu0 %v417
    %761 = vmatmul.mubr.bf16.gmra.mrb[0].mxu0 %v416
    %v762 = vpop.f32.mrb[0].mxu0
    %v763 = vadd.f32 0.0, %v762
    %v764 = vpop.f32.mrb[0].mxu0
    %v765 = vpop.f32.mrb[0].mxu0
    %v766 = vadd.f32 0.0, %v765
    %v767 = vpop.f32.mrb[0].mxu0
    %768 = vmatprep.mubr.bf16.mxu0 %v419
    %769 = vmatmul.mubr.bf16.gmra.mrb[0].mxu0 %v418
    %v770 = vpop.f32.mrb[0].mxu0
    %v771 = vadd.f32 0.0, %v770
    %v772 = vpop.f32.mrb[0].mxu0
    %v773 = vpop.f32.mrb[0].mxu0
    %v774 = vadd.f32 0.0, %v773
    %v775 = vpop.f32.mrb[0].mxu0
    %776 = vmatprep.mubr.bf16.mxu0 %v421
    %777 = vmatmul.mubr.bf16.gmra.mrb[0].mxu0 %v420
    %v778 = vpop.f32.mrb[0].mxu0
    %v779 = vadd.f32 0.0, %v778
    %v780 = vpop.f32.mrb[0].mxu0
    %v781 = vpop.f32.mrb[0].mxu0
    %v782 = vadd.f32 0.0, %v781
    %v783 = vpop.f32.mrb[0].mxu0
    %784 = vmatprep.mubr.bf16.mxu0 %v423
    %785 = vmatmul.mubr.bf16.gmra.mrb[0].mxu0 %v422
    %v786 = vpop.f32.mrb[0].mxu0
    %v787 = vadd.f32 0.0, %v786
    %v788 = vpop.f32.mrb[0].mxu0
    %v789 = vpop.f32.mrb[0].mxu0
    %v790 = vadd.f32 0.0, %v789
    %v791 = vpop.f32.mrb[0].mxu0
    %792 = vmatprep.mubr.bf16.mxu0 %v425
    %793 = vmatmul.mubr.bf16.gmra.mrb[0].mxu0 %v424
    %v794 = vpop.f32.mrb[0].mxu0
    %v795 = vadd.f32 0.0, %v794
    %v796 = vpop.f32.mrb[0].mxu0
    %v797 = vpop.f32.mrb[0].mxu0
    %v798 = vadd.f32 0.0, %v797
    %v799 = vpop.f32.mrb[0].mxu0
    %800 = vmatprep.mubr.bf16.mxu0 %v427
    %801 = vmatmul.mubr.bf16.gmra.mrb[0].mxu0 %v426
    %v802 = vpop.f32.mrb[0].mxu0
    %v803 = vadd.f32 0.0, %v802
    %v804 = vpop.f32.mrb[0].mxu0
    %v805 = vpop.f32.mrb[0].mxu0
    %v806 = vadd.f32 0.0, %v805
    %v807 = vpop.f32.mrb[0].mxu0
    %808 = vmatprep.mubr.bf16.mxu0 %v429
    %809 = vmatmul.mubr.bf16.gmra.mrb[0].mxu0 %v428
    %v810 = vpop.f32.mrb[0].mxu0
    %v811 = vadd.f32 0.0, %v810
    %v812 = vpop.f32.mrb[0].mxu0
    %v813 = vpop.f32.mrb[0].mxu0
    %v814 = vadd.f32 0.0, %v813
    %v815 = vpop.f32.mrb[0].mxu0
    %816 = vmatprep.mubr.bf16.mxu0 %v431
    %817 = vmatmul.mubr.bf16.gmra.mrb[0].mxu0 %v430
    %v818 = vpop.f32.mrb[0].mxu0
    %v819 = vadd.f32 0.0, %v818
    %v820 = vpop.f32.mrb[0].mxu0
    %v821 = vpop.f32.mrb[0].mxu0
    %v822 = vadd.f32 0.0, %v821
    %v823 = vpop.f32.mrb[0].mxu0
    %824 = vmatprep.mubr.bf16.mxu0 %v433
    %825 = vmatmul.mubr.bf16.gmra.mrb[0].mxu0 %v432
    %v826 = vpop.f32.mrb[0].mxu0
    %v827 = vadd.f32 0.0, %v826
    %v828 = vpop.f32.mrb[0].mxu0
    %v829 = vpop.f32.mrb[0].mxu0
    %v830 = vadd.f32 0.0, %v829
    %v831 = vpop.f32.mrb[0].mxu0
    %832 = vmatprep.mubr.bf16.mxu0 %v435
    %833 = vmatmul.mubr.bf16.gmra.mrb[0].mxu0 %v434
    %v834 = vpop.f32.mrb[0].mxu0
    %v835 = vadd.f32 0.0, %v834
    %v836 = vpop.f32.mrb[0].mxu0
    %v837 = vpop.f32.mrb[0].mxu0
    %v838 = vadd.f32 0.0, %v837
    %v839 = vpop.f32.mrb[0].mxu0
    %840 = vmatprep.mubr.bf16.mxu0 %v437
    %841 = vmatmul.mubr.bf16.gmra.mrb[0].mxu0 %v436
    %v842 = vpop.f32.mrb[0].mxu0
    %v843 = vadd.f32 0.0, %v842
    %v844 = vpop.f32.mrb[0].mxu0
    %v845 = vpop.f32.mrb[0].mxu0
    %v846 = vadd.f32 0.0, %v845
    %v847 = vpop.f32.mrb[0].mxu0
    %848 = vmatprep.mubr.bf16.mxu0 %v439
    %849 = vmatmul.mubr.bf16.gmra.mrb[0].mxu0 %v438
    %v850 = vpop.f32.mrb[0].mxu0
    %v851 = vadd.f32 0.0, %v850
    %v852 = vpop.f32.mrb[0].mxu0
    %v853 = vpop.f32.mrb[0].mxu0
    %v854 = vadd.f32 0.0, %v853
    %v855 = vpop.f32.mrb[0].mxu0
    %856 = vmatprep.mubr.bf16.mxu0 %v441
    %857 = vmatmul.mubr.bf16.gmra.mrb[0].mxu0 %v440
    %v858 = vpop.f32.mrb[0].mxu0
    %v859 = vadd.f32 0.0, %v858
    %v860 = vpop.f32.mrb[0].mxu0
    %v861 = vpop.f32.mrb[0].mxu0
    %v862 = vadd.f32 0.0, %v861
    %v863 = vpop.f32.mrb[0].mxu0
    %864 = vmatprep.mubr.bf16.mxu0 %v443
    %865 = vmatmul.mubr.bf16.gmra.mrb[0].mxu0 %v442
    %v866 = vpop.f32.mrb[0].mxu0
    %v867 = vadd.f32 0.0, %v866
    %v868 = vpop.f32.mrb[0].mxu0
    %v869 = vpop.f32.mrb[0].mxu0
    %v870 = vadd.f32 0.0, %v869
    %v871 = vpop.f32.mrb[0].mxu0
    %872 = vmatprep.mubr.bf16.mxu0 %v445
    %873 = vmatmul.mubr.bf16.gmra.mrb[0].mxu0 %v444
    %v874 = vpop.f32.mrb[0].mxu0
    %v875 = vadd.f32 0.0, %v874
    %v876 = vpop.f32.mrb[0].mxu0
    %v877 = vpop.f32.mrb[0].mxu0
    %v878 = vadd.f32 0.0, %v877
    %v879 = vpop.f32.mrb[0].mxu0
    %880 = vmatprep.mubr.bf16.mxu0 %v447
    %881 = vmatmul.mubr.bf16.gmra.mrb[0].mxu0 %v446
    %v882 = vpop.f32.mrb[0].mxu0
    %v883 = vadd.f32 0.0, %v882
    %v884 = vpop.f32.mrb[0].mxu0
    %v885 = vpop.f32.mrb[0].mxu0
    %v886 = vadd.f32 0.0, %v885
    %v887 = vpop.f32.mrb[0].mxu0
    %888 = vmatprep.mubr.bf16.mxu0 %v449
    %889 = vmatmul.mubr.bf16.gmra.mrb[0].mxu0 %v448
    %v890 = vpop.f32.mrb[0].mxu0
    %v891 = vadd.f32 0.0, %v890
    %v892 = vpop.f32.mrb[0].mxu0
    %v893 = vpop.f32.mrb[0].mxu0
    %v894 = vadd.f32 0.0, %v893
    %v895 = vpop.f32.mrb[0].mxu0
    %896 = vmatprep.mubr.bf16.mxu0 %v451
    %897 = vmatmul.mubr.bf16.gmra.mrb[0].mxu0 %v450
    %v898 = vpop.f32.mrb[0].mxu0
    %v899 = vadd.f32 0.0, %v898
    %v900 = vpop.f32.mrb[0].mxu0
    %v901 = vpop.f32.mrb[0].mxu0
    %v902 = vadd.f32 0.0, %v901
    %v903 = vpop.f32.mrb[0].mxu0
    %904 = vmatprep.mubr.bf16.mxu0 %v453
    %905 = vmatmul.mubr.bf16.gmra.mrb[0].mxu0 %v452
    %v906 = vpop.f32.mrb[0].mxu0
    %v907 = vadd.f32 0.0, %v906
    %v908 = vpop.f32.mrb[0].mxu0
    %v909 = vpop.f32.mrb[0].mxu0
    %v910 = vadd.f32 0.0, %v909
    %v911 = vpop.f32.mrb[0].mxu0
    %912 = vmatprep.mubr.bf16.mxu0 %v455
    %913 = vmatmul.mubr.bf16.gmra.mrb[0].mxu0 %v454
    %v914 = vpop.f32.mrb[0].mxu0
    %v915 = vadd.f32 0.0, %v914
    %v916 = vpop.f32.mrb[0].mxu0
    %v917 = vpop.f32.mrb[0].mxu0
    %v918 = vadd.f32 0.0, %v917
    %v919 = vpop.f32.mrb[0].mxu0
    %920 = vmatprep.mubr.bf16.mxu0 %v457
    %921 = vmatmul.mubr.bf16.gmra.mrb[0].mxu0 %v456
    %v922 = vpop.f32.mrb[0].mxu0
    %v923 = vadd.f32 0.0, %v922
    %v924 = vpop.f32.mrb[0].mxu0
    %v925 = vpop.f32.mrb[0].mxu0
    %v926 = vadd.f32 0.0, %v925
    %v927 = vpop.f32.mrb[0].mxu0
    %928 = vmatprep.mubr.bf16.mxu0 %v459
    %929 = vmatmul.mubr.bf16.gmra.mrb[0].mxu0 %v458
    %v930 = vpop.f32.mrb[0].mxu0
    %v931 = vadd.f32 0.0, %v930
    %v932 = vpop.f32.mrb[0].mxu0
    %v933 = vpop.f32.mrb[0].mxu0
    %v934 = vadd.f32 0.0, %v933
    %v935 = vpop.f32.mrb[0].mxu0
    %936 = vmatprep.mubr.bf16.mxu0 %v461
    %937 = vmatmul.mubr.bf16.gmra.mrb[0].mxu0 %v460
    %v938 = vpop.f32.mrb[0].mxu0
    %v939 = vadd.f32 0.0, %v938
    %v940 = vpop.f32.mrb[0].mxu0
    %v941 = vpop.f32.mrb[0].mxu0
    %v942 = vadd.f32 0.0, %v941
    %v943 = vpop.f32.mrb[0].mxu0
    %944 = vmatprep.mubr.bf16.mxu0 %v463
    %945 = vmatmul.mubr.bf16.gmra.mrb[0].mxu0 %v462
    %v946 = vpop.f32.mrb[0].mxu0
    %v947 = vadd.f32 0.0, %v946
    %v948 = vpop.f32.mrb[0].mxu0
    %v949 = vpop.f32.mrb[0].mxu0
    %v950 = vadd.f32 0.0, %v949
    %v951 = vpop.f32.mrb[0].mxu0
    %952 = vmatprep.mubr.bf16.mxu0 %v465
    %953 = vmatmul.mubr.bf16.gmra.mrb[0].mxu0 %v464
    %v954 = vpop.f32.mrb[0].mxu0
    %v955 = vadd.f32 0.0, %v954
    %v956 = vpop.f32.mrb[0].mxu0
    %v957 = vpop.f32.mrb[0].mxu0
    %v958 = vadd.f32 0.0, %v957
    %v959 = vpop.f32.mrb[0].mxu0
    %960 = vmatprep.mubr.bf16.mxu0 %v467
    %961 = vmatmul.mubr.bf16.gmra.mrb[0].mxu0 %v466
    %v962 = vpop.f32.mrb[0].mxu0
    %v963 = vadd.f32 0.0, %v962
    %v964 = vpop.f32.mrb[0].mxu0
    %v965 = vpop.f32.mrb[0].mxu0
    %v966 = vadd.f32 0.0, %v965
    %v967 = vpop.f32.mrb[0].mxu0
    %968 = vmatprep.mubr.bf16.mxu0 %v469
    %969 = vmatmul.mubr.bf16.gmra.mrb[0].mxu0 %v468
    %v970 = vpop.f32.mrb[0].mxu0
    %v971 = vadd.f32 0.0, %v970
    %v972 = vpop.f32.mrb[0].mxu0
    %v973 = vpop.f32.mrb[0].mxu0
    %v974 = vadd.f32 0.0, %v973
    %v975 = vpop.f32.mrb[0].mxu0
    %976 = vmatprep.mubr.bf16.mxu0 %v471
    %977 = vmatmul.mubr.bf16.gmra.mrb[0].mxu0 %v470
    %v978 = vpop.f32.mrb[0].mxu0
    %v979 = vadd.f32 0.0, %v978
    %v980 = vpop.f32.mrb[0].mxu0
    %v981 = vpop.f32.mrb[0].mxu0
    %v982 = vadd.f32 0.0, %v981
    %v983 = vpop.f32.mrb[0].mxu0
    %984 = vmatprep.mubr.bf16.mxu0 %v473
    %985 = vmatmul.mubr.bf16.gmra.mrb[0].mxu0 %v472
    %v986 = vpop.f32.mrb[0].mxu0
    %v987 = vadd.f32 0.0, %v986
    %v988 = vpop.f32.mrb[0].mxu0
    %v989 = vpop.f32.mrb[0].mxu0
    %v990 = vadd.f32 0.0, %v989
    %v991 = vpop.f32.mrb[0].mxu0
    %992 = vmatprep.mubr.bf16.mxu0 %v475
    %993 = vmatmul.mubr.bf16.gmra.mrb[0].mxu0 %v474
    %v994 = vpop.f32.mrb[0].mxu0
    %v995 = vadd.f32 0.0, %v994
    %v996 = vpop.f32.mrb[0].mxu0
    %v997 = vpop.f32.mrb[0].mxu0
    %v998 = vadd.f32 0.0, %v997
    %v999 = vpop.f32.mrb[0].mxu0
    %1000 = vmatprep.mubr.bf16.mxu0 %v477
    %1001 = vmatmul.mubr.bf16.gmra.mrb[0].mxu0 %v476
    %v1002 = vpop.f32.mrb[0].mxu0
    %v1003 = vadd.f32 0.0, %v1002
    %v1004 = vpop.f32.mrb[0].mxu0
    %v1005 = vpop.f32.mrb[0].mxu0
    %v1006 = vadd.f32 0.0, %v1005
    %v1007 = vpop.f32.mrb[0].mxu0
    %1008 = vmatprep.mubr.bf16.mxu0 %v479
    %1009 = vmatmul.mubr.bf16.gmra.mrb[0].mxu0 %v478
    %v1010 = vpop.f32.mrb[0].mxu0
    %v1011 = vadd.f32 0.0, %v1010
    %v1012 = vpop.f32.mrb[0].mxu0
    %v1013 = vpop.f32.mrb[0].mxu0
    %v1014 = vadd.f32 0.0, %v1013
    %v1015 = vpop.f32.mrb[0].mxu0
    %1016 = vmatprep.mubr.bf16.mxu0 %v481
    %1017 = vmatmul.mubr.bf16.gmra.mrb[0].mxu0 %v480
    %v1018 = vpop.f32.mrb[0].mxu0
    %v1019 = vadd.f32 0.0, %v1018
    %v1020 = vpop.f32.mrb[0].mxu0
    %v1021 = vpop.f32.mrb[0].mxu0
    %v1022 = vadd.f32 0.0, %v1021
    %v1023 = vpop.f32.mrb[0].mxu0
    %1024 = vmatprep.mubr.bf16.mxu0 %v483
    %1025 = vmatmul.mubr.bf16.gmra.mrb[0].mxu0 %v482
    %v1026 = vpop.f32.mrb[0].mxu0
    %v1027 = vadd.f32 0.0, %v1026
    %v1028 = vpop.f32.mrb[0].mxu0
    %v1029 = vpop.f32.mrb[0].mxu0
    %v1030 = vadd.f32 0.0, %v1029
    %v1031 = vpop.f32.mrb[0].mxu0
    %1032 = vdwg.mxu0
    %v1033 = vpack.c.bf16 %v702, %v699
    %v1034 = vpack.c.bf16 %v710, %v707
    %v1035 = vpack.c.bf16 %v718, %v715
    %v1036 = vpack.c.bf16 %v726, %v723
    %v1037 = vpack.c.bf16 %v734, %v731
    %v1038 = vpack.c.bf16 %v742, %v739
    %v1039 = vpack.c.bf16 %v750, %v747
    %v1040 = vld [vmem:[#allocation2] sm:$0xff]
    %v1041 = vld [vmem:[#allocation2 + $0x8] sm:$0xff]
    %v1042 = vld [vmem:[#allocation2 + $0x10] sm:$0xff]
    %v1043 = vld [vmem:[#allocation2 + $0x18] sm:$0xff]
    %v1044 = vld [vmem:[#allocation2 + $0x20] sm:$0xff]
    %v1045 = vld [vmem:[#allocation2 + $0x28] sm:$0xff]
    %v1046 = vld [vmem:[#allocation2 + $0x30] sm:$0xff]
    %v1047 = vld [vmem:[#allocation2 + $0x38] sm:$0xff]
    %v1048 = vld [vmem:[#allocation2 + $0x40] sm:$0xff]
    %v1049 = vld [vmem:[#allocation2 + $0x48] sm:$0xff]
    %v1050 = vld [vmem:[#allocation2 + $0x50] sm:$0xff]
    %v1051 = vld [vmem:[#allocation2 + $0x58] sm:$0xff]
    %v1052 = vld [vmem:[#allocation2 + $0x60] sm:$0xff]
    %v1053 = vld [vmem:[#allocation2 + $0x68] sm:$0xff]
    %v1054 = vld [vmem:[#allocation2 + $0x70] sm:$0xff]
    %v1055 = vld [vmem:[#allocation2 + $0x78] sm:$0xff]
    %v1056 = vld [vmem:[#allocation2 + $0x80] sm:$0xff]
    %v1057 = vld [vmem:[#allocation2 + $0x88] sm:$0xff]
    %v1058 = vld [vmem:[#allocation2 + $0x90] sm:$0xff]
    %v1059 = vld [vmem:[#allocation2 + $0x98] sm:$0xff]
    %v1060 = vld [vmem:[#allocation2 + $0xa0] sm:$0xff]
    %v1061 = vld [vmem:[#allocation2 + $0xa8] sm:$0xff]
    %v1062 = vld [vmem:[#allocation2 + $0xb0] sm:$0xff]
    %v1063 = vld [vmem:[#allocation2 + $0xb8] sm:$0xff]
    %v1064 = vpack.c.bf16 %v758, %v755
    %v1065 = vpack.c.bf16 %v766, %v763
    %v1066 = vpack.c.bf16 %v774, %v771
    %v1067 = vpack.c.bf16 %v782, %v779
    %v1068 = vpack.c.bf16 %v790, %v787
    %v1069 = vpack.c.bf16 %v798, %v795
    %v1070 = vpack.c.bf16 %v806, %v803
    %s1071 = scalar_lea.vmem [#allocation2], 192
    %v1072 = vld [vmem:[%s1071] sm:$0xff]
    %v1073 = vld [vmem:[%s1071 + $0x8] sm:$0xff]
    %v1074 = vld [vmem:[%s1071 + $0x10] sm:$0xff]
    %v1075 = vld [vmem:[%s1071 + $0x18] sm:$0xff]
    %v1076 = vld [vmem:[%s1071 + $0x20] sm:$0xff]
    %v1077 = vld [vmem:[%s1071 + $0x28] sm:$0xff]
    %v1078 = vld [vmem:[%s1071 + $0x30] sm:$0xff]
    %v1079 = vld [vmem:[%s1071 + $0x38] sm:$0xff]
    %v1080 = vld [vmem:[%s1071 + $0x40] sm:$0xff]
    %v1081 = vld [vmem:[%s1071 + $0x48] sm:$0xff]
    %v1082 = vld [vmem:[%s1071 + $0x50] sm:$0xff]
    %v1083 = vld [vmem:[%s1071 + $0x58] sm:$0xff]
    %v1084 = vld [vmem:[%s1071 + $0x60] sm:$0xff]
    %v1085 = vld [vmem:[%s1071 + $0x68] sm:$0xff]
    %v1086 = vld [vmem:[%s1071 + $0x70] sm:$0xff]
    %v1087 = vld [vmem:[%s1071 + $0x78] sm:$0xff]
    %v1088 = vld [vmem:[%s1071 + $0x80] sm:$0xff]
    %v1089 = vld [vmem:[%s1071 + $0x88] sm:$0xff]
    %v1090 = vld [vmem:[%s1071 + $0x90] sm:$0xff]
    %v1091 = vld [vmem:[%s1071 + $0x98] sm:$0xff]
    %v1092 = vld [vmem:[%s1071 + $0xa0] sm:$0xff]
    %v1093 = vld [vmem:[%s1071 + $0xa8] sm:$0xff]
    %v1094 = vld [vmem:[%s1071 + $0xb0] sm:$0xff]
    %v1095 = vld [vmem:[%s1071 + $0xb8] sm:$0xff]
    %v1120 = vunpack.c.l.b16 %v1072
    %v1121 = vunpack.c.h.b16 %v1072
    %v1122 = vunpack.c.l.b16 %v1073
    %v1123 = vunpack.c.h.b16 %v1073
    %v1124 = vunpack.c.l.b16 %v1074
    %v1125 = vunpack.c.h.b16 %v1074
    %v1126 = vunpack.c.l.b16 %v1075
    %v1127 = vunpack.c.h.b16 %v1075
    %v1128 = vunpack.c.l.b16 %v1076
    %v1129 = vunpack.c.h.b16 %v1076
    %v1130 = vunpack.c.l.b16 %v1077
    %v1131 = vunpack.c.h.b16 %v1077
    %v1132 = vunpack.c.l.b16 %v1078
    %v1133 = vunpack.c.h.b16 %v1078
    %v1134 = vunpack.c.l.b16 %v1079
    %v1135 = vunpack.c.h.b16 %v1079
    %v1136 = vunpack.c.l.b16 %v1080
    %v1137 = vunpack.c.h.b16 %v1080
    %v1138 = vunpack.c.l.b16 %v1081
    %v1139 = vunpack.c.h.b16 %v1081
    %v1140 = vunpack.c.l.b16 %v1082
    %v1141 = vunpack.c.h.b16 %v1082
    %v1142 = vunpack.c.l.b16 %v1083
    %v1143 = vunpack.c.h.b16 %v1083
    %v1144 = vunpack.c.l.b16 %v1084
    %v1145 = vunpack.c.h.b16 %v1084
    %v1146 = vunpack.c.l.b16 %v1085
    %v1147 = vunpack.c.h.b16 %v1085
    %v1148 = vunpack.c.l.b16 %v1086
    %v1149 = vunpack.c.h.b16 %v1086
    %v1150 = vunpack.c.l.b16 %v1087
    %v1151 = vunpack.c.h.b16 %v1087
    %v1152 = vunpack.c.l.b16 %v1088
    %v1153 = vunpack.c.h.b16 %v1088
    %v1154 = vunpack.c.l.b16 %v1089
    %v1155 = vunpack.c.h.b16 %v1089
    %v1156 = vunpack.c.l.b16 %v1090
    %v1157 = vunpack.c.h.b16 %v1090
    %v1158 = vunpack.c.l.b16 %v1091
    %v1159 = vunpack.c.h.b16 %v1091
    %v1160 = vunpack.c.l.b16 %v1092
    %v1161 = vunpack.c.h.b16 %v1092
    %v1162 = vunpack.c.l.b16 %v1093
    %v1163 = vunpack.c.h.b16 %v1093
    %v1164 = vunpack.c.l.b16 %v1094
    %v1165 = vunpack.c.h.b16 %v1094
    %v1166 = vunpack.c.l.b16 %v1095
    %v1167 = vunpack.c.h.b16 %v1095
    %v1168 = vpack.c.b16 %v1124, %v1120
    %v1169 = vpack.c.b16 %v1125, %v1121
    %v1170 = vpack.c.b16 %v1126, %v1122
    %v1171 = vpack.c.b16 %v1127, %v1123
    %v1172 = vpack.c.b16 %v1132, %v1128
    %v1173 = vpack.c.b16 %v1133, %v1129
    %v1174 = vpack.c.b16 %v1134, %v1130
    %v1175 = vpack.c.b16 %v1135, %v1131
    %v1176 = vpack.c.b16 %v1140, %v1136
    %v1177 = vpack.c.b16 %v1141, %v1137
    %v1178 = vpack.c.b16 %v1142, %v1138
    %v1179 = vpack.c.b16 %v1143, %v1139
    %v1180 = vpack.c.b16 %v1148, %v1144
    %v1181 = vpack.c.b16 %v1149, %v1145
    %v1182 = vpack.c.b16 %v1150, %v1146
    %v1183 = vpack.c.b16 %v1151, %v1147
    %v1184 = vpack.c.b16 %v1156, %v1152
    %v1185 = vpack.c.b16 %v1157, %v1153
    %v1186 = vpack.c.b16 %v1158, %v1154
    %v1187 = vpack.c.b16 %v1159, %v1155
    %v1188 = vpack.c.b16 %v1164, %v1160
    %v1189 = vpack.c.b16 %v1165, %v1161
    %v1190 = vpack.c.b16 %v1166, %v1162
    %v1191 = vpack.c.b16 %v1167, %v1163
    %vm1216 = vcmask 785408
    %v1218 = vsel %vm1216, %v1064, 0
    %v1221 = vsel %vm1216, %v1065, 0
    %v1224 = vsel %vm1216, %v1066, 0
    %v1227 = vsel %vm1216, %v1067, 0
    %v1230 = vsel %vm1216, %v1068, 0
    %v1233 = vsel %vm1216, %v1069, 0
    %v1236 = vsel %vm1216, %v1070, 0
    %1238 = vmatprep.subr.bf16.mxu0 %v1169
    %1239 = vmatpush1.bf16.msra.mxu0 %v1168
    %1240 = vmatprep.subr.bf16.mxu0 %v1173
    %1241 = vmatpush1.bf16.msra.mxu0 %v1172
    %1242 = vmatprep.subr.bf16.mxu0 %v1177
    %1243 = vmatpush1.bf16.msra.mxu0 %v1176
    %1244 = vmatprep.subr.bf16.mxu0 %v1181
    %1245 = vmatpush1.bf16.msra.mxu0 %v1180
    %1246 = vmatprep.subr.bf16.mxu0 %v1185
    %1247 = vmatpush1.bf16.msra.mxu0 %v1184
    %1248 = vmatprep.subr.bf16.mxu0 %v1189
    %1249 = vmatpush1.bf16.msra.mxu0 %v1188
    %1250 = vmatprep.subr.bf16.mxu0 0
    %1251 = vmatpush1.bf16.msra.mxu0 0
    %1252 = vmatprep.subr.bf16.mxu0 0
    %1253 = vmatpush1.bf16.msra.mxu0 0
    %1254 = vmatprep.subr.bf16.mxu0 0
    %1255 = vmatpush1.bf16.msra.mxu0 0
    %1256 = vmatprep.subr.bf16.mxu0 0
    %1257 = vmatpush1.bf16.msra.mxu0 0
    %1258 = vmatprep.subr.bf16.mxu0 0
    %1259 = vmatpush1.bf16.msra.mxu0 0
    %1260 = vmatprep.subr.bf16.mxu0 0
    %1261 = vmatpush1.bf16.msra.mxu0 0
    %1262 = vmatprep.subr.bf16.mxu0 0
    %1263 = vmatpush1.bf16.msra.mxu0 0
    %1264 = vmatprep.subr.bf16.mxu0 0
    %1265 = vmatpush1.bf16.msra.mxu0 0
    %1266 = vmatprep.subr.bf16.mxu0 0
    %1267 = vmatpush1.bf16.msra.mxu0 0
    %1268 = vmatprep.subr.bf16.mxu0 0
    %1269 = vmatpush1.bf16.msra.mxu0 0
    %1270 = vmatprep.mubr.bf16.mxu0 0
    %1271 = vmatmul.mubr.bf16.gmra.mrb[0].mxu0 %v1218
    %v1272 = vpop.f32.mrb[0].mxu0
    %v1273 = vadd.f32 0.0, %v1272
    %v1274 = vpop.f32.mrb[0].mxu0
    %v1275 = vadd.f32 0.0, %v1274
    %v1276 = vpop.f32.mrb[0].mxu0
    %v1277 = vadd.f32 0.0, %v1276
    %v1278 = vpop.f32.mrb[0].mxu0
    %v1279 = vadd.f32 0.0, %v1278
    %1280 = vmatprep.mubr.bf16.mxu0 0
    %1281 = vmatmul.mubr.bf16.gmra.mrb[0].mxu0 %v1221
    %v1282 = vpop.f32.mrb[0].mxu0
    %v1283 = vadd.f32 0.0, %v1282
    %v1284 = vpop.f32.mrb[0].mxu0
    %v1285 = vadd.f32 0.0, %v1284
    %v1286 = vpop.f32.mrb[0].mxu0
    %v1287 = vadd.f32 0.0, %v1286
    %v1288 = vpop.f32.mrb[0].mxu0
    %v1289 = vadd.f32 0.0, %v1288
    %1290 = vmatprep.mubr.bf16.mxu0 0
    %1291 = vmatmul.mubr.bf16.gmra.mrb[0].mxu0 %v1224
    %v1292 = vpop.f32.mrb[0].mxu0
    %v1293 = vadd.f32 0.0, %v1292
    %v1294 = vpop.f32.mrb[0].mxu0
    %v1295 = vadd.f32 0.0, %v1294
    %v1296 = vpop.f32.mrb[0].mxu0
    %v1297 = vadd.f32 0.0, %v1296
    %v1298 = vpop.f32.mrb[0].mxu0
    %v1299 = vadd.f32 0.0, %v1298
    %1300 = vmatprep.mubr.bf16.mxu0 0
    %1301 = vmatmul.mubr.bf16.gmra.mrb[0].mxu0 %v1227
    %v1302 = vpop.f32.mrb[0].mxu0
    %v1303 = vadd.f32 0.0, %v1302
    %v1304 = vpop.f32.mrb[0].mxu0
    %v1305 = vadd.f32 0.0, %v1304
    %v1306 = vpop.f32.mrb[0].mxu0
    %v1307 = vadd.f32 0.0, %v1306
    %v1308 = vpop.f32.mrb[0].mxu0
    %v1309 = vadd.f32 0.0, %v1308
    %1310 = vmatprep.mubr.bf16.mxu0 0
    %1311 = vmatmul.mubr.bf16.gmra.mrb[0].mxu0 %v1230
    %v1312 = vpop.f32.mrb[0].mxu0
    %v1313 = vadd.f32 0.0, %v1312
    %v1314 = vpop.f32.mrb[0].mxu0
    %v1315 = vadd.f32 0.0, %v1314
    %v1316 = vpop.f32.mrb[0].mxu0
    %v1317 = vadd.f32 0.0, %v1316
    %v1318 = vpop.f32.mrb[0].mxu0
    %v1319 = vadd.f32 0.0, %v1318
    %1320 = vmatprep.mubr.bf16.mxu0 0
    %1321 = vmatmul.mubr.bf16.gmra.mrb[0].mxu0 %v1233
    %v1322 = vpop.f32.mrb[0].mxu0
    %v1323 = vadd.f32 0.0, %v1322
    %v1324 = vpop.f32.mrb[0].mxu0
    %v1325 = vadd.f32 0.0, %v1324
    %v1326 = vpop.f32.mrb[0].mxu0
    %v1327 = vadd.f32 0.0, %v1326
    %v1328 = vpop.f32.mrb[0].mxu0
    %v1329 = vadd.f32 0.0, %v1328
    %1330 = vmatprep.mubr.bf16.mxu0 0
    %1331 = vmatmul.mubr.bf16.gmra.mrb[0].mxu0 %v1236
    %v1332 = vpop.f32.mrb[0].mxu0
    %v1333 = vadd.f32 0.0, %v1332
    %v1334 = vpop.f32.mrb[0].mxu0
    %v1335 = vadd.f32 0.0, %v1334
    %v1336 = vpop.f32.mrb[0].mxu0
    %v1337 = vadd.f32 0.0, %v1336
    %v1338 = vpop.f32.mrb[0].mxu0
    %v1339 = vadd.f32 0.0, %v1338
    %1340 = vdwg.mxu0
    %1341 = vmatprep.subr.bf16.mxu0 %v1171
    %1342 = vmatpush1.bf16.msra.mxu0 %v1170
    %1343 = vmatprep.subr.bf16.mxu0 %v1175
    %1344 = vmatpush1.bf16.msra.mxu0 %v1174
    %1345 = vmatprep.subr.bf16.mxu0 %v1179
    %1346 = vmatpush1.bf16.msra.mxu0 %v1178
    %1347 = vmatprep.subr.bf16.mxu0 %v1183
    %1348 = vmatpush1.bf16.msra.mxu0 %v1182
    %1349 = vmatprep.subr.bf16.mxu0 %v1187
    %1350 = vmatpush1.bf16.msra.mxu0 %v1186
    %1351 = vmatprep.subr.bf16.mxu0 %v1191
    %1352 = vmatpush1.bf16.msra.mxu0 %v1190
    %1353 = vmatprep.subr.bf16.mxu0 0
    %1354 = vmatpush1.bf16.msra.mxu0 0
    %1355 = vmatprep.subr.bf16.mxu0 0
    %1356 = vmatpush1.bf16.msra.mxu0 0
    %1357 = vmatprep.subr.bf16.mxu0 0
    %1358 = vmatpush1.bf16.msra.mxu0 0
    %1359 = vmatprep.subr.bf16.mxu0 0
    %1360 = vmatpush1.bf16.msra.mxu0 0
    %1361 = vmatprep.subr.bf16.mxu0 0
    %1362 = vmatpush1.bf16.msra.mxu0 0
    %1363 = vmatprep.subr.bf16.mxu0 0
    %1364 = vmatpush1.bf16.msra.mxu0 0
    %1365 = vmatprep.subr.bf16.mxu0 0
    %1366 = vmatpush1.bf16.msra.mxu0 0
    %1367 = vmatprep.subr.bf16.mxu0 0
    %1368 = vmatpush1.bf16.msra.mxu0 0
    %1369 = vmatprep.subr.bf16.mxu0 0
    %1370 = vmatpush1.bf16.msra.mxu0 0
    %1371 = vmatprep.subr.bf16.mxu0 0
    %1372 = vmatpush1.bf16.msra.mxu0 0
    %1373 = vmatprep.mubr.bf16.mxu0 0
    %1374 = vmatmul.mubr.bf16.gmra.mrb[0].mxu0 %v1218
    %v1375 = vpop.f32.mrb[0].mxu0
    %v1376 = vadd.f32 0.0, %v1375
    %v1377 = vpop.f32.mrb[0].mxu0
    %v1378 = vadd.f32 0.0, %v1377
    %v1379 = vpop.f32.mrb[0].mxu0
    %v1380 = vadd.f32 0.0, %v1379
    %v1381 = vpop.f32.mrb[0].mxu0
    %v1382 = vadd.f32 0.0, %v1381
    %1383 = vmatprep.mubr.bf16.mxu0 0
    %1384 = vmatmul.mubr.bf16.gmra.mrb[0].mxu0 %v1221
    %v1385 = vpop.f32.mrb[0].mxu0
    %v1386 = vadd.f32 0.0, %v1385
    %v1387 = vpop.f32.mrb[0].mxu0
    %v1388 = vadd.f32 0.0, %v1387
    %v1389 = vpop.f32.mrb[0].mxu0
    %v1390 = vadd.f32 0.0, %v1389
    %v1391 = vpop.f32.mrb[0].mxu0
    %v1392 = vadd.f32 0.0, %v1391
    %1393 = vmatprep.mubr.bf16.mxu0 0
    %1394 = vmatmul.mubr.bf16.gmra.mrb[0].mxu0 %v1224
    %v1395 = vpop.f32.mrb[0].mxu0
    %v1396 = vadd.f32 0.0, %v1395
    %v1397 = vpop.f32.mrb[0].mxu0
    %v1398 = vadd.f32 0.0, %v1397
    %v1399 = vpop.f32.mrb[0].mxu0
    %v1400 = vadd.f32 0.0, %v1399
    %v1401 = vpop.f32.mrb[0].mxu0
    %v1402 = vadd.f32 0.0, %v1401
    %1403 = vmatprep.mubr.bf16.mxu0 0
    %1404 = vmatmul.mubr.bf16.gmra.mrb[0].mxu0 %v1227
    %v1405 = vpop.f32.mrb[0].mxu0
    %v1406 = vadd.f32 0.0, %v1405
    %v1407 = vpop.f32.mrb[0].mxu0
    %v1408 = vadd.f32 0.0, %v1407
    %v1409 = vpop.f32.mrb[0].mxu0
    %v1410 = vadd.f32 0.0, %v1409
    %v1411 = vpop.f32.mrb[0].mxu0
    %v1412 = vadd.f32 0.0, %v1411
    %1413 = vmatprep.mubr.bf16.mxu0 0
    %1414 = vmatmul.mubr.bf16.gmra.mrb[0].mxu0 %v1230
    %v1415 = vpop.f32.mrb[0].mxu0
    %v1416 = vadd.f32 0.0, %v1415
    %v1417 = vpop.f32.mrb[0].mxu0
    %v1418 = vadd.f32 0.0, %v1417
    %v1419 = vpop.f32.mrb[0].mxu0
    %v1420 = vadd.f32 0.0, %v1419
    %v1421 = vpop.f32.mrb[0].mxu0
    %v1422 = vadd.f32 0.0, %v1421
    %1423 = vmatprep.mubr.bf16.mxu0 0
    %1424 = vmatmul.mubr.bf16.gmra.mrb[0].mxu0 %v1233
    %v1425 = vpop.f32.mrb[0].mxu0
    %v1426 = vadd.f32 0.0, %v1425
    %v1427 = vpop.f32.mrb[0].mxu0
    %v1428 = vadd.f32 0.0, %v1427
    %v1429 = vpop.f32.mrb[0].mxu0
    %v1430 = vadd.f32 0.0, %v1429
    %v1431 = vpop.f32.mrb[0].mxu0
    %v1432 = vadd.f32 0.0, %v1431
    %1433 = vmatprep.mubr.bf16.mxu0 0
    %1434 = vmatmul.mubr.bf16.gmra.mrb[0].mxu0 %v1236
    %v1435 = vpop.f32.mrb[0].mxu0
    %v1436 = vadd.f32 0.0, %v1435
    %v1437 = vpop.f32.mrb[0].mxu0
    %v1438 = vadd.f32 0.0, %v1437
    %v1439 = vpop.f32.mrb[0].mxu0
    %v1440 = vadd.f32 0.0, %v1439
    %v1441 = vpop.f32.mrb[0].mxu0
    %v1442 = vadd.f32 0.0, %v1441
    %1443 = vdwg.mxu0
    %v1468 = vunpack.c.l.b16 %v1040
    %v1469 = vunpack.c.h.b16 %v1040
    %v1470 = vunpack.c.l.b16 %v1041
    %v1471 = vunpack.c.h.b16 %v1041
    %v1472 = vunpack.c.l.b16 %v1042
    %v1473 = vunpack.c.h.b16 %v1042
    %v1474 = vunpack.c.l.b16 %v1043
    %v1475 = vunpack.c.h.b16 %v1043
    %v1476 = vunpack.c.l.b16 %v1044
    %v1477 = vunpack.c.h.b16 %v1044
    %v1478 = vunpack.c.l.b16 %v1045
    %v1479 = vunpack.c.h.b16 %v1045
    %v1480 = vunpack.c.l.b16 %v1046
    %v1481 = vunpack.c.h.b16 %v1046
    %v1482 = vunpack.c.l.b16 %v1047
    %v1483 = vunpack.c.h.b16 %v1047
    %v1484 = vunpack.c.l.b16 %v1048
    %v1485 = vunpack.c.h.b16 %v1048
    %v1486 = vunpack.c.l.b16 %v1049
    %v1487 = vunpack.c.h.b16 %v1049
    %v1488 = vunpack.c.l.b16 %v1050
    %v1489 = vunpack.c.h.b16 %v1050
    %v1490 = vunpack.c.l.b16 %v1051
    %v1491 = vunpack.c.h.b16 %v1051
    %v1492 = vunpack.c.l.b16 %v1052
    %v1493 = vunpack.c.h.b16 %v1052
    %v1494 = vunpack.c.l.b16 %v1053
    %v1495 = vunpack.c.h.b16 %v1053
    %v1496 = vunpack.c.l.b16 %v1054
    %v1497 = vunpack.c.h.b16 %v1054
    %v1498 = vunpack.c.l.b16 %v1055
    %v1499 = vunpack.c.h.b16 %v1055
    %v1500 = vunpack.c.l.b16 %v1056
    %v1501 = vunpack.c.h.b16 %v1056
    %v1502 = vunpack.c.l.b16 %v1057
    %v1503 = vunpack.c.h.b16 %v1057
    %v1504 = vunpack.c.l.b16 %v1058
    %v1505 = vunpack.c.h.b16 %v1058
    %v1506 = vunpack.c.l.b16 %v1059
    %v1507 = vunpack.c.h.b16 %v1059
    %v1508 = vunpack.c.l.b16 %v1060
    %v1509 = vunpack.c.h.b16 %v1060
    %v1510 = vunpack.c.l.b16 %v1061
    %v1511 = vunpack.c.h.b16 %v1061
    %v1512 = vunpack.c.l.b16 %v1062
    %v1513 = vunpack.c.h.b16 %v1062
    %v1514 = vunpack.c.l.b16 %v1063
    %v1515 = vunpack.c.h.b16 %v1063
    %v1516 = vpack.c.b16 %v1472, %v1468
    %v1517 = vpack.c.b16 %v1473, %v1469
    %v1518 = vpack.c.b16 %v1474, %v1470
    %v1519 = vpack.c.b16 %v1475, %v1471
    %v1520 = vpack.c.b16 %v1480, %v1476
    %v1521 = vpack.c.b16 %v1481, %v1477
    %v1522 = vpack.c.b16 %v1482, %v1478
    %v1523 = vpack.c.b16 %v1483, %v1479
    %v1524 = vpack.c.b16 %v1488, %v1484
    %v1525 = vpack.c.b16 %v1489, %v1485
    %v1526 = vpack.c.b16 %v1490, %v1486
    %v1527 = vpack.c.b16 %v1491, %v1487
    %v1528 = vpack.c.b16 %v1496, %v1492
    %v1529 = vpack.c.b16 %v1497, %v1493
    %v1530 = vpack.c.b16 %v1498, %v1494
    %v1531 = vpack.c.b16 %v1499, %v1495
    %v1532 = vpack.c.b16 %v1504, %v1500
    %v1533 = vpack.c.b16 %v1505, %v1501
    %v1534 = vpack.c.b16 %v1506, %v1502
    %v1535 = vpack.c.b16 %v1507, %v1503
    %v1536 = vpack.c.b16 %v1512, %v1508
    %v1537 = vpack.c.b16 %v1513, %v1509
    %v1538 = vpack.c.b16 %v1514, %v1510
    %v1539 = vpack.c.b16 %v1515, %v1511
    %v1565 = vsel %vm1216, %v1033, 0
    %v1568 = vsel %vm1216, %v1034, 0
    %v1571 = vsel %vm1216, %v1035, 0
    %v1574 = vsel %vm1216, %v1036, 0
    %v1577 = vsel %vm1216, %v1037, 0
    %v1580 = vsel %vm1216, %v1038, 0
    %v1583 = vsel %vm1216, %v1039, 0
    %1585 = vmatprep.subr.bf16.mxu0 %v1517
    %1586 = vmatpush1.bf16.msra.mxu0 %v1516
    %1587 = vmatprep.subr.bf16.mxu0 %v1521
    %1588 = vmatpush1.bf16.msra.mxu0 %v1520
    %1589 = vmatprep.subr.bf16.mxu0 %v1525
    %1590 = vmatpush1.bf16.msra.mxu0 %v1524
    %1591 = vmatprep.subr.bf16.mxu0 %v1529
    %1592 = vmatpush1.bf16.msra.mxu0 %v1528
    %1593 = vmatprep.subr.bf16.mxu0 %v1533
    %1594 = vmatpush1.bf16.msra.mxu0 %v1532
    %1595 = vmatprep.subr.bf16.mxu0 %v1537
    %1596 = vmatpush1.bf16.msra.mxu0 %v1536
    %1597 = vmatprep.subr.bf16.mxu0 0
    %1598 = vmatpush1.bf16.msra.mxu0 0
    %1599 = vmatprep.subr.bf16.mxu0 0
    %1600 = vmatpush1.bf16.msra.mxu0 0
    %1601 = vmatprep.subr.bf16.mxu0 0
    %1602 = vmatpush1.bf16.msra.mxu0 0
    %1603 = vmatprep.subr.bf16.mxu0 0
    %1604 = vmatpush1.bf16.msra.mxu0 0
    %1605 = vmatprep.subr.bf16.mxu0 0
    %1606 = vmatpush1.bf16.msra.mxu0 0
    %1607 = vmatprep.subr.bf16.mxu0 0
    %1608 = vmatpush1.bf16.msra.mxu0 0
    %1609 = vmatprep.subr.bf16.mxu0 0
    %1610 = vmatpush1.bf16.msra.mxu0 0
    %1611 = vmatprep.subr.bf16.mxu0 0
    %1612 = vmatpush1.bf16.msra.mxu0 0
    %1613 = vmatprep.subr.bf16.mxu0 0
    %1614 = vmatpush1.bf16.msra.mxu0 0
    %1615 = vmatprep.subr.bf16.mxu0 0
    %1616 = vmatpush1.bf16.msra.mxu0 0
    %1617 = vmatprep.mubr.bf16.mxu0 0
    %1618 = vmatmul.mubr.bf16.gmra.mrb[0].mxu0 %v1565
    %v1619 = vpop.f32.mrb[0].mxu0
    %v1620 = vadd.f32 %v1273, %v1619
    %v1621 = vpop.f32.mrb[0].mxu0
    %v1622 = vadd.f32 %v1275, %v1621
    %v1623 = vpop.f32.mrb[0].mxu0
    %v1624 = vadd.f32 %v1277, %v1623
    %v1625 = vpop.f32.mrb[0].mxu0
    %v1626 = vadd.f32 %v1279, %v1625
    %1627 = vmatprep.mubr.bf16.mxu0 0
    %1628 = vmatmul.mubr.bf16.gmra.mrb[0].mxu0 %v1568
    %v1629 = vpop.f32.mrb[0].mxu0
    %v1630 = vadd.f32 %v1283, %v1629
    %v1631 = vpop.f32.mrb[0].mxu0
    %v1632 = vadd.f32 %v1285, %v1631
    %v1633 = vpop.f32.mrb[0].mxu0
    %v1634 = vadd.f32 %v1287, %v1633
    %v1635 = vpop.f32.mrb[0].mxu0
    %v1636 = vadd.f32 %v1289, %v1635
    %1637 = vmatprep.mubr.bf16.mxu0 0
    %1638 = vmatmul.mubr.bf16.gmra.mrb[0].mxu0 %v1571
    %v1639 = vpop.f32.mrb[0].mxu0
    %v1640 = vadd.f32 %v1293, %v1639
    %v1641 = vpop.f32.mrb[0].mxu0
    %v1642 = vadd.f32 %v1295, %v1641
    %v1643 = vpop.f32.mrb[0].mxu0
    %v1644 = vadd.f32 %v1297, %v1643
    %v1645 = vpop.f32.mrb[0].mxu0
    %v1646 = vadd.f32 %v1299, %v1645
    %1647 = vmatprep.mubr.bf16.mxu0 0
    %1648 = vmatmul.mubr.bf16.gmra.mrb[0].mxu0 %v1574
    %v1649 = vpop.f32.mrb[0].mxu0
    %v1650 = vadd.f32 %v1303, %v1649
    %v1651 = vpop.f32.mrb[0].mxu0
    %v1652 = vadd.f32 %v1305, %v1651
    %v1653 = vpop.f32.mrb[0].mxu0
    %v1654 = vadd.f32 %v1307, %v1653
    %v1655 = vpop.f32.mrb[0].mxu0
    %v1656 = vadd.f32 %v1309, %v1655
    %1657 = vmatprep.mubr.bf16.mxu0 0
    %1658 = vmatmul.mubr.bf16.gmra.mrb[0].mxu0 %v1577
    %v1659 = vpop.f32.mrb[0].mxu0
    %v1660 = vadd.f32 %v1313, %v1659
    %v1661 = vpop.f32.mrb[0].mxu0
    %v1662 = vadd.f32 %v1315, %v1661
    %v1663 = vpop.f32.mrb[0].mxu0
    %v1664 = vadd.f32 %v1317, %v1663
    %v1665 = vpop.f32.mrb[0].mxu0
    %v1666 = vadd.f32 %v1319, %v1665
    %1667 = vmatprep.mubr.bf16.mxu0 0
    %1668 = vmatmul.mubr.bf16.gmra.mrb[0].mxu0 %v1580
    %v1669 = vpop.f32.mrb[0].mxu0
    %v1670 = vadd.f32 %v1323, %v1669
    %v1671 = vpop.f32.mrb[0].mxu0
    %v1672 = vadd.f32 %v1325, %v1671
    %v1673 = vpop.f32.mrb[0].mxu0
    %v1674 = vadd.f32 %v1327, %v1673
    %v1675 = vpop.f32.mrb[0].mxu0
    %v1676 = vadd.f32 %v1329, %v1675
    %1677 = vmatprep.mubr.bf16.mxu0 0
    %1678 = vmatmul.mubr.bf16.gmra.mrb[0].mxu0 %v1583
    %v1679 = vpop.f32.mrb[0].mxu0
    %v1680 = vadd.f32 %v1333, %v1679
    %v1681 = vpop.f32.mrb[0].mxu0
    %v1682 = vadd.f32 %v1335, %v1681
    %v1683 = vpop.f32.mrb[0].mxu0
    %v1684 = vadd.f32 %v1337, %v1683
    %v1685 = vpop.f32.mrb[0].mxu0
    %v1686 = vadd.f32 %v1339, %v1685
    %1687 = vdwg.mxu0
    %1688 = vmatprep.subr.bf16.mxu0 %v1519
    %1689 = vmatpush1.bf16.msra.mxu0 %v1518
    %1690 = vmatprep.subr.bf16.mxu0 %v1523
    %1691 = vmatpush1.bf16.msra.mxu0 %v1522
    %1692 = vmatprep.subr.bf16.mxu0 %v1527
    %1693 = vmatpush1.bf16.msra.mxu0 %v1526
    %1694 = vmatprep.subr.bf16.mxu0 %v1531
    %1695 = vmatpush1.bf16.msra.mxu0 %v1530
    %1696 = vmatprep.subr.bf16.mxu0 %v1535
    %1697 = vmatpush1.bf16.msra.mxu0 %v1534
    %1698 = vmatprep.subr.bf16.mxu0 %v1539
    %1699 = vmatpush1.bf16.msra.mxu0 %v1538
    %1700 = vmatprep.subr.bf16.mxu0 0
    %1701 = vmatpush1.bf16.msra.mxu0 0
    %1702 = vmatprep.subr.bf16.mxu0 0
    %1703 = vmatpush1.bf16.msra.mxu0 0
    %1704 = vmatprep.subr.bf16.mxu0 0
    %1705 = vmatpush1.bf16.msra.mxu0 0
    %1706 = vmatprep.subr.bf16.mxu0 0
    %1707 = vmatpush1.bf16.msra.mxu0 0
    %1708 = vmatprep.subr.bf16.mxu0 0
    %1709 = vmatpush1.bf16.msra.mxu0 0
    %1710 = vmatprep.subr.bf16.mxu0 0
    %1711 = vmatpush1.bf16.msra.mxu0 0
    %1712 = vmatprep.subr.bf16.mxu0 0
    %1713 = vmatpush1.bf16.msra.mxu0 0
    %1714 = vmatprep.subr.bf16.mxu0 0
    %1715 = vmatpush1.bf16.msra.mxu0 0
    %1716 = vmatprep.subr.bf16.mxu0 0
    %1717 = vmatpush1.bf16.msra.mxu0 0
    %1718 = vmatprep.subr.bf16.mxu0 0
    %1719 = vmatpush1.bf16.msra.mxu0 0
    %1720 = vmatprep.mubr.bf16.mxu0 0
    %1721 = vmatmul.mubr.bf16.gmra.mrb[0].mxu0 %v1565
    %v1722 = vpop.f32.mrb[0].mxu0
    %v1723 = vadd.f32 %v1376, %v1722
    %v1724 = vpop.f32.mrb[0].mxu0
    %v1725 = vadd.f32 %v1378, %v1724
    %v1726 = vpop.f32.mrb[0].mxu0
    %v1727 = vadd.f32 %v1380, %v1726
    %v1728 = vpop.f32.mrb[0].mxu0
    %v1729 = vadd.f32 %v1382, %v1728
    %1730 = vmatprep.mubr.bf16.mxu0 0
    %1731 = vmatmul.mubr.bf16.gmra.mrb[0].mxu0 %v1568
    %v1732 = vpop.f32.mrb[0].mxu0
    %v1733 = vadd.f32 %v1386, %v1732
    %v1734 = vpop.f32.mrb[0].mxu0
    %v1735 = vadd.f32 %v1388, %v1734
    %v1736 = vpop.f32.mrb[0].mxu0
    %v1737 = vadd.f32 %v1390, %v1736
    %v1738 = vpop.f32.mrb[0].mxu0
    %v1739 = vadd.f32 %v1392, %v1738
    %1740 = vmatprep.mubr.bf16.mxu0 0
    %1741 = vmatmul.mubr.bf16.gmra.mrb[0].mxu0 %v1571
    %v1742 = vpop.f32.mrb[0].mxu0
    %v1743 = vadd.f32 %v1396, %v1742
    %v1744 = vpop.f32.mrb[0].mxu0
    %v1745 = vadd.f32 %v1398, %v1744
    %v1746 = vpop.f32.mrb[0].mxu0
    %v1747 = vadd.f32 %v1400, %v1746
    %v1748 = vpop.f32.mrb[0].mxu0
    %v1749 = vadd.f32 %v1402, %v1748
    %1750 = vmatprep.mubr.bf16.mxu0 0
    %1751 = vmatmul.mubr.bf16.gmra.mrb[0].mxu0 %v1574
    %v1752 = vpop.f32.mrb[0].mxu0
    %v1753 = vadd.f32 %v1406, %v1752
    %v1754 = vpop.f32.mrb[0].mxu0
    %v1755 = vadd.f32 %v1408, %v1754
    %v1756 = vpop.f32.mrb[0].mxu0
    %v1757 = vadd.f32 %v1410, %v1756
    %v1758 = vpop.f32.mrb[0].mxu0
    %v1759 = vadd.f32 %v1412, %v1758
    %1760 = vmatprep.mubr.bf16.mxu0 0
    %1761 = vmatmul.mubr.bf16.gmra.mrb[0].mxu0 %v1577
    %v1762 = vpop.f32.mrb[0].mxu0
    %v1763 = vadd.f32 %v1416, %v1762
    %v1764 = vpop.f32.mrb[0].mxu0
    %v1765 = vadd.f32 %v1418, %v1764
    %v1766 = vpop.f32.mrb[0].mxu0
    %v1767 = vadd.f32 %v1420, %v1766
    %v1768 = vpop.f32.mrb[0].mxu0
    %v1769 = vadd.f32 %v1422, %v1768
    %1770 = vmatprep.mubr.bf16.mxu0 0
    %1771 = vmatmul.mubr.bf16.gmra.mrb[0].mxu0 %v1580
    %v1772 = vpop.f32.mrb[0].mxu0
    %v1773 = vadd.f32 %v1426, %v1772
    %v1774 = vpop.f32.mrb[0].mxu0
    %v1775 = vadd.f32 %v1428, %v1774
    %v1776 = vpop.f32.mrb[0].mxu0
    %v1777 = vadd.f32 %v1430, %v1776
    %v1778 = vpop.f32.mrb[0].mxu0
    %v1779 = vadd.f32 %v1432, %v1778
    %1780 = vmatprep.mubr.bf16.mxu0 0
    %1781 = vmatmul.mubr.bf16.gmra.mrb[0].mxu0 %v1583
    %v1782 = vpop.f32.mrb[0].mxu0
    %v1783 = vadd.f32 %v1436, %v1782
    %v1784 = vpop.f32.mrb[0].mxu0
    %v1785 = vadd.f32 %v1438, %v1784
    %v1786 = vpop.f32.mrb[0].mxu0
    %v1787 = vadd.f32 %v1440, %v1786
    %v1788 = vpop.f32.mrb[0].mxu0
    %v1789 = vadd.f32 %v1442, %v1788
    %1790 = vdwg.mxu0
    %v1791 = vpack.c.bf16 %v814, %v811
    %v1792 = vpack.c.bf16 %v822, %v819
    %v1793 = vpack.c.bf16 %v830, %v827
    %v1794 = vpack.c.bf16 %v838, %v835
    %v1795 = vpack.c.bf16 %v846, %v843
    %v1796 = vpack.c.bf16 %v854, %v851
    %v1797 = vpack.c.bf16 %v862, %v859
    %s1798 = scalar_lea.vmem [#allocation2], 384
    %v1799 = vld [vmem:[%s1798] sm:$0xff]
    %v1800 = vld [vmem:[%s1798 + $0x8] sm:$0xff]
    %v1801 = vld [vmem:[%s1798 + $0x10] sm:$0xff]
    %v1802 = vld [vmem:[%s1798 + $0x18] sm:$0xff]
    %v1803 = vld [vmem:[%s1798 + $0x20] sm:$0xff]
    %v1804 = vld [vmem:[%s1798 + $0x28] sm:$0xff]
    %v1805 = vld [vmem:[%s1798 + $0x30] sm:$0xff]
    %v1806 = vld [vmem:[%s1798 + $0x38] sm:$0xff]
    %v1807 = vld [vmem:[%s1798 + $0x40] sm:$0xff]
    %v1808 = vld [vmem:[%s1798 + $0x48] sm:$0xff]
    %v1809 = vld [vmem:[%s1798 + $0x50] sm:$0xff]
    %v1810 = vld [vmem:[%s1798 + $0x58] sm:$0xff]
    %v1811 = vld [vmem:[%s1798 + $0x60] sm:$0xff]
    %v1812 = vld [vmem:[%s1798 + $0x68] sm:$0xff]
    %v1813 = vld [vmem:[%s1798 + $0x70] sm:$0xff]
    %v1814 = vld [vmem:[%s1798 + $0x78] sm:$0xff]
    %v1815 = vld [vmem:[%s1798 + $0x80] sm:$0xff]
    %v1816 = vld [vmem:[%s1798 + $0x88] sm:$0xff]
    %v1817 = vld [vmem:[%s1798 + $0x90] sm:$0xff]
    %v1818 = vld [vmem:[%s1798 + $0x98] sm:$0xff]
    %v1819 = vld [vmem:[%s1798 + $0xa0] sm:$0xff]
    %v1820 = vld [vmem:[%s1798 + $0xa8] sm:$0xff]
    %v1821 = vld [vmem:[%s1798 + $0xb0] sm:$0xff]
    %v1822 = vld [vmem:[%s1798 + $0xb8] sm:$0xff]
    %v1847 = vunpack.c.l.b16 %v1799
    %v1848 = vunpack.c.h.b16 %v1799
    %v1849 = vunpack.c.l.b16 %v1800
    %v1850 = vunpack.c.h.b16 %v1800
    %v1851 = vunpack.c.l.b16 %v1801
    %v1852 = vunpack.c.h.b16 %v1801
    %v1853 = vunpack.c.l.b16 %v1802
    %v1854 = vunpack.c.h.b16 %v1802
    %v1855 = vunpack.c.l.b16 %v1803
    %v1856 = vunpack.c.h.b16 %v1803
    %v1857 = vunpack.c.l.b16 %v1804
    %v1858 = vunpack.c.h.b16 %v1804
    %v1859 = vunpack.c.l.b16 %v1805
    %v1860 = vunpack.c.h.b16 %v1805
    %v1861 = vunpack.c.l.b16 %v1806
    %v1862 = vunpack.c.h.b16 %v1806
    %v1863 = vunpack.c.l.b16 %v1807
    %v1864 = vunpack.c.h.b16 %v1807
    %v1865 = vunpack.c.l.b16 %v1808
    %v1866 = vunpack.c.h.b16 %v1808
    %v1867 = vunpack.c.l.b16 %v1809
    %v1868 = vunpack.c.h.b16 %v1809
    %v1869 = vunpack.c.l.b16 %v1810
    %v1870 = vunpack.c.h.b16 %v1810
    %v1871 = vunpack.c.l.b16 %v1811
    %v1872 = vunpack.c.h.b16 %v1811
    %v1873 = vunpack.c.l.b16 %v1812
    %v1874 = vunpack.c.h.b16 %v1812
    %v1875 = vunpack.c.l.b16 %v1813
    %v1876 = vunpack.c.h.b16 %v1813
    %v1877 = vunpack.c.l.b16 %v1814
    %v1878 = vunpack.c.h.b16 %v1814
    %v1879 = vunpack.c.l.b16 %v1815
    %v1880 = vunpack.c.h.b16 %v1815
    %v1881 = vunpack.c.l.b16 %v1816
    %v1882 = vunpack.c.h.b16 %v1816
    %v1883 = vunpack.c.l.b16 %v1817
    %v1884 = vunpack.c.h.b16 %v1817
    %v1885 = vunpack.c.l.b16 %v1818
    %v1886 = vunpack.c.h.b16 %v1818
    %v1887 = vunpack.c.l.b16 %v1819
    %v1888 = vunpack.c.h.b16 %v1819
    %v1889 = vunpack.c.l.b16 %v1820
    %v1890 = vunpack.c.h.b16 %v1820
    %v1891 = vunpack.c.l.b16 %v1821
    %v1892 = vunpack.c.h.b16 %v1821
    %v1893 = vunpack.c.l.b16 %v1822
    %v1894 = vunpack.c.h.b16 %v1822
    %v1895 = vpack.c.b16 %v1851, %v1847
    %v1896 = vpack.c.b16 %v1852, %v1848
    %v1897 = vpack.c.b16 %v1853, %v1849
    %v1898 = vpack.c.b16 %v1854, %v1850
    %v1899 = vpack.c.b16 %v1859, %v1855
    %v1900 = vpack.c.b16 %v1860, %v1856
    %v1901 = vpack.c.b16 %v1861, %v1857
    %v1902 = vpack.c.b16 %v1862, %v1858
    %v1903 = vpack.c.b16 %v1867, %v1863
    %v1904 = vpack.c.b16 %v1868, %v1864
    %v1905 = vpack.c.b16 %v1869, %v1865
    %v1906 = vpack.c.b16 %v1870, %v1866
    %v1907 = vpack.c.b16 %v1875, %v1871
    %v1908 = vpack.c.b16 %v1876, %v1872
    %v1909 = vpack.c.b16 %v1877, %v1873
    %v1910 = vpack.c.b16 %v1878, %v1874
    %v1911 = vpack.c.b16 %v1883, %v1879
    %v1912 = vpack.c.b16 %v1884, %v1880
    %v1913 = vpack.c.b16 %v1885, %v1881
    %v1914 = vpack.c.b16 %v1886, %v1882
    %v1915 = vpack.c.b16 %v1891, %v1887
    %v1916 = vpack.c.b16 %v1892, %v1888
    %v1917 = vpack.c.b16 %v1893, %v1889
    %v1918 = vpack.c.b16 %v1894, %v1890
    %v1944 = vsel %vm1216, %v1791, 0
    %v1947 = vsel %vm1216, %v1792, 0
    %v1950 = vsel %vm1216, %v1793, 0
    %v1953 = vsel %vm1216, %v1794, 0
    %v1956 = vsel %vm1216, %v1795, 0
    %v1959 = vsel %vm1216, %v1796, 0
    %v1962 = vsel %vm1216, %v1797, 0
    %1964 = vmatprep.subr.bf16.mxu0 %v1896
    %1965 = vmatpush1.bf16.msra.mxu0 %v1895
    %1966 = vmatprep.subr.bf16.mxu0 %v1900
    %1967 = vmatpush1.bf16.msra.mxu0 %v1899
    %1968 = vmatprep.subr.bf16.mxu0 %v1904
    %1969 = vmatpush1.bf16.msra.mxu0 %v1903
    %1970 = vmatprep.subr.bf16.mxu0 %v1908
    %1971 = vmatpush1.bf16.msra.mxu0 %v1907
    %1972 = vmatprep.subr.bf16.mxu0 %v1912
    %1973 = vmatpush1.bf16.msra.mxu0 %v1911
    %1974 = vmatprep.subr.bf16.mxu0 %v1916
    %1975 = vmatpush1.bf16.msra.mxu0 %v1915
    %1976 = vmatprep.subr.bf16.mxu0 0
    %1977 = vmatpush1.bf16.msra.mxu0 0
    %1978 = vmatprep.subr.bf16.mxu0 0
    %1979 = vmatpush1.bf16.msra.mxu0 0
    %1980 = vmatprep.subr.bf16.mxu0 0
    %1981 = vmatpush1.bf16.msra.mxu0 0
    %1982 = vmatprep.subr.bf16.mxu0 0
    %1983 = vmatpush1.bf16.msra.mxu0 0
    %1984 = vmatprep.subr.bf16.mxu0 0
    %1985 = vmatpush1.bf16.msra.mxu0 0
    %1986 = vmatprep.subr.bf16.mxu0 0
    %1987 = vmatpush1.bf16.msra.mxu0 0
    %1988 = vmatprep.subr.bf16.mxu0 0
    %1989 = vmatpush1.bf16.msra.mxu0 0
    %1990 = vmatprep.subr.bf16.mxu0 0
    %1991 = vmatpush1.bf16.msra.mxu0 0
    %1992 = vmatprep.subr.bf16.mxu0 0
    %1993 = vmatpush1.bf16.msra.mxu0 0
    %1994 = vmatprep.subr.bf16.mxu0 0
    %1995 = vmatpush1.bf16.msra.mxu0 0
    %1996 = vmatprep.mubr.bf16.mxu0 0
    %1997 = vmatmul.mubr.bf16.gmra.mrb[0].mxu0 %v1944
    %v1998 = vpop.f32.mrb[0].mxu0
    %v1999 = vadd.f32 0.0, %v1998
    %v2000 = vpop.f32.mrb[0].mxu0
    %v2001 = vadd.f32 0.0, %v2000
    %v2002 = vpop.f32.mrb[0].mxu0
    %v2003 = vadd.f32 0.0, %v2002
    %v2004 = vpop.f32.mrb[0].mxu0
    %v2005 = vadd.f32 0.0, %v2004
    %2006 = vmatprep.mubr.bf16.mxu0 0
    %2007 = vmatmul.mubr.bf16.gmra.mrb[0].mxu0 %v1947
    %v2008 = vpop.f32.mrb[0].mxu0
    %v2009 = vadd.f32 0.0, %v2008
    %v2010 = vpop.f32.mrb[0].mxu0
    %v2011 = vadd.f32 0.0, %v2010
    %v2012 = vpop.f32.mrb[0].mxu0
    %v2013 = vadd.f32 0.0, %v2012
    %v2014 = vpop.f32.mrb[0].mxu0
    %v2015 = vadd.f32 0.0, %v2014
    %2016 = vmatprep.mubr.bf16.mxu0 0
    %2017 = vmatmul.mubr.bf16.gmra.mrb[0].mxu0 %v1950
    %v2018 = vpop.f32.mrb[0].mxu0
    %v2019 = vadd.f32 0.0, %v2018
    %v2020 = vpop.f32.mrb[0].mxu0
    %v2021 = vadd.f32 0.0, %v2020
    %v2022 = vpop.f32.mrb[0].mxu0
    %v2023 = vadd.f32 0.0, %v2022
    %v2024 = vpop.f32.mrb[0].mxu0
    %v2025 = vadd.f32 0.0, %v2024
    %2026 = vmatprep.mubr.bf16.mxu0 0
    %2027 = vmatmul.mubr.bf16.gmra.mrb[0].mxu0 %v1953
    %v2028 = vpop.f32.mrb[0].mxu0
    %v2029 = vadd.f32 0.0, %v2028
    %v2030 = vpop.f32.mrb[0].mxu0
    %v2031 = vadd.f32 0.0, %v2030
    %v2032 = vpop.f32.mrb[0].mxu0
    %v2033 = vadd.f32 0.0, %v2032
    %v2034 = vpop.f32.mrb[0].mxu0
    %v2035 = vadd.f32 0.0, %v2034
    %2036 = vmatprep.mubr.bf16.mxu0 0
    %2037 = vmatmul.mubr.bf16.gmra.mrb[0].mxu0 %v1956
    %v2038 = vpop.f32.mrb[0].mxu0
    %v2039 = vadd.f32 0.0, %v2038
    %v2040 = vpop.f32.mrb[0].mxu0
    %v2041 = vadd.f32 0.0, %v2040
    %v2042 = vpop.f32.mrb[0].mxu0
    %v2043 = vadd.f32 0.0, %v2042
    %v2044 = vpop.f32.mrb[0].mxu0
    %v2045 = vadd.f32 0.0, %v2044
    %2046 = vmatprep.mubr.bf16.mxu0 0
    %2047 = vmatmul.mubr.bf16.gmra.mrb[0].mxu0 %v1959
    %v2048 = vpop.f32.mrb[0].mxu0
    %v2049 = vadd.f32 0.0, %v2048
    %v2050 = vpop.f32.mrb[0].mxu0
    %v2051 = vadd.f32 0.0, %v2050
    %v2052 = vpop.f32.mrb[0].mxu0
    %v2053 = vadd.f32 0.0, %v2052
    %v2054 = vpop.f32.mrb[0].mxu0
    %v2055 = vadd.f32 0.0, %v2054
    %2056 = vmatprep.mubr.bf16.mxu0 0
    %2057 = vmatmul.mubr.bf16.gmra.mrb[0].mxu0 %v1962
    %v2058 = vpop.f32.mrb[0].mxu0
    %v2059 = vadd.f32 0.0, %v2058
    %v2060 = vpop.f32.mrb[0].mxu0
    %v2061 = vadd.f32 0.0, %v2060
    %v2062 = vpop.f32.mrb[0].mxu0
    %v2063 = vadd.f32 0.0, %v2062
    %v2064 = vpop.f32.mrb[0].mxu0
    %v2065 = vadd.f32 0.0, %v2064
    %2066 = vdwg.mxu0
    %2067 = vmatprep.subr.bf16.mxu0 %v1898
    %2068 = vmatpush1.bf16.msra.mxu0 %v1897
    %2069 = vmatprep.subr.bf16.mxu0 %v1902
    %2070 = vmatpush1.bf16.msra.mxu0 %v1901
    %2071 = vmatprep.subr.bf16.mxu0 %v1906
    %2072 = vmatpush1.bf16.msra.mxu0 %v1905
    %2073 = vmatprep.subr.bf16.mxu0 %v1910
    %2074 = vmatpush1.bf16.msra.mxu0 %v1909
    %2075 = vmatprep.subr.bf16.mxu0 %v1914
    %2076 = vmatpush1.bf16.msra.mxu0 %v1913
    %2077 = vmatprep.subr.bf16.mxu0 %v1918
    %2078 = vmatpush1.bf16.msra.mxu0 %v1917
    %2079 = vmatprep.subr.bf16.mxu0 0
    %2080 = vmatpush1.bf16.msra.mxu0 0
    %2081 = vmatprep.subr.bf16.mxu0 0
    %2082 = vmatpush1.bf16.msra.mxu0 0
    %2083 = vmatprep.subr.bf16.mxu0 0
    %2084 = vmatpush1.bf16.msra.mxu0 0
    %2085 = vmatprep.subr.bf16.mxu0 0
    %2086 = vmatpush1.bf16.msra.mxu0 0
    %2087 = vmatprep.subr.bf16.mxu0 0
    %2088 = vmatpush1.bf16.msra.mxu0 0
    %2089 = vmatprep.subr.bf16.mxu0 0
    %2090 = vmatpush1.bf16.msra.mxu0 0
    %2091 = vmatprep.subr.bf16.mxu0 0
    %2092 = vmatpush1.bf16.msra.mxu0 0
    %2093 = vmatprep.subr.bf16.mxu0 0
    %2094 = vmatpush1.bf16.msra.mxu0 0
    %2095 = vmatprep.subr.bf16.mxu0 0
    %2096 = vmatpush1.bf16.msra.mxu0 0
    %2097 = vmatprep.subr.bf16.mxu0 0
    %2098 = vmatpush1.bf16.msra.mxu0 0
    %2099 = vmatprep.mubr.bf16.mxu0 0
    %2100 = vmatmul.mubr.bf16.gmra.mrb[0].mxu0 %v1944
    %v2101 = vpop.f32.mrb[0].mxu0
    %v2102 = vadd.f32 0.0, %v2101
    %v2103 = vpop.f32.mrb[0].mxu0
    %v2104 = vadd.f32 0.0, %v2103
    %v2105 = vpop.f32.mrb[0].mxu0
    %v2106 = vadd.f32 0.0, %v2105
    %v2107 = vpop.f32.mrb[0].mxu0
    %v2108 = vadd.f32 0.0, %v2107
    %2109 = vmatprep.mubr.bf16.mxu0 0
    %2110 = vmatmul.mubr.bf16.gmra.mrb[0].mxu0 %v1947
    %v2111 = vpop.f32.mrb[0].mxu0
    %v2112 = vadd.f32 0.0, %v2111
    %v2113 = vpop.f32.mrb[0].mxu0
    %v2114 = vadd.f32 0.0, %v2113
    %v2115 = vpop.f32.mrb[0].mxu0
    %v2116 = vadd.f32 0.0, %v2115
    %v2117 = vpop.f32.mrb[0].mxu0
    %v2118 = vadd.f32 0.0, %v2117
    %2119 = vmatprep.mubr.bf16.mxu0 0
    %2120 = vmatmul.mubr.bf16.gmra.mrb[0].mxu0 %v1950
    %v2121 = vpop.f32.mrb[0].mxu0
    %v2122 = vadd.f32 0.0, %v2121
    %v2123 = vpop.f32.mrb[0].mxu0
    %v2124 = vadd.f32 0.0, %v2123
    %v2125 = vpop.f32.mrb[0].mxu0
    %v2126 = vadd.f32 0.0, %v2125
    %v2127 = vpop.f32.mrb[0].mxu0
    %v2128 = vadd.f32 0.0, %v2127
    %2129 = vmatprep.mubr.bf16.mxu0 0
    %2130 = vmatmul.mubr.bf16.gmra.mrb[0].mxu0 %v1953
    %v2131 = vpop.f32.mrb[0].mxu0
    %v2132 = vadd.f32 0.0, %v2131
    %v2133 = vpop.f32.mrb[0].mxu0
    %v2134 = vadd.f32 0.0, %v2133
    %v2135 = vpop.f32.mrb[0].mxu0
    %v2136 = vadd.f32 0.0, %v2135
    %v2137 = vpop.f32.mrb[0].mxu0
    %v2138 = vadd.f32 0.0, %v2137
    %2139 = vmatprep.mubr.bf16.mxu0 0
    %2140 = vmatmul.mubr.bf16.gmra.mrb[0].mxu0 %v1956
    %v2141 = vpop.f32.mrb[0].mxu0
    %v2142 = vadd.f32 0.0, %v2141
    %v2143 = vpop.f32.mrb[0].mxu0
    %v2144 = vadd.f32 0.0, %v2143
    %v2145 = vpop.f32.mrb[0].mxu0
    %v2146 = vadd.f32 0.0, %v2145
    %v2147 = vpop.f32.mrb[0].mxu0
    %v2148 = vadd.f32 0.0, %v2147
    %2149 = vmatprep.mubr.bf16.mxu0 0
    %2150 = vmatmul.mubr.bf16.gmra.mrb[0].mxu0 %v1959
    %v2151 = vpop.f32.mrb[0].mxu0
    %v2152 = vadd.f32 0.0, %v2151
    %v2153 = vpop.f32.mrb[0].mxu0
    %v2154 = vadd.f32 0.0, %v2153
    %v2155 = vpop.f32.mrb[0].mxu0
    %v2156 = vadd.f32 0.0, %v2155
    %v2157 = vpop.f32.mrb[0].mxu0
    %v2158 = vadd.f32 0.0, %v2157
    %2159 = vmatprep.mubr.bf16.mxu0 0
    %2160 = vmatmul.mubr.bf16.gmra.mrb[0].mxu0 %v1962
    %v2161 = vpop.f32.mrb[0].mxu0
    %v2162 = vadd.f32 0.0, %v2161
    %v2163 = vpop.f32.mrb[0].mxu0
    %v2164 = vadd.f32 0.0, %v2163
    %v2165 = vpop.f32.mrb[0].mxu0
    %v2166 = vadd.f32 0.0, %v2165
    %v2167 = vpop.f32.mrb[0].mxu0
    %v2168 = vadd.f32 0.0, %v2167
    %2169 = vdwg.mxu0
    %v2170 = vadd.f32 %v1620, %v1999
    %v2171 = vadd.f32 %v1622, %v2001
    %v2172 = vadd.f32 %v1723, %v2102
    %v2173 = vadd.f32 %v1725, %v2104
    %v2174 = vadd.f32 %v1624, %v2003
    %v2175 = vadd.f32 %v1626, %v2005
    %v2176 = vadd.f32 %v1727, %v2106
    %v2177 = vadd.f32 %v1729, %v2108
    %v2178 = vadd.f32 %v1630, %v2009
    %v2179 = vadd.f32 %v1632, %v2011
    %v2180 = vadd.f32 %v1733, %v2112
    %v2181 = vadd.f32 %v1735, %v2114
    %v2182 = vadd.f32 %v1634, %v2013
    %v2183 = vadd.f32 %v1636, %v2015
    %v2184 = vadd.f32 %v1737, %v2116
    %v2185 = vadd.f32 %v1739, %v2118
    %v2186 = vadd.f32 %v1640, %v2019
    %v2187 = vadd.f32 %v1642, %v2021
    %v2188 = vadd.f32 %v1743, %v2122
    %v2189 = vadd.f32 %v1745, %v2124
    %v2190 = vadd.f32 %v1644, %v2023
    %v2191 = vadd.f32 %v1646, %v2025
    %v2192 = vadd.f32 %v1747, %v2126
    %v2193 = vadd.f32 %v1749, %v2128
    %v2194 = vadd.f32 %v1650, %v2029
    %v2195 = vadd.f32 %v1652, %v2031
    %v2196 = vadd.f32 %v1753, %v2132
    %v2197 = vadd.f32 %v1755, %v2134
    %v2198 = vadd.f32 %v1654, %v2033
    %v2199 = vadd.f32 %v1656, %v2035
    %v2200 = vadd.f32 %v1757, %v2136
    %v2201 = vadd.f32 %v1759, %v2138
    %v2202 = vadd.f32 %v1660, %v2039
    %v2203 = vadd.f32 %v1662, %v2041
    %v2204 = vadd.f32 %v1763, %v2142
    %v2205 = vadd.f32 %v1765, %v2144
    %v2206 = vadd.f32 %v1664, %v2043
    %v2207 = vadd.f32 %v1666, %v2045
    %v2208 = vadd.f32 %v1767, %v2146
    %v2209 = vadd.f32 %v1769, %v2148
    %v2210 = vadd.f32 %v1670, %v2049
    %v2211 = vadd.f32 %v1672, %v2051
    %v2212 = vadd.f32 %v1773, %v2152
    %v2213 = vadd.f32 %v1775, %v2154
    %v2214 = vadd.f32 %v1674, %v2053
    %v2215 = vadd.f32 %v1676, %v2055
    %v2216 = vadd.f32 %v1777, %v2156
    %v2217 = vadd.f32 %v1779, %v2158
    %v2218 = vadd.f32 %v1680, %v2059
    %v2219 = vadd.f32 %v1682, %v2061
    %v2220 = vadd.f32 %v1783, %v2162
    %v2221 = vadd.f32 %v1785, %v2164
    %v2222 = vadd.f32 %v1684, %v2063
    %v2223 = vadd.f32 %v1686, %v2065
    %v2224 = vadd.f32 %v1787, %v2166
    %v2225 = vadd.f32 %v1789, %v2168
    %v2226 = vpack.c.bf16 %v870, %v867
    %v2227 = vpack.c.bf16 %v878, %v875
    %v2228 = vpack.c.bf16 %v886, %v883
    %v2229 = vpack.c.bf16 %v894, %v891
    %v2230 = vpack.c.bf16 %v902, %v899
    %v2231 = vpack.c.bf16 %v910, %v907
    %v2232 = vpack.c.bf16 %v918, %v915
    %s2233 = scalar_lea.vmem [#allocation2], 576
    %v2234 = vld [vmem:[%s2233] sm:$0xff]
    %v2235 = vld [vmem:[%s2233 + $0x8] sm:$0xff]
    %v2236 = vld [vmem:[%s2233 + $0x10] sm:$0xff]
    %v2237 = vld [vmem:[%s2233 + $0x18] sm:$0xff]
    %v2238 = vld [vmem:[%s2233 + $0x20] sm:$0xff]
    %v2239 = vld [vmem:[%s2233 + $0x28] sm:$0xff]
    %v2240 = vld [vmem:[%s2233 + $0x30] sm:$0xff]
    %v2241 = vld [vmem:[%s2233 + $0x38] sm:$0xff]
    %v2242 = vld [vmem:[%s2233 + $0x40] sm:$0xff]
    %v2243 = vld [vmem:[%s2233 + $0x48] sm:$0xff]
    %v2244 = vld [vmem:[%s2233 + $0x50] sm:$0xff]
    %v2245 = vld [vmem:[%s2233 + $0x58] sm:$0xff]
    %v2246 = vld [vmem:[%s2233 + $0x60] sm:$0xff]
    %v2247 = vld [vmem:[%s2233 + $0x68] sm:$0xff]
    %v2248 = vld [vmem:[%s2233 + $0x70] sm:$0xff]
    %v2249 = vld [vmem:[%s2233 + $0x78] sm:$0xff]
    %v2250 = vld [vmem:[%s2233 + $0x80] sm:$0xff]
    %v2251 = vld [vmem:[%s2233 + $0x88] sm:$0xff]
    %v2252 = vld [vmem:[%s2233 + $0x90] sm:$0xff]
    %v2253 = vld [vmem:[%s2233 + $0x98] sm:$0xff]
    %v2254 = vld [vmem:[%s2233 + $0xa0] sm:$0xff]
    %v2255 = vld [vmem:[%s2233 + $0xa8] sm:$0xff]
    %v2256 = vld [vmem:[%s2233 + $0xb0] sm:$0xff]
    %v2257 = vld [vmem:[%s2233 + $0xb8] sm:$0xff]
    %v2282 = vunpack.c.l.b16 %v2234
    %v2283 = vunpack.c.h.b16 %v2234
    %v2284 = vunpack.c.l.b16 %v2235
    %v2285 = vunpack.c.h.b16 %v2235
    %v2286 = vunpack.c.l.b16 %v2236
    %v2287 = vunpack.c.h.b16 %v2236
    %v2288 = vunpack.c.l.b16 %v2237
    %v2289 = vunpack.c.h.b16 %v2237
    %v2290 = vunpack.c.l.b16 %v2238
    %v2291 = vunpack.c.h.b16 %v2238
    %v2292 = vunpack.c.l.b16 %v2239
    %v2293 = vunpack.c.h.b16 %v2239
    %v2294 = vunpack.c.l.b16 %v2240
    %v2295 = vunpack.c.h.b16 %v2240
    %v2296 = vunpack.c.l.b16 %v2241
    %v2297 = vunpack.c.h.b16 %v2241
    %v2298 = vunpack.c.l.b16 %v2242
    %v2299 = vunpack.c.h.b16 %v2242
    %v2300 = vunpack.c.l.b16 %v2243
    %v2301 = vunpack.c.h.b16 %v2243
    %v2302 = vunpack.c.l.b16 %v2244
    %v2303 = vunpack.c.h.b16 %v2244
    %v2304 = vunpack.c.l.b16 %v2245
    %v2305 = vunpack.c.h.b16 %v2245
    %v2306 = vunpack.c.l.b16 %v2246
    %v2307 = vunpack.c.h.b16 %v2246
    %v2308 = vunpack.c.l.b16 %v2247
    %v2309 = vunpack.c.h.b16 %v2247
    %v2310 = vunpack.c.l.b16 %v2248
    %v2311 = vunpack.c.h.b16 %v2248
    %v2312 = vunpack.c.l.b16 %v2249
    %v2313 = vunpack.c.h.b16 %v2249
    %v2314 = vunpack.c.l.b16 %v2250
    %v2315 = vunpack.c.h.b16 %v2250
    %v2316 = vunpack.c.l.b16 %v2251
    %v2317 = vunpack.c.h.b16 %v2251
    %v2318 = vunpack.c.l.b16 %v2252
    %v2319 = vunpack.c.h.b16 %v2252
    %v2320 = vunpack.c.l.b16 %v2253
    %v2321 = vunpack.c.h.b16 %v2253
    %v2322 = vunpack.c.l.b16 %v2254
    %v2323 = vunpack.c.h.b16 %v2254
    %v2324 = vunpack.c.l.b16 %v2255
    %v2325 = vunpack.c.h.b16 %v2255
    %v2326 = vunpack.c.l.b16 %v2256
    %v2327 = vunpack.c.h.b16 %v2256
    %v2328 = vunpack.c.l.b16 %v2257
    %v2329 = vunpack.c.h.b16 %v2257
    %v2330 = vpack.c.b16 %v2286, %v2282
    %v2331 = vpack.c.b16 %v2287, %v2283
    %v2332 = vpack.c.b16 %v2288, %v2284
    %v2333 = vpack.c.b16 %v2289, %v2285
    %v2334 = vpack.c.b16 %v2294, %v2290
    %v2335 = vpack.c.b16 %v2295, %v2291
    %v2336 = vpack.c.b16 %v2296, %v2292
    %v2337 = vpack.c.b16 %v2297, %v2293
    %v2338 = vpack.c.b16 %v2302, %v2298
    %v2339 = vpack.c.b16 %v2303, %v2299
    %v2340 = vpack.c.b16 %v2304, %v2300
    %v2341 = vpack.c.b16 %v2305, %v2301
    %v2342 = vpack.c.b16 %v2310, %v2306
    %v2343 = vpack.c.b16 %v2311, %v2307
    %v2344 = vpack.c.b16 %v2312, %v2308
    %v2345 = vpack.c.b16 %v2313, %v2309
    %v2346 = vpack.c.b16 %v2318, %v2314
    %v2347 = vpack.c.b16 %v2319, %v2315
    %v2348 = vpack.c.b16 %v2320, %v2316
    %v2349 = vpack.c.b16 %v2321, %v2317
    %v2350 = vpack.c.b16 %v2326, %v2322
    %v2351 = vpack.c.b16 %v2327, %v2323
    %v2352 = vpack.c.b16 %v2328, %v2324
    %v2353 = vpack.c.b16 %v2329, %v2325
    %v2379 = vsel %vm1216, %v2226, 0
    %v2382 = vsel %vm1216, %v2227, 0
    %v2385 = vsel %vm1216, %v2228, 0
    %v2388 = vsel %vm1216, %v2229, 0
    %v2391 = vsel %vm1216, %v2230, 0
    %v2394 = vsel %vm1216, %v2231, 0
    %v2397 = vsel %vm1216, %v2232, 0
    %2399 = vmatprep.subr.bf16.mxu0 %v2331
    %2400 = vmatpush1.bf16.msra.mxu0 %v2330
    %2401 = vmatprep.subr.bf16.mxu0 %v2335
    %2402 = vmatpush1.bf16.msra.mxu0 %v2334
    %2403 = vmatprep.subr.bf16.mxu0 %v2339
    %2404 = vmatpush1.bf16.msra.mxu0 %v2338
    %2405 = vmatprep.subr.bf16.mxu0 %v2343
    %2406 = vmatpush1.bf16.msra.mxu0 %v2342
    %2407 = vmatprep.subr.bf16.mxu0 %v2347
    %2408 = vmatpush1.bf16.msra.mxu0 %v2346
    %2409 = vmatprep.subr.bf16.mxu0 %v2351
    %2410 = vmatpush1.bf16.msra.mxu0 %v2350
    %2411 = vmatprep.subr.bf16.mxu0 0
    %2412 = vmatpush1.bf16.msra.mxu0 0
    %2413 = vmatprep.subr.bf16.mxu0 0
    %2414 = vmatpush1.bf16.msra.mxu0 0
    %2415 = vmatprep.subr.bf16.mxu0 0
    %2416 = vmatpush1.bf16.msra.mxu0 0
    %2417 = vmatprep.subr.bf16.mxu0 0
    %2418 = vmatpush1.bf16.msra.mxu0 0
    %2419 = vmatprep.subr.bf16.mxu0 0
    %2420 = vmatpush1.bf16.msra.mxu0 0
    %2421 = vmatprep.subr.bf16.mxu0 0
    %2422 = vmatpush1.bf16.msra.mxu0 0
    %2423 = vmatprep.subr.bf16.mxu0 0
    %2424 = vmatpush1.bf16.msra.mxu0 0
    %2425 = vmatprep.subr.bf16.mxu0 0
    %2426 = vmatpush1.bf16.msra.mxu0 0
    %2427 = vmatprep.subr.bf16.mxu0 0
    %2428 = vmatpush1.bf16.msra.mxu0 0
    %2429 = vmatprep.subr.bf16.mxu0 0
    %2430 = vmatpush1.bf16.msra.mxu0 0
    %2431 = vmatprep.mubr.bf16.mxu0 0
    %2432 = vmatmul.mubr.bf16.gmra.mrb[0].mxu0 %v2379
    %v2433 = vpop.f32.mrb[0].mxu0
    %v2434 = vadd.f32 0.0, %v2433
    %v2435 = vpop.f32.mrb[0].mxu0
    %v2436 = vadd.f32 0.0, %v2435
    %v2437 = vpop.f32.mrb[0].mxu0
    %v2438 = vadd.f32 0.0, %v2437
    %v2439 = vpop.f32.mrb[0].mxu0
    %v2440 = vadd.f32 0.0, %v2439
    %2441 = vmatprep.mubr.bf16.mxu0 0
    %2442 = vmatmul.mubr.bf16.gmra.mrb[0].mxu0 %v2382
    %v2443 = vpop.f32.mrb[0].mxu0
    %v2444 = vadd.f32 0.0, %v2443
    %v2445 = vpop.f32.mrb[0].mxu0
    %v2446 = vadd.f32 0.0, %v2445
    %v2447 = vpop.f32.mrb[0].mxu0
    %v2448 = vadd.f32 0.0, %v2447
    %v2449 = vpop.f32.mrb[0].mxu0
    %v2450 = vadd.f32 0.0, %v2449
    %2451 = vmatprep.mubr.bf16.mxu0 0
    %2452 = vmatmul.mubr.bf16.gmra.mrb[0].mxu0 %v2385
    %v2453 = vpop.f32.mrb[0].mxu0
    %v2454 = vadd.f32 0.0, %v2453
    %v2455 = vpop.f32.mrb[0].mxu0
    %v2456 = vadd.f32 0.0, %v2455
    %v2457 = vpop.f32.mrb[0].mxu0
    %v2458 = vadd.f32 0.0, %v2457
    %v2459 = vpop.f32.mrb[0].mxu0
    %v2460 = vadd.f32 0.0, %v2459
    %2461 = vmatprep.mubr.bf16.mxu0 0
    %2462 = vmatmul.mubr.bf16.gmra.mrb[0].mxu0 %v2388
    %v2463 = vpop.f32.mrb[0].mxu0
    %v2464 = vadd.f32 0.0, %v2463
    %v2465 = vpop.f32.mrb[0].mxu0
    %v2466 = vadd.f32 0.0, %v2465
    %v2467 = vpop.f32.mrb[0].mxu0
    %v2468 = vadd.f32 0.0, %v2467
    %v2469 = vpop.f32.mrb[0].mxu0
    %v2470 = vadd.f32 0.0, %v2469
    %2471 = vmatprep.mubr.bf16.mxu0 0
    %2472 = vmatmul.mubr.bf16.gmra.mrb[0].mxu0 %v2391
    %v2473 = vpop.f32.mrb[0].mxu0
    %v2474 = vadd.f32 0.0, %v2473
    %v2475 = vpop.f32.mrb[0].mxu0
    %v2476 = vadd.f32 0.0, %v2475
    %v2477 = vpop.f32.mrb[0].mxu0
    %v2478 = vadd.f32 0.0, %v2477
    %v2479 = vpop.f32.mrb[0].mxu0
    %v2480 = vadd.f32 0.0, %v2479
    %2481 = vmatprep.mubr.bf16.mxu0 0
    %2482 = vmatmul.mubr.bf16.gmra.mrb[0].mxu0 %v2394
    %v2483 = vpop.f32.mrb[0].mxu0
    %v2484 = vadd.f32 0.0, %v2483
    %v2485 = vpop.f32.mrb[0].mxu0
    %v2486 = vadd.f32 0.0, %v2485
    %v2487 = vpop.f32.mrb[0].mxu0
    %v2488 = vadd.f32 0.0, %v2487
    %v2489 = vpop.f32.mrb[0].mxu0
    %v2490 = vadd.f32 0.0, %v2489
    %2491 = vmatprep.mubr.bf16.mxu0 0
    %2492 = vmatmul.mubr.bf16.gmra.mrb[0].mxu0 %v2397
    %v2493 = vpop.f32.mrb[0].mxu0
    %v2494 = vadd.f32 0.0, %v2493
    %v2495 = vpop.f32.mrb[0].mxu0
    %v2496 = vadd.f32 0.0, %v2495
    %v2497 = vpop.f32.mrb[0].mxu0
    %v2498 = vadd.f32 0.0, %v2497
    %v2499 = vpop.f32.mrb[0].mxu0
    %v2500 = vadd.f32 0.0, %v2499
    %2501 = vdwg.mxu0
    %2502 = vmatprep.subr.bf16.mxu0 %v2333
    %2503 = vmatpush1.bf16.msra.mxu0 %v2332
    %2504 = vmatprep.subr.bf16.mxu0 %v2337
    %2505 = vmatpush1.bf16.msra.mxu0 %v2336
    %2506 = vmatprep.subr.bf16.mxu0 %v2341
    %2507 = vmatpush1.bf16.msra.mxu0 %v2340
    %2508 = vmatprep.subr.bf16.mxu0 %v2345
    %2509 = vmatpush1.bf16.msra.mxu0 %v2344
    %2510 = vmatprep.subr.bf16.mxu0 %v2349
    %2511 = vmatpush1.bf16.msra.mxu0 %v2348
    %2512 = vmatprep.subr.bf16.mxu0 %v2353
    %2513 = vmatpush1.bf16.msra.mxu0 %v2352
    %2514 = vmatprep.subr.bf16.mxu0 0
    %2515 = vmatpush1.bf16.msra.mxu0 0
    %2516 = vmatprep.subr.bf16.mxu0 0
    %2517 = vmatpush1.bf16.msra.mxu0 0
    %2518 = vmatprep.subr.bf16.mxu0 0
    %2519 = vmatpush1.bf16.msra.mxu0 0
    %2520 = vmatprep.subr.bf16.mxu0 0
    %2521 = vmatpush1.bf16.msra.mxu0 0
    %2522 = vmatprep.subr.bf16.mxu0 0
    %2523 = vmatpush1.bf16.msra.mxu0 0
    %2524 = vmatprep.subr.bf16.mxu0 0
    %2525 = vmatpush1.bf16.msra.mxu0 0
    %2526 = vmatprep.subr.bf16.mxu0 0
    %2527 = vmatpush1.bf16.msra.mxu0 0
    %2528 = vmatprep.subr.bf16.mxu0 0
    %2529 = vmatpush1.bf16.msra.mxu0 0
    %2530 = vmatprep.subr.bf16.mxu0 0
    %2531 = vmatpush1.bf16.msra.mxu0 0
    %2532 = vmatprep.subr.bf16.mxu0 0
    %2533 = vmatpush1.bf16.msra.mxu0 0
    %2534 = vmatprep.mubr.bf16.mxu0 0
    %2535 = vmatmul.mubr.bf16.gmra.mrb[0].mxu0 %v2379
    %v2536 = vpop.f32.mrb[0].mxu0
    %v2537 = vadd.f32 0.0, %v2536
    %v2538 = vpop.f32.mrb[0].mxu0
    %v2539 = vadd.f32 0.0, %v2538
    %v2540 = vpop.f32.mrb[0].mxu0
    %v2541 = vadd.f32 0.0, %v2540
    %v2542 = vpop.f32.mrb[0].mxu0
    %v2543 = vadd.f32 0.0, %v2542
    %2544 = vmatprep.mubr.bf16.mxu0 0
    %2545 = vmatmul.mubr.bf16.gmra.mrb[0].mxu0 %v2382
    %v2546 = vpop.f32.mrb[0].mxu0
    %v2547 = vadd.f32 0.0, %v2546
    %v2548 = vpop.f32.mrb[0].mxu0
    %v2549 = vadd.f32 0.0, %v2548
    %v2550 = vpop.f32.mrb[0].mxu0
    %v2551 = vadd.f32 0.0, %v2550
    %v2552 = vpop.f32.mrb[0].mxu0
    %v2553 = vadd.f32 0.0, %v2552
    %2554 = vmatprep.mubr.bf16.mxu0 0
    %2555 = vmatmul.mubr.bf16.gmra.mrb[0].mxu0 %v2385
    %v2556 = vpop.f32.mrb[0].mxu0
    %v2557 = vadd.f32 0.0, %v2556
    %v2558 = vpop.f32.mrb[0].mxu0
    %v2559 = vadd.f32 0.0, %v2558
    %v2560 = vpop.f32.mrb[0].mxu0
    %v2561 = vadd.f32 0.0, %v2560
    %v2562 = vpop.f32.mrb[0].mxu0
    %v2563 = vadd.f32 0.0, %v2562
    %2564 = vmatprep.mubr.bf16.mxu0 0
    %2565 = vmatmul.mubr.bf16.gmra.mrb[0].mxu0 %v2388
    %v2566 = vpop.f32.mrb[0].mxu0
    %v2567 = vadd.f32 0.0, %v2566
    %v2568 = vpop.f32.mrb[0].mxu0
    %v2569 = vadd.f32 0.0, %v2568
    %v2570 = vpop.f32.mrb[0].mxu0
    %v2571 = vadd.f32 0.0, %v2570
    %v2572 = vpop.f32.mrb[0].mxu0
    %v2573 = vadd.f32 0.0, %v2572
    %2574 = vmatprep.mubr.bf16.mxu0 0
    %2575 = vmatmul.mubr.bf16.gmra.mrb[0].mxu0 %v2391
    %v2576 = vpop.f32.mrb[0].mxu0
    %v2577 = vadd.f32 0.0, %v2576
    %v2578 = vpop.f32.mrb[0].mxu0
    %v2579 = vadd.f32 0.0, %v2578
    %v2580 = vpop.f32.mrb[0].mxu0
    %v2581 = vadd.f32 0.0, %v2580
    %v2582 = vpop.f32.mrb[0].mxu0
    %v2583 = vadd.f32 0.0, %v2582
    %2584 = vmatprep.mubr.bf16.mxu0 0
    %2585 = vmatmul.mubr.bf16.gmra.mrb[0].mxu0 %v2394
    %v2586 = vpop.f32.mrb[0].mxu0
    %v2587 = vadd.f32 0.0, %v2586
    %v2588 = vpop.f32.mrb[0].mxu0
    %v2589 = vadd.f32 0.0, %v2588
    %v2590 = vpop.f32.mrb[0].mxu0
    %v2591 = vadd.f32 0.0, %v2590
    %v2592 = vpop.f32.mrb[0].mxu0
    %v2593 = vadd.f32 0.0, %v2592
    %2594 = vmatprep.mubr.bf16.mxu0 0
    %2595 = vmatmul.mubr.bf16.gmra.mrb[0].mxu0 %v2397
    %v2596 = vpop.f32.mrb[0].mxu0
    %v2597 = vadd.f32 0.0, %v2596
    %v2598 = vpop.f32.mrb[0].mxu0
    %v2599 = vadd.f32 0.0, %v2598
    %v2600 = vpop.f32.mrb[0].mxu0
    %v2601 = vadd.f32 0.0, %v2600
    %v2602 = vpop.f32.mrb[0].mxu0
    %v2603 = vadd.f32 0.0, %v2602
    %2604 = vdwg.mxu0
    %v2605 = vadd.f32 %v2170, %v2434
    %v2606 = vadd.f32 %v2171, %v2436
    %v2607 = vadd.f32 %v2172, %v2537
    %v2608 = vadd.f32 %v2173, %v2539
    %v2609 = vadd.f32 %v2174, %v2438
    %v2610 = vadd.f32 %v2175, %v2440
    %v2611 = vadd.f32 %v2176, %v2541
    %v2612 = vadd.f32 %v2177, %v2543
    %v2613 = vadd.f32 %v2178, %v2444
    %v2614 = vadd.f32 %v2179, %v2446
    %v2615 = vadd.f32 %v2180, %v2547
    %v2616 = vadd.f32 %v2181, %v2549
    %v2617 = vadd.f32 %v2182, %v2448
    %v2618 = vadd.f32 %v2183, %v2450
    %v2619 = vadd.f32 %v2184, %v2551
    %v2620 = vadd.f32 %v2185, %v2553
    %v2621 = vadd.f32 %v2186, %v2454
    %v2622 = vadd.f32 %v2187, %v2456
    %v2623 = vadd.f32 %v2188, %v2557
    %v2624 = vadd.f32 %v2189, %v2559
    %v2625 = vadd.f32 %v2190, %v2458
    %v2626 = vadd.f32 %v2191, %v2460
    %v2627 = vadd.f32 %v2192, %v2561
    %v2628 = vadd.f32 %v2193, %v2563
    %v2629 = vadd.f32 %v2194, %v2464
    %v2630 = vadd.f32 %v2195, %v2466
    %v2631 = vadd.f32 %v2196, %v2567
    %v2632 = vadd.f32 %v2197, %v2569
    %v2633 = vadd.f32 %v2198, %v2468
    %v2634 = vadd.f32 %v2199, %v2470
    %v2635 = vadd.f32 %v2200, %v2571
    %v2636 = vadd.f32 %v2201, %v2573
    %v2637 = vadd.f32 %v2202, %v2474
    %v2638 = vadd.f32 %v2203, %v2476
    %v2639 = vadd.f32 %v2204, %v2577
    %v2640 = vadd.f32 %v2205, %v2579
    %v2641 = vadd.f32 %v2206, %v2478
    %v2642 = vadd.f32 %v2207, %v2480
    %v2643 = vadd.f32 %v2208, %v2581
    %v2644 = vadd.f32 %v2209, %v2583
    %v2645 = vadd.f32 %v2210, %v2484
    %v2646 = vadd.f32 %v2211, %v2486
    %v2647 = vadd.f32 %v2212, %v2587
    %v2648 = vadd.f32 %v2213, %v2589
    %v2649 = vadd.f32 %v2214, %v2488
    %v2650 = vadd.f32 %v2215, %v2490
    %v2651 = vadd.f32 %v2216, %v2591
    %v2652 = vadd.f32 %v2217, %v2593
    %v2653 = vadd.f32 %v2218, %v2494
    %v2654 = vadd.f32 %v2219, %v2496
    %v2655 = vadd.f32 %v2220, %v2597
    %v2656 = vadd.f32 %v2221, %v2599
    %v2657 = vadd.f32 %v2222, %v2498
    %v2658 = vadd.f32 %v2223, %v2500
    %v2659 = vadd.f32 %v2224, %v2601
    %v2660 = vadd.f32 %v2225, %v2603
    %v2661 = vpack.c.bf16 %v926, %v923
    %v2662 = vpack.c.bf16 %v934, %v931
    %v2663 = vpack.c.bf16 %v942, %v939
    %v2664 = vpack.c.bf16 %v950, %v947
    %v2665 = vpack.c.bf16 %v958, %v955
    %v2666 = vpack.c.bf16 %v966, %v963
    %v2667 = vpack.c.bf16 %v974, %v971
    %s2668 = scalar_lea.vmem [#allocation2], 768
    %v2669 = vld [vmem:[%s2668] sm:$0xff]
    %v2670 = vld [vmem:[%s2668 + $0x8] sm:$0xff]
    %v2671 = vld [vmem:[%s2668 + $0x10] sm:$0xff]
    %v2672 = vld [vmem:[%s2668 + $0x18] sm:$0xff]
    %v2673 = vld [vmem:[%s2668 + $0x20] sm:$0xff]
    %v2674 = vld [vmem:[%s2668 + $0x28] sm:$0xff]
    %v2675 = vld [vmem:[%s2668 + $0x30] sm:$0xff]
    %v2676 = vld [vmem:[%s2668 + $0x38] sm:$0xff]
    %v2677 = vld [vmem:[%s2668 + $0x40] sm:$0xff]
    %v2678 = vld [vmem:[%s2668 + $0x48] sm:$0xff]
    %v2679 = vld [vmem:[%s2668 + $0x50] sm:$0xff]
    %v2680 = vld [vmem:[%s2668 + $0x58] sm:$0xff]
    %v2681 = vld [vmem:[%s2668 + $0x60] sm:$0xff]
    %v2682 = vld [vmem:[%s2668 + $0x68] sm:$0xff]
    %v2683 = vld [vmem:[%s2668 + $0x70] sm:$0xff]
    %v2684 = vld [vmem:[%s2668 + $0x78] sm:$0xff]
    %v2685 = vld [vmem:[%s2668 + $0x80] sm:$0xff]
    %v2686 = vld [vmem:[%s2668 + $0x88] sm:$0xff]
    %v2687 = vld [vmem:[%s2668 + $0x90] sm:$0xff]
    %v2688 = vld [vmem:[%s2668 + $0x98] sm:$0xff]
    %v2689 = vld [vmem:[%s2668 + $0xa0] sm:$0xff]
    %v2690 = vld [vmem:[%s2668 + $0xa8] sm:$0xff]
    %v2691 = vld [vmem:[%s2668 + $0xb0] sm:$0xff]
    %v2692 = vld [vmem:[%s2668 + $0xb8] sm:$0xff]
    %v2717 = vunpack.c.l.b16 %v2669
    %v2718 = vunpack.c.h.b16 %v2669
    %v2719 = vunpack.c.l.b16 %v2670
    %v2720 = vunpack.c.h.b16 %v2670
    %v2721 = vunpack.c.l.b16 %v2671
    %v2722 = vunpack.c.h.b16 %v2671
    %v2723 = vunpack.c.l.b16 %v2672
    %v2724 = vunpack.c.h.b16 %v2672
    %v2725 = vunpack.c.l.b16 %v2673
    %v2726 = vunpack.c.h.b16 %v2673
    %v2727 = vunpack.c.l.b16 %v2674
    %v2728 = vunpack.c.h.b16 %v2674
    %v2729 = vunpack.c.l.b16 %v2675
    %v2730 = vunpack.c.h.b16 %v2675
    %v2731 = vunpack.c.l.b16 %v2676
    %v2732 = vunpack.c.h.b16 %v2676
    %v2733 = vunpack.c.l.b16 %v2677
    %v2734 = vunpack.c.h.b16 %v2677
    %v2735 = vunpack.c.l.b16 %v2678
    %v2736 = vunpack.c.h.b16 %v2678
    %v2737 = vunpack.c.l.b16 %v2679
    %v2738 = vunpack.c.h.b16 %v2679
    %v2739 = vunpack.c.l.b16 %v2680
    %v2740 = vunpack.c.h.b16 %v2680
    %v2741 = vunpack.c.l.b16 %v2681
    %v2742 = vunpack.c.h.b16 %v2681
    %v2743 = vunpack.c.l.b16 %v2682
    %v2744 = vunpack.c.h.b16 %v2682
    %v2745 = vunpack.c.l.b16 %v2683
    %v2746 = vunpack.c.h.b16 %v2683
    %v2747 = vunpack.c.l.b16 %v2684
    %v2748 = vunpack.c.h.b16 %v2684
    %v2749 = vunpack.c.l.b16 %v2685
    %v2750 = vunpack.c.h.b16 %v2685
    %v2751 = vunpack.c.l.b16 %v2686
    %v2752 = vunpack.c.h.b16 %v2686
    %v2753 = vunpack.c.l.b16 %v2687
    %v2754 = vunpack.c.h.b16 %v2687
    %v2755 = vunpack.c.l.b16 %v2688
    %v2756 = vunpack.c.h.b16 %v2688
    %v2757 = vunpack.c.l.b16 %v2689
    %v2758 = vunpack.c.h.b16 %v2689
    %v2759 = vunpack.c.l.b16 %v2690
    %v2760 = vunpack.c.h.b16 %v2690
    %v2761 = vunpack.c.l.b16 %v2691
    %v2762 = vunpack.c.h.b16 %v2691
    %v2763 = vunpack.c.l.b16 %v2692
    %v2764 = vunpack.c.h.b16 %v2692
    %v2765 = vpack.c.b16 %v2721, %v2717
    %v2766 = vpack.c.b16 %v2722, %v2718
    %v2767 = vpack.c.b16 %v2723, %v2719
    %v2768 = vpack.c.b16 %v2724, %v2720
    %v2769 = vpack.c.b16 %v2729, %v2725
    %v2770 = vpack.c.b16 %v2730, %v2726
    %v2771 = vpack.c.b16 %v2731, %v2727
    %v2772 = vpack.c.b16 %v2732, %v2728
    %v2773 = vpack.c.b16 %v2737, %v2733
    %v2774 = vpack.c.b16 %v2738, %v2734
    %v2775 = vpack.c.b16 %v2739, %v2735
    %v2776 = vpack.c.b16 %v2740, %v2736
    %v2777 = vpack.c.b16 %v2745, %v2741
    %v2778 = vpack.c.b16 %v2746, %v2742
    %v2779 = vpack.c.b16 %v2747, %v2743
    %v2780 = vpack.c.b16 %v2748, %v2744
    %v2781 = vpack.c.b16 %v2753, %v2749
    %v2782 = vpack.c.b16 %v2754, %v2750
    %v2783 = vpack.c.b16 %v2755, %v2751
    %v2784 = vpack.c.b16 %v2756, %v2752
    %v2785 = vpack.c.b16 %v2761, %v2757
    %v2786 = vpack.c.b16 %v2762, %v2758
    %v2787 = vpack.c.b16 %v2763, %v2759
    %v2788 = vpack.c.b16 %v2764, %v2760
    %v2814 = vsel %vm1216, %v2661, 0
    %v2817 = vsel %vm1216, %v2662, 0
    %v2820 = vsel %vm1216, %v2663, 0
    %v2823 = vsel %vm1216, %v2664, 0
    %v2826 = vsel %vm1216, %v2665, 0
    %v2829 = vsel %vm1216, %v2666, 0
    %v2832 = vsel %vm1216, %v2667, 0
    %2834 = vmatprep.subr.bf16.mxu0 %v2766
    %2835 = vmatpush1.bf16.msra.mxu0 %v2765
    %2836 = vmatprep.subr.bf16.mxu0 %v2770
    %2837 = vmatpush1.bf16.msra.mxu0 %v2769
    %2838 = vmatprep.subr.bf16.mxu0 %v2774
    %2839 = vmatpush1.bf16.msra.mxu0 %v2773
    %2840 = vmatprep.subr.bf16.mxu0 %v2778
    %2841 = vmatpush1.bf16.msra.mxu0 %v2777
    %2842 = vmatprep.subr.bf16.mxu0 %v2782
    %2843 = vmatpush1.bf16.msra.mxu0 %v2781
    %2844 = vmatprep.subr.bf16.mxu0 %v2786
    %2845 = vmatpush1.bf16.msra.mxu0 %v2785
    %2846 = vmatprep.subr.bf16.mxu0 0
    %2847 = vmatpush1.bf16.msra.mxu0 0
    %2848 = vmatprep.subr.bf16.mxu0 0
    %2849 = vmatpush1.bf16.msra.mxu0 0
    %2850 = vmatprep.subr.bf16.mxu0 0
    %2851 = vmatpush1.bf16.msra.mxu0 0
    %2852 = vmatprep.subr.bf16.mxu0 0
    %2853 = vmatpush1.bf16.msra.mxu0 0
    %2854 = vmatprep.subr.bf16.mxu0 0
    %2855 = vmatpush1.bf16.msra.mxu0 0
    %2856 = vmatprep.subr.bf16.mxu0 0
    %2857 = vmatpush1.bf16.msra.mxu0 0
    %2858 = vmatprep.subr.bf16.mxu0 0
    %2859 = vmatpush1.bf16.msra.mxu0 0
    %2860 = vmatprep.subr.bf16.mxu0 0
    %2861 = vmatpush1.bf16.msra.mxu0 0
    %2862 = vmatprep.subr.bf16.mxu0 0
    %2863 = vmatpush1.bf16.msra.mxu0 0
    %2864 = vmatprep.subr.bf16.mxu0 0
    %2865 = vmatpush1.bf16.msra.mxu0 0
    %2866 = vmatprep.mubr.bf16.mxu0 0
    %2867 = vmatmul.mubr.bf16.gmra.mrb[0].mxu0 %v2814
    %v2868 = vpop.f32.mrb[0].mxu0
    %v2869 = vadd.f32 0.0, %v2868
    %v2870 = vpop.f32.mrb[0].mxu0
    %v2871 = vadd.f32 0.0, %v2870
    %v2872 = vpop.f32.mrb[0].mxu0
    %v2873 = vadd.f32 0.0, %v2872
    %v2874 = vpop.f32.mrb[0].mxu0
    %v2875 = vadd.f32 0.0, %v2874
    %2876 = vmatprep.mubr.bf16.mxu0 0
    %2877 = vmatmul.mubr.bf16.gmra.mrb[0].mxu0 %v2817
    %v2878 = vpop.f32.mrb[0].mxu0
    %v2879 = vadd.f32 0.0, %v2878
    %v2880 = vpop.f32.mrb[0].mxu0
    %v2881 = vadd.f32 0.0, %v2880
    %v2882 = vpop.f32.mrb[0].mxu0
    %v2883 = vadd.f32 0.0, %v2882
    %v2884 = vpop.f32.mrb[0].mxu0
    %v2885 = vadd.f32 0.0, %v2884
    %2886 = vmatprep.mubr.bf16.mxu0 0
    %2887 = vmatmul.mubr.bf16.gmra.mrb[0].mxu0 %v2820
    %v2888 = vpop.f32.mrb[0].mxu0
    %v2889 = vadd.f32 0.0, %v2888
    %v2890 = vpop.f32.mrb[0].mxu0
    %v2891 = vadd.f32 0.0, %v2890
    %v2892 = vpop.f32.mrb[0].mxu0
    %v2893 = vadd.f32 0.0, %v2892
    %v2894 = vpop.f32.mrb[0].mxu0
    %v2895 = vadd.f32 0.0, %v2894
    %2896 = vmatprep.mubr.bf16.mxu0 0
    %2897 = vmatmul.mubr.bf16.gmra.mrb[0].mxu0 %v2823
    %v2898 = vpop.f32.mrb[0].mxu0
    %v2899 = vadd.f32 0.0, %v2898
    %v2900 = vpop.f32.mrb[0].mxu0
    %v2901 = vadd.f32 0.0, %v2900
    %v2902 = vpop.f32.mrb[0].mxu0
    %v2903 = vadd.f32 0.0, %v2902
    %v2904 = vpop.f32.mrb[0].mxu0
    %v2905 = vadd.f32 0.0, %v2904
    %2906 = vmatprep.mubr.bf16.mxu0 0
    %2907 = vmatmul.mubr.bf16.gmra.mrb[0].mxu0 %v2826
    %v2908 = vpop.f32.mrb[0].mxu0
    %v2909 = vadd.f32 0.0, %v2908
    %v2910 = vpop.f32.mrb[0].mxu0
    %v2911 = vadd.f32 0.0, %v2910
    %v2912 = vpop.f32.mrb[0].mxu0
    %v2913 = vadd.f32 0.0, %v2912
    %v2914 = vpop.f32.mrb[0].mxu0
    %v2915 = vadd.f32 0.0, %v2914
    %2916 = vmatprep.mubr.bf16.mxu0 0
    %2917 = vmatmul.mubr.bf16.gmra.mrb[0].mxu0 %v2829
    %v2918 = vpop.f32.mrb[0].mxu0
    %v2919 = vadd.f32 0.0, %v2918
    %v2920 = vpop.f32.mrb[0].mxu0
    %v2921 = vadd.f32 0.0, %v2920
    %v2922 = vpop.f32.mrb[0].mxu0
    %v2923 = vadd.f32 0.0, %v2922
    %v2924 = vpop.f32.mrb[0].mxu0
    %v2925 = vadd.f32 0.0, %v2924
    %2926 = vmatprep.mubr.bf16.mxu0 0
    %2927 = vmatmul.mubr.bf16.gmra.mrb[0].mxu0 %v2832
    %v2928 = vpop.f32.mrb[0].mxu0
    %v2929 = vadd.f32 0.0, %v2928
    %v2930 = vpop.f32.mrb[0].mxu0
    %v2931 = vadd.f32 0.0, %v2930
    %v2932 = vpop.f32.mrb[0].mxu0
    %v2933 = vadd.f32 0.0, %v2932
    %v2934 = vpop.f32.mrb[0].mxu0
    %v2935 = vadd.f32 0.0, %v2934
    %2936 = vdwg.mxu0
    %2937 = vmatprep.subr.bf16.mxu0 %v2768
    %2938 = vmatpush1.bf16.msra.mxu0 %v2767
    %2939 = vmatprep.subr.bf16.mxu0 %v2772
    %2940 = vmatpush1.bf16.msra.mxu0 %v2771
    %2941 = vmatprep.subr.bf16.mxu0 %v2776
    %2942 = vmatpush1.bf16.msra.mxu0 %v2775
    %2943 = vmatprep.subr.bf16.mxu0 %v2780
    %2944 = vmatpush1.bf16.msra.mxu0 %v2779
    %2945 = vmatprep.subr.bf16.mxu0 %v2784
    %2946 = vmatpush1.bf16.msra.mxu0 %v2783
    %2947 = vmatprep.subr.bf16.mxu0 %v2788
    %2948 = vmatpush1.bf16.msra.mxu0 %v2787
    %2949 = vmatprep.subr.bf16.mxu0 0
    %2950 = vmatpush1.bf16.msra.mxu0 0
    %2951 = vmatprep.subr.bf16.mxu0 0
    %2952 = vmatpush1.bf16.msra.mxu0 0
    %2953 = vmatprep.subr.bf16.mxu0 0
    %2954 = vmatpush1.bf16.msra.mxu0 0
    %2955 = vmatprep.subr.bf16.mxu0 0
    %2956 = vmatpush1.bf16.msra.mxu0 0
    %2957 = vmatprep.subr.bf16.mxu0 0
    %2958 = vmatpush1.bf16.msra.mxu0 0
    %2959 = vmatprep.subr.bf16.mxu0 0
    %2960 = vmatpush1.bf16.msra.mxu0 0
    %2961 = vmatprep.subr.bf16.mxu0 0
    %2962 = vmatpush1.bf16.msra.mxu0 0
    %2963 = vmatprep.subr.bf16.mxu0 0
    %2964 = vmatpush1.bf16.msra.mxu0 0
    %2965 = vmatprep.subr.bf16.mxu0 0
    %2966 = vmatpush1.bf16.msra.mxu0 0
    %2967 = vmatprep.subr.bf16.mxu0 0
    %2968 = vmatpush1.bf16.msra.mxu0 0
    %2969 = vmatprep.mubr.bf16.mxu0 0
    %2970 = vmatmul.mubr.bf16.gmra.mrb[0].mxu0 %v2814
    %v2971 = vpop.f32.mrb[0].mxu0
    %v2972 = vadd.f32 0.0, %v2971
    %v2973 = vpop.f32.mrb[0].mxu0
    %v2974 = vadd.f32 0.0, %v2973
    %v2975 = vpop.f32.mrb[0].mxu0
    %v2976 = vadd.f32 0.0, %v2975
    %v2977 = vpop.f32.mrb[0].mxu0
    %v2978 = vadd.f32 0.0, %v2977
    %2979 = vmatprep.mubr.bf16.mxu0 0
    %2980 = vmatmul.mubr.bf16.gmra.mrb[0].mxu0 %v2817
    %v2981 = vpop.f32.mrb[0].mxu0
    %v2982 = vadd.f32 0.0, %v2981
    %v2983 = vpop.f32.mrb[0].mxu0
    %v2984 = vadd.f32 0.0, %v2983
    %v2985 = vpop.f32.mrb[0].mxu0
    %v2986 = vadd.f32 0.0, %v2985
    %v2987 = vpop.f32.mrb[0].mxu0
    %v2988 = vadd.f32 0.0, %v2987
    %2989 = vmatprep.mubr.bf16.mxu0 0
    %2990 = vmatmul.mubr.bf16.gmra.mrb[0].mxu0 %v2820
    %v2991 = vpop.f32.mrb[0].mxu0
    %v2992 = vadd.f32 0.0, %v2991
    %v2993 = vpop.f32.mrb[0].mxu0
    %v2994 = vadd.f32 0.0, %v2993
    %v2995 = vpop.f32.mrb[0].mxu0
    %v2996 = vadd.f32 0.0, %v2995
    %v2997 = vpop.f32.mrb[0].mxu0
    %v2998 = vadd.f32 0.0, %v2997
    %2999 = vmatprep.mubr.bf16.mxu0 0
    %3000 = vmatmul.mubr.bf16.gmra.mrb[0].mxu0 %v2823
    %v3001 = vpop.f32.mrb[0].mxu0
    %v3002 = vadd.f32 0.0, %v3001
    %v3003 = vpop.f32.mrb[0].mxu0
    %v3004 = vadd.f32 0.0, %v3003
    %v3005 = vpop.f32.mrb[0].mxu0
    %v3006 = vadd.f32 0.0, %v3005
    %v3007 = vpop.f32.mrb[0].mxu0
    %v3008 = vadd.f32 0.0, %v3007
    %3009 = vmatprep.mubr.bf16.mxu0 0
    %3010 = vmatmul.mubr.bf16.gmra.mrb[0].mxu0 %v2826
    %v3011 = vpop.f32.mrb[0].mxu0
    %v3012 = vadd.f32 0.0, %v3011
    %v3013 = vpop.f32.mrb[0].mxu0
    %v3014 = vadd.f32 0.0, %v3013
    %v3015 = vpop.f32.mrb[0].mxu0
    %v3016 = vadd.f32 0.0, %v3015
    %v3017 = vpop.f32.mrb[0].mxu0
    %v3018 = vadd.f32 0.0, %v3017
    %3019 = vmatprep.mubr.bf16.mxu0 0
    %3020 = vmatmul.mubr.bf16.gmra.mrb[0].mxu0 %v2829
    %v3021 = vpop.f32.mrb[0].mxu0
    %v3022 = vadd.f32 0.0, %v3021
    %v3023 = vpop.f32.mrb[0].mxu0
    %v3024 = vadd.f32 0.0, %v3023
    %v3025 = vpop.f32.mrb[0].mxu0
    %v3026 = vadd.f32 0.0, %v3025
    %v3027 = vpop.f32.mrb[0].mxu0
    %v3028 = vadd.f32 0.0, %v3027
    %3029 = vmatprep.mubr.bf16.mxu0 0
    %3030 = vmatmul.mubr.bf16.gmra.mrb[0].mxu0 %v2832
    %v3031 = vpop.f32.mrb[0].mxu0
    %v3032 = vadd.f32 0.0, %v3031
    %v3033 = vpop.f32.mrb[0].mxu0
    %v3034 = vadd.f32 0.0, %v3033
    %v3035 = vpop.f32.mrb[0].mxu0
    %v3036 = vadd.f32 0.0, %v3035
    %v3037 = vpop.f32.mrb[0].mxu0
    %v3038 = vadd.f32 0.0, %v3037
    %3039 = vdwg.mxu0
    %v3040 = vadd.f32 %v2605, %v2869
    %v3041 = vadd.f32 %v2606, %v2871
    %v3042 = vadd.f32 %v2607, %v2972
    %v3043 = vadd.f32 %v2608, %v2974
    %v3044 = vadd.f32 %v2609, %v2873
    %v3045 = vadd.f32 %v2610, %v2875
    %v3046 = vadd.f32 %v2611, %v2976
    %v3047 = vadd.f32 %v2612, %v2978
    %v3048 = vadd.f32 %v2613, %v2879
    %v3049 = vadd.f32 %v2614, %v2881
    %v3050 = vadd.f32 %v2615, %v2982
    %v3051 = vadd.f32 %v2616, %v2984
    %v3052 = vadd.f32 %v2617, %v2883
    %v3053 = vadd.f32 %v2618, %v2885
    %v3054 = vadd.f32 %v2619, %v2986
    %v3055 = vadd.f32 %v2620, %v2988
    %v3056 = vadd.f32 %v2621, %v2889
    %v3057 = vadd.f32 %v2622, %v2891
    %v3058 = vadd.f32 %v2623, %v2992
    %v3059 = vadd.f32 %v2624, %v2994
    %v3060 = vadd.f32 %v2625, %v2893
    %v3061 = vadd.f32 %v2626, %v2895
    %v3062 = vadd.f32 %v2627, %v2996
    %v3063 = vadd.f32 %v2628, %v2998
    %v3064 = vadd.f32 %v2629, %v2899
    %v3065 = vadd.f32 %v2630, %v2901
    %v3066 = vadd.f32 %v2631, %v3002
    %v3067 = vadd.f32 %v2632, %v3004
    %v3068 = vadd.f32 %v2633, %v2903
    %v3069 = vadd.f32 %v2634, %v2905
    %v3070 = vadd.f32 %v2635, %v3006
    %v3071 = vadd.f32 %v2636, %v3008
    %v3072 = vadd.f32 %v2637, %v2909
    %v3073 = vadd.f32 %v2638, %v2911
    %v3074 = vadd.f32 %v2639, %v3012
    %v3075 = vadd.f32 %v2640, %v3014
    %v3076 = vadd.f32 %v2641, %v2913
    %v3077 = vadd.f32 %v2642, %v2915
    %v3078 = vadd.f32 %v2643, %v3016
    %v3079 = vadd.f32 %v2644, %v3018
    %v3080 = vadd.f32 %v2645, %v2919
    %v3081 = vadd.f32 %v2646, %v2921
    %v3082 = vadd.f32 %v2647, %v3022
    %v3083 = vadd.f32 %v2648, %v3024
    %v3084 = vadd.f32 %v2649, %v2923
    %v3085 = vadd.f32 %v2650, %v2925
    %v3086 = vadd.f32 %v2651, %v3026
    %v3087 = vadd.f32 %v2652, %v3028
    %v3088 = vadd.f32 %v2653, %v2929
    %v3089 = vadd.f32 %v2654, %v2931
    %v3090 = vadd.f32 %v2655, %v3032
    %v3091 = vadd.f32 %v2656, %v3034
    %v3092 = vadd.f32 %v2657, %v2933
    %v3093 = vadd.f32 %v2658, %v2935
    %v3094 = vadd.f32 %v2659, %v3036
    %v3095 = vadd.f32 %v2660, %v3038
    %v3096 = vpack.c.bf16 %v982, %v979
    %v3097 = vpack.c.bf16 %v990, %v987
    %v3098 = vpack.c.bf16 %v998, %v995
    %v3099 = vpack.c.bf16 %v1006, %v1003
    %v3100 = vpack.c.bf16 %v1014, %v1011
    %v3101 = vpack.c.bf16 %v1022, %v1019
    %v3102 = vpack.c.bf16 %v1030, %v1027
    %s3103 = scalar_lea.vmem [#allocation2], 960
    %v3104 = vld [vmem:[%s3103] sm:$0xff]
    %v3105 = vld [vmem:[%s3103 + $0x8] sm:$0xff]
    %v3106 = vld [vmem:[%s3103 + $0x10] sm:$0xff]
    %v3107 = vld [vmem:[%s3103 + $0x18] sm:$0xff]
    %v3108 = vld [vmem:[%s3103 + $0x20] sm:$0xff]
    %v3109 = vld [vmem:[%s3103 + $0x28] sm:$0xff]
    %v3110 = vld [vmem:[%s3103 + $0x30] sm:$0xff]
    %v3111 = vld [vmem:[%s3103 + $0x38] sm:$0xff]
    %v3112 = vld [vmem:[%s3103 + $0x40] sm:$0xff]
    %v3113 = vld [vmem:[%s3103 + $0x48] sm:$0xff]
    %v3114 = vld [vmem:[%s3103 + $0x50] sm:$0xff]
    %v3115 = vld [vmem:[%s3103 + $0x58] sm:$0xff]
    %v3116 = vld [vmem:[%s3103 + $0x60] sm:$0xff]
    %v3117 = vld [vmem:[%s3103 + $0x68] sm:$0xff]
    %v3118 = vld [vmem:[%s3103 + $0x70] sm:$0xff]
    %v3119 = vld [vmem:[%s3103 + $0x78] sm:$0xff]
    %v3120 = vld [vmem:[%s3103 + $0x80] sm:$0xff]
    %v3121 = vld [vmem:[%s3103 + $0x88] sm:$0xff]
    %v3122 = vld [vmem:[%s3103 + $0x90] sm:$0xff]
    %v3123 = vld [vmem:[%s3103 + $0x98] sm:$0xff]
    %v3124 = vld [vmem:[%s3103 + $0xa0] sm:$0xff]
    %v3125 = vld [vmem:[%s3103 + $0xa8] sm:$0xff]
    %v3126 = vld [vmem:[%s3103 + $0xb0] sm:$0xff]
    %v3127 = vld [vmem:[%s3103 + $0xb8] sm:$0xff]
    %v3152 = vunpack.c.l.b16 %v3104
    %v3153 = vunpack.c.h.b16 %v3104
    %v3154 = vunpack.c.l.b16 %v3105
    %v3155 = vunpack.c.h.b16 %v3105
    %v3156 = vunpack.c.l.b16 %v3106
    %v3157 = vunpack.c.h.b16 %v3106
    %v3158 = vunpack.c.l.b16 %v3107
    %v3159 = vunpack.c.h.b16 %v3107
    %v3160 = vunpack.c.l.b16 %v3108
    %v3161 = vunpack.c.h.b16 %v3108
    %v3162 = vunpack.c.l.b16 %v3109
    %v3163 = vunpack.c.h.b16 %v3109
    %v3164 = vunpack.c.l.b16 %v3110
    %v3165 = vunpack.c.h.b16 %v3110
    %v3166 = vunpack.c.l.b16 %v3111
    %v3167 = vunpack.c.h.b16 %v3111
    %v3168 = vunpack.c.l.b16 %v3112
    %v3169 = vunpack.c.h.b16 %v3112
    %v3170 = vunpack.c.l.b16 %v3113
    %v3171 = vunpack.c.h.b16 %v3113
    %v3172 = vunpack.c.l.b16 %v3114
    %v3173 = vunpack.c.h.b16 %v3114
    %v3174 = vunpack.c.l.b16 %v3115
    %v3175 = vunpack.c.h.b16 %v3115
    %v3176 = vunpack.c.l.b16 %v3116
    %v3177 = vunpack.c.h.b16 %v3116
    %v3178 = vunpack.c.l.b16 %v3117
    %v3179 = vunpack.c.h.b16 %v3117
    %v3180 = vunpack.c.l.b16 %v3118
    %v3181 = vunpack.c.h.b16 %v3118
    %v3182 = vunpack.c.l.b16 %v3119
    %v3183 = vunpack.c.h.b16 %v3119
    %v3184 = vunpack.c.l.b16 %v3120
    %v3185 = vunpack.c.h.b16 %v3120
    %v3186 = vunpack.c.l.b16 %v3121
    %v3187 = vunpack.c.h.b16 %v3121
    %v3188 = vunpack.c.l.b16 %v3122
    %v3189 = vunpack.c.h.b16 %v3122
    %v3190 = vunpack.c.l.b16 %v3123
    %v3191 = vunpack.c.h.b16 %v3123
    %v3192 = vunpack.c.l.b16 %v3124
    %v3193 = vunpack.c.h.b16 %v3124
    %v3194 = vunpack.c.l.b16 %v3125
    %v3195 = vunpack.c.h.b16 %v3125
    %v3196 = vunpack.c.l.b16 %v3126
    %v3197 = vunpack.c.h.b16 %v3126
    %v3198 = vunpack.c.l.b16 %v3127
    %v3199 = vunpack.c.h.b16 %v3127
    %v3200 = vpack.c.b16 %v3156, %v3152
    %v3201 = vpack.c.b16 %v3157, %v3153
    %v3202 = vpack.c.b16 %v3158, %v3154
    %v3203 = vpack.c.b16 %v3159, %v3155
    %v3204 = vpack.c.b16 %v3164, %v3160
    %v3205 = vpack.c.b16 %v3165, %v3161
    %v3206 = vpack.c.b16 %v3166, %v3162
    %v3207 = vpack.c.b16 %v3167, %v3163
    %v3208 = vpack.c.b16 %v3172, %v3168
    %v3209 = vpack.c.b16 %v3173, %v3169
    %v3210 = vpack.c.b16 %v3174, %v3170
    %v3211 = vpack.c.b16 %v3175, %v3171
    %v3212 = vpack.c.b16 %v3180, %v3176
    %v3213 = vpack.c.b16 %v3181, %v3177
    %v3214 = vpack.c.b16 %v3182, %v3178
    %v3215 = vpack.c.b16 %v3183, %v3179
    %v3216 = vpack.c.b16 %v3188, %v3184
    %v3217 = vpack.c.b16 %v3189, %v3185
    %v3218 = vpack.c.b16 %v3190, %v3186
    %v3219 = vpack.c.b16 %v3191, %v3187
    %v3220 = vpack.c.b16 %v3196, %v3192
    %v3221 = vpack.c.b16 %v3197, %v3193
    %v3222 = vpack.c.b16 %v3198, %v3194
    %v3223 = vpack.c.b16 %v3199, %v3195
    %v3249 = vsel %vm1216, %v3096, 0
    %v3252 = vsel %vm1216, %v3097, 0
    %v3255 = vsel %vm1216, %v3098, 0
    %v3258 = vsel %vm1216, %v3099, 0
    %v3261 = vsel %vm1216, %v3100, 0
    %v3264 = vsel %vm1216, %v3101, 0
    %v3267 = vsel %vm1216, %v3102, 0
    %3269 = vmatprep.subr.bf16.mxu0 %v3201
    %3270 = vmatpush1.bf16.msra.mxu0 %v3200
    %3271 = vmatprep.subr.bf16.mxu0 %v3205
    %3272 = vmatpush1.bf16.msra.mxu0 %v3204
    %3273 = vmatprep.subr.bf16.mxu0 %v3209
    %3274 = vmatpush1.bf16.msra.mxu0 %v3208
    %3275 = vmatprep.subr.bf16.mxu0 %v3213
    %3276 = vmatpush1.bf16.msra.mxu0 %v3212
    %3277 = vmatprep.subr.bf16.mxu0 %v3217
    %3278 = vmatpush1.bf16.msra.mxu0 %v3216
    %3279 = vmatprep.subr.bf16.mxu0 %v3221
    %3280 = vmatpush1.bf16.msra.mxu0 %v3220
    %3281 = vmatprep.subr.bf16.mxu0 0
    %3282 = vmatpush1.bf16.msra.mxu0 0
    %3283 = vmatprep.subr.bf16.mxu0 0
    %3284 = vmatpush1.bf16.msra.mxu0 0
    %3285 = vmatprep.subr.bf16.mxu0 0
    %3286 = vmatpush1.bf16.msra.mxu0 0
    %3287 = vmatprep.subr.bf16.mxu0 0
    %3288 = vmatpush1.bf16.msra.mxu0 0
    %3289 = vmatprep.subr.bf16.mxu0 0
    %3290 = vmatpush1.bf16.msra.mxu0 0
    %3291 = vmatprep.subr.bf16.mxu0 0
    %3292 = vmatpush1.bf16.msra.mxu0 0
    %3293 = vmatprep.subr.bf16.mxu0 0
    %3294 = vmatpush1.bf16.msra.mxu0 0
    %3295 = vmatprep.subr.bf16.mxu0 0
    %3296 = vmatpush1.bf16.msra.mxu0 0
    %3297 = vmatprep.subr.bf16.mxu0 0
    %3298 = vmatpush1.bf16.msra.mxu0 0
    %3299 = vmatprep.subr.bf16.mxu0 0
    %3300 = vmatpush1.bf16.msra.mxu0 0
    %3301 = vmatprep.mubr.bf16.mxu0 0
    %3302 = vmatmul.mubr.bf16.gmra.mrb[0].mxu0 %v3249
    %v3303 = vpop.f32.mrb[0].mxu0
    %v3304 = vadd.f32 0.0, %v3303
    %v3305 = vpop.f32.mrb[0].mxu0
    %v3306 = vadd.f32 0.0, %v3305
    %v3307 = vpop.f32.mrb[0].mxu0
    %v3308 = vadd.f32 0.0, %v3307
    %v3309 = vpop.f32.mrb[0].mxu0
    %v3310 = vadd.f32 0.0, %v3309
    %3311 = vmatprep.mubr.bf16.mxu0 0
    %3312 = vmatmul.mubr.bf16.gmra.mrb[0].mxu0 %v3252
    %v3313 = vpop.f32.mrb[0].mxu0
    %v3314 = vadd.f32 0.0, %v3313
    %v3315 = vpop.f32.mrb[0].mxu0
    %v3316 = vadd.f32 0.0, %v3315
    %v3317 = vpop.f32.mrb[0].mxu0
    %v3318 = vadd.f32 0.0, %v3317
    %v3319 = vpop.f32.mrb[0].mxu0
    %v3320 = vadd.f32 0.0, %v3319
    %3321 = vmatprep.mubr.bf16.mxu0 0
    %3322 = vmatmul.mubr.bf16.gmra.mrb[0].mxu0 %v3255
    %v3323 = vpop.f32.mrb[0].mxu0
    %v3324 = vadd.f32 0.0, %v3323
    %v3325 = vpop.f32.mrb[0].mxu0
    %v3326 = vadd.f32 0.0, %v3325
    %v3327 = vpop.f32.mrb[0].mxu0
    %v3328 = vadd.f32 0.0, %v3327
    %v3329 = vpop.f32.mrb[0].mxu0
    %v3330 = vadd.f32 0.0, %v3329
    %3331 = vmatprep.mubr.bf16.mxu0 0
    %3332 = vmatmul.mubr.bf16.gmra.mrb[0].mxu0 %v3258
    %v3333 = vpop.f32.mrb[0].mxu0
    %v3334 = vadd.f32 0.0, %v3333
    %v3335 = vpop.f32.mrb[0].mxu0
    %v3336 = vadd.f32 0.0, %v3335
    %v3337 = vpop.f32.mrb[0].mxu0
    %v3338 = vadd.f32 0.0, %v3337
    %v3339 = vpop.f32.mrb[0].mxu0
    %v3340 = vadd.f32 0.0, %v3339
    %3341 = vmatprep.mubr.bf16.mxu0 0
    %3342 = vmatmul.mubr.bf16.gmra.mrb[0].mxu0 %v3261
    %v3343 = vpop.f32.mrb[0].mxu0
    %v3344 = vadd.f32 0.0, %v3343
    %v3345 = vpop.f32.mrb[0].mxu0
    %v3346 = vadd.f32 0.0, %v3345
    %v3347 = vpop.f32.mrb[0].mxu0
    %v3348 = vadd.f32 0.0, %v3347
    %v3349 = vpop.f32.mrb[0].mxu0
    %v3350 = vadd.f32 0.0, %v3349
    %3351 = vmatprep.mubr.bf16.mxu0 0
    %3352 = vmatmul.mubr.bf16.gmra.mrb[0].mxu0 %v3264
    %v3353 = vpop.f32.mrb[0].mxu0
    %v3354 = vadd.f32 0.0, %v3353
    %v3355 = vpop.f32.mrb[0].mxu0
    %v3356 = vadd.f32 0.0, %v3355
    %v3357 = vpop.f32.mrb[0].mxu0
    %v3358 = vadd.f32 0.0, %v3357
    %v3359 = vpop.f32.mrb[0].mxu0
    %v3360 = vadd.f32 0.0, %v3359
    %3361 = vmatprep.mubr.bf16.mxu0 0
    %3362 = vmatmul.mubr.bf16.gmra.mrb[0].mxu0 %v3267
    %v3363 = vpop.f32.mrb[0].mxu0
    %v3364 = vadd.f32 0.0, %v3363
    %v3365 = vpop.f32.mrb[0].mxu0
    %v3366 = vadd.f32 0.0, %v3365
    %v3367 = vpop.f32.mrb[0].mxu0
    %v3368 = vadd.f32 0.0, %v3367
    %v3369 = vpop.f32.mrb[0].mxu0
    %v3370 = vadd.f32 0.0, %v3369
    %3371 = vdwg.mxu0
    %3372 = vmatprep.subr.bf16.mxu0 %v3203
    %3373 = vmatpush1.bf16.msra.mxu0 %v3202
    %3374 = vmatprep.subr.bf16.mxu0 %v3207
    %3375 = vmatpush1.bf16.msra.mxu0 %v3206
    %3376 = vmatprep.subr.bf16.mxu0 %v3211
    %3377 = vmatpush1.bf16.msra.mxu0 %v3210
    %3378 = vmatprep.subr.bf16.mxu0 %v3215
    %3379 = vmatpush1.bf16.msra.mxu0 %v3214
    %3380 = vmatprep.subr.bf16.mxu0 %v3219
    %3381 = vmatpush1.bf16.msra.mxu0 %v3218
    %3382 = vmatprep.subr.bf16.mxu0 %v3223
    %3383 = vmatpush1.bf16.msra.mxu0 %v3222
    %3384 = vmatprep.subr.bf16.mxu0 0
    %3385 = vmatpush1.bf16.msra.mxu0 0
    %3386 = vmatprep.subr.bf16.mxu0 0
    %3387 = vmatpush1.bf16.msra.mxu0 0
    %3388 = vmatprep.subr.bf16.mxu0 0
    %3389 = vmatpush1.bf16.msra.mxu0 0
    %3390 = vmatprep.subr.bf16.mxu0 0
    %3391 = vmatpush1.bf16.msra.mxu0 0
    %3392 = vmatprep.subr.bf16.mxu0 0
    %3393 = vmatpush1.bf16.msra.mxu0 0
    %3394 = vmatprep.subr.bf16.mxu0 0
    %3395 = vmatpush1.bf16.msra.mxu0 0
    %3396 = vmatprep.subr.bf16.mxu0 0
    %3397 = vmatpush1.bf16.msra.mxu0 0
    %3398 = vmatprep.subr.bf16.mxu0 0
    %3399 = vmatpush1.bf16.msra.mxu0 0
    %3400 = vmatprep.subr.bf16.mxu0 0
    %3401 = vmatpush1.bf16.msra.mxu0 0
    %3402 = vmatprep.subr.bf16.mxu0 0
    %3403 = vmatpush1.bf16.msra.mxu0 0
    %3404 = vmatprep.mubr.bf16.mxu0 0
    %3405 = vmatmul.mubr.bf16.gmra.mrb[0].mxu0 %v3249
    %v3406 = vpop.f32.mrb[0].mxu0
    %v3407 = vadd.f32 0.0, %v3406
    %v3408 = vpop.f32.mrb[0].mxu0
    %v3409 = vadd.f32 0.0, %v3408
    %v3410 = vpop.f32.mrb[0].mxu0
    %v3411 = vadd.f32 0.0, %v3410
    %v3412 = vpop.f32.mrb[0].mxu0
    %v3413 = vadd.f32 0.0, %v3412
    %3414 = vmatprep.mubr.bf16.mxu0 0
    %3415 = vmatmul.mubr.bf16.gmra.mrb[0].mxu0 %v3252
    %v3416 = vpop.f32.mrb[0].mxu0
    %v3417 = vadd.f32 0.0, %v3416
    %v3418 = vpop.f32.mrb[0].mxu0
    %v3419 = vadd.f32 0.0, %v3418
    %v3420 = vpop.f32.mrb[0].mxu0
    %v3421 = vadd.f32 0.0, %v3420
    %v3422 = vpop.f32.mrb[0].mxu0
    %v3423 = vadd.f32 0.0, %v3422
    %3424 = vmatprep.mubr.bf16.mxu0 0
    %3425 = vmatmul.mubr.bf16.gmra.mrb[0].mxu0 %v3255
    %v3426 = vpop.f32.mrb[0].mxu0
    %v3427 = vadd.f32 0.0, %v3426
    %v3428 = vpop.f32.mrb[0].mxu0
    %v3429 = vadd.f32 0.0, %v3428
    %v3430 = vpop.f32.mrb[0].mxu0
    %v3431 = vadd.f32 0.0, %v3430
    %v3432 = vpop.f32.mrb[0].mxu0
    %v3433 = vadd.f32 0.0, %v3432
    %3434 = vmatprep.mubr.bf16.mxu0 0
    %3435 = vmatmul.mubr.bf16.gmra.mrb[0].mxu0 %v3258
    %v3436 = vpop.f32.mrb[0].mxu0
    %v3437 = vadd.f32 0.0, %v3436
    %v3438 = vpop.f32.mrb[0].mxu0
    %v3439 = vadd.f32 0.0, %v3438
    %v3440 = vpop.f32.mrb[0].mxu0
    %v3441 = vadd.f32 0.0, %v3440
    %v3442 = vpop.f32.mrb[0].mxu0
    %v3443 = vadd.f32 0.0, %v3442
    %3444 = vmatprep.mubr.bf16.mxu0 0
    %3445 = vmatmul.mubr.bf16.gmra.mrb[0].mxu0 %v3261
    %v3446 = vpop.f32.mrb[0].mxu0
    %v3447 = vadd.f32 0.0, %v3446
    %v3448 = vpop.f32.mrb[0].mxu0
    %v3449 = vadd.f32 0.0, %v3448
    %v3450 = vpop.f32.mrb[0].mxu0
    %v3451 = vadd.f32 0.0, %v3450
    %v3452 = vpop.f32.mrb[0].mxu0
    %v3453 = vadd.f32 0.0, %v3452
    %3454 = vmatprep.mubr.bf16.mxu0 0
    %3455 = vmatmul.mubr.bf16.gmra.mrb[0].mxu0 %v3264
    %v3456 = vpop.f32.mrb[0].mxu0
    %v3457 = vadd.f32 0.0, %v3456
    %v3458 = vpop.f32.mrb[0].mxu0
    %v3459 = vadd.f32 0.0, %v3458
    %v3460 = vpop.f32.mrb[0].mxu0
    %v3461 = vadd.f32 0.0, %v3460
    %v3462 = vpop.f32.mrb[0].mxu0
    %v3463 = vadd.f32 0.0, %v3462
    %3464 = vmatprep.mubr.bf16.mxu0 0
    %3465 = vmatmul.mubr.bf16.gmra.mrb[0].mxu0 %v3267
    %v3466 = vpop.f32.mrb[0].mxu0
    %v3467 = vadd.f32 0.0, %v3466
    %v3468 = vpop.f32.mrb[0].mxu0
    %v3469 = vadd.f32 0.0, %v3468
    %v3470 = vpop.f32.mrb[0].mxu0
    %v3471 = vadd.f32 0.0, %v3470
    %v3472 = vpop.f32.mrb[0].mxu0
    %v3473 = vadd.f32 0.0, %v3472
    %3474 = vdwg.mxu0
    %v3475 = vadd.f32 %v3040, %v3304
    %v3476 = vadd.f32 %v3041, %v3306
    %v3477 = vadd.f32 %v3042, %v3407
    %v3478 = vadd.f32 %v3043, %v3409
    %v3479 = vadd.f32 %v3044, %v3308
    %v3480 = vadd.f32 %v3045, %v3310
    %v3481 = vadd.f32 %v3046, %v3411
    %v3482 = vadd.f32 %v3047, %v3413
    %v3483 = vadd.f32 %v3048, %v3314
    %v3484 = vadd.f32 %v3049, %v3316
    %v3485 = vadd.f32 %v3050, %v3417
    %v3486 = vadd.f32 %v3051, %v3419
    %v3487 = vadd.f32 %v3052, %v3318
    %v3488 = vadd.f32 %v3053, %v3320
    %v3489 = vadd.f32 %v3054, %v3421
    %v3490 = vadd.f32 %v3055, %v3423
    %v3491 = vadd.f32 %v3056, %v3324
    %v3492 = vadd.f32 %v3057, %v3326
    %v3493 = vadd.f32 %v3058, %v3427
    %v3494 = vadd.f32 %v3059, %v3429
    %v3495 = vadd.f32 %v3060, %v3328
    %v3496 = vadd.f32 %v3061, %v3330
    %v3497 = vadd.f32 %v3062, %v3431
    %v3498 = vadd.f32 %v3063, %v3433
    %v3499 = vadd.f32 %v3064, %v3334
    %v3500 = vadd.f32 %v3065, %v3336
    %v3501 = vadd.f32 %v3066, %v3437
    %v3502 = vadd.f32 %v3067, %v3439
    %v3503 = vadd.f32 %v3068, %v3338
    %v3504 = vadd.f32 %v3069, %v3340
    %v3505 = vadd.f32 %v3070, %v3441
    %v3506 = vadd.f32 %v3071, %v3443
    %v3507 = vadd.f32 %v3072, %v3344
    %v3508 = vadd.f32 %v3073, %v3346
    %v3509 = vadd.f32 %v3074, %v3447
    %v3510 = vadd.f32 %v3075, %v3449
    %v3511 = vadd.f32 %v3076, %v3348
    %v3512 = vadd.f32 %v3077, %v3350
    %v3513 = vadd.f32 %v3078, %v3451
    %v3514 = vadd.f32 %v3079, %v3453
    %v3515 = vadd.f32 %v3080, %v3354
    %v3516 = vadd.f32 %v3081, %v3356
    %v3517 = vadd.f32 %v3082, %v3457
    %v3518 = vadd.f32 %v3083, %v3459
    %v3519 = vadd.f32 %v3084, %v3358
    %v3520 = vadd.f32 %v3085, %v3360
    %v3521 = vadd.f32 %v3086, %v3461
    %v3522 = vadd.f32 %v3087, %v3463
    %v3523 = vadd.f32 %v3088, %v3364
    %v3524 = vadd.f32 %v3089, %v3366
    %v3525 = vadd.f32 %v3090, %v3467
    %v3526 = vadd.f32 %v3091, %v3469
    %v3527 = vadd.f32 %v3092, %v3368
    %v3528 = vadd.f32 %v3093, %v3370
    %v3529 = vadd.f32 %v3094, %v3471
    %v3530 = vadd.f32 %v3095, %v3473
    %v3531 = vmax.f32 %v3475, %v3476
    %v3532 = vmax.f32 %v3479, %v3480
    %v3533 = vmax.f32 %v3483, %v3484
    %v3534 = vmax.f32 %v3487, %v3488
    %v3535 = vmax.f32 %v3491, %v3492
    %v3536 = vmax.f32 %v3495, %v3496
    %v3537 = vmax.f32 %v3499, %v3500
    %v3538 = vmax.f32 %v3503, %v3504
    %v3539 = vmax.f32 %v3507, %v3508
    %v3540 = vmax.f32 %v3511, %v3512
    %v3541 = vmax.f32 %v3515, %v3516
    %v3542 = vmax.f32 %v3519, %v3520
    %v3543 = vmax.f32 %v3523, %v3524
    %v3544 = vmax.f32 %v3527, %v3528
    %v3545 = vmax.f32 %v3477, %v3478
    %v3546 = vmax.f32 %v3481, %v3482
    %v3547 = vmax.f32 %v3485, %v3486
    %v3548 = vmax.f32 %v3489, %v3490
    %v3549 = vmax.f32 %v3493, %v3494
    %v3550 = vmax.f32 %v3497, %v3498
    %v3551 = vmax.f32 %v3501, %v3502
    %v3552 = vmax.f32 %v3505, %v3506
    %v3553 = vmax.f32 %v3509, %v3510
    %v3554 = vmax.f32 %v3513, %v3514
    %v3555 = vmax.f32 %v3517, %v3518
    %v3556 = vmax.f32 %v3521, %v3522
    %v3557 = vmax.f32 %v3525, %v3526
    %v3558 = vmax.f32 %v3529, %v3530
    %v3559 = vmax.f32 %v3531, %v3545
    %v3560 = vmax.f32 %v3532, %v3546
    %v3561 = vmax.f32 %v3533, %v3547
    %v3562 = vmax.f32 %v3534, %v3548
    %v3563 = vmax.f32 %v3535, %v3549
    %v3564 = vmax.f32 %v3536, %v3550
    %v3565 = vmax.f32 %v3537, %v3551
    %v3566 = vmax.f32 %v3538, %v3552
    %v3567 = vmax.f32 %v3539, %v3553
    %v3568 = vmax.f32 %v3540, %v3554
    %v3569 = vmax.f32 %v3541, %v3555
    %v3570 = vmax.f32 %v3542, %v3556
    %v3571 = vmax.f32 %v3543, %v3557
    %v3572 = vmax.f32 %v3544, %v3558
    %v3573 = vld [vmem:[%s3] sm:$0x1]
    %v3575 = vlaneseq
    %v3576 = vshrl.u32 %v3575, 7
    %v3577 = vsub.s32 0, %v3576
    %v3578 = vrot.slane %v3573, %v3577
    %v3580 = vadd.f32 %v3559, %v3578
    %v3581 = vadd.f32 %v3560, %v3578
    %v3582 = vadd.f32 %v3561, %v3578
    %v3583 = vadd.f32 %v3562, %v3578
    %v3584 = vadd.f32 %v3563, %v3578
    %v3585 = vadd.f32 %v3564, %v3578
    %v3586 = vadd.f32 %v3565, %v3578
    %v3587 = vadd.f32 %v3566, %v3578
    %v3588 = vadd.f32 %v3567, %v3578
    %v3589 = vadd.f32 %v3568, %v3578
    %v3590 = vadd.f32 %v3569, %v3578
    %v3591 = vadd.f32 %v3570, %v3578
    %v3592 = vadd.f32 %v3571, %v3578
    %v3593 = vadd.f32 %v3572, %v3578
    %v3594 = vmax.f32 %v3580, 0.0
    %v3595 = vmax.f32 %v3581, 0.0
    %v3596 = vmax.f32 %v3582, 0.0
    %v3597 = vmax.f32 %v3583, 0.0
    %v3598 = vmax.f32 %v3584, 0.0
    %v3599 = vmax.f32 %v3585, 0.0
    %v3600 = vmax.f32 %v3586, 0.0
    %v3601 = vmax.f32 %v3587, 0.0
    %v3602 = vmax.f32 %v3588, 0.0
    %v3603 = vmax.f32 %v3589, 0.0
    %v3604 = vmax.f32 %v3590, 0.0
    %v3605 = vmax.f32 %v3591, 0.0
    %v3606 = vmax.f32 %v3592, 0.0
    %v3607 = vmax.f32 %v3593, 0.0
    %v3608 = vpack.c.bf16 %v3595, %v3594
    %v3609 = vpack.c.bf16 %v3597, %v3596
    %v3610 = vpack.c.bf16 %v3599, %v3598
    %v3611 = vpack.c.bf16 %v3601, %v3600
    %v3612 = vpack.c.bf16 %v3603, %v3602
    %v3613 = vpack.c.bf16 %v3605, %v3604
    %v3614 = vpack.c.bf16 %v3607, %v3606
    %v3622 = vunpack.c.l.b16 %v3608
    %v3623 = vunpack.c.h.b16 %v3608
    %v3624 = vunpack.c.l.b16 %v3609
    %v3625 = vunpack.c.h.b16 %v3609
    %v3626 = vunpack.c.l.b16 %v3610
    %v3627 = vunpack.c.h.b16 %v3610
    %v3628 = vunpack.c.l.b16 %v3611
    %v3629 = vunpack.c.h.b16 %v3611
    %v3630 = vunpack.c.l.b16 %v3612
    %v3631 = vunpack.c.h.b16 %v3612
    %v3632 = vunpack.c.l.b16 %v3613
    %v3633 = vunpack.c.h.b16 %v3613
    %v3634 = vunpack.c.l.b16 %v3614
    %v3635 = vunpack.c.h.b16 %v3614
    %v3636 = vpack.c.b16 %v3622, %v3622
    %v3637 = vpack.c.b16 %v3623, %v3623
    %v3638 = vpack.c.b16 %v3624, %v3624
    %v3639 = vpack.c.b16 %v3625, %v3625
    %v3640 = vpack.c.b16 %v3626, %v3626
    %v3641 = vpack.c.b16 %v3627, %v3627
    %v3642 = vpack.c.b16 %v3628, %v3628
    %v3643 = vpack.c.b16 %v3629, %v3629
    %v3644 = vpack.c.b16 %v3630, %v3630
    %v3645 = vpack.c.b16 %v3631, %v3631
    %v3646 = vpack.c.b16 %v3632, %v3632
    %v3647 = vpack.c.b16 %v3633, %v3633
    %v3648 = vpack.c.b16 %v3634, %v3634
    %v3649 = vpack.c.b16 %v3635, %v3635
    %3664 = vst [vmem:[%s4] sm:$0xf] %v3636
    %3665 = vst [vmem:[%s4 + $0x4] sm:$0xf] %v3637
    %3666 = vst [vmem:[%s4 + $0x8] sm:$0xf] %v3638
    %3667 = vst [vmem:[%s4 + $0xc] sm:$0xf] %v3639
    %3668 = vst [vmem:[%s4 + $0x10] sm:$0xf] %v3640
    %3669 = vst [vmem:[%s4 + $0x14] sm:$0xf] %v3641
    %3670 = vst [vmem:[%s4 + $0x18] sm:$0xf] %v3642
    %3671 = vst [vmem:[%s4 + $0x1c] sm:$0xf] %v3643
    %3672 = vst [vmem:[%s4 + $0x20] sm:$0xf] %v3644
    %3673 = vst [vmem:[%s4 + $0x24] sm:$0xf] %v3645
    %3674 = vst [vmem:[%s4 + $0x28] sm:$0xf] %v3646
    %3675 = vst [vmem:[%s4 + $0x2c] sm:$0xf] %v3647
    %3676 = vst [vmem:[%s4 + $0x30] sm:$0xf] %v3648
    %3677 = vst [vmem:[%s4 + $0x34] sm:$0xf] %v3649
    // Predicated region
    $region22: #{cifar_cnn_forward.4} parent=1 // pred_check
      _
    $region23: #{cifar_cnn_forward.4} parent=1 // pred_check_branch
      %3679 = sbr.rel (0) target = $region25
    $region24: #{cifar_cnn_forward.4} parent=1 // pred_region
      _
    $region25: #{cifar_cnn_forward.4} parent=1 // pred_fallthru
      _
    // Predicated region
    $region26: #{cifar_cnn_forward.4} parent=1 // pred_check
      _
    $region27: #{cifar_cnn_forward.4} parent=1 // pred_check_branch
      %3681 = sbr.rel (0) target = $region29
    $region28: #{cifar_cnn_forward.4} parent=1 // pred_region
      _
    $region29: #{cifar_cnn_forward.4} parent=1 // pred_fallthru
      _
    %3682 = vsyncpa [#allocation3], 1

</llo_original>
